<compile_context>
chip_gen: v7x
topology: tpu7x:2x2x1
jax: 0.10.0
libtpu: 0.0.40
codegen_flags: <defaults>
</compile_context>

<pallas_src>
import functools

import jax
import jax.numpy as jnp
from jax.experimental import pallas as pl
from jax.experimental.pallas import tpu as pltpu

EPS = 1e-5
KH = KW = 5
PAD = 2


def bn_relu_dwconv_bn_kernel(x_ref, g1_ref, b1_ref, w_ref, g2_ref, b2_ref,
                             o_ref, pad_ref, col_ref):
    H, W, C = o_ref.shape
    inv_n = 1.0 / (H * W)

    # ---- BatchNorm #1 (training-mode batch stats, biased variance), single stats pass ----
    x = x_ref[...]
    s1 = jnp.sum(x, axis=(0, 1), keepdims=True)
    ss1 = jnp.sum(x * x, axis=(0, 1), keepdims=True)
    m1 = s1 * inv_n
    v1 = ss1 * inv_n - m1 * m1
    scale1 = g1_ref[...] * jax.lax.rsqrt(v1 + EPS)            # (1,1,C)
    shift1 = b1_ref[...] - m1 * scale1
    act = jnp.maximum(x * scale1 + shift1, 0.0)               # BN affine + ReLU

    # ---- zero-padded activation: zero only the halo, write act into the interior ----
    Wp = W + 2 * PAD
    pad_ref[:PAD, :, :] = jnp.zeros((PAD, Wp, C), jnp.float32)
    pad_ref[PAD + H:, :, :] = jnp.zeros((PAD, Wp, C), jnp.float32)
    pad_ref[PAD:PAD + H, :PAD, :] = jnp.zeros((H, PAD, C), jnp.float32)
    pad_ref[PAD:PAD + H, PAD + W:, :] = jnp.zeros((H, PAD, C), jnp.float32)
    pad_ref[PAD:PAD + H, PAD:PAD + W, :] = act

    # ---- depthwise 5x5 conv, stride 1, groups == C, no bias ----
    # kw-outer: one sublane-shifted copy into an aligned staging buffer per kw;
    # kh-inner: pure major-dim row offsets (aligned loads).
    acc = jnp.zeros((H, W, C), jnp.float32)
    for kw in range(KW):
        col_ref[...] = pad_ref[:, kw:kw + W, :]               # (H+2P, W, C) staged, aligned
        for kh in range(KH):
            wt = w_ref[pl.ds(kh * KW + kw, 1), :]             # (1, C) lane-aligned weight row
            acc = acc + col_ref[kh:kh + H, :, :] * wt

    # ---- BatchNorm #2 (training-mode batch stats), fused single pass over acc ----
    s2 = jnp.sum(acc, axis=(0, 1), keepdims=True)
    ss2 = jnp.sum(acc * acc, axis=(0, 1), keepdims=True)
    m2 = s2 * inv_n
    v2 = ss2 * inv_n - m2 * m2
    scale2 = g2_ref[...] * jax.lax.rsqrt(v2 + EPS)
    shift2 = b2_ref[...] - m2 * scale2
    o_ref[...] = (acc * scale2 + shift2).astype(o_ref.dtype)


def _num_channel_blocks():
    """Shard channels across TensorCores only on 2-TC chips (v7x); else keep grid=1."""
    try:
        kind = jax.devices()[0].device_kind.lower()
    except Exception:
        return 1
    return 2 if "v7" in kind else 1


@functools.partial(jax.jit, static_argnums=(6,))
def _forward_impl(x_nchw, g1, b1, w_oihw, g2, b2, nc):
    N, C, H, W = x_nchw.shape
    # Layout glue (interface only): NCHW -> HWC, depthwise weight (C,1,5,5) -> (25, C).
    x_hwc = jnp.transpose(x_nchw[0], (1, 2, 0))
    w_tc = jnp.transpose(w_oihw[:, 0, :, :].reshape(C, KH * KW), (1, 0))
    g1r, b1r, g2r, b2r = (p.reshape(1, C) for p in (g1, b1, g2, b2))

    # Channel-block size: full C for a single block; 128-multiple blocks when sharding.
    cb = C if nc == 1 else ((C + nc * 128 - 1) // (nc * 128)) * 128
    cp = cb * nc
    if cp != C:
        pc = cp - C  # zero-padded channels are exactly zero through BN/ReLU/conv/BN
        x_hwc = jnp.pad(x_hwc, ((0, 0), (0, 0), (0, pc)))
        w_tc = jnp.pad(w_tc, ((0, 0), (0, pc)))
        g1r, b1r, g2r, b2r = (jnp.pad(p, ((0, 0), (0, pc))) for p in (g1r, b1r, g2r, b2r))

    out_hwc = pl.pallas_call(
        bn_relu_dwconv_bn_kernel,
        out_shape=jax.ShapeDtypeStruct((H, W, cp), jnp.float32),
        grid=(nc,),
        in_specs=[
            pl.BlockSpec((H, W, cb), lambda c: (0, 0, c)),
            pl.BlockSpec((1, cb), lambda c: (0, c)),
            pl.BlockSpec((1, cb), lambda c: (0, c)),
            pl.BlockSpec((KH * KW, cb), lambda c: (0, c)),
            pl.BlockSpec((1, cb), lambda c: (0, c)),
            pl.BlockSpec((1, cb), lambda c: (0, c)),
        ],
        out_specs=pl.BlockSpec((H, W, cb), lambda c: (0, 0, c)),
        scratch_shapes=[
            pltpu.VMEM((H + 2 * PAD, W + 2 * PAD, cb), jnp.float32),  # padded activation
            pltpu.VMEM((H + 2 * PAD, W, cb), jnp.float32),            # kw-staged column slab
        ],
        compiler_params=pltpu.CompilerParams(dimension_semantics=("parallel",)),
    )(x_hwc, g1r, b1r, w_tc, g2r, b2r)

    out_hwc = out_hwc[:, :, :C]
    return jnp.transpose(out_hwc, (2, 0, 1))[None]             # back to NCHW


def module_forward(x_nchw, g1, b1, w_oihw, g2, b2):
    """x_nchw: (1, C, H, W); w_oihw: (C, 1, 5, 5). Returns (1, C, H, W)."""
    assert x_nchw.shape[0] == 1, "kernel assumes batch size 1 (as in the reference module)"
    return _forward_impl(x_nchw, g1, b1, w_oihw, g2, b2, _num_channel_blocks())


def reference(x, g1, b1, w, g2, b2):
    """Pure-JAX reference (same semantics, NCHW)."""
    m1 = jnp.mean(x, axis=(0, 2, 3), keepdims=True)
    v1 = jnp.mean((x - m1) ** 2, axis=(0, 2, 3), keepdims=True)
    a = (x - m1) / jnp.sqrt(v1 + EPS) * g1.reshape(1, -1, 1, 1) + b1.reshape(1, -1, 1, 1)
    a = jnp.maximum(a, 0.0)
    y = jax.lax.conv_general_dilated(
        a, w, window_strides=(1, 1), padding=((PAD, PAD), (PAD, PAD)),
        feature_group_count=x.shape[1],
        dimension_numbers=("NCHW", "OIHW", "NCHW"))
    m2 = jnp.mean(y, axis=(0, 2, 3), keepdims=True)
    v2 = jnp.mean((y - m2) ** 2, axis=(0, 2, 3), keepdims=True)
    return (y - m2) / jnp.sqrt(v2 + EPS) * g2.reshape(1, -1, 1, 1) + b2.reshape(1, -1, 1, 1)


if __name__ == "__main__":
    C, H, W = 864, 7, 7                       # shapes implied by the module
    key = jax.random.PRNGKey(0)
    k1, k2, k3, k4, k5, k6 = jax.random.split(key, 6)

    x = jax.random.normal(k1, (1, C, H, W), jnp.float32)
    # deterministic synthetic parameters (module __init__ only fixes shapes)
    g1 = 1.0 + 0.1 * jax.random.normal(k2, (C,), jnp.float32)        # bn39 weight
    b1 = 0.1 * jax.random.normal(k3, (C,), jnp.float32)              # bn39 bias
    w = 0.2 * jax.random.normal(k4, (C, 1, 5, 5), jnp.float32)       # depthwise conv weight
    g2 = 1.0 + 0.1 * jax.random.normal(k5, (C,), jnp.float32)        # bn40 weight
    b2 = 0.1 * jax.random.normal(k6, (C,), jnp.float32)              # bn40 bias

    out = module_forward(x, g1, b1, w, g2, b2)
    out = jax.block_until_ready(out)

    ref = reference(x, g1, b1, w, g2, b2)
    assert out.shape == (1, C, H, W)
    if not bool(jnp.allclose(out, ref, atol=2e-3, rtol=2e-3)):
        raise AssertionError("Pallas kernel output does not match JAX reference")
    print("KERNEL_OK")
</pallas_src>

<mosaic_0001>
module attributes {stable_mosaic.version = 11 : i64} {
  func.func @bn_relu_dwconv_bn_kernel(%arg0: i32, %arg1: memref<7x7x864xf32, #tpu.memory_space<vmem>>, %arg2: memref<1x864xf32, #tpu.memory_space<vmem>>, %arg3: memref<1x864xf32, #tpu.memory_space<vmem>>, %arg4: memref<25x864xf32, #tpu.memory_space<vmem>>, %arg5: memref<1x864xf32, #tpu.memory_space<vmem>>, %arg6: memref<1x864xf32, #tpu.memory_space<vmem>>, %arg7: memref<7x7x864xf32, #tpu.memory_space<vmem>>, %arg8: memref<11x11x864xf32, #tpu.memory_space<vmem>>, %arg9: memref<11x7x864xf32, #tpu.memory_space<vmem>>) attributes {dimension_semantics = [#tpu.dimension_semantics<parallel>], iteration_bounds = array<i64: 1>, scalar_prefetch = 0 : i64, scratch_operands = 2 : i64, tpu.core_type = #tpu.core_type<tc>, window_params = [{transform_indices = @transform_0, window_bounds = array<i64: 7, 7, 864>}, {transform_indices = @transform_1, window_bounds = array<i64: 1, 864>}, {transform_indices = @transform_2, window_bounds = array<i64: 1, 864>}, {transform_indices = @transform_3, window_bounds = array<i64: 25, 864>}, {transform_indices = @transform_4, window_bounds = array<i64: 1, 864>}, {transform_indices = @transform_5, window_bounds = array<i64: 1, 864>}, {transform_indices = @transform_6, window_bounds = array<i64: 7, 7, 864>}]} {
    %c0 = arith.constant 0 : index
    %c0_0 = arith.constant 0 : index
    %c0_1 = arith.constant 0 : index
    %0 = vector.load %arg1[%c0, %c0_0, %c0_1] : memref<7x7x864xf32, #tpu.memory_space<vmem>>, vector<7x7x864xf32>
    %cst = arith.constant dense<0.000000e+00> : vector<864xf32>
    %1 = vector.multi_reduction <add>, %0, %cst [0, 1] : vector<7x7x864xf32> to vector<864xf32>
    %2 = vector.shape_cast %1 : vector<864xf32> to vector<1x1x864xf32>
    %3 = arith.mulf %0, %0 : vector<7x7x864xf32>
    %cst_2 = arith.constant dense<0.000000e+00> : vector<864xf32>
    %4 = vector.multi_reduction <add>, %3, %cst_2 [0, 1] : vector<7x7x864xf32> to vector<864xf32>
    %5 = vector.shape_cast %4 : vector<864xf32> to vector<1x1x864xf32>
    %cst_3 = arith.constant 0.0204081628 : f32
    %6 = vector.broadcast %cst_3 : f32 to vector<1x1x864xf32>
    %7 = arith.mulf %2, %6 : vector<1x1x864xf32>
    %cst_4 = arith.constant 0.0204081628 : f32
    %8 = vector.broadcast %cst_4 : f32 to vector<1x1x864xf32>
    %9 = arith.mulf %5, %8 : vector<1x1x864xf32>
    %10 = arith.mulf %7, %7 : vector<1x1x864xf32>
    %11 = arith.subf %9, %10 : vector<1x1x864xf32>
    %c0_5 = arith.constant 0 : index
    %c0_6 = arith.constant 0 : index
    %12 = vector.load %arg2[%c0_5, %c0_6] : memref<1x864xf32, #tpu.memory_space<vmem>>, vector<1x864xf32>
    %cst_7 = arith.constant 9.99999974E-6 : f32
    %13 = vector.broadcast %cst_7 : f32 to vector<1x1x864xf32>
    %14 = arith.addf %11, %13 : vector<1x1x864xf32>
    %15 = math.rsqrt %14 : vector<1x1x864xf32>
    %16 = vector.shape_cast %12 : vector<1x864xf32> to vector<1x1x864xf32>
    %17 = arith.mulf %16, %15 : vector<1x1x864xf32>
    %c0_8 = arith.constant 0 : index
    %c0_9 = arith.constant 0 : index
    %18 = vector.load %arg3[%c0_8, %c0_9] : memref<1x864xf32, #tpu.memory_space<vmem>>, vector<1x864xf32>
    %19 = arith.mulf %7, %17 : vector<1x1x864xf32>
    %20 = vector.shape_cast %18 : vector<1x864xf32> to vector<1x1x864xf32>
    %21 = arith.subf %20, %19 : vector<1x1x864xf32>
    %22 = vector.broadcast %17 : vector<1x1x864xf32> to vector<7x7x864xf32>
    %23 = arith.mulf %0, %22 : vector<7x7x864xf32>
    %24 = vector.broadcast %21 : vector<1x1x864xf32> to vector<7x7x864xf32>
    %25 = arith.addf %23, %24 : vector<7x7x864xf32>
    %cst_10 = arith.constant 0.000000e+00 : f32
    %26 = vector.broadcast %cst_10 : f32 to vector<7x7x864xf32>
    %27 = arith.maximumf %25, %26 : vector<7x7x864xf32>
    %cst_11 = arith.constant 0.000000e+00 : f32
    %28 = vector.broadcast %cst_11 : f32 to vector<2x11x864xf32>
    %c0_12 = arith.constant 0 : index
    %c0_13 = arith.constant 0 : index
    %c0_14 = arith.constant 0 : index
    %29 = vector.load %arg8[%c0_12, %c0_13, %c0_14] : memref<11x11x864xf32, #tpu.memory_space<vmem>>, vector<2x11x864xf32>
    tpu.vector_store %arg8[%c0_12, %c0_13, %c0_14], %28 {strides = array<i32>} : memref<11x11x864xf32, #tpu.memory_space<vmem>>, vector<2x11x864xf32>,
    %cst_15 = arith.constant 0.000000e+00 : f32
    %30 = vector.broadcast %cst_15 : f32 to vector<2x11x864xf32>
    %c9 = arith.constant 9 : index
    %c0_16 = arith.constant 0 : index
    %c0_17 = arith.constant 0 : index
    %31 = vector.load %arg8[%c9, %c0_16, %c0_17] : memref<11x11x864xf32, #tpu.memory_space<vmem>>, vector<2x11x864xf32>
    tpu.vector_store %arg8[%c9, %c0_16, %c0_17], %30 {strides = array<i32>} : memref<11x11x864xf32, #tpu.memory_space<vmem>>, vector<2x11x864xf32>,
    %cst_18 = arith.constant 0.000000e+00 : f32
    %32 = vector.broadcast %cst_18 : f32 to vector<7x2x864xf32>
    %c2 = arith.constant 2 : index
    %c0_19 = arith.constant 0 : index
    %c0_20 = arith.constant 0 : index
    %33 = vector.load %arg8[%c2, %c0_19, %c0_20] : memref<11x11x864xf32, #tpu.memory_space<vmem>>, vector<7x2x864xf32>
    tpu.vector_store %arg8[%c2, %c0_19, %c0_20], %32 {strides = array<i32>} : memref<11x11x864xf32, #tpu.memory_space<vmem>>, vector<7x2x864xf32>,
    %cst_21 = arith.constant 0.000000e+00 : f32
    %34 = vector.broadcast %cst_21 : f32 to vector<7x2x864xf32>
    %c2_22 = arith.constant 2 : index
    %c9_23 = arith.constant 9 : index
    %c0_24 = arith.constant 0 : index
    %35 = vector.load %arg8[%c2_22, %c9_23, %c0_24] : memref<11x11x864xf32, #tpu.memory_space<vmem>>, vector<7x2x864xf32>
    tpu.vector_store %arg8[%c2_22, %c9_23, %c0_24], %34 {strides = array<i32>} : memref<11x11x864xf32, #tpu.memory_space<vmem>>, vector<7x2x864xf32>,
    %c2_25 = arith.constant 2 : index
    %c2_26 = arith.constant 2 : index
    %c0_27 = arith.constant 0 : index
    %36 = vector.load %arg8[%c2_25, %c2_26, %c0_27] : memref<11x11x864xf32, #tpu.memory_space<vmem>>, vector<7x7x864xf32>
    tpu.vector_store %arg8[%c2_25, %c2_26, %c0_27], %27 {strides = array<i32>} : memref<11x11x864xf32, #tpu.memory_space<vmem>>, vector<7x7x864xf32>,
    %cst_28 = arith.constant 0.000000e+00 : f32
    %37 = vector.broadcast %cst_28 : f32 to vector<7x7x864xf32>
    %c0_29 = arith.constant 0 : index
    %c0_30 = arith.constant 0 : index
    %c0_31 = arith.constant 0 : index
    %38 = vector.load %arg8[%c0_29, %c0_30, %c0_31] : memref<11x11x864xf32, #tpu.memory_space<vmem>>, vector<11x7x864xf32>
    %c0_32 = arith.constant 0 : index
    %c0_33 = arith.constant 0 : index
    %c0_34 = arith.constant 0 : index
    %39 = vector.load %arg9[%c0_32, %c0_33, %c0_34] : memref<11x7x864xf32, #tpu.memory_space<vmem>>, vector<11x7x864xf32>
    tpu.vector_store %arg9[%c0_32, %c0_33, %c0_34], %38 {strides = array<i32>} : memref<11x7x864xf32, #tpu.memory_space<vmem>>, vector<11x7x864xf32>,
    %c0_35 = arith.constant 0 : index
    %c0_36 = arith.constant 0 : index
    %40 = vector.load %arg4[%c0_35, %c0_36] : memref<25x864xf32, #tpu.memory_space<vmem>>, vector<1x864xf32>
    %c0_37 = arith.constant 0 : index
    %c0_38 = arith.constant 0 : index
    %c0_39 = arith.constant 0 : index
    %41 = vector.load %arg9[%c0_37, %c0_38, %c0_39] : memref<11x7x864xf32, #tpu.memory_space<vmem>>, vector<7x7x864xf32>
    %42 = vector.shape_cast %40 : vector<1x864xf32> to vector<1x1x864xf32>
    %43 = vector.broadcast %42 : vector<1x1x864xf32> to vector<7x7x864xf32>
    %44 = arith.mulf %41, %43 : vector<7x7x864xf32>
    %45 = arith.addf %37, %44 : vector<7x7x864xf32>
    %c5 = arith.constant 5 : index
    %c0_40 = arith.constant 0 : index
    %46 = vector.load %arg4[%c5, %c0_40] : memref<25x864xf32, #tpu.memory_space<vmem>>, vector<1x864xf32>
    %c1 = arith.constant 1 : index
    %c0_41 = arith.constant 0 : index
    %c0_42 = arith.constant 0 : index
    %47 = vector.load %arg9[%c1, %c0_41, %c0_42] : memref<11x7x864xf32, #tpu.memory_space<vmem>>, vector<7x7x864xf32>
    %48 = vector.shape_cast %46 : vector<1x864xf32> to vector<1x1x864xf32>
    %49 = vector.broadcast %48 : vector<1x1x864xf32> to vector<7x7x864xf32>
    %50 = arith.mulf %47, %49 : vector<7x7x864xf32>
    %51 = arith.addf %45, %50 : vector<7x7x864xf32>
    %c10 = arith.constant 10 : index
    %c0_43 = arith.constant 0 : index
    %52 = vector.load %arg4[%c10, %c0_43] : memref<25x864xf32, #tpu.memory_space<vmem>>, vector<1x864xf32>
    %c2_44 = arith.constant 2 : index
    %c0_45 = arith.constant 0 : index
    %c0_46 = arith.constant 0 : index
    %53 = vector.load %arg9[%c2_44, %c0_45, %c0_46] : memref<11x7x864xf32, #tpu.memory_space<vmem>>, vector<7x7x864xf32>
    %54 = vector.shape_cast %52 : vector<1x864xf32> to vector<1x1x864xf32>
    %55 = vector.broadcast %54 : vector<1x1x864xf32> to vector<7x7x864xf32>
    %56 = arith.mulf %53, %55 : vector<7x7x864xf32>
    %57 = arith.addf %51, %56 : vector<7x7x864xf32>
    %c15 = arith.constant 15 : index
    %c0_47 = arith.constant 0 : index
    %58 = vector.load %arg4[%c15, %c0_47] : memref<25x864xf32, #tpu.memory_space<vmem>>, vector<1x864xf32>
    %c3 = arith.constant 3 : index
    %c0_48 = arith.constant 0 : index
    %c0_49 = arith.constant 0 : index
    %59 = vector.load %arg9[%c3, %c0_48, %c0_49] : memref<11x7x864xf32, #tpu.memory_space<vmem>>, vector<7x7x864xf32>
    %60 = vector.shape_cast %58 : vector<1x864xf32> to vector<1x1x864xf32>
    %61 = vector.broadcast %60 : vector<1x1x864xf32> to vector<7x7x864xf32>
    %62 = arith.mulf %59, %61 : vector<7x7x864xf32>
    %63 = arith.addf %57, %62 : vector<7x7x864xf32>
    %c20 = arith.constant 20 : index
    %c0_50 = arith.constant 0 : index
    %64 = vector.load %arg4[%c20, %c0_50] : memref<25x864xf32, #tpu.memory_space<vmem>>, vector<1x864xf32>
    %c4 = arith.constant 4 : index
    %c0_51 = arith.constant 0 : index
    %c0_52 = arith.constant 0 : index
    %65 = vector.load %arg9[%c4, %c0_51, %c0_52] : memref<11x7x864xf32, #tpu.memory_space<vmem>>, vector<7x7x864xf32>
    %66 = vector.shape_cast %64 : vector<1x864xf32> to vector<1x1x864xf32>
    %67 = vector.broadcast %66 : vector<1x1x864xf32> to vector<7x7x864xf32>
    %68 = arith.mulf %65, %67 : vector<7x7x864xf32>
    %69 = arith.addf %63, %68 : vector<7x7x864xf32>
    %c0_53 = arith.constant 0 : index
    %c1_54 = arith.constant 1 : index
    %c0_55 = arith.constant 0 : index
    %70 = vector.load %arg8[%c0_53, %c1_54, %c0_55] : memref<11x11x864xf32, #tpu.memory_space<vmem>>, vector<11x7x864xf32>
    %c0_56 = arith.constant 0 : index
    %c0_57 = arith.constant 0 : index
    %c0_58 = arith.constant 0 : index
    %71 = vector.load %arg9[%c0_56, %c0_57, %c0_58] : memref<11x7x864xf32, #tpu.memory_space<vmem>>, vector<11x7x864xf32>
    tpu.vector_store %arg9[%c0_56, %c0_57, %c0_58], %70 {strides = array<i32>} : memref<11x7x864xf32, #tpu.memory_space<vmem>>, vector<11x7x864xf32>,
    %c1_59 = arith.constant 1 : index
    %c0_60 = arith.constant 0 : index
    %72 = vector.load %arg4[%c1_59, %c0_60] : memref<25x864xf32, #tpu.memory_space<vmem>>, vector<1x864xf32>
    %c0_61 = arith.constant 0 : index
    %c0_62 = arith.constant 0 : index
    %c0_63 = arith.constant 0 : index
    %73 = vector.load %arg9[%c0_61, %c0_62, %c0_63] : memref<11x7x864xf32, #tpu.memory_space<vmem>>, vector<7x7x864xf32>
    %74 = vector.shape_cast %72 : vector<1x864xf32> to vector<1x1x864xf32>
    %75 = vector.broadcast %74 : vector<1x1x864xf32> to vector<7x7x864xf32>
    %76 = arith.mulf %73, %75 : vector<7x7x864xf32>
    %77 = arith.addf %69, %76 : vector<7x7x864xf32>
    %c6 = arith.constant 6 : index
    %c0_64 = arith.constant 0 : index
    %78 = vector.load %arg4[%c6, %c0_64] : memref<25x864xf32, #tpu.memory_space<vmem>>, vector<1x864xf32>
    %c1_65 = arith.constant 1 : index
    %c0_66 = arith.constant 0 : index
    %c0_67 = arith.constant 0 : index
    %79 = vector.load %arg9[%c1_65, %c0_66, %c0_67] : memref<11x7x864xf32, #tpu.memory_space<vmem>>, vector<7x7x864xf32>
    %80 = vector.shape_cast %78 : vector<1x864xf32> to vector<1x1x864xf32>
    %81 = vector.broadcast %80 : vector<1x1x864xf32> to vector<7x7x864xf32>
    %82 = arith.mulf %79, %81 : vector<7x7x864xf32>
    %83 = arith.addf %77, %82 : vector<7x7x864xf32>
    %c11 = arith.constant 11 : index
    %c0_68 = arith.constant 0 : index
    %84 = vector.load %arg4[%c11, %c0_68] : memref<25x864xf32, #tpu.memory_space<vmem>>, vector<1x864xf32>
    %c2_69 = arith.constant 2 : index
    %c0_70 = arith.constant 0 : index
    %c0_71 = arith.constant 0 : index
    %85 = vector.load %arg9[%c2_69, %c0_70, %c0_71] : memref<11x7x864xf32, #tpu.memory_space<vmem>>, vector<7x7x864xf32>
    %86 = vector.shape_cast %84 : vector<1x864xf32> to vector<1x1x864xf32>
    %87 = vector.broadcast %86 : vector<1x1x864xf32> to vector<7x7x864xf32>
    %88 = arith.mulf %85, %87 : vector<7x7x864xf32>
    %89 = arith.addf %83, %88 : vector<7x7x864xf32>
    %c16 = arith.constant 16 : index
    %c0_72 = arith.constant 0 : index
    %90 = vector.load %arg4[%c16, %c0_72] : memref<25x864xf32, #tpu.memory_space<vmem>>, vector<1x864xf32>
    %c3_73 = arith.constant 3 : index
    %c0_74 = arith.constant 0 : index
    %c0_75 = arith.constant 0 : index
    %91 = vector.load %arg9[%c3_73, %c0_74, %c0_75] : memref<11x7x864xf32, #tpu.memory_space<vmem>>, vector<7x7x864xf32>
    %92 = vector.shape_cast %90 : vector<1x864xf32> to vector<1x1x864xf32>
    %93 = vector.broadcast %92 : vector<1x1x864xf32> to vector<7x7x864xf32>
    %94 = arith.mulf %91, %93 : vector<7x7x864xf32>
    %95 = arith.addf %89, %94 : vector<7x7x864xf32>
    %c21 = arith.constant 21 : index
    %c0_76 = arith.constant 0 : index
    %96 = vector.load %arg4[%c21, %c0_76] : memref<25x864xf32, #tpu.memory_space<vmem>>, vector<1x864xf32>
    %c4_77 = arith.constant 4 : index
    %c0_78 = arith.constant 0 : index
    %c0_79 = arith.constant 0 : index
    %97 = vector.load %arg9[%c4_77, %c0_78, %c0_79] : memref<11x7x864xf32, #tpu.memory_space<vmem>>, vector<7x7x864xf32>
    %98 = vector.shape_cast %96 : vector<1x864xf32> to vector<1x1x864xf32>
    %99 = vector.broadcast %98 : vector<1x1x864xf32> to vector<7x7x864xf32>
    %100 = arith.mulf %97, %99 : vector<7x7x864xf32>
    %101 = arith.addf %95, %100 : vector<7x7x864xf32>
    %c0_80 = arith.constant 0 : index
    %c2_81 = arith.constant 2 : index
    %c0_82 = arith.constant 0 : index
    %102 = vector.load %arg8[%c0_80, %c2_81, %c0_82] : memref<11x11x864xf32, #tpu.memory_space<vmem>>, vector<11x7x864xf32>
    %c0_83 = arith.constant 0 : index
    %c0_84 = arith.constant 0 : index
    %c0_85 = arith.constant 0 : index
    %103 = vector.load %arg9[%c0_83, %c0_84, %c0_85] : memref<11x7x864xf32, #tpu.memory_space<vmem>>, vector<11x7x864xf32>
    tpu.vector_store %arg9[%c0_83, %c0_84, %c0_85], %102 {strides = array<i32>} : memref<11x7x864xf32, #tpu.memory_space<vmem>>, vector<11x7x864xf32>,
    %c2_86 = arith.constant 2 : index
    %c0_87 = arith.constant 0 : index
    %104 = vector.load %arg4[%c2_86, %c0_87] : memref<25x864xf32, #tpu.memory_space<vmem>>, vector<1x864xf32>
    %c0_88 = arith.constant 0 : index
    %c0_89 = arith.constant 0 : index
    %c0_90 = arith.constant 0 : index
    %105 = vector.load %arg9[%c0_88, %c0_89, %c0_90] : memref<11x7x864xf32, #tpu.memory_space<vmem>>, vector<7x7x864xf32>
    %106 = vector.shape_cast %104 : vector<1x864xf32> to vector<1x1x864xf32>
    %107 = vector.broadcast %106 : vector<1x1x864xf32> to vector<7x7x864xf32>
    %108 = arith.mulf %105, %107 : vector<7x7x864xf32>
    %109 = arith.addf %101, %108 : vector<7x7x864xf32>
    %c7 = arith.constant 7 : index
    %c0_91 = arith.constant 0 : index
    %110 = vector.load %arg4[%c7, %c0_91] : memref<25x864xf32, #tpu.memory_space<vmem>>, vector<1x864xf32>
    %c1_92 = arith.constant 1 : index
    %c0_93 = arith.constant 0 : index
    %c0_94 = arith.constant 0 : index
    %111 = vector.load %arg9[%c1_92, %c0_93, %c0_94] : memref<11x7x864xf32, #tpu.memory_space<vmem>>, vector<7x7x864xf32>
    %112 = vector.shape_cast %110 : vector<1x864xf32> to vector<1x1x864xf32>
    %113 = vector.broadcast %112 : vector<1x1x864xf32> to vector<7x7x864xf32>
    %114 = arith.mulf %111, %113 : vector<7x7x864xf32>
    %115 = arith.addf %109, %114 : vector<7x7x864xf32>
    %c12 = arith.constant 12 : index
    %c0_95 = arith.constant 0 : index
    %116 = vector.load %arg4[%c12, %c0_95] : memref<25x864xf32, #tpu.memory_space<vmem>>, vector<1x864xf32>
    %c2_96 = arith.constant 2 : index
    %c0_97 = arith.constant 0 : index
    %c0_98 = arith.constant 0 : index
    %117 = vector.load %arg9[%c2_96, %c0_97, %c0_98] : memref<11x7x864xf32, #tpu.memory_space<vmem>>, vector<7x7x864xf32>
    %118 = vector.shape_cast %116 : vector<1x864xf32> to vector<1x1x864xf32>
    %119 = vector.broadcast %118 : vector<1x1x864xf32> to vector<7x7x864xf32>
    %120 = arith.mulf %117, %119 : vector<7x7x864xf32>
    %121 = arith.addf %115, %120 : vector<7x7x864xf32>
    %c17 = arith.constant 17 : index
    %c0_99 = arith.constant 0 : index
    %122 = vector.load %arg4[%c17, %c0_99] : memref<25x864xf32, #tpu.memory_space<vmem>>, vector<1x864xf32>
    %c3_100 = arith.constant 3 : index
    %c0_101 = arith.constant 0 : index
    %c0_102 = arith.constant 0 : index
    %123 = vector.load %arg9[%c3_100, %c0_101, %c0_102] : memref<11x7x864xf32, #tpu.memory_space<vmem>>, vector<7x7x864xf32>
    %124 = vector.shape_cast %122 : vector<1x864xf32> to vector<1x1x864xf32>
    %125 = vector.broadcast %124 : vector<1x1x864xf32> to vector<7x7x864xf32>
    %126 = arith.mulf %123, %125 : vector<7x7x864xf32>
    %127 = arith.addf %121, %126 : vector<7x7x864xf32>
    %c22 = arith.constant 22 : index
    %c0_103 = arith.constant 0 : index
    %128 = vector.load %arg4[%c22, %c0_103] : memref<25x864xf32, #tpu.memory_space<vmem>>, vector<1x864xf32>
    %c4_104 = arith.constant 4 : index
    %c0_105 = arith.constant 0 : index
    %c0_106 = arith.constant 0 : index
    %129 = vector.load %arg9[%c4_104, %c0_105, %c0_106] : memref<11x7x864xf32, #tpu.memory_space<vmem>>, vector<7x7x864xf32>
    %130 = vector.shape_cast %128 : vector<1x864xf32> to vector<1x1x864xf32>
    %131 = vector.broadcast %130 : vector<1x1x864xf32> to vector<7x7x864xf32>
    %132 = arith.mulf %129, %131 : vector<7x7x864xf32>
    %133 = arith.addf %127, %132 : vector<7x7x864xf32>
    %c0_107 = arith.constant 0 : index
    %c3_108 = arith.constant 3 : index
    %c0_109 = arith.constant 0 : index
    %134 = vector.load %arg8[%c0_107, %c3_108, %c0_109] : memref<11x11x864xf32, #tpu.memory_space<vmem>>, vector<11x7x864xf32>
    %c0_110 = arith.constant 0 : index
    %c0_111 = arith.constant 0 : index
    %c0_112 = arith.constant 0 : index
    %135 = vector.load %arg9[%c0_110, %c0_111, %c0_112] : memref<11x7x864xf32, #tpu.memory_space<vmem>>, vector<11x7x864xf32>
    tpu.vector_store %arg9[%c0_110, %c0_111, %c0_112], %134 {strides = array<i32>} : memref<11x7x864xf32, #tpu.memory_space<vmem>>, vector<11x7x864xf32>,
    %c3_113 = arith.constant 3 : index
    %c0_114 = arith.constant 0 : index
    %136 = vector.load %arg4[%c3_113, %c0_114] : memref<25x864xf32, #tpu.memory_space<vmem>>, vector<1x864xf32>
    %c0_115 = arith.constant 0 : index
    %c0_116 = arith.constant 0 : index
    %c0_117 = arith.constant 0 : index
    %137 = vector.load %arg9[%c0_115, %c0_116, %c0_117] : memref<11x7x864xf32, #tpu.memory_space<vmem>>, vector<7x7x864xf32>
    %138 = vector.shape_cast %136 : vector<1x864xf32> to vector<1x1x864xf32>
    %139 = vector.broadcast %138 : vector<1x1x864xf32> to vector<7x7x864xf32>
    %140 = arith.mulf %137, %139 : vector<7x7x864xf32>
    %141 = arith.addf %133, %140 : vector<7x7x864xf32>
    %c8 = arith.constant 8 : index
    %c0_118 = arith.constant 0 : index
    %142 = vector.load %arg4[%c8, %c0_118] : memref<25x864xf32, #tpu.memory_space<vmem>>, vector<1x864xf32>
    %c1_119 = arith.constant 1 : index
    %c0_120 = arith.constant 0 : index
    %c0_121 = arith.constant 0 : index
    %143 = vector.load %arg9[%c1_119, %c0_120, %c0_121] : memref<11x7x864xf32, #tpu.memory_space<vmem>>, vector<7x7x864xf32>
    %144 = vector.shape_cast %142 : vector<1x864xf32> to vector<1x1x864xf32>
    %145 = vector.broadcast %144 : vector<1x1x864xf32> to vector<7x7x864xf32>
    %146 = arith.mulf %143, %145 : vector<7x7x864xf32>
    %147 = arith.addf %141, %146 : vector<7x7x864xf32>
    %c13 = arith.constant 13 : index
    %c0_122 = arith.constant 0 : index
    %148 = vector.load %arg4[%c13, %c0_122] : memref<25x864xf32, #tpu.memory_space<vmem>>, vector<1x864xf32>
    %c2_123 = arith.constant 2 : index
    %c0_124 = arith.constant 0 : index
    %c0_125 = arith.constant 0 : index
    %149 = vector.load %arg9[%c2_123, %c0_124, %c0_125] : memref<11x7x864xf32, #tpu.memory_space<vmem>>, vector<7x7x864xf32>
    %150 = vector.shape_cast %148 : vector<1x864xf32> to vector<1x1x864xf32>
    %151 = vector.broadcast %150 : vector<1x1x864xf32> to vector<7x7x864xf32>
    %152 = arith.mulf %149, %151 : vector<7x7x864xf32>
    %153 = arith.addf %147, %152 : vector<7x7x864xf32>
    %c18 = arith.constant 18 : index
    %c0_126 = arith.constant 0 : index
    %154 = vector.load %arg4[%c18, %c0_126] : memref<25x864xf32, #tpu.memory_space<vmem>>, vector<1x864xf32>
    %c3_127 = arith.constant 3 : index
    %c0_128 = arith.constant 0 : index
    %c0_129 = arith.constant 0 : index
    %155 = vector.load %arg9[%c3_127, %c0_128, %c0_129] : memref<11x7x864xf32, #tpu.memory_space<vmem>>, vector<7x7x864xf32>
    %156 = vector.shape_cast %154 : vector<1x864xf32> to vector<1x1x864xf32>
    %157 = vector.broadcast %156 : vector<1x1x864xf32> to vector<7x7x864xf32>
    %158 = arith.mulf %155, %157 : vector<7x7x864xf32>
    %159 = arith.addf %153, %158 : vector<7x7x864xf32>
    %c23 = arith.constant 23 : index
    %c0_130 = arith.constant 0 : index
    %160 = vector.load %arg4[%c23, %c0_130] : memref<25x864xf32, #tpu.memory_space<vmem>>, vector<1x864xf32>
    %c4_131 = arith.constant 4 : index
    %c0_132 = arith.constant 0 : index
    %c0_133 = arith.constant 0 : index
    %161 = vector.load %arg9[%c4_131, %c0_132, %c0_133] : memref<11x7x864xf32, #tpu.memory_space<vmem>>, vector<7x7x864xf32>
    %162 = vector.shape_cast %160 : vector<1x864xf32> to vector<1x1x864xf32>
    %163 = vector.broadcast %162 : vector<1x1x864xf32> to vector<7x7x864xf32>
    %164 = arith.mulf %161, %163 : vector<7x7x864xf32>
    %165 = arith.addf %159, %164 : vector<7x7x864xf32>
    %c0_134 = arith.constant 0 : index
    %c4_135 = arith.constant 4 : index
    %c0_136 = arith.constant 0 : index
    %166 = vector.load %arg8[%c0_134, %c4_135, %c0_136] : memref<11x11x864xf32, #tpu.memory_space<vmem>>, vector<11x7x864xf32>
    %c0_137 = arith.constant 0 : index
    %c0_138 = arith.constant 0 : index
    %c0_139 = arith.constant 0 : index
    %167 = vector.load %arg9[%c0_137, %c0_138, %c0_139] : memref<11x7x864xf32, #tpu.memory_space<vmem>>, vector<11x7x864xf32>
    tpu.vector_store %arg9[%c0_137, %c0_138, %c0_139], %166 {strides = array<i32>} : memref<11x7x864xf32, #tpu.memory_space<vmem>>, vector<11x7x864xf32>,
    %c4_140 = arith.constant 4 : index
    %c0_141 = arith.constant 0 : index
    %168 = vector.load %arg4[%c4_140, %c0_141] : memref<25x864xf32, #tpu.memory_space<vmem>>, vector<1x864xf32>
    %c0_142 = arith.constant 0 : index
    %c0_143 = arith.constant 0 : index
    %c0_144 = arith.constant 0 : index
    %169 = vector.load %arg9[%c0_142, %c0_143, %c0_144] : memref<11x7x864xf32, #tpu.memory_space<vmem>>, vector<7x7x864xf32>
    %170 = vector.shape_cast %168 : vector<1x864xf32> to vector<1x1x864xf32>
    %171 = vector.broadcast %170 : vector<1x1x864xf32> to vector<7x7x864xf32>
    %172 = arith.mulf %169, %171 : vector<7x7x864xf32>
    %173 = arith.addf %165, %172 : vector<7x7x864xf32>
    %c9_145 = arith.constant 9 : index
    %c0_146 = arith.constant 0 : index
    %174 = vector.load %arg4[%c9_145, %c0_146] : memref<25x864xf32, #tpu.memory_space<vmem>>, vector<1x864xf32>
    %c1_147 = arith.constant 1 : index
    %c0_148 = arith.constant 0 : index
    %c0_149 = arith.constant 0 : index
    %175 = vector.load %arg9[%c1_147, %c0_148, %c0_149] : memref<11x7x864xf32, #tpu.memory_space<vmem>>, vector<7x7x864xf32>
    %176 = vector.shape_cast %174 : vector<1x864xf32> to vector<1x1x864xf32>
    %177 = vector.broadcast %176 : vector<1x1x864xf32> to vector<7x7x864xf32>
    %178 = arith.mulf %175, %177 : vector<7x7x864xf32>
    %179 = arith.addf %173, %178 : vector<7x7x864xf32>
    %c14 = arith.constant 14 : index
    %c0_150 = arith.constant 0 : index
    %180 = vector.load %arg4[%c14, %c0_150] : memref<25x864xf32, #tpu.memory_space<vmem>>, vector<1x864xf32>
    %c2_151 = arith.constant 2 : index
    %c0_152 = arith.constant 0 : index
    %c0_153 = arith.constant 0 : index
    %181 = vector.load %arg9[%c2_151, %c0_152, %c0_153] : memref<11x7x864xf32, #tpu.memory_space<vmem>>, vector<7x7x864xf32>
    %182 = vector.shape_cast %180 : vector<1x864xf32> to vector<1x1x864xf32>
    %183 = vector.broadcast %182 : vector<1x1x864xf32> to vector<7x7x864xf32>
    %184 = arith.mulf %181, %183 : vector<7x7x864xf32>
    %185 = arith.addf %179, %184 : vector<7x7x864xf32>
    %c19 = arith.constant 19 : index
    %c0_154 = arith.constant 0 : index
    %186 = vector.load %arg4[%c19, %c0_154] : memref<25x864xf32, #tpu.memory_space<vmem>>, vector<1x864xf32>
    %c3_155 = arith.constant 3 : index
    %c0_156 = arith.constant 0 : index
    %c0_157 = arith.constant 0 : index
    %187 = vector.load %arg9[%c3_155, %c0_156, %c0_157] : memref<11x7x864xf32, #tpu.memory_space<vmem>>, vector<7x7x864xf32>
    %188 = vector.shape_cast %186 : vector<1x864xf32> to vector<1x1x864xf32>
    %189 = vector.broadcast %188 : vector<1x1x864xf32> to vector<7x7x864xf32>
    %190 = arith.mulf %187, %189 : vector<7x7x864xf32>
    %191 = arith.addf %185, %190 : vector<7x7x864xf32>
    %c24 = arith.constant 24 : index
    %c0_158 = arith.constant 0 : index
    %192 = vector.load %arg4[%c24, %c0_158] : memref<25x864xf32, #tpu.memory_space<vmem>>, vector<1x864xf32>
    %c4_159 = arith.constant 4 : index
    %c0_160 = arith.constant 0 : index
    %c0_161 = arith.constant 0 : index
    %193 = vector.load %arg9[%c4_159, %c0_160, %c0_161] : memref<11x7x864xf32, #tpu.memory_space<vmem>>, vector<7x7x864xf32>
    %194 = vector.shape_cast %192 : vector<1x864xf32> to vector<1x1x864xf32>
    %195 = vector.broadcast %194 : vector<1x1x864xf32> to vector<7x7x864xf32>
    %196 = arith.mulf %193, %195 : vector<7x7x864xf32>
    %197 = arith.addf %191, %196 : vector<7x7x864xf32>
    %cst_162 = arith.constant dense<0.000000e+00> : vector<864xf32>
    %198 = vector.multi_reduction <add>, %197, %cst_162 [0, 1] : vector<7x7x864xf32> to vector<864xf32>
    %199 = vector.shape_cast %198 : vector<864xf32> to vector<1x1x864xf32>
    %200 = arith.mulf %197, %197 : vector<7x7x864xf32>
    %cst_163 = arith.constant dense<0.000000e+00> : vector<864xf32>
    %201 = vector.multi_reduction <add>, %200, %cst_163 [0, 1] : vector<7x7x864xf32> to vector<864xf32>
    %202 = vector.shape_cast %201 : vector<864xf32> to vector<1x1x864xf32>
    %cst_164 = arith.constant 0.0204081628 : f32
    %203 = vector.broadcast %cst_164 : f32 to vector<1x1x864xf32>
    %204 = arith.mulf %199, %203 : vector<1x1x864xf32>
    %cst_165 = arith.constant 0.0204081628 : f32
    %205 = vector.broadcast %cst_165 : f32 to vector<1x1x864xf32>
    %206 = arith.mulf %202, %205 : vector<1x1x864xf32>
    %207 = arith.mulf %204, %204 : vector<1x1x864xf32>
    %208 = arith.subf %206, %207 : vector<1x1x864xf32>
    %c0_166 = arith.constant 0 : index
    %c0_167 = arith.constant 0 : index
    %209 = vector.load %arg5[%c0_166, %c0_167] : memref<1x864xf32, #tpu.memory_space<vmem>>, vector<1x864xf32>
    %cst_168 = arith.constant 9.99999974E-6 : f32
    %210 = vector.broadcast %cst_168 : f32 to vector<1x1x864xf32>
    %211 = arith.addf %208, %210 : vector<1x1x864xf32>
    %212 = math.rsqrt %211 : vector<1x1x864xf32>
    %213 = vector.shape_cast %209 : vector<1x864xf32> to vector<1x1x864xf32>
    %214 = arith.mulf %213, %212 : vector<1x1x864xf32>
    %c0_169 = arith.constant 0 : index
    %c0_170 = arith.constant 0 : index
    %215 = vector.load %arg6[%c0_169, %c0_170] : memref<1x864xf32, #tpu.memory_space<vmem>>, vector<1x864xf32>
    %216 = arith.mulf %204, %214 : vector<1x1x864xf32>
    %217 = vector.shape_cast %215 : vector<1x864xf32> to vector<1x1x864xf32>
    %218 = arith.subf %217, %216 : vector<1x1x864xf32>
    %219 = vector.broadcast %214 : vector<1x1x864xf32> to vector<7x7x864xf32>
    %220 = arith.mulf %197, %219 : vector<7x7x864xf32>
    %221 = vector.broadcast %218 : vector<1x1x864xf32> to vector<7x7x864xf32>
    %222 = arith.addf %220, %221 : vector<7x7x864xf32>
    %c0_171 = arith.constant 0 : index
    %c0_172 = arith.constant 0 : index
    %c0_173 = arith.constant 0 : index
    %223 = vector.load %arg7[%c0_171, %c0_172, %c0_173] : memref<7x7x864xf32, #tpu.memory_space<vmem>>, vector<7x7x864xf32>
    tpu.vector_store %arg7[%c0_171, %c0_172, %c0_173], %222 {strides = array<i32>} : memref<7x7x864xf32, #tpu.memory_space<vmem>>, vector<7x7x864xf32>,
    return
  }
  func.func @transform_0(%arg0: i32) -> (i32, i32, i32) {
    %c0_i32 = arith.constant 0 : i32
    %c0_i32_0 = arith.constant 0 : i32
    %c0_i32_1 = arith.constant 0 : i32
    return %c0_i32, %c0_i32_0, %arg0 : i32, i32, i32
  }
  func.func @transform_1(%arg0: i32) -> (i32, i32) {
    %c0_i32 = arith.constant 0 : i32
    %c0_i32_0 = arith.constant 0 : i32
    return %c0_i32, %arg0 : i32, i32
  }
  func.func @transform_2(%arg0: i32) -> (i32, i32) {
    %c0_i32 = arith.constant 0 : i32
    %c0_i32_0 = arith.constant 0 : i32
    return %c0_i32, %arg0 : i32, i32
  }
  func.func @transform_3(%arg0: i32) -> (i32, i32) {
    %c0_i32 = arith.constant 0 : i32
    %c0_i32_0 = arith.constant 0 : i32
    return %c0_i32, %arg0 : i32, i32
  }
  func.func @transform_4(%arg0: i32) -> (i32, i32) {
    %c0_i32 = arith.constant 0 : i32
    %c0_i32_0 = arith.constant 0 : i32
    return %c0_i32, %arg0 : i32, i32
  }
  func.func @transform_5(%arg0: i32) -> (i32, i32) {
    %c0_i32 = arith.constant 0 : i32
    %c0_i32_0 = arith.constant 0 : i32
    return %c0_i32, %arg0 : i32, i32
  }
  func.func @transform_6(%arg0: i32) -> (i32, i32, i32) {
    %c0_i32 = arith.constant 0 : i32
    %c0_i32_0 = arith.constant 0 : i32
    %c0_i32_1 = arith.constant 0 : i32
    return %c0_i32, %c0_i32_0, %arg0 : i32, i32, i32
  }
}

</mosaic_0001>

<llo_original>
// kernel: squeeze.3
$region0: #{squeeze.3}
  %s0 = inlined_call_operand.vmem [shape: f32[864,5,5], index: 0, kind: input, shape index: {}]
  %s1 = inlined_call_operand.vmem [shape: f32[864,25], index: 1, kind: output, shape index: {}]
  %s2 = scalar_lea.vmem %s0, 48
  %v3 = vld [vmem:[%s2] sm:$0x1f]
  %vm4 = vcmask 785408
  %s5 = scalar_lea.vmem %s1, 48
  %6 = vst.msk [vmem:[%s5] sm:$0x1f] %vm4, %v3
  %s7 = scalar_lea.vmem %s0, 104
  %v8 = vld [vmem:[%s7] sm:$0x1f]
  %vm9 = vcmask 785408
  %s10 = scalar_lea.vmem %s1, 53
  %11 = vst.msk [vmem:[%s10] sm:$0x7] %vm9, %v8
  %s12 = scalar_lea.vmem %s1, 101
  %13 = vst.msk [vmem:[%s12] sm:$0x18] %vm9, %v8
  %s14 = scalar_lea.vmem %s0, 160
  %v15 = vld [vmem:[%s14] sm:$0x1f]
  %vm16 = vcmask 785408
  %s17 = scalar_lea.vmem %s1, 106
  %18 = vst.msk [vmem:[%s17] sm:$0x1f] %vm16, %v15
  %s19 = scalar_lea.vmem %s0, 216
  %v20 = vld [vmem:[%s19] sm:$0x1f]
  %vm21 = vcmask 785408
  %s22 = scalar_lea.vmem %s1, 111
  %23 = vst.msk [vmem:[%s22] ss:$49 sm:$0x3] %vm21, %v20
  %s24 = scalar_lea.vmem %s1, 159
  %25 = vst.msk [vmem:[%s24] sm:$0x1c] %vm21, %v20
  %s26 = scalar_lea.vmem %s0, 272
  %v27 = vld [vmem:[%s26] sm:$0x1f]
  %vm28 = vcmask 785408
  %s29 = scalar_lea.vmem %s1, 164
  %30 = vst.msk [vmem:[%s29] sm:$0xf] %vm28, %v27
  %s31 = scalar_lea.vmem %s1, 212
  %32 = vst.msk [vmem:[%s31] sm:$0x10] %vm28, %v27
  %v33 = vld [vmem:[%s0] sm:$0x1f]
  %34 = vst [vmem:[%s1] sm:$0x1f] %v33
  %s35 = scalar_lea.vmem %s0, 8
  %v36 = vld [vmem:[%s35] sm:$0x1f]
  %s37 = scalar_lea.vmem %s1, 8
  %38 = vst [vmem:[%s37] sm:$0x1f] %v36
  %s39 = scalar_lea.vmem %s0, 16
  %v40 = vld [vmem:[%s39] sm:$0x1f]
  %s41 = scalar_lea.vmem %s1, 16
  %42 = vst [vmem:[%s41] sm:$0x1f] %v40
  %s43 = scalar_lea.vmem %s0, 24
  %v44 = vld [vmem:[%s43] sm:$0x1f]
  %s45 = scalar_lea.vmem %s1, 24
  %46 = vst [vmem:[%s45] sm:$0x1f] %v44
  %s47 = scalar_lea.vmem %s0, 32
  %v48 = vld [vmem:[%s47] sm:$0x1f]
  %s49 = scalar_lea.vmem %s1, 32
  %50 = vst [vmem:[%s49] sm:$0x1f] %v48
  %s51 = scalar_lea.vmem %s0, 40
  %v52 = vld [vmem:[%s51] sm:$0x1f]
  %s53 = scalar_lea.vmem %s1, 40
  %54 = vst [vmem:[%s53] sm:$0x1f] %v52
  %s55 = scalar_lea.vmem %s0, 56
  %v56 = vld [vmem:[%s55] sm:$0x1f]
  %s57 = scalar_lea.vmem %s1, 5
  %58 = vst [vmem:[%s57] sm:$0x7] %v56
  %s59 = scalar_lea.vmem %s1, 53
  %60 = vst [vmem:[%s59] sm:$0x18] %v56
  %s61 = scalar_lea.vmem %s0, 64
  %v62 = vld [vmem:[%s61] sm:$0x1f]
  %s63 = scalar_lea.vmem %s1, 13
  %64 = vst [vmem:[%s63] sm:$0x7] %v62
  %s65 = scalar_lea.vmem %s1, 61
  %66 = vst [vmem:[%s65] sm:$0x18] %v62
  %s67 = scalar_lea.vmem %s0, 72
  %v68 = vld [vmem:[%s67] sm:$0x1f]
  %s69 = scalar_lea.vmem %s1, 21
  %70 = vst [vmem:[%s69] sm:$0x7] %v68
  %s71 = scalar_lea.vmem %s1, 69
  %72 = vst [vmem:[%s71] sm:$0x18] %v68
  %s73 = scalar_lea.vmem %s0, 80
  %v74 = vld [vmem:[%s73] sm:$0x1f]
  %s75 = scalar_lea.vmem %s1, 29
  %76 = vst [vmem:[%s75] sm:$0x7] %v74
  %s77 = scalar_lea.vmem %s1, 77
  %78 = vst [vmem:[%s77] sm:$0x18] %v74
  %s79 = scalar_lea.vmem %s0, 88
  %v80 = vld [vmem:[%s79] sm:$0x1f]
  %s81 = scalar_lea.vmem %s1, 37
  %82 = vst [vmem:[%s81] sm:$0x7] %v80
  %s83 = scalar_lea.vmem %s1, 85
  %84 = vst [vmem:[%s83] sm:$0x18] %v80
  %s85 = scalar_lea.vmem %s0, 96
  %v86 = vld [vmem:[%s85] sm:$0x1f]
  %s87 = scalar_lea.vmem %s1, 45
  %88 = vst [vmem:[%s87] sm:$0x7] %v86
  %s89 = scalar_lea.vmem %s1, 93
  %90 = vst [vmem:[%s89] sm:$0x18] %v86
  %s91 = scalar_lea.vmem %s0, 112
  %v92 = vld [vmem:[%s91] sm:$0x1f]
  %s93 = scalar_lea.vmem %s1, 58
  %94 = vst [vmem:[%s93] sm:$0x1f] %v92
  %s95 = scalar_lea.vmem %s0, 120
  %v96 = vld [vmem:[%s95] sm:$0x1f]
  %s97 = scalar_lea.vmem %s1, 66
  %98 = vst [vmem:[%s97] sm:$0x1f] %v96
  %s99 = scalar_lea.vmem %s0, 128
  %v100 = vld [vmem:[%s99] sm:$0x1f]
  %s101 = scalar_lea.vmem %s1, 74
  %102 = vst [vmem:[%s101] sm:$0x1f] %v100
  %s103 = scalar_lea.vmem %s0, 136
  %v104 = vld [vmem:[%s103] sm:$0x1f]
  %s105 = scalar_lea.vmem %s1, 82
  %106 = vst [vmem:[%s105] sm:$0x1f] %v104
  %s107 = scalar_lea.vmem %s0, 144
  %v108 = vld [vmem:[%s107] sm:$0x1f]
  %s109 = scalar_lea.vmem %s1, 90
  %110 = vst [vmem:[%s109] sm:$0x1f] %v108
  %s111 = scalar_lea.vmem %s0, 152
  %v112 = vld [vmem:[%s111] sm:$0x1f]
  %s113 = scalar_lea.vmem %s1, 98
  %114 = vst [vmem:[%s113] sm:$0x1f] %v112
  %s115 = scalar_lea.vmem %s0, 168
  %v116 = vld [vmem:[%s115] sm:$0x1f]
  %s117 = scalar_lea.vmem %s1, 63
  %118 = vst [vmem:[%s117] ss:$49 sm:$0x3] %v116
  %s119 = scalar_lea.vmem %s1, 111
  %120 = vst [vmem:[%s119] sm:$0x1c] %v116
  %s121 = scalar_lea.vmem %s0, 176
  %v122 = vld [vmem:[%s121] sm:$0x1f]
  %s123 = scalar_lea.vmem %s1, 71
  %124 = vst [vmem:[%s123] ss:$49 sm:$0x3] %v122
  %s125 = scalar_lea.vmem %s1, 119
  %126 = vst [vmem:[%s125] sm:$0x1c] %v122
  %s127 = scalar_lea.vmem %s0, 184
  %v128 = vld [vmem:[%s127] sm:$0x1f]
  %s129 = scalar_lea.vmem %s1, 79
  %130 = vst [vmem:[%s129] ss:$49 sm:$0x3] %v128
  %s131 = scalar_lea.vmem %s1, 127
  %132 = vst [vmem:[%s131] sm:$0x1c] %v128
  %s133 = scalar_lea.vmem %s0, 192
  %v134 = vld [vmem:[%s133] sm:$0x1f]
  %s135 = scalar_lea.vmem %s1, 87
  %136 = vst [vmem:[%s135] ss:$49 sm:$0x3] %v134
  %s137 = scalar_lea.vmem %s1, 135
  %138 = vst [vmem:[%s137] sm:$0x1c] %v134
  %s139 = scalar_lea.vmem %s0, 200
  %v140 = vld [vmem:[%s139] sm:$0x1f]
  %s141 = scalar_lea.vmem %s1, 95
  %142 = vst [vmem:[%s141] ss:$49 sm:$0x3] %v140
  %s143 = scalar_lea.vmem %s1, 143
  %144 = vst [vmem:[%s143] sm:$0x1c] %v140
  %s145 = scalar_lea.vmem %s0, 208
  %v146 = vld [vmem:[%s145] sm:$0x1f]
  %s147 = scalar_lea.vmem %s1, 103
  %148 = vst [vmem:[%s147] ss:$49 sm:$0x3] %v146
  %s149 = scalar_lea.vmem %s1, 151
  %150 = vst [vmem:[%s149] sm:$0x1c] %v146
  %s151 = scalar_lea.vmem %s0, 224
  %v152 = vld [vmem:[%s151] sm:$0x1f]
  %s153 = scalar_lea.vmem %s1, 116
  %154 = vst [vmem:[%s153] sm:$0xf] %v152
  %s155 = scalar_lea.vmem %s1, 164
  %156 = vst [vmem:[%s155] sm:$0x10] %v152
  %s157 = scalar_lea.vmem %s0, 232
  %v158 = vld [vmem:[%s157] sm:$0x1f]
  %s159 = scalar_lea.vmem %s1, 124
  %160 = vst [vmem:[%s159] sm:$0xf] %v158
  %s161 = scalar_lea.vmem %s1, 172
  %162 = vst [vmem:[%s161] sm:$0x10] %v158
  %s163 = scalar_lea.vmem %s0, 240
  %v164 = vld [vmem:[%s163] sm:$0x1f]
  %s165 = scalar_lea.vmem %s1, 132
  %166 = vst [vmem:[%s165] sm:$0xf] %v164
  %s167 = scalar_lea.vmem %s1, 180
  %168 = vst [vmem:[%s167] sm:$0x10] %v164
  %s169 = scalar_lea.vmem %s0, 248
  %v170 = vld [vmem:[%s169] sm:$0x1f]
  %s171 = scalar_lea.vmem %s1, 140
  %172 = vst [vmem:[%s171] sm:$0xf] %v170
  %s173 = scalar_lea.vmem %s1, 188
  %174 = vst [vmem:[%s173] sm:$0x10] %v170
  %s175 = scalar_lea.vmem %s0, 256
  %v176 = vld [vmem:[%s175] sm:$0x1f]
  %s177 = scalar_lea.vmem %s1, 148
  %178 = vst [vmem:[%s177] sm:$0xf] %v176
  %s179 = scalar_lea.vmem %s1, 196
  %180 = vst [vmem:[%s179] sm:$0x10] %v176
  %s181 = scalar_lea.vmem %s0, 264
  %v182 = vld [vmem:[%s181] sm:$0x1f]
  %s183 = scalar_lea.vmem %s1, 156
  %184 = vst [vmem:[%s183] sm:$0xf] %v182
  %s185 = scalar_lea.vmem %s1, 204
  %186 = vst [vmem:[%s185] sm:$0x10] %v182

// kernel: _forward_impl.1
$region0: #{_forward_impl.1}
  #allocation0 [shape = 'u32[]', space=smem, size = 0x4, offset = 0x4, fixed_abs, tag = 'smem constant byte address 0x4 - core index']
  #allocation1 [shape = 'u32[144,128]{1,0:T(1,128)}', space=vmem, size = 0x12000, scoped, tag = 'internal scratch']
  #allocation2 [shape = 'f32[11,11,864]{2,1,0:T(8,128)}', space=vmem, size = 0x9a000, scoped, tag = 'scratch operand']
  #allocation3 [shape = 'f32[11,7,864]{2,1,0:T(8,128)}', space=vmem, size = 0x4d000, scoped, tag = 'scratch operand']
  %s0 = inlined_call_operand.vmem [shape: f32[7,7,864], index: 0, kind: input, shape index: {}]
  %s1 = inlined_call_operand.vmem [shape: f32[1,864], index: 1, kind: input, shape index: {}]
  %s2 = inlined_call_operand.vmem [shape: f32[1,864], index: 2, kind: input, shape index: {}]
  %s3 = inlined_call_operand.vmem [shape: f32[25,864], index: 3, kind: input, shape index: {}]
  %s4 = inlined_call_operand.vmem [shape: f32[1,864], index: 4, kind: input, shape index: {}]
  %s5 = inlined_call_operand.vmem [shape: f32[1,864], index: 5, kind: input, shape index: {}]
  %s6 = inlined_call_operand.vmem [shape: f32[7,7,864], index: 6, kind: output, shape index: {}]
  %s7 = sld [smem:[#allocation0]]
  $region34: #{_forward_impl.1} parent=0
    _
  %s9 = ssub.s32 1, %s7
  %s10 = scalar_select 0, %s9, %s7
  // Predicated region
  $region2: #{_forward_impl.1} parent=0 // pred_check
    _
  $region3: #{_forward_impl.1} parent=0 // pred_check_branch
    %12 = sbr.rel (0) target = $region5
  $region4: #{_forward_impl.1} parent=0 // pred_region
    _
  $region5: #{_forward_impl.1} parent=0 // pred_fallthru
    _
  // Predicated region
  $region6: #{_forward_impl.1} parent=0 // pred_check
    _
  $region7: #{_forward_impl.1} parent=0 // pred_check_branch
    %14 = sbr.rel (0) target = $region9
  $region8: #{_forward_impl.1} parent=0 // pred_region
    _
  $region9: #{_forward_impl.1} parent=0 // pred_fallthru
    _
  // Predicated region
  $region10: #{_forward_impl.1} parent=0 // pred_check
    _
  $region11: #{_forward_impl.1} parent=0 // pred_check_branch
    %16 = sbr.rel (0) target = $region13
  $region12: #{_forward_impl.1} parent=0 // pred_region
    _
  $region13: #{_forward_impl.1} parent=0 // pred_fallthru
    _
  // Predicated region
  $region14: #{_forward_impl.1} parent=0 // pred_check
    _
  $region15: #{_forward_impl.1} parent=0 // pred_check_branch
    %18 = sbr.rel (0) target = $region17
  $region16: #{_forward_impl.1} parent=0 // pred_region
    _
  $region17: #{_forward_impl.1} parent=0 // pred_fallthru
    _
  // Predicated region
  $region18: #{_forward_impl.1} parent=0 // pred_check
    _
  $region19: #{_forward_impl.1} parent=0 // pred_check_branch
    %20 = sbr.rel (0) target = $region21
  $region20: #{_forward_impl.1} parent=0 // pred_region
    _
  $region21: #{_forward_impl.1} parent=0 // pred_fallthru
    _
  // Predicated region
  $region22: #{_forward_impl.1} parent=0 // pred_check
    _
  $region23: #{_forward_impl.1} parent=0 // pred_check_branch
    %22 = sbr.rel (0) target = $region25
  $region24: #{_forward_impl.1} parent=0 // pred_region
    _
  $region25: #{_forward_impl.1} parent=0 // pred_fallthru
    _
  %v23 = vld [vmem:[%s0] sm:$0x7f]
  %v24 = vld [vmem:[%s0 + $0x8] sm:$0x7f]
  %v25 = vld [vmem:[%s0 + $0x10] sm:$0x7f]
  %v26 = vld [vmem:[%s0 + $0x18] sm:$0x7f]
  %v27 = vld [vmem:[%s0 + $0x20] sm:$0x7f]
  %v28 = vld [vmem:[%s0 + $0x28] sm:$0x7f]
  %v29 = vld [vmem:[%s0 + $0x30] sm:$0x7f]
  %v30 = vld [vmem:[%s0 + $0x38] sm:$0x7f]
  %v31 = vld [vmem:[%s0 + $0x40] sm:$0x7f]
  %v32 = vld [vmem:[%s0 + $0x48] sm:$0x7f]
  %v33 = vld [vmem:[%s0 + $0x50] sm:$0x7f]
  %v34 = vld [vmem:[%s0 + $0x58] sm:$0x7f]
  %v35 = vld [vmem:[%s0 + $0x60] sm:$0x7f]
  %v36 = vld [vmem:[%s0 + $0x68] sm:$0x7f]
  %v37 = vld [vmem:[%s0 + $0x70] sm:$0x7f]
  %v38 = vld [vmem:[%s0 + $0x78] sm:$0x7f]
  %v39 = vld [vmem:[%s0 + $0x80] sm:$0x7f]
  %v40 = vld [vmem:[%s0 + $0x88] sm:$0x7f]
  %v41 = vld [vmem:[%s0 + $0x90] sm:$0x7f]
  %v42 = vld [vmem:[%s0 + $0x98] sm:$0x7f]
  %v43 = vld [vmem:[%s0 + $0xa0] sm:$0x7f]
  %v44 = vld [vmem:[%s0 + $0xa8] sm:$0x7f]
  %v45 = vld [vmem:[%s0 + $0xb0] sm:$0x7f]
  %v46 = vld [vmem:[%s0 + $0xb8] sm:$0x7f]
  %v47 = vld [vmem:[%s0 + $0xc0] sm:$0x7f]
  %v48 = vld [vmem:[%s0 + $0xc8] sm:$0x7f]
  %v49 = vld [vmem:[%s0 + $0xd0] sm:$0x7f]
  %v50 = vld [vmem:[%s0 + $0xd8] sm:$0x7f]
  %v51 = vld [vmem:[%s0 + $0xe0] sm:$0x7f]
  %v52 = vld [vmem:[%s0 + $0xe8] sm:$0x7f]
  %v53 = vld [vmem:[%s0 + $0xf0] sm:$0x7f]
  %v54 = vld [vmem:[%s0 + $0xf8] sm:$0x7f]
  %v55 = vld [vmem:[%s0 + $0x100] sm:$0x7f]
  %v56 = vld [vmem:[%s0 + $0x108] sm:$0x7f]
  %v57 = vld [vmem:[%s0 + $0x110] sm:$0x7f]
  %v58 = vld [vmem:[%s0 + $0x118] sm:$0x7f]
  %v59 = vld [vmem:[%s0 + $0x120] sm:$0x7f]
  %v60 = vld [vmem:[%s0 + $0x128] sm:$0x7f]
  %v61 = vld [vmem:[%s0 + $0x130] sm:$0x7f]
  %v62 = vld [vmem:[%s0 + $0x138] sm:$0x7f]
  %v63 = vld [vmem:[%s0 + $0x140] sm:$0x7f]
  %v64 = vld [vmem:[%s0 + $0x148] sm:$0x7f]
  %v65 = vld [vmem:[%s0 + $0x150] sm:$0x7f]
  %v66 = vld [vmem:[%s0 + $0x158] sm:$0x7f]
  %v67 = vld [vmem:[%s0 + $0x160] sm:$0x7f]
  %v68 = vld [vmem:[%s0 + $0x168] sm:$0x7f]
  %v69 = vld [vmem:[%s0 + $0x170] sm:$0x7f]
  %v70 = vld [vmem:[%s0 + $0x178] sm:$0x7f]
  %v71 = vld [vmem:[%s0 + $0x180] sm:$0x7f]
  %vm72 = vcmask 1046528
  %v73 = vsel %vm72, %v23, 0.0
  %v74 = vsel %vm72, %v30, 0.0
  %v75 = vadd.f32 %v73, %v74
  %v76 = vsel %vm72, %v37, 0.0
  %v77 = vadd.f32 %v75, %v76
  %v78 = vsel %vm72, %v44, 0.0
  %v79 = vadd.f32 %v77, %v78
  %v80 = vsel %vm72, %v51, 0.0
  %v81 = vadd.f32 %v79, %v80
  %v82 = vsel %vm72, %v58, 0.0
  %v83 = vadd.f32 %v81, %v82
  %v84 = vsel %vm72, %v65, 0.0
  %v85 = vadd.f32 %v83, %v84
  %v86 = vrot.slane %v85, 4
  %v87 = vadd.f32 %v85, %v86
  %v88 = vrot.slane %v87, 2
  %v89 = vadd.f32 %v87, %v88
  %v90 = vrot.slane %v89, 1
  %v91 = vadd.f32 %v89, %v90
  %v92 = vsel %vm72, %v24, 0.0
  %v93 = vsel %vm72, %v31, 0.0
  %v94 = vadd.f32 %v92, %v93
  %v95 = vsel %vm72, %v38, 0.0
  %v96 = vadd.f32 %v94, %v95
  %v97 = vsel %vm72, %v45, 0.0
  %v98 = vadd.f32 %v96, %v97
  %v99 = vsel %vm72, %v52, 0.0
  %v100 = vadd.f32 %v98, %v99
  %v101 = vsel %vm72, %v59, 0.0
  %v102 = vadd.f32 %v100, %v101
  %v103 = vsel %vm72, %v66, 0.0
  %v104 = vadd.f32 %v102, %v103
  %v105 = vrot.slane %v104, 4
  %v106 = vadd.f32 %v104, %v105
  %v107 = vrot.slane %v106, 2
  %v108 = vadd.f32 %v106, %v107
  %v109 = vrot.slane %v108, 1
  %v110 = vadd.f32 %v108, %v109
  %v111 = vsel %vm72, %v25, 0.0
  %v112 = vsel %vm72, %v32, 0.0
  %v113 = vadd.f32 %v111, %v112
  %v114 = vsel %vm72, %v39, 0.0
  %v115 = vadd.f32 %v113, %v114
  %v116 = vsel %vm72, %v46, 0.0
  %v117 = vadd.f32 %v115, %v116
  %v118 = vsel %vm72, %v53, 0.0
  %v119 = vadd.f32 %v117, %v118
  %v120 = vsel %vm72, %v60, 0.0
  %v121 = vadd.f32 %v119, %v120
  %v122 = vsel %vm72, %v67, 0.0
  %v123 = vadd.f32 %v121, %v122
  %v124 = vrot.slane %v123, 4
  %v125 = vadd.f32 %v123, %v124
  %v126 = vrot.slane %v125, 2
  %v127 = vadd.f32 %v125, %v126
  %v128 = vrot.slane %v127, 1
  %v129 = vadd.f32 %v127, %v128
  %v130 = vsel %vm72, %v26, 0.0
  %v131 = vsel %vm72, %v33, 0.0
  %v132 = vadd.f32 %v130, %v131
  %v133 = vsel %vm72, %v40, 0.0
  %v134 = vadd.f32 %v132, %v133
  %v135 = vsel %vm72, %v47, 0.0
  %v136 = vadd.f32 %v134, %v135
  %v137 = vsel %vm72, %v54, 0.0
  %v138 = vadd.f32 %v136, %v137
  %v139 = vsel %vm72, %v61, 0.0
  %v140 = vadd.f32 %v138, %v139
  %v141 = vsel %vm72, %v68, 0.0
  %v142 = vadd.f32 %v140, %v141
  %v143 = vrot.slane %v142, 4
  %v144 = vadd.f32 %v142, %v143
  %v145 = vrot.slane %v144, 2
  %v146 = vadd.f32 %v144, %v145
  %v147 = vrot.slane %v146, 1
  %v148 = vadd.f32 %v146, %v147
  %v149 = vsel %vm72, %v27, 0.0
  %v150 = vsel %vm72, %v34, 0.0
  %v151 = vadd.f32 %v149, %v150
  %v152 = vsel %vm72, %v41, 0.0
  %v153 = vadd.f32 %v151, %v152
  %v154 = vsel %vm72, %v48, 0.0
  %v155 = vadd.f32 %v153, %v154
  %v156 = vsel %vm72, %v55, 0.0
  %v157 = vadd.f32 %v155, %v156
  %v158 = vsel %vm72, %v62, 0.0
  %v159 = vadd.f32 %v157, %v158
  %v160 = vsel %vm72, %v69, 0.0
  %v161 = vadd.f32 %v159, %v160
  %v162 = vrot.slane %v161, 4
  %v163 = vadd.f32 %v161, %v162
  %v164 = vrot.slane %v163, 2
  %v165 = vadd.f32 %v163, %v164
  %v166 = vrot.slane %v165, 1
  %v167 = vadd.f32 %v165, %v166
  %v168 = vsel %vm72, %v28, 0.0
  %v169 = vsel %vm72, %v35, 0.0
  %v170 = vadd.f32 %v168, %v169
  %v171 = vsel %vm72, %v42, 0.0
  %v172 = vadd.f32 %v170, %v171
  %v173 = vsel %vm72, %v49, 0.0
  %v174 = vadd.f32 %v172, %v173
  %v175 = vsel %vm72, %v56, 0.0
  %v176 = vadd.f32 %v174, %v175
  %v177 = vsel %vm72, %v63, 0.0
  %v178 = vadd.f32 %v176, %v177
  %v179 = vsel %vm72, %v70, 0.0
  %v180 = vadd.f32 %v178, %v179
  %v181 = vrot.slane %v180, 4
  %v182 = vadd.f32 %v180, %v181
  %v183 = vrot.slane %v182, 2
  %v184 = vadd.f32 %v182, %v183
  %v185 = vrot.slane %v184, 1
  %v186 = vadd.f32 %v184, %v185
  %vm187 = vcmask 784384
  %v188 = vsel %vm187, %v29, 0.0
  %v189 = vsel %vm187, %v36, 0.0
  %v190 = vadd.f32 %v188, %v189
  %v191 = vsel %vm187, %v43, 0.0
  %v192 = vadd.f32 %v190, %v191
  %v193 = vsel %vm187, %v50, 0.0
  %v194 = vadd.f32 %v192, %v193
  %v195 = vsel %vm187, %v57, 0.0
  %v196 = vadd.f32 %v194, %v195
  %v197 = vsel %vm187, %v64, 0.0
  %v198 = vadd.f32 %v196, %v197
  %v199 = vsel %vm187, %v71, 0.0
  %v200 = vadd.f32 %v198, %v199
  %v201 = vrot.slane %v200, 4
  %v202 = vadd.f32 %v200, %v201
  %v203 = vrot.slane %v202, 2
  %v204 = vadd.f32 %v202, %v203
  %v205 = vrot.slane %v204, 1
  %v206 = vadd.f32 %v204, %v205
  %v207 = vmul.f32 %v23, %v23
  %v208 = vmul.f32 %v24, %v24
  %v209 = vmul.f32 %v25, %v25
  %v210 = vmul.f32 %v26, %v26
  %v211 = vmul.f32 %v27, %v27
  %v212 = vmul.f32 %v28, %v28
  %v213 = vmul.f32 %v29, %v29
  %v214 = vmul.f32 %v30, %v30
  %v215 = vmul.f32 %v31, %v31
  %v216 = vmul.f32 %v32, %v32
  %v217 = vmul.f32 %v33, %v33
  %v218 = vmul.f32 %v34, %v34
  %v219 = vmul.f32 %v35, %v35
  %v220 = vmul.f32 %v36, %v36
  %v221 = vmul.f32 %v37, %v37
  %v222 = vmul.f32 %v38, %v38
  %v223 = vmul.f32 %v39, %v39
  %v224 = vmul.f32 %v40, %v40
  %v225 = vmul.f32 %v41, %v41
  %v226 = vmul.f32 %v42, %v42
  %v227 = vmul.f32 %v43, %v43
  %v228 = vmul.f32 %v44, %v44
  %v229 = vmul.f32 %v45, %v45
  %v230 = vmul.f32 %v46, %v46
  %v231 = vmul.f32 %v47, %v47
  %v232 = vmul.f32 %v48, %v48
  %v233 = vmul.f32 %v49, %v49
  %v234 = vmul.f32 %v50, %v50
  %v235 = vmul.f32 %v51, %v51
  %v236 = vmul.f32 %v52, %v52
  %v237 = vmul.f32 %v53, %v53
  %v238 = vmul.f32 %v54, %v54
  %v239 = vmul.f32 %v55, %v55
  %v240 = vmul.f32 %v56, %v56
  %v241 = vmul.f32 %v57, %v57
  %v242 = vmul.f32 %v58, %v58
  %v243 = vmul.f32 %v59, %v59
  %v244 = vmul.f32 %v60, %v60
  %v245 = vmul.f32 %v61, %v61
  %v246 = vmul.f32 %v62, %v62
  %v247 = vmul.f32 %v63, %v63
  %v248 = vmul.f32 %v64, %v64
  %v249 = vmul.f32 %v65, %v65
  %v250 = vmul.f32 %v66, %v66
  %v251 = vmul.f32 %v67, %v67
  %v252 = vmul.f32 %v68, %v68
  %v253 = vmul.f32 %v69, %v69
  %v254 = vmul.f32 %v70, %v70
  %v255 = vmul.f32 %v71, %v71
  %v256 = vsel %vm72, %v207, 0.0
  %v257 = vsel %vm72, %v214, 0.0
  %v258 = vadd.f32 %v256, %v257
  %v259 = vsel %vm72, %v221, 0.0
  %v260 = vadd.f32 %v258, %v259
  %v261 = vsel %vm72, %v228, 0.0
  %v262 = vadd.f32 %v260, %v261
  %v263 = vsel %vm72, %v235, 0.0
  %v264 = vadd.f32 %v262, %v263
  %v265 = vsel %vm72, %v242, 0.0
  %v266 = vadd.f32 %v264, %v265
  %v267 = vsel %vm72, %v249, 0.0
  %v268 = vadd.f32 %v266, %v267
  %v269 = vrot.slane %v268, 4
  %v270 = vadd.f32 %v268, %v269
  %v271 = vrot.slane %v270, 2
  %v272 = vadd.f32 %v270, %v271
  %v273 = vrot.slane %v272, 1
  %v274 = vadd.f32 %v272, %v273
  %v275 = vsel %vm72, %v208, 0.0
  %v276 = vsel %vm72, %v215, 0.0
  %v277 = vadd.f32 %v275, %v276
  %v278 = vsel %vm72, %v222, 0.0
  %v279 = vadd.f32 %v277, %v278
  %v280 = vsel %vm72, %v229, 0.0
  %v281 = vadd.f32 %v279, %v280
  %v282 = vsel %vm72, %v236, 0.0
  %v283 = vadd.f32 %v281, %v282
  %v284 = vsel %vm72, %v243, 0.0
  %v285 = vadd.f32 %v283, %v284
  %v286 = vsel %vm72, %v250, 0.0
  %v287 = vadd.f32 %v285, %v286
  %v288 = vrot.slane %v287, 4
  %v289 = vadd.f32 %v287, %v288
  %v290 = vrot.slane %v289, 2
  %v291 = vadd.f32 %v289, %v290
  %v292 = vrot.slane %v291, 1
  %v293 = vadd.f32 %v291, %v292
  %v294 = vsel %vm72, %v209, 0.0
  %v295 = vsel %vm72, %v216, 0.0
  %v296 = vadd.f32 %v294, %v295
  %v297 = vsel %vm72, %v223, 0.0
  %v298 = vadd.f32 %v296, %v297
  %v299 = vsel %vm72, %v230, 0.0
  %v300 = vadd.f32 %v298, %v299
  %v301 = vsel %vm72, %v237, 0.0
  %v302 = vadd.f32 %v300, %v301
  %v303 = vsel %vm72, %v244, 0.0
  %v304 = vadd.f32 %v302, %v303
  %v305 = vsel %vm72, %v251, 0.0
  %v306 = vadd.f32 %v304, %v305
  %v307 = vrot.slane %v306, 4
  %v308 = vadd.f32 %v306, %v307
  %v309 = vrot.slane %v308, 2
  %v310 = vadd.f32 %v308, %v309
  %v311 = vrot.slane %v310, 1
  %v312 = vadd.f32 %v310, %v311
  %v313 = vsel %vm72, %v210, 0.0
  %v314 = vsel %vm72, %v217, 0.0
  %v315 = vadd.f32 %v313, %v314
  %v316 = vsel %vm72, %v224, 0.0
  %v317 = vadd.f32 %v315, %v316
  %v318 = vsel %vm72, %v231, 0.0
  %v319 = vadd.f32 %v317, %v318
  %v320 = vsel %vm72, %v238, 0.0
  %v321 = vadd.f32 %v319, %v320
  %v322 = vsel %vm72, %v245, 0.0
  %v323 = vadd.f32 %v321, %v322
  %v324 = vsel %vm72, %v252, 0.0
  %v325 = vadd.f32 %v323, %v324
  %v326 = vrot.slane %v325, 4
  %v327 = vadd.f32 %v325, %v326
  %v328 = vrot.slane %v327, 2
  %v329 = vadd.f32 %v327, %v328
  %v330 = vrot.slane %v329, 1
  %v331 = vadd.f32 %v329, %v330
  %v332 = vsel %vm72, %v211, 0.0
  %v333 = vsel %vm72, %v218, 0.0
  %v334 = vadd.f32 %v332, %v333
  %v335 = vsel %vm72, %v225, 0.0
  %v336 = vadd.f32 %v334, %v335
  %v337 = vsel %vm72, %v232, 0.0
  %v338 = vadd.f32 %v336, %v337
  %v339 = vsel %vm72, %v239, 0.0
  %v340 = vadd.f32 %v338, %v339
  %v341 = vsel %vm72, %v246, 0.0
  %v342 = vadd.f32 %v340, %v341
  %v343 = vsel %vm72, %v253, 0.0
  %v344 = vadd.f32 %v342, %v343
  %v345 = vrot.slane %v344, 4
  %v346 = vadd.f32 %v344, %v345
  %v347 = vrot.slane %v346, 2
  %v348 = vadd.f32 %v346, %v347
  %v349 = vrot.slane %v348, 1
  %v350 = vadd.f32 %v348, %v349
  %v351 = vsel %vm72, %v212, 0.0
  %v352 = vsel %vm72, %v219, 0.0
  %v353 = vadd.f32 %v351, %v352
  %v354 = vsel %vm72, %v226, 0.0
  %v355 = vadd.f32 %v353, %v354
  %v356 = vsel %vm72, %v233, 0.0
  %v357 = vadd.f32 %v355, %v356
  %v358 = vsel %vm72, %v240, 0.0
  %v359 = vadd.f32 %v357, %v358
  %v360 = vsel %vm72, %v247, 0.0
  %v361 = vadd.f32 %v359, %v360
  %v362 = vsel %vm72, %v254, 0.0
  %v363 = vadd.f32 %v361, %v362
  %v364 = vrot.slane %v363, 4
  %v365 = vadd.f32 %v363, %v364
  %v366 = vrot.slane %v365, 2
  %v367 = vadd.f32 %v365, %v366
  %v368 = vrot.slane %v367, 1
  %v369 = vadd.f32 %v367, %v368
  %v370 = vsel %vm187, %v213, 0.0
  %v371 = vsel %vm187, %v220, 0.0
  %v372 = vadd.f32 %v370, %v371
  %v373 = vsel %vm187, %v227, 0.0
  %v374 = vadd.f32 %v372, %v373
  %v375 = vsel %vm187, %v234, 0.0
  %v376 = vadd.f32 %v374, %v375
  %v377 = vsel %vm187, %v241, 0.0
  %v378 = vadd.f32 %v376, %v377
  %v379 = vsel %vm187, %v248, 0.0
  %v380 = vadd.f32 %v378, %v379
  %v381 = vsel %vm187, %v255, 0.0
  %v382 = vadd.f32 %v380, %v381
  %v383 = vrot.slane %v382, 4
  %v384 = vadd.f32 %v382, %v383
  %v385 = vrot.slane %v384, 2
  %v386 = vadd.f32 %v384, %v385
  %v387 = vrot.slane %v386, 1
  %v388 = vadd.f32 %v386, %v387
  %v389 = vmul.f32 %v91, 0.020408163
  %v390 = vmul.f32 %v110, 0.020408163
  %v391 = vmul.f32 %v129, 0.020408163
  %v392 = vmul.f32 %v148, 0.020408163
  %v393 = vmul.f32 %v167, 0.020408163
  %v394 = vmul.f32 %v186, 0.020408163
  %v395 = vmul.f32 %v206, 0.020408163
  %v396 = vmul.f32 %v274, 0.020408163
  %v397 = vmul.f32 %v293, 0.020408163
  %v398 = vmul.f32 %v312, 0.020408163
  %v399 = vmul.f32 %v331, 0.020408163
  %v400 = vmul.f32 %v350, 0.020408163
  %v401 = vmul.f32 %v369, 0.020408163
  %v402 = vmul.f32 %v388, 0.020408163
  %v403 = vmul.f32 %v389, %v389
  %v404 = vmul.f32 %v390, %v390
  %v405 = vmul.f32 %v391, %v391
  %v406 = vmul.f32 %v392, %v392
  %v407 = vmul.f32 %v393, %v393
  %v408 = vmul.f32 %v394, %v394
  %v409 = vmul.f32 %v395, %v395
  %v410 = vsub.f32 %v396, %v403
  %v411 = vsub.f32 %v397, %v404
  %v412 = vsub.f32 %v398, %v405
  %v413 = vsub.f32 %v399, %v406
  %v414 = vsub.f32 %v400, %v407
  %v415 = vsub.f32 %v401, %v408
  %v416 = vsub.f32 %v402, %v409
  %v417 = vld [vmem:[%s1] sm:$0x7f]
  %v418 = vadd.f32 %v410, 1e-05
  %v419 = vadd.f32 %v411, 1e-05
  %v420 = vadd.f32 %v412, 1e-05
  %v421 = vadd.f32 %v413, 1e-05
  %v422 = vadd.f32 %v414, 1e-05
  %v423 = vadd.f32 %v415, 1e-05
  %v424 = vadd.f32 %v416, 1e-05
  %v425 = vrsqrt.pop %v418
  %v426 = vrsqrt.pop %v419
  %v427 = vrsqrt.pop %v420
  %v428 = vrsqrt.pop %v421
  %v429 = vrsqrt.pop %v422
  %v430 = vrsqrt.pop %v423
  %v431 = vrsqrt.pop %v424
  %v439 = vcombine.low %v425, %v426
  %v440 = vcombine.low %v427, %v428
  %v441 = vcombine.low %v429, %v430
  %v443 = vunpack.c.l.s4 1966171168
  %v444 = vunpack.c.0.s8 %v443
  %v445 = vlaneseq
  %v446 = vshrl.u32 %v445, 7
  %v447 = vsub.s32 %v444, %v446
  %v448 = vrot.slane %v439, %v447
  %v450 = vunpack.c.l.s4 1966171168
  %v451 = vunpack.c.0.s8 %v450
  %v452 = vlaneseq
  %v453 = vshrl.u32 %v452, 7
  %v454 = vsub.s32 %v451, %v453
  %v455 = vrot.slane %v440, %v454
  %v457 = vunpack.c.l.s4 1966171168
  %v458 = vunpack.c.0.s8 %v457
  %v459 = vlaneseq
  %v460 = vshrl.u32 %v459, 7
  %v461 = vsub.s32 %v458, %v460
  %v462 = vrot.slane %v441, %v461
  %v464 = vunpack.c.l.s4 1966171168
  %v465 = vunpack.c.0.s8 %v464
  %v466 = vlaneseq
  %v467 = vshrl.u32 %v466, 7
  %v468 = vsub.s32 %v465, %v467
  %v469 = vrot.slane %v431, %v468
  %v470 = vcombine.low %v448, %v455
  %v471 = vcombine.low %v462, %v469
  %v473 = vunpack.c.l.s4 1966171168
  %v474 = vunpack.c.0.s8 %v473
  %v475 = vlaneseq
  %v476 = vshrl.u32 %v475, 7
  %v477 = vsub.s32 %v474, %v476
  %v478 = vrot.slane %v470, %v477
  %v480 = vunpack.c.l.s4 1966171168
  %v481 = vunpack.c.0.s8 %v480
  %v482 = vlaneseq
  %v483 = vshrl.u32 %v482, 7
  %v484 = vsub.s32 %v481, %v483
  %v485 = vrot.slane %v471, %v484
  %v486 = vcombine.low %v478, %v485
  %v488 = vmul.f32 %v417, %v486
  %v489 = vld [vmem:[%s2] sm:$0x7f]
  %v491 = vlaneseq
  %v492 = vshrl.u32 %v491, 7
  %v493 = vsub.s32 0, %v492
  %v494 = vrot.slane %v488, %v493
  %v495 = vlaneseq
  %v496 = vshrl.u32 %v495, 7
  %v497 = vsub.s32 1, %v496
  %v498 = vrot.slane %v488, %v497
  %v499 = vlaneseq
  %v500 = vshrl.u32 %v499, 7
  %v501 = vsub.s32 2, %v500
  %v502 = vrot.slane %v488, %v501
  %v503 = vlaneseq
  %v504 = vshrl.u32 %v503, 7
  %v505 = vsub.s32 3, %v504
  %v506 = vrot.slane %v488, %v505
  %v507 = vlaneseq
  %v508 = vshrl.u32 %v507, 7
  %v509 = vsub.s32 4, %v508
  %v510 = vrot.slane %v488, %v509
  %v511 = vlaneseq
  %v512 = vshrl.u32 %v511, 7
  %v513 = vsub.s32 5, %v512
  %v514 = vrot.slane %v488, %v513
  %v515 = vlaneseq
  %v516 = vshrl.u32 %v515, 7
  %v517 = vsub.s32 6, %v516
  %v518 = vrot.slane %v488, %v517
  %v526 = vmul.f32 %v389, %v494
  %v527 = vmul.f32 %v390, %v498
  %v528 = vmul.f32 %v391, %v502
  %v529 = vmul.f32 %v392, %v506
  %v530 = vmul.f32 %v393, %v510
  %v531 = vmul.f32 %v394, %v514
  %v532 = vmul.f32 %v395, %v518
  %v540 = vcombine.low %v526, %v527
  %v541 = vcombine.low %v528, %v529
  %v542 = vcombine.low %v530, %v531
  %v544 = vunpack.c.l.s4 1966171168
  %v545 = vunpack.c.0.s8 %v544
  %v546 = vlaneseq
  %v547 = vshrl.u32 %v546, 7
  %v548 = vsub.s32 %v545, %v547
  %v549 = vrot.slane %v540, %v548
  %v551 = vunpack.c.l.s4 1966171168
  %v552 = vunpack.c.0.s8 %v551
  %v553 = vlaneseq
  %v554 = vshrl.u32 %v553, 7
  %v555 = vsub.s32 %v552, %v554
  %v556 = vrot.slane %v541, %v555
  %v558 = vunpack.c.l.s4 1966171168
  %v559 = vunpack.c.0.s8 %v558
  %v560 = vlaneseq
  %v561 = vshrl.u32 %v560, 7
  %v562 = vsub.s32 %v559, %v561
  %v563 = vrot.slane %v542, %v562
  %v565 = vunpack.c.l.s4 1966171168
  %v566 = vunpack.c.0.s8 %v565
  %v567 = vlaneseq
  %v568 = vshrl.u32 %v567, 7
  %v569 = vsub.s32 %v566, %v568
  %v570 = vrot.slane %v532, %v569
  %v571 = vcombine.low %v549, %v556
  %v572 = vcombine.low %v563, %v570
  %v574 = vunpack.c.l.s4 1966171168
  %v575 = vunpack.c.0.s8 %v574
  %v576 = vlaneseq
  %v577 = vshrl.u32 %v576, 7
  %v578 = vsub.s32 %v575, %v577
  %v579 = vrot.slane %v571, %v578
  %v581 = vunpack.c.l.s4 1966171168
  %v582 = vunpack.c.0.s8 %v581
  %v583 = vlaneseq
  %v584 = vshrl.u32 %v583, 7
  %v585 = vsub.s32 %v582, %v584
  %v586 = vrot.slane %v572, %v585
  %v587 = vcombine.low %v579, %v586
  %v589 = vsub.f32 %v489, %v587
  %v590 = vmul.f32 %v23, %v494
  %v591 = vmul.f32 %v24, %v498
  %v592 = vmul.f32 %v25, %v502
  %v593 = vmul.f32 %v26, %v506
  %v594 = vmul.f32 %v27, %v510
  %v595 = vmul.f32 %v28, %v514
  %v596 = vmul.f32 %v29, %v518
  %v597 = vmul.f32 %v30, %v494
  %v598 = vmul.f32 %v31, %v498
  %v599 = vmul.f32 %v32, %v502
  %v600 = vmul.f32 %v33, %v506
  %v601 = vmul.f32 %v34, %v510
  %v602 = vmul.f32 %v35, %v514
  %v603 = vmul.f32 %v36, %v518
  %v604 = vmul.f32 %v37, %v494
  %v605 = vmul.f32 %v38, %v498
  %v606 = vmul.f32 %v39, %v502
  %v607 = vmul.f32 %v40, %v506
  %v608 = vmul.f32 %v41, %v510
  %v609 = vmul.f32 %v42, %v514
  %v610 = vmul.f32 %v43, %v518
  %v611 = vmul.f32 %v44, %v494
  %v612 = vmul.f32 %v45, %v498
  %v613 = vmul.f32 %v46, %v502
  %v614 = vmul.f32 %v47, %v506
  %v615 = vmul.f32 %v48, %v510
  %v616 = vmul.f32 %v49, %v514
  %v617 = vmul.f32 %v50, %v518
  %v618 = vmul.f32 %v51, %v494
  %v619 = vmul.f32 %v52, %v498
  %v620 = vmul.f32 %v53, %v502
  %v621 = vmul.f32 %v54, %v506
  %v622 = vmul.f32 %v55, %v510
  %v623 = vmul.f32 %v56, %v514
  %v624 = vmul.f32 %v57, %v518
  %v625 = vmul.f32 %v58, %v494
  %v626 = vmul.f32 %v59, %v498
  %v627 = vmul.f32 %v60, %v502
  %v628 = vmul.f32 %v61, %v506
  %v629 = vmul.f32 %v62, %v510
  %v630 = vmul.f32 %v63, %v514
  %v631 = vmul.f32 %v64, %v518
  %v632 = vmul.f32 %v65, %v494
  %v633 = vmul.f32 %v66, %v498
  %v634 = vmul.f32 %v67, %v502
  %v635 = vmul.f32 %v68, %v506
  %v636 = vmul.f32 %v69, %v510
  %v637 = vmul.f32 %v70, %v514
  %v638 = vmul.f32 %v71, %v518
  %v640 = vlaneseq
  %v641 = vshrl.u32 %v640, 7
  %v642 = vsub.s32 0, %v641
  %v643 = vrot.slane %v589, %v642
  %v644 = vlaneseq
  %v645 = vshrl.u32 %v644, 7
  %v646 = vsub.s32 1, %v645
  %v647 = vrot.slane %v589, %v646
  %v648 = vlaneseq
  %v649 = vshrl.u32 %v648, 7
  %v650 = vsub.s32 2, %v649
  %v651 = vrot.slane %v589, %v650
  %v652 = vlaneseq
  %v653 = vshrl.u32 %v652, 7
  %v654 = vsub.s32 3, %v653
  %v655 = vrot.slane %v589, %v654
  %v656 = vlaneseq
  %v657 = vshrl.u32 %v656, 7
  %v658 = vsub.s32 4, %v657
  %v659 = vrot.slane %v589, %v658
  %v660 = vlaneseq
  %v661 = vshrl.u32 %v660, 7
  %v662 = vsub.s32 5, %v661
  %v663 = vrot.slane %v589, %v662
  %v664 = vlaneseq
  %v665 = vshrl.u32 %v664, 7
  %v666 = vsub.s32 6, %v665
  %v667 = vrot.slane %v589, %v666
  %v675 = vadd.f32 %v590, %v643
  %v676 = vadd.f32 %v591, %v647
  %v677 = vadd.f32 %v592, %v651
  %v678 = vadd.f32 %v593, %v655
  %v679 = vadd.f32 %v594, %v659
  %v680 = vadd.f32 %v595, %v663
  %v681 = vadd.f32 %v596, %v667
  %v682 = vadd.f32 %v597, %v643
  %v683 = vadd.f32 %v598, %v647
  %v684 = vadd.f32 %v599, %v651
  %v685 = vadd.f32 %v600, %v655
  %v686 = vadd.f32 %v601, %v659
  %v687 = vadd.f32 %v602, %v663
  %v688 = vadd.f32 %v603, %v667
  %v689 = vadd.f32 %v604, %v643
  %v690 = vadd.f32 %v605, %v647
  %v691 = vadd.f32 %v606, %v651
  %v692 = vadd.f32 %v607, %v655
  %v693 = vadd.f32 %v608, %v659
  %v694 = vadd.f32 %v609, %v663
  %v695 = vadd.f32 %v610, %v667
  %v696 = vadd.f32 %v611, %v643
  %v697 = vadd.f32 %v612, %v647
  %v698 = vadd.f32 %v613, %v651
  %v699 = vadd.f32 %v614, %v655
  %v700 = vadd.f32 %v615, %v659
  %v701 = vadd.f32 %v616, %v663
  %v702 = vadd.f32 %v617, %v667
  %v703 = vadd.f32 %v618, %v643
  %v704 = vadd.f32 %v619, %v647
  %v705 = vadd.f32 %v620, %v651
  %v706 = vadd.f32 %v621, %v655
  %v707 = vadd.f32 %v622, %v659
  %v708 = vadd.f32 %v623, %v663
  %v709 = vadd.f32 %v624, %v667
  %v710 = vadd.f32 %v625, %v643
  %v711 = vadd.f32 %v626, %v647
  %v712 = vadd.f32 %v627, %v651
  %v713 = vadd.f32 %v628, %v655
  %v714 = vadd.f32 %v629, %v659
  %v715 = vadd.f32 %v630, %v663
  %v716 = vadd.f32 %v631, %v667
  %v717 = vadd.f32 %v632, %v643
  %v718 = vadd.f32 %v633, %v647
  %v719 = vadd.f32 %v634, %v651
  %v720 = vadd.f32 %v635, %v655
  %v721 = vadd.f32 %v636, %v659
  %v722 = vadd.f32 %v637, %v663
  %v723 = vadd.f32 %v638, %v667
  %v724 = vmax.f32 %v675, 0.0
  %v725 = vmax.f32 %v676, 0.0
  %v726 = vmax.f32 %v677, 0.0
  %v727 = vmax.f32 %v678, 0.0
  %v728 = vmax.f32 %v679, 0.0
  %v729 = vmax.f32 %v680, 0.0
  %v730 = vmax.f32 %v681, 0.0
  %v731 = vmax.f32 %v682, 0.0
  %v732 = vmax.f32 %v683, 0.0
  %v733 = vmax.f32 %v684, 0.0
  %v734 = vmax.f32 %v685, 0.0
  %v735 = vmax.f32 %v686, 0.0
  %v736 = vmax.f32 %v687, 0.0
  %v737 = vmax.f32 %v688, 0.0
  %v738 = vmax.f32 %v689, 0.0
  %v739 = vmax.f32 %v690, 0.0
  %v740 = vmax.f32 %v691, 0.0
  %v741 = vmax.f32 %v692, 0.0
  %v742 = vmax.f32 %v693, 0.0
  %v743 = vmax.f32 %v694, 0.0
  %v744 = vmax.f32 %v695, 0.0
  %v745 = vmax.f32 %v696, 0.0
  %v746 = vmax.f32 %v697, 0.0
  %v747 = vmax.f32 %v698, 0.0
  %v748 = vmax.f32 %v699, 0.0
  %v749 = vmax.f32 %v700, 0.0
  %v750 = vmax.f32 %v701, 0.0
  %v751 = vmax.f32 %v702, 0.0
  %v752 = vmax.f32 %v703, 0.0
  %v753 = vmax.f32 %v704, 0.0
  %v754 = vmax.f32 %v705, 0.0
  %v755 = vmax.f32 %v706, 0.0
  %v756 = vmax.f32 %v707, 0.0
  %v757 = vmax.f32 %v708, 0.0
  %v758 = vmax.f32 %v709, 0.0
  %v759 = vmax.f32 %v710, 0.0
  %v760 = vmax.f32 %v711, 0.0
  %v761 = vmax.f32 %v712, 0.0
  %v762 = vmax.f32 %v713, 0.0
  %v763 = vmax.f32 %v714, 0.0
  %v764 = vmax.f32 %v715, 0.0
  %v765 = vmax.f32 %v716, 0.0
  %v766 = vmax.f32 %v717, 0.0
  %v767 = vmax.f32 %v718, 0.0
  %v768 = vmax.f32 %v719, 0.0
  %v769 = vmax.f32 %v720, 0.0
  %v770 = vmax.f32 %v721, 0.0
  %v771 = vmax.f32 %v722, 0.0
  %v772 = vmax.f32 %v723, 0.0
  %773 = vst [vmem:[#allocation2] sm:$0xff] 0.0
  %774 = vst [vmem:[#allocation2 + $0x8] sm:$0xff] 0.0
  %775 = vst [vmem:[#allocation2 + $0x10] sm:$0xff] 0.0
  %776 = vst [vmem:[#allocation2 + $0x18] sm:$0xff] 0.0
  %777 = vst [vmem:[#allocation2 + $0x20] sm:$0xff] 0.0
  %778 = vst [vmem:[#allocation2 + $0x28] sm:$0xff] 0.0
  %vm779 = vcmask 785408
  %780 = vst.msk [vmem:[#allocation2 + $0x30] sm:$0xff] %vm779, 0.0
  %781 = vst [vmem:[#allocation2 + $0x38] sm:$0x7] 0.0
  %782 = vst [vmem:[#allocation2 + $0x40] sm:$0x7] 0.0
  %783 = vst [vmem:[#allocation2 + $0x48] sm:$0x7] 0.0
  %784 = vst [vmem:[#allocation2 + $0x50] sm:$0x7] 0.0
  %785 = vst [vmem:[#allocation2 + $0x58] sm:$0x7] 0.0
  %786 = vst [vmem:[#allocation2 + $0x60] sm:$0x7] 0.0
  %vm787 = vcmask 780288
  %788 = vst.msk [vmem:[#allocation2 + $0x68] sm:$0x7] %vm787, 0.0
  %789 = vst [vmem:[#allocation2 + $0x70] sm:$0xff] 0.0
  %790 = vst [vmem:[#allocation2 + $0x78] sm:$0xff] 0.0
  %791 = vst [vmem:[#allocation2 + $0x80] sm:$0xff] 0.0
  %792 = vst [vmem:[#allocation2 + $0x88] sm:$0xff] 0.0
  %793 = vst [vmem:[#allocation2 + $0x90] sm:$0xff] 0.0
  %794 = vst [vmem:[#allocation2 + $0x98] sm:$0xff] 0.0
  %795 = vst.msk [vmem:[#allocation2 + $0xa0] sm:$0xff] %vm779, 0.0
  %796 = vst [vmem:[#allocation2 + $0xa8] sm:$0x7] 0.0
  %797 = vst [vmem:[#allocation2 + $0xb0] sm:$0x7] 0.0
  %798 = vst [vmem:[#allocation2 + $0xb8] sm:$0x7] 0.0
  %799 = vst [vmem:[#allocation2 + $0xc0] sm:$0x7] 0.0
  %800 = vst [vmem:[#allocation2 + $0xc8] sm:$0x7] 0.0
  %801 = vst [vmem:[#allocation2 + $0xd0] sm:$0x7] 0.0
  %802 = vst.msk [vmem:[#allocation2 + $0xd8] sm:$0x7] %vm787, 0.0
  %s803 = scalar_lea.vmem [#allocation2], 1008
  %804 = vst [vmem:[%s803] sm:$0xff] 0.0
  %805 = vst [vmem:[%s803 + $0x8] sm:$0xff] 0.0
  %806 = vst [vmem:[%s803 + $0x10] sm:$0xff] 0.0
  %807 = vst [vmem:[%s803 + $0x18] sm:$0xff] 0.0
  %808 = vst [vmem:[%s803 + $0x20] sm:$0xff] 0.0
  %809 = vst [vmem:[%s803 + $0x28] sm:$0xff] 0.0
  %810 = vst.msk [vmem:[%s803 + $0x30] sm:$0xff] %vm779, 0.0
  %811 = vst [vmem:[%s803 + $0x38] sm:$0x7] 0.0
  %812 = vst [vmem:[%s803 + $0x40] sm:$0x7] 0.0
  %813 = vst [vmem:[%s803 + $0x48] sm:$0x7] 0.0
  %814 = vst [vmem:[%s803 + $0x50] sm:$0x7] 0.0
  %815 = vst [vmem:[%s803 + $0x58] sm:$0x7] 0.0
  %816 = vst [vmem:[%s803 + $0x60] sm:$0x7] 0.0
  %817 = vst.msk [vmem:[%s803 + $0x68] sm:$0x7] %vm787, 0.0
  %818 = vst [vmem:[%s803 + $0x70] sm:$0xff] 0.0
  %819 = vst [vmem:[%s803 + $0x78] sm:$0xff] 0.0
  %820 = vst [vmem:[%s803 + $0x80] sm:$0xff] 0.0
  %821 = vst [vmem:[%s803 + $0x88] sm:$0xff] 0.0
  %822 = vst [vmem:[%s803 + $0x90] sm:$0xff] 0.0
  %823 = vst [vmem:[%s803 + $0x98] sm:$0xff] 0.0
  %824 = vst.msk [vmem:[%s803 + $0xa0] sm:$0xff] %vm779, 0.0
  %825 = vst [vmem:[%s803 + $0xa8] sm:$0x7] 0.0
  %826 = vst [vmem:[%s803 + $0xb0] sm:$0x7] 0.0
  %827 = vst [vmem:[%s803 + $0xb8] sm:$0x7] 0.0
  %828 = vst [vmem:[%s803 + $0xc0] sm:$0x7] 0.0
  %829 = vst [vmem:[%s803 + $0xc8] sm:$0x7] 0.0
  %830 = vst [vmem:[%s803 + $0xd0] sm:$0x7] 0.0
  %831 = vst.msk [vmem:[%s803 + $0xd8] sm:$0x7] %vm787, 0.0
  %s832 = scalar_lea.vmem [#allocation2], 224
  %833 = vst [vmem:[%s832] sm:$0x3] 0.0
  %834 = vst [vmem:[%s832 + $0x8] sm:$0x3] 0.0
  %835 = vst [vmem:[%s832 + $0x10] sm:$0x3] 0.0
  %836 = vst [vmem:[%s832 + $0x18] sm:$0x3] 0.0
  %837 = vst [vmem:[%s832 + $0x20] sm:$0x3] 0.0
  %838 = vst [vmem:[%s832 + $0x28] sm:$0x3] 0.0
  %vm839 = vcmask 779264
  %840 = vst.msk [vmem:[%s832 + $0x30] sm:$0x3] %vm839, 0.0
  %841 = vst [vmem:[%s832 + $0x70] sm:$0x3] 0.0
  %842 = vst [vmem:[%s832 + $0x78] sm:$0x3] 0.0
  %843 = vst [vmem:[%s832 + $0x80] sm:$0x3] 0.0
  %844 = vst [vmem:[%s832 + $0x88] sm:$0x3] 0.0
  %845 = vst [vmem:[%s832 + $0x90] sm:$0x3] 0.0
  %846 = vst [vmem:[%s832 + $0x98] sm:$0x3] 0.0
  %847 = vst.msk [vmem:[%s832 + $0xa0] sm:$0x3] %vm839, 0.0
  %848 = vst [vmem:[%s832 + $0xe0] sm:$0x3] 0.0
  %849 = vst [vmem:[%s832 + $0xe8] sm:$0x3] 0.0
  %850 = vst [vmem:[%s832 + $0xf0] sm:$0x3] 0.0
  %851 = vst [vmem:[%s832 + $0xf8] sm:$0x3] 0.0
  %852 = vst [vmem:[%s832 + $0x100] sm:$0x3] 0.0
  %853 = vst [vmem:[%s832 + $0x108] sm:$0x3] 0.0
  %854 = vst.msk [vmem:[%s832 + $0x110] sm:$0x3] %vm839, 0.0
  %855 = vst [vmem:[%s832 + $0x150] sm:$0x3] 0.0
  %856 = vst [vmem:[%s832 + $0x158] sm:$0x3] 0.0
  %857 = vst [vmem:[%s832 + $0x160] sm:$0x3] 0.0
  %858 = vst [vmem:[%s832 + $0x168] sm:$0x3] 0.0
  %859 = vst [vmem:[%s832 + $0x170] sm:$0x3] 0.0
  %860 = vst [vmem:[%s832 + $0x178] sm:$0x3] 0.0
  %861 = vst.msk [vmem:[%s832 + $0x180] sm:$0x3] %vm839, 0.0
  %862 = vst [vmem:[%s832 + $0x1c0] sm:$0x3] 0.0
  %863 = vst [vmem:[%s832 + $0x1c8] sm:$0x3] 0.0
  %864 = vst [vmem:[%s832 + $0x1d0] sm:$0x3] 0.0
  %865 = vst [vmem:[%s832 + $0x1d8] sm:$0x3] 0.0
  %866 = vst [vmem:[%s832 + $0x1e0] sm:$0x3] 0.0
  %867 = vst [vmem:[%s832 + $0x1e8] sm:$0x3] 0.0
  %868 = vst.msk [vmem:[%s832 + $0x1f0] sm:$0x3] %vm839, 0.0
  %869 = vst [vmem:[%s832 + $0x230] sm:$0x3] 0.0
  %870 = vst [vmem:[%s832 + $0x238] sm:$0x3] 0.0
  %871 = vst [vmem:[%s832 + $0x240] sm:$0x3] 0.0
  %872 = vst [vmem:[%s832 + $0x248] sm:$0x3] 0.0
  %873 = vst [vmem:[%s832 + $0x250] sm:$0x3] 0.0
  %874 = vst [vmem:[%s832 + $0x258] sm:$0x3] 0.0
  %875 = vst.msk [vmem:[%s832 + $0x260] sm:$0x3] %vm839, 0.0
  %876 = vst [vmem:[%s832 + $0x2a0] sm:$0x3] 0.0
  %877 = vst [vmem:[%s832 + $0x2a8] sm:$0x3] 0.0
  %878 = vst [vmem:[%s832 + $0x2b0] sm:$0x3] 0.0
  %879 = vst [vmem:[%s832 + $0x2b8] sm:$0x3] 0.0
  %880 = vst [vmem:[%s832 + $0x2c0] sm:$0x3] 0.0
  %881 = vst [vmem:[%s832 + $0x2c8] sm:$0x3] 0.0
  %882 = vst.msk [vmem:[%s832 + $0x2d0] sm:$0x3] %vm839, 0.0
  %883 = vst [vmem:[%s832 + $0x38] sm:$0x6] 0.0
  %884 = vst [vmem:[%s832 + $0x40] sm:$0x6] 0.0
  %885 = vst [vmem:[%s832 + $0x48] sm:$0x6] 0.0
  %886 = vst [vmem:[%s832 + $0x50] sm:$0x6] 0.0
  %887 = vst [vmem:[%s832 + $0x58] sm:$0x6] 0.0
  %888 = vst [vmem:[%s832 + $0x60] sm:$0x6] 0.0
  %vm889 = vcmask 780289
  %890 = vst.msk [vmem:[%s832 + $0x68] sm:$0x6] %vm889, 0.0
  %891 = vst [vmem:[%s832 + $0xa8] sm:$0x6] 0.0
  %892 = vst [vmem:[%s832 + $0xb0] sm:$0x6] 0.0
  %893 = vst [vmem:[%s832 + $0xb8] sm:$0x6] 0.0
  %894 = vst [vmem:[%s832 + $0xc0] sm:$0x6] 0.0
  %895 = vst [vmem:[%s832 + $0xc8] sm:$0x6] 0.0
  %896 = vst [vmem:[%s832 + $0xd0] sm:$0x6] 0.0
  %897 = vst.msk [vmem:[%s832 + $0xd8] sm:$0x6] %vm889, 0.0
  %898 = vst [vmem:[%s832 + $0x118] sm:$0x6] 0.0
  %899 = vst [vmem:[%s832 + $0x120] sm:$0x6] 0.0
  %900 = vst [vmem:[%s832 + $0x128] sm:$0x6] 0.0
  %901 = vst [vmem:[%s832 + $0x130] sm:$0x6] 0.0
  %902 = vst [vmem:[%s832 + $0x138] sm:$0x6] 0.0
  %903 = vst [vmem:[%s832 + $0x140] sm:$0x6] 0.0
  %904 = vst.msk [vmem:[%s832 + $0x148] sm:$0x6] %vm889, 0.0
  %905 = vst [vmem:[%s832 + $0x188] sm:$0x6] 0.0
  %906 = vst [vmem:[%s832 + $0x190] sm:$0x6] 0.0
  %907 = vst [vmem:[%s832 + $0x198] sm:$0x6] 0.0
  %908 = vst [vmem:[%s832 + $0x1a0] sm:$0x6] 0.0
  %909 = vst [vmem:[%s832 + $0x1a8] sm:$0x6] 0.0
  %910 = vst [vmem:[%s832 + $0x1b0] sm:$0x6] 0.0
  %911 = vst.msk [vmem:[%s832 + $0x1b8] sm:$0x6] %vm889, 0.0
  %912 = vst [vmem:[%s832 + $0x1f8] sm:$0x6] 0.0
  %913 = vst [vmem:[%s832 + $0x200] sm:$0x6] 0.0
  %914 = vst [vmem:[%s832 + $0x208] sm:$0x6] 0.0
  %915 = vst [vmem:[%s832 + $0x210] sm:$0x6] 0.0
  %916 = vst [vmem:[%s832 + $0x218] sm:$0x6] 0.0
  %917 = vst [vmem:[%s832 + $0x220] sm:$0x6] 0.0
  %918 = vst.msk [vmem:[%s832 + $0x228] sm:$0x6] %vm889, 0.0
  %919 = vst [vmem:[%s832 + $0x268] sm:$0x6] 0.0
  %920 = vst [vmem:[%s832 + $0x270] sm:$0x6] 0.0
  %921 = vst [vmem:[%s832 + $0x278] sm:$0x6] 0.0
  %922 = vst [vmem:[%s832 + $0x280] sm:$0x6] 0.0
  %923 = vst [vmem:[%s832 + $0x288] sm:$0x6] 0.0
  %924 = vst [vmem:[%s832 + $0x290] sm:$0x6] 0.0
  %925 = vst.msk [vmem:[%s832 + $0x298] sm:$0x6] %vm889, 0.0
  %926 = vst [vmem:[%s832 + $0x2d8] sm:$0x6] 0.0
  %927 = vst [vmem:[%s832 + $0x2e0] sm:$0x6] 0.0
  %928 = vst [vmem:[%s832 + $0x2e8] sm:$0x6] 0.0
  %929 = vst [vmem:[%s832 + $0x2f0] sm:$0x6] 0.0
  %930 = vst [vmem:[%s832 + $0x2f8] sm:$0x6] 0.0
  %931 = vst [vmem:[%s832 + $0x300] sm:$0x6] 0.0
  %932 = vst.msk [vmem:[%s832 + $0x308] sm:$0x6] %vm889, 0.0
  %v982 = vrot.slane %v724, 6
  %v983 = vrot.slane %v725, 6
  %v984 = vrot.slane %v726, 6
  %v985 = vrot.slane %v727, 6
  %v986 = vrot.slane %v728, 6
  %v987 = vrot.slane %v729, 6
  %v988 = vrot.slane %v730, 6
  %v989 = vrot.slane %v731, 6
  %v990 = vrot.slane %v732, 6
  %v991 = vrot.slane %v733, 6
  %v992 = vrot.slane %v734, 6
  %v993 = vrot.slane %v735, 6
  %v994 = vrot.slane %v736, 6
  %v995 = vrot.slane %v737, 6
  %v996 = vrot.slane %v738, 6
  %v997 = vrot.slane %v739, 6
  %v998 = vrot.slane %v740, 6
  %v999 = vrot.slane %v741, 6
  %v1000 = vrot.slane %v742, 6
  %v1001 = vrot.slane %v743, 6
  %v1002 = vrot.slane %v744, 6
  %v1003 = vrot.slane %v745, 6
  %v1004 = vrot.slane %v746, 6
  %v1005 = vrot.slane %v747, 6
  %v1006 = vrot.slane %v748, 6
  %v1007 = vrot.slane %v749, 6
  %v1008 = vrot.slane %v750, 6
  %v1009 = vrot.slane %v751, 6
  %v1010 = vrot.slane %v752, 6
  %v1011 = vrot.slane %v753, 6
  %v1012 = vrot.slane %v754, 6
  %v1013 = vrot.slane %v755, 6
  %v1014 = vrot.slane %v756, 6
  %v1015 = vrot.slane %v757, 6
  %v1016 = vrot.slane %v758, 6
  %v1017 = vrot.slane %v759, 6
  %v1018 = vrot.slane %v760, 6
  %v1019 = vrot.slane %v761, 6
  %v1020 = vrot.slane %v762, 6
  %v1021 = vrot.slane %v763, 6
  %v1022 = vrot.slane %v764, 6
  %v1023 = vrot.slane %v765, 6
  %v1024 = vrot.slane %v766, 6
  %v1025 = vrot.slane %v767, 6
  %v1026 = vrot.slane %v768, 6
  %v1027 = vrot.slane %v769, 6
  %v1028 = vrot.slane %v770, 6
  %v1029 = vrot.slane %v771, 6
  %v1030 = vrot.slane %v772, 6
  %1080 = vst [vmem:[%s832] sm:$0xfc] %v982
  %1081 = vst [vmem:[%s832 + $0x8] sm:$0xfc] %v983
  %1082 = vst [vmem:[%s832 + $0x10] sm:$0xfc] %v984
  %1083 = vst [vmem:[%s832 + $0x18] sm:$0xfc] %v985
  %1084 = vst [vmem:[%s832 + $0x20] sm:$0xfc] %v986
  %1085 = vst [vmem:[%s832 + $0x28] sm:$0xfc] %v987
  %vm1086 = vcmask 785410
  %1087 = vst.msk [vmem:[%s832 + $0x30] sm:$0xfc] %vm1086, %v988
  %1088 = vst [vmem:[%s832 + $0x38] sm:$0x1] %v982
  %1089 = vst [vmem:[%s832 + $0x40] sm:$0x1] %v983
  %1090 = vst [vmem:[%s832 + $0x48] sm:$0x1] %v984
  %1091 = vst [vmem:[%s832 + $0x50] sm:$0x1] %v985
  %1092 = vst [vmem:[%s832 + $0x58] sm:$0x1] %v986
  %1093 = vst [vmem:[%s832 + $0x60] sm:$0x1] %v987
  %vm1094 = vcmask 778240
  %1095 = vst.msk [vmem:[%s832 + $0x68] sm:$0x1] %vm1094, %v988
  %1096 = vst [vmem:[%s832 + $0x70] sm:$0xfc] %v989
  %1097 = vst [vmem:[%s832 + $0x78] sm:$0xfc] %v990
  %1098 = vst [vmem:[%s832 + $0x80] sm:$0xfc] %v991
  %1099 = vst [vmem:[%s832 + $0x88] sm:$0xfc] %v992
  %1100 = vst [vmem:[%s832 + $0x90] sm:$0xfc] %v993
  %1101 = vst [vmem:[%s832 + $0x98] sm:$0xfc] %v994
  %1102 = vst.msk [vmem:[%s832 + $0xa0] sm:$0xfc] %vm1086, %v995
  %1103 = vst [vmem:[%s832 + $0xa8] sm:$0x1] %v989
  %1104 = vst [vmem:[%s832 + $0xb0] sm:$0x1] %v990
  %1105 = vst [vmem:[%s832 + $0xb8] sm:$0x1] %v991
  %1106 = vst [vmem:[%s832 + $0xc0] sm:$0x1] %v992
  %1107 = vst [vmem:[%s832 + $0xc8] sm:$0x1] %v993
  %1108 = vst [vmem:[%s832 + $0xd0] sm:$0x1] %v994
  %1109 = vst.msk [vmem:[%s832 + $0xd8] sm:$0x1] %vm1094, %v995
  %1110 = vst [vmem:[%s832 + $0xe0] sm:$0xfc] %v996
  %1111 = vst [vmem:[%s832 + $0xe8] sm:$0xfc] %v997
  %1112 = vst [vmem:[%s832 + $0xf0] sm:$0xfc] %v998
  %1113 = vst [vmem:[%s832 + $0xf8] sm:$0xfc] %v999
  %1114 = vst [vmem:[%s832 + $0x100] sm:$0xfc] %v1000
  %1115 = vst [vmem:[%s832 + $0x108] sm:$0xfc] %v1001
  %1116 = vst.msk [vmem:[%s832 + $0x110] sm:$0xfc] %vm1086, %v1002
  %1117 = vst [vmem:[%s832 + $0x118] sm:$0x1] %v996
  %1118 = vst [vmem:[%s832 + $0x120] sm:$0x1] %v997
  %1119 = vst [vmem:[%s832 + $0x128] sm:$0x1] %v998
  %1120 = vst [vmem:[%s832 + $0x130] sm:$0x1] %v999
  %1121 = vst [vmem:[%s832 + $0x138] sm:$0x1] %v1000
  %1122 = vst [vmem:[%s832 + $0x140] sm:$0x1] %v1001
  %1123 = vst.msk [vmem:[%s832 + $0x148] sm:$0x1] %vm1094, %v1002
  %1124 = vst [vmem:[%s832 + $0x150] sm:$0xfc] %v1003
  %1125 = vst [vmem:[%s832 + $0x158] sm:$0xfc] %v1004
  %1126 = vst [vmem:[%s832 + $0x160] sm:$0xfc] %v1005
  %1127 = vst [vmem:[%s832 + $0x168] sm:$0xfc] %v1006
  %1128 = vst [vmem:[%s832 + $0x170] sm:$0xfc] %v1007
  %1129 = vst [vmem:[%s832 + $0x178] sm:$0xfc] %v1008
  %1130 = vst.msk [vmem:[%s832 + $0x180] sm:$0xfc] %vm1086, %v1009
  %1131 = vst [vmem:[%s832 + $0x188] sm:$0x1] %v1003
  %1132 = vst [vmem:[%s832 + $0x190] sm:$0x1] %v1004
  %1133 = vst [vmem:[%s832 + $0x198] sm:$0x1] %v1005
  %1134 = vst [vmem:[%s832 + $0x1a0] sm:$0x1] %v1006
  %1135 = vst [vmem:[%s832 + $0x1a8] sm:$0x1] %v1007
  %1136 = vst [vmem:[%s832 + $0x1b0] sm:$0x1] %v1008
  %1137 = vst.msk [vmem:[%s832 + $0x1b8] sm:$0x1] %vm1094, %v1009
  %1138 = vst [vmem:[%s832 + $0x1c0] sm:$0xfc] %v1010
  %1139 = vst [vmem:[%s832 + $0x1c8] sm:$0xfc] %v1011
  %1140 = vst [vmem:[%s832 + $0x1d0] sm:$0xfc] %v1012
  %1141 = vst [vmem:[%s832 + $0x1d8] sm:$0xfc] %v1013
  %1142 = vst [vmem:[%s832 + $0x1e0] sm:$0xfc] %v1014
  %1143 = vst [vmem:[%s832 + $0x1e8] sm:$0xfc] %v1015
  %1144 = vst.msk [vmem:[%s832 + $0x1f0] sm:$0xfc] %vm1086, %v1016
  %1145 = vst [vmem:[%s832 + $0x1f8] sm:$0x1] %v1010
  %1146 = vst [vmem:[%s832 + $0x200] sm:$0x1] %v1011
  %1147 = vst [vmem:[%s832 + $0x208] sm:$0x1] %v1012
  %1148 = vst [vmem:[%s832 + $0x210] sm:$0x1] %v1013
  %1149 = vst [vmem:[%s832 + $0x218] sm:$0x1] %v1014
  %1150 = vst [vmem:[%s832 + $0x220] sm:$0x1] %v1015
  %1151 = vst.msk [vmem:[%s832 + $0x228] sm:$0x1] %vm1094, %v1016
  %1152 = vst [vmem:[%s832 + $0x230] sm:$0xfc] %v1017
  %1153 = vst [vmem:[%s832 + $0x238] sm:$0xfc] %v1018
  %1154 = vst [vmem:[%s832 + $0x240] sm:$0xfc] %v1019
  %1155 = vst [vmem:[%s832 + $0x248] sm:$0xfc] %v1020
  %1156 = vst [vmem:[%s832 + $0x250] sm:$0xfc] %v1021
  %1157 = vst [vmem:[%s832 + $0x258] sm:$0xfc] %v1022
  %1158 = vst.msk [vmem:[%s832 + $0x260] sm:$0xfc] %vm1086, %v1023
  %1159 = vst [vmem:[%s832 + $0x268] sm:$0x1] %v1017
  %1160 = vst [vmem:[%s832 + $0x270] sm:$0x1] %v1018
  %1161 = vst [vmem:[%s832 + $0x278] sm:$0x1] %v1019
  %1162 = vst [vmem:[%s832 + $0x280] sm:$0x1] %v1020
  %1163 = vst [vmem:[%s832 + $0x288] sm:$0x1] %v1021
  %1164 = vst [vmem:[%s832 + $0x290] sm:$0x1] %v1022
  %1165 = vst.msk [vmem:[%s832 + $0x298] sm:$0x1] %vm1094, %v1023
  %1166 = vst [vmem:[%s832 + $0x2a0] sm:$0xfc] %v1024
  %1167 = vst [vmem:[%s832 + $0x2a8] sm:$0xfc] %v1025
  %1168 = vst [vmem:[%s832 + $0x2b0] sm:$0xfc] %v1026
  %1169 = vst [vmem:[%s832 + $0x2b8] sm:$0xfc] %v1027
  %1170 = vst [vmem:[%s832 + $0x2c0] sm:$0xfc] %v1028
  %1171 = vst [vmem:[%s832 + $0x2c8] sm:$0xfc] %v1029
  %1172 = vst.msk [vmem:[%s832 + $0x2d0] sm:$0xfc] %vm1086, %v1030
  %1173 = vst [vmem:[%s832 + $0x2d8] sm:$0x1] %v1024
  %1174 = vst [vmem:[%s832 + $0x2e0] sm:$0x1] %v1025
  %1175 = vst [vmem:[%s832 + $0x2e8] sm:$0x1] %v1026
  %1176 = vst [vmem:[%s832 + $0x2f0] sm:$0x1] %v1027
  %1177 = vst [vmem:[%s832 + $0x2f8] sm:$0x1] %v1028
  %1178 = vst [vmem:[%s832 + $0x300] sm:$0x1] %v1029
  %1179 = vst.msk [vmem:[%s832 + $0x308] sm:$0x1] %vm1094, %v1030
  %v1180 = vld [vmem:[#allocation2] sm:$0x7f]
  %v1181 = vld [vmem:[#allocation2 + $0x8] sm:$0x7f]
  %v1182 = vld [vmem:[#allocation2 + $0x10] sm:$0x7f]
  %v1183 = vld [vmem:[#allocation2 + $0x18] sm:$0x7f]
  %v1184 = vld [vmem:[#allocation2 + $0x20] sm:$0x7f]
  %v1185 = vld [vmem:[#allocation2 + $0x28] sm:$0x7f]
  %v1186 = vld [vmem:[#allocation2 + $0x30] sm:$0x7f]
  %v1187 = vld [vmem:[#allocation2 + $0x70] sm:$0x7f]
  %v1188 = vld [vmem:[#allocation2 + $0x78] sm:$0x7f]
  %v1189 = vld [vmem:[#allocation2 + $0x80] sm:$0x7f]
  %v1190 = vld [vmem:[#allocation2 + $0x88] sm:$0x7f]
  %v1191 = vld [vmem:[#allocation2 + $0x90] sm:$0x7f]
  %v1192 = vld [vmem:[#allocation2 + $0x98] sm:$0x7f]
  %v1193 = vld [vmem:[#allocation2 + $0xa0] sm:$0x7f]
  %v1194 = vld [vmem:[#allocation2 + $0xe0] sm:$0x7f]
  %v1195 = vld [vmem:[#allocation2 + $0xe8] sm:$0x7f]
  %v1196 = vld [vmem:[#allocation2 + $0xf0] sm:$0x7f]
  %v1197 = vld [vmem:[#allocation2 + $0xf8] sm:$0x7f]
  %v1198 = vld [vmem:[#allocation2 + $0x100] sm:$0x7f]
  %v1199 = vld [vmem:[#allocation2 + $0x108] sm:$0x7f]
  %v1200 = vld [vmem:[#allocation2 + $0x110] sm:$0x7f]
  %v1201 = vld [vmem:[#allocation2 + $0x150] sm:$0x7f]
  %v1202 = vld [vmem:[#allocation2 + $0x158] sm:$0x7f]
  %v1203 = vld [vmem:[#allocation2 + $0x160] sm:$0x7f]
  %v1204 = vld [vmem:[#allocation2 + $0x168] sm:$0x7f]
  %v1205 = vld [vmem:[#allocation2 + $0x170] sm:$0x7f]
  %v1206 = vld [vmem:[#allocation2 + $0x178] sm:$0x7f]
  %v1207 = vld [vmem:[#allocation2 + $0x180] sm:$0x7f]
  %v1208 = vld [vmem:[#allocation2 + $0x1c0] sm:$0x7f]
  %v1209 = vld [vmem:[#allocation2 + $0x1c8] sm:$0x7f]
  %v1210 = vld [vmem:[#allocation2 + $0x1d0] sm:$0x7f]
  %v1211 = vld [vmem:[#allocation2 + $0x1d8] sm:$0x7f]
  %v1212 = vld [vmem:[#allocation2 + $0x1e0] sm:$0x7f]
  %v1213 = vld [vmem:[#allocation2 + $0x1e8] sm:$0x7f]
  %v1214 = vld [vmem:[#allocation2 + $0x1f0] sm:$0x7f]
  %v1215 = vld [vmem:[#allocation2 + $0x230] sm:$0x7f]
  %v1216 = vld [vmem:[#allocation2 + $0x238] sm:$0x7f]
  %v1217 = vld [vmem:[#allocation2 + $0x240] sm:$0x7f]
  %v1218 = vld [vmem:[#allocation2 + $0x248] sm:$0x7f]
  %v1219 = vld [vmem:[#allocation2 + $0x250] sm:$0x7f]
  %v1220 = vld [vmem:[#allocation2 + $0x258] sm:$0x7f]
  %v1221 = vld [vmem:[#allocation2 + $0x260] sm:$0x7f]
  %v1222 = vld [vmem:[#allocation2 + $0x2a0] sm:$0x7f]
  %v1223 = vld [vmem:[#allocation2 + $0x2a8] sm:$0x7f]
  %v1224 = vld [vmem:[#allocation2 + $0x2b0] sm:$0x7f]
  %v1225 = vld [vmem:[#allocation2 + $0x2b8] sm:$0x7f]
  %v1226 = vld [vmem:[#allocation2 + $0x2c0] sm:$0x7f]
  %v1227 = vld [vmem:[#allocation2 + $0x2c8] sm:$0x7f]
  %v1228 = vld [vmem:[#allocation2 + $0x2d0] sm:$0x7f]
  %v1229 = vld [vmem:[#allocation2 + $0x310] sm:$0x7f]
  %v1230 = vld [vmem:[#allocation2 + $0x318] sm:$0x7f]
  %v1231 = vld [vmem:[#allocation2 + $0x320] sm:$0x7f]
  %v1232 = vld [vmem:[#allocation2 + $0x328] sm:$0x7f]
  %v1233 = vld [vmem:[#allocation2 + $0x330] sm:$0x7f]
  %v1234 = vld [vmem:[#allocation2 + $0x338] sm:$0x7f]
  %v1235 = vld [vmem:[#allocation2 + $0x340] sm:$0x7f]
  %v1236 = vld [vmem:[#allocation2 + $0x380] sm:$0x7f]
  %v1237 = vld [vmem:[#allocation2 + $0x388] sm:$0x7f]
  %v1238 = vld [vmem:[#allocation2 + $0x390] sm:$0x7f]
  %v1239 = vld [vmem:[#allocation2 + $0x398] sm:$0x7f]
  %v1240 = vld [vmem:[#allocation2 + $0x3a0] sm:$0x7f]
  %v1241 = vld [vmem:[#allocation2 + $0x3a8] sm:$0x7f]
  %v1242 = vld [vmem:[#allocation2 + $0x3b0] sm:$0x7f]
  %v1243 = vld [vmem:[#allocation2 + $0x3f0] sm:$0x7f]
  %v1244 = vld [vmem:[#allocation2 + $0x3f8] sm:$0x7f]
  %v1245 = vld [vmem:[#allocation2 + $0x400] sm:$0x7f]
  %v1246 = vld [vmem:[#allocation2 + $0x408] sm:$0x7f]
  %v1247 = vld [vmem:[#allocation2 + $0x410] sm:$0x7f]
  %v1248 = vld [vmem:[#allocation2 + $0x418] sm:$0x7f]
  %v1249 = vld [vmem:[#allocation2 + $0x420] sm:$0x7f]
  %v1250 = vld [vmem:[#allocation2 + $0x460] sm:$0x7f]
  %v1251 = vld [vmem:[#allocation2 + $0x468] sm:$0x7f]
  %v1252 = vld [vmem:[#allocation2 + $0x470] sm:$0x7f]
  %v1253 = vld [vmem:[#allocation2 + $0x478] sm:$0x7f]
  %v1254 = vld [vmem:[#allocation2 + $0x480] sm:$0x7f]
  %v1255 = vld [vmem:[#allocation2 + $0x488] sm:$0x7f]
  %v1256 = vld [vmem:[#allocation2 + $0x490] sm:$0x7f]
  %1257 = vst [vmem:[#allocation3] sm:$0x7f] %v1180
  %1258 = vst [vmem:[#allocation3 + $0x8] sm:$0x7f] %v1181
  %1259 = vst [vmem:[#allocation3 + $0x10] sm:$0x7f] %v1182
  %1260 = vst [vmem:[#allocation3 + $0x18] sm:$0x7f] %v1183
  %1261 = vst [vmem:[#allocation3 + $0x20] sm:$0x7f] %v1184
  %1262 = vst [vmem:[#allocation3 + $0x28] sm:$0x7f] %v1185
  %1263 = vst.msk [vmem:[#allocation3 + $0x30] sm:$0x7f] %vm187, %v1186
  %1264 = vst [vmem:[#allocation3 + $0x38] sm:$0x7f] %v1187
  %1265 = vst [vmem:[#allocation3 + $0x40] sm:$0x7f] %v1188
  %1266 = vst [vmem:[#allocation3 + $0x48] sm:$0x7f] %v1189
  %1267 = vst [vmem:[#allocation3 + $0x50] sm:$0x7f] %v1190
  %1268 = vst [vmem:[#allocation3 + $0x58] sm:$0x7f] %v1191
  %1269 = vst [vmem:[#allocation3 + $0x60] sm:$0x7f] %v1192
  %1270 = vst.msk [vmem:[#allocation3 + $0x68] sm:$0x7f] %vm187, %v1193
  %1271 = vst [vmem:[#allocation3 + $0x70] sm:$0x7f] %v1194
  %1272 = vst [vmem:[#allocation3 + $0x78] sm:$0x7f] %v1195
  %1273 = vst [vmem:[#allocation3 + $0x80] sm:$0x7f] %v1196
  %1274 = vst [vmem:[#allocation3 + $0x88] sm:$0x7f] %v1197
  %1275 = vst [vmem:[#allocation3 + $0x90] sm:$0x7f] %v1198
  %1276 = vst [vmem:[#allocation3 + $0x98] sm:$0x7f] %v1199
  %1277 = vst.msk [vmem:[#allocation3 + $0xa0] sm:$0x7f] %vm187, %v1200
  %1278 = vst [vmem:[#allocation3 + $0xa8] sm:$0x7f] %v1201
  %1279 = vst [vmem:[#allocation3 + $0xb0] sm:$0x7f] %v1202
  %1280 = vst [vmem:[#allocation3 + $0xb8] sm:$0x7f] %v1203
  %1281 = vst [vmem:[#allocation3 + $0xc0] sm:$0x7f] %v1204
  %1282 = vst [vmem:[#allocation3 + $0xc8] sm:$0x7f] %v1205
  %1283 = vst [vmem:[#allocation3 + $0xd0] sm:$0x7f] %v1206
  %1284 = vst.msk [vmem:[#allocation3 + $0xd8] sm:$0x7f] %vm187, %v1207
  %1285 = vst [vmem:[#allocation3 + $0xe0] sm:$0x7f] %v1208
  %1286 = vst [vmem:[#allocation3 + $0xe8] sm:$0x7f] %v1209
  %1287 = vst [vmem:[#allocation3 + $0xf0] sm:$0x7f] %v1210
  %1288 = vst [vmem:[#allocation3 + $0xf8] sm:$0x7f] %v1211
  %1289 = vst [vmem:[#allocation3 + $0x100] sm:$0x7f] %v1212
  %1290 = vst [vmem:[#allocation3 + $0x108] sm:$0x7f] %v1213
  %1291 = vst.msk [vmem:[#allocation3 + $0x110] sm:$0x7f] %vm187, %v1214
  %1292 = vst [vmem:[#allocation3 + $0x118] sm:$0x7f] %v1215
  %1293 = vst [vmem:[#allocation3 + $0x120] sm:$0x7f] %v1216
  %1294 = vst [vmem:[#allocation3 + $0x128] sm:$0x7f] %v1217
  %1295 = vst [vmem:[#allocation3 + $0x130] sm:$0x7f] %v1218
  %1296 = vst [vmem:[#allocation3 + $0x138] sm:$0x7f] %v1219
  %1297 = vst [vmem:[#allocation3 + $0x140] sm:$0x7f] %v1220
  %1298 = vst.msk [vmem:[#allocation3 + $0x148] sm:$0x7f] %vm187, %v1221
  %1299 = vst [vmem:[#allocation3 + $0x150] sm:$0x7f] %v1222
  %1300 = vst [vmem:[#allocation3 + $0x158] sm:$0x7f] %v1223
  %1301 = vst [vmem:[#allocation3 + $0x160] sm:$0x7f] %v1224
  %1302 = vst [vmem:[#allocation3 + $0x168] sm:$0x7f] %v1225
  %1303 = vst [vmem:[#allocation3 + $0x170] sm:$0x7f] %v1226
  %1304 = vst [vmem:[#allocation3 + $0x178] sm:$0x7f] %v1227
  %1305 = vst.msk [vmem:[#allocation3 + $0x180] sm:$0x7f] %vm187, %v1228
  %1306 = vst [vmem:[#allocation3 + $0x188] sm:$0x7f] %v1229
  %1307 = vst [vmem:[#allocation3 + $0x190] sm:$0x7f] %v1230
  %1308 = vst [vmem:[#allocation3 + $0x198] sm:$0x7f] %v1231
  %1309 = vst [vmem:[#allocation3 + $0x1a0] sm:$0x7f] %v1232
  %1310 = vst [vmem:[#allocation3 + $0x1a8] sm:$0x7f] %v1233
  %1311 = vst [vmem:[#allocation3 + $0x1b0] sm:$0x7f] %v1234
  %1312 = vst.msk [vmem:[#allocation3 + $0x1b8] sm:$0x7f] %vm187, %v1235
  %1313 = vst [vmem:[#allocation3 + $0x1c0] sm:$0x7f] %v1236
  %1314 = vst [vmem:[#allocation3 + $0x1c8] sm:$0x7f] %v1237
  %1315 = vst [vmem:[#allocation3 + $0x1d0] sm:$0x7f] %v1238
  %1316 = vst [vmem:[#allocation3 + $0x1d8] sm:$0x7f] %v1239
  %1317 = vst [vmem:[#allocation3 + $0x1e0] sm:$0x7f] %v1240
  %1318 = vst [vmem:[#allocation3 + $0x1e8] sm:$0x7f] %v1241
  %1319 = vst.msk [vmem:[#allocation3 + $0x1f0] sm:$0x7f] %vm187, %v1242
  %1320 = vst [vmem:[#allocation3 + $0x1f8] sm:$0x7f] %v1243
  %1321 = vst [vmem:[#allocation3 + $0x200] sm:$0x7f] %v1244
  %1322 = vst [vmem:[#allocation3 + $0x208] sm:$0x7f] %v1245
  %1323 = vst [vmem:[#allocation3 + $0x210] sm:$0x7f] %v1246
  %1324 = vst [vmem:[#allocation3 + $0x218] sm:$0x7f] %v1247
  %1325 = vst [vmem:[#allocation3 + $0x220] sm:$0x7f] %v1248
  %1326 = vst.msk [vmem:[#allocation3 + $0x228] sm:$0x7f] %vm187, %v1249
  %1327 = vst [vmem:[#allocation3 + $0x230] sm:$0x7f] %v1250
  %1328 = vst [vmem:[#allocation3 + $0x238] sm:$0x7f] %v1251
  %1329 = vst [vmem:[#allocation3 + $0x240] sm:$0x7f] %v1252
  %1330 = vst [vmem:[#allocation3 + $0x248] sm:$0x7f] %v1253
  %1331 = vst [vmem:[#allocation3 + $0x250] sm:$0x7f] %v1254
  %1332 = vst [vmem:[#allocation3 + $0x258] sm:$0x7f] %v1255
  %1333 = vst.msk [vmem:[#allocation3 + $0x260] sm:$0x7f] %vm187, %v1256
  %v1334 = vld [vmem:[%s3] ss:$8 sm:$0xf]
  %v1335 = vld [vmem:[%s3] ss:$8 sm:$0x70]
  %v1336 = vor.u32 %v1334, %v1335
  %v1337 = vld [vmem:[#allocation3] sm:$0x7f]
  %v1338 = vld [vmem:[#allocation3 + $0x8] sm:$0x7f]
  %v1339 = vld [vmem:[#allocation3 + $0x10] sm:$0x7f]
  %v1340 = vld [vmem:[#allocation3 + $0x18] sm:$0x7f]
  %v1341 = vld [vmem:[#allocation3 + $0x20] sm:$0x7f]
  %v1342 = vld [vmem:[#allocation3 + $0x28] sm:$0x7f]
  %v1343 = vld [vmem:[#allocation3 + $0x30] sm:$0x7f]
  %v1344 = vld [vmem:[#allocation3 + $0x38] sm:$0x7f]
  %v1345 = vld [vmem:[#allocation3 + $0x40] sm:$0x7f]
  %v1346 = vld [vmem:[#allocation3 + $0x48] sm:$0x7f]
  %v1347 = vld [vmem:[#allocation3 + $0x50] sm:$0x7f]
  %v1348 = vld [vmem:[#allocation3 + $0x58] sm:$0x7f]
  %v1349 = vld [vmem:[#allocation3 + $0x60] sm:$0x7f]
  %v1350 = vld [vmem:[#allocation3 + $0x68] sm:$0x7f]
  %v1351 = vld [vmem:[#allocation3 + $0x70] sm:$0x7f]
  %v1352 = vld [vmem:[#allocation3 + $0x78] sm:$0x7f]
  %v1353 = vld [vmem:[#allocation3 + $0x80] sm:$0x7f]
  %v1354 = vld [vmem:[#allocation3 + $0x88] sm:$0x7f]
  %v1355 = vld [vmem:[#allocation3 + $0x90] sm:$0x7f]
  %v1356 = vld [vmem:[#allocation3 + $0x98] sm:$0x7f]
  %v1357 = vld [vmem:[#allocation3 + $0xa0] sm:$0x7f]
  %v1358 = vld [vmem:[#allocation3 + $0xa8] sm:$0x7f]
  %v1359 = vld [vmem:[#allocation3 + $0xb0] sm:$0x7f]
  %v1360 = vld [vmem:[#allocation3 + $0xb8] sm:$0x7f]
  %v1361 = vld [vmem:[#allocation3 + $0xc0] sm:$0x7f]
  %v1362 = vld [vmem:[#allocation3 + $0xc8] sm:$0x7f]
  %v1363 = vld [vmem:[#allocation3 + $0xd0] sm:$0x7f]
  %v1364 = vld [vmem:[#allocation3 + $0xd8] sm:$0x7f]
  %v1365 = vld [vmem:[#allocation3 + $0xe0] sm:$0x7f]
  %v1366 = vld [vmem:[#allocation3 + $0xe8] sm:$0x7f]
  %v1367 = vld [vmem:[#allocation3 + $0xf0] sm:$0x7f]
  %v1368 = vld [vmem:[#allocation3 + $0xf8] sm:$0x7f]
  %v1369 = vld [vmem:[#allocation3 + $0x100] sm:$0x7f]
  %v1370 = vld [vmem:[#allocation3 + $0x108] sm:$0x7f]
  %v1371 = vld [vmem:[#allocation3 + $0x110] sm:$0x7f]
  %v1372 = vld [vmem:[#allocation3 + $0x118] sm:$0x7f]
  %v1373 = vld [vmem:[#allocation3 + $0x120] sm:$0x7f]
  %v1374 = vld [vmem:[#allocation3 + $0x128] sm:$0x7f]
  %v1375 = vld [vmem:[#allocation3 + $0x130] sm:$0x7f]
  %v1376 = vld [vmem:[#allocation3 + $0x138] sm:$0x7f]
  %v1377 = vld [vmem:[#allocation3 + $0x140] sm:$0x7f]
  %v1378 = vld [vmem:[#allocation3 + $0x148] sm:$0x7f]
  %v1379 = vld [vmem:[#allocation3 + $0x150] sm:$0x7f]
  %v1380 = vld [vmem:[#allocation3 + $0x158] sm:$0x7f]
  %v1381 = vld [vmem:[#allocation3 + $0x160] sm:$0x7f]
  %v1382 = vld [vmem:[#allocation3 + $0x168] sm:$0x7f]
  %v1383 = vld [vmem:[#allocation3 + $0x170] sm:$0x7f]
  %v1384 = vld [vmem:[#allocation3 + $0x178] sm:$0x7f]
  %v1385 = vld [vmem:[#allocation3 + $0x180] sm:$0x7f]
  %v1387 = vlaneseq
  %v1388 = vshrl.u32 %v1387, 7
  %v1389 = vsub.s32 0, %v1388
  %v1390 = vrot.slane %v1336, %v1389
  %v1391 = vlaneseq
  %v1392 = vshrl.u32 %v1391, 7
  %v1393 = vsub.s32 1, %v1392
  %v1394 = vrot.slane %v1336, %v1393
  %v1395 = vlaneseq
  %v1396 = vshrl.u32 %v1395, 7
  %v1397 = vsub.s32 2, %v1396
  %v1398 = vrot.slane %v1336, %v1397
  %v1399 = vlaneseq
  %v1400 = vshrl.u32 %v1399, 7
  %v1401 = vsub.s32 3, %v1400
  %v1402 = vrot.slane %v1336, %v1401
  %v1403 = vlaneseq
  %v1404 = vshrl.u32 %v1403, 7
  %v1405 = vsub.s32 4, %v1404
  %v1406 = vrot.slane %v1336, %v1405
  %v1407 = vlaneseq
  %v1408 = vshrl.u32 %v1407, 7
  %v1409 = vsub.s32 5, %v1408
  %v1410 = vrot.slane %v1336, %v1409
  %v1411 = vlaneseq
  %v1412 = vshrl.u32 %v1411, 7
  %v1413 = vsub.s32 6, %v1412
  %v1414 = vrot.slane %v1336, %v1413
  %v1422 = vmul.f32 %v1337, %v1390
  %v1423 = vmul.f32 %v1338, %v1394
  %v1424 = vmul.f32 %v1339, %v1398
  %v1425 = vmul.f32 %v1340, %v1402
  %v1426 = vmul.f32 %v1341, %v1406
  %v1427 = vmul.f32 %v1342, %v1410
  %v1428 = vmul.f32 %v1343, %v1414
  %v1429 = vmul.f32 %v1344, %v1390
  %v1430 = vmul.f32 %v1345, %v1394
  %v1431 = vmul.f32 %v1346, %v1398
  %v1432 = vmul.f32 %v1347, %v1402
  %v1433 = vmul.f32 %v1348, %v1406
  %v1434 = vmul.f32 %v1349, %v1410
  %v1435 = vmul.f32 %v1350, %v1414
  %v1436 = vmul.f32 %v1351, %v1390
  %v1437 = vmul.f32 %v1352, %v1394
  %v1438 = vmul.f32 %v1353, %v1398
  %v1439 = vmul.f32 %v1354, %v1402
  %v1440 = vmul.f32 %v1355, %v1406
  %v1441 = vmul.f32 %v1356, %v1410
  %v1442 = vmul.f32 %v1357, %v1414
  %v1443 = vmul.f32 %v1358, %v1390
  %v1444 = vmul.f32 %v1359, %v1394
  %v1445 = vmul.f32 %v1360, %v1398
  %v1446 = vmul.f32 %v1361, %v1402
  %v1447 = vmul.f32 %v1362, %v1406
  %v1448 = vmul.f32 %v1363, %v1410
  %v1449 = vmul.f32 %v1364, %v1414
  %v1450 = vmul.f32 %v1365, %v1390
  %v1451 = vmul.f32 %v1366, %v1394
  %v1452 = vmul.f32 %v1367, %v1398
  %v1453 = vmul.f32 %v1368, %v1402
  %v1454 = vmul.f32 %v1369, %v1406
  %v1455 = vmul.f32 %v1370, %v1410
  %v1456 = vmul.f32 %v1371, %v1414
  %v1457 = vmul.f32 %v1372, %v1390
  %v1458 = vmul.f32 %v1373, %v1394
  %v1459 = vmul.f32 %v1374, %v1398
  %v1460 = vmul.f32 %v1375, %v1402
  %v1461 = vmul.f32 %v1376, %v1406
  %v1462 = vmul.f32 %v1377, %v1410
  %v1463 = vmul.f32 %v1378, %v1414
  %v1464 = vmul.f32 %v1379, %v1390
  %v1465 = vmul.f32 %v1380, %v1394
  %v1466 = vmul.f32 %v1381, %v1398
  %v1467 = vmul.f32 %v1382, %v1402
  %v1468 = vmul.f32 %v1383, %v1406
  %v1469 = vmul.f32 %v1384, %v1410
  %v1470 = vmul.f32 %v1385, %v1414
  %v1471 = vadd.f32 %v1422, 0.0
  %v1472 = vadd.f32 %v1423, 0.0
  %v1473 = vadd.f32 %v1424, 0.0
  %v1474 = vadd.f32 %v1425, 0.0
  %v1475 = vadd.f32 %v1426, 0.0
  %v1476 = vadd.f32 %v1427, 0.0
  %v1477 = vadd.f32 %v1428, 0.0
  %v1478 = vadd.f32 %v1429, 0.0
  %v1479 = vadd.f32 %v1430, 0.0
  %v1480 = vadd.f32 %v1431, 0.0
  %v1481 = vadd.f32 %v1432, 0.0
  %v1482 = vadd.f32 %v1433, 0.0
  %v1483 = vadd.f32 %v1434, 0.0
  %v1484 = vadd.f32 %v1435, 0.0
  %v1485 = vadd.f32 %v1436, 0.0
  %v1486 = vadd.f32 %v1437, 0.0
  %v1487 = vadd.f32 %v1438, 0.0
  %v1488 = vadd.f32 %v1439, 0.0
  %v1489 = vadd.f32 %v1440, 0.0
  %v1490 = vadd.f32 %v1441, 0.0
  %v1491 = vadd.f32 %v1442, 0.0
  %v1492 = vadd.f32 %v1443, 0.0
  %v1493 = vadd.f32 %v1444, 0.0
  %v1494 = vadd.f32 %v1445, 0.0
  %v1495 = vadd.f32 %v1446, 0.0
  %v1496 = vadd.f32 %v1447, 0.0
  %v1497 = vadd.f32 %v1448, 0.0
  %v1498 = vadd.f32 %v1449, 0.0
  %v1499 = vadd.f32 %v1450, 0.0
  %v1500 = vadd.f32 %v1451, 0.0
  %v1501 = vadd.f32 %v1452, 0.0
  %v1502 = vadd.f32 %v1453, 0.0
  %v1503 = vadd.f32 %v1454, 0.0
  %v1504 = vadd.f32 %v1455, 0.0
  %v1505 = vadd.f32 %v1456, 0.0
  %v1506 = vadd.f32 %v1457, 0.0
  %v1507 = vadd.f32 %v1458, 0.0
  %v1508 = vadd.f32 %v1459, 0.0
  %v1509 = vadd.f32 %v1460, 0.0
  %v1510 = vadd.f32 %v1461, 0.0
  %v1511 = vadd.f32 %v1462, 0.0
  %v1512 = vadd.f32 %v1463, 0.0
  %v1513 = vadd.f32 %v1464, 0.0
  %v1514 = vadd.f32 %v1465, 0.0
  %v1515 = vadd.f32 %v1466, 0.0
  %v1516 = vadd.f32 %v1467, 0.0
  %v1517 = vadd.f32 %v1468, 0.0
  %v1518 = vadd.f32 %v1469, 0.0
  %v1519 = vadd.f32 %v1470, 0.0
  %s1520 = scalar_lea.vmem %s3, 5
  %v1521 = vld [vmem:[%s1520] ss:$8 sm:$0xf]
  %v1522 = vld [vmem:[%s1520] ss:$8 sm:$0x70]
  %v1523 = vor.u32 %v1521, %v1522
  %s1524 = scalar_lea.vmem [#allocation3], 56
  %v1525 = vld [vmem:[%s1524] sm:$0x7f]
  %v1526 = vld [vmem:[%s1524 + $0x8] sm:$0x7f]
  %v1527 = vld [vmem:[%s1524 + $0x10] sm:$0x7f]
  %v1528 = vld [vmem:[%s1524 + $0x18] sm:$0x7f]
  %v1529 = vld [vmem:[%s1524 + $0x20] sm:$0x7f]
  %v1530 = vld [vmem:[%s1524 + $0x28] sm:$0x7f]
  %v1531 = vld [vmem:[%s1524 + $0x30] sm:$0x7f]
  %v1532 = vld [vmem:[%s1524 + $0x38] sm:$0x7f]
  %v1533 = vld [vmem:[%s1524 + $0x40] sm:$0x7f]
  %v1534 = vld [vmem:[%s1524 + $0x48] sm:$0x7f]
  %v1535 = vld [vmem:[%s1524 + $0x50] sm:$0x7f]
  %v1536 = vld [vmem:[%s1524 + $0x58] sm:$0x7f]
  %v1537 = vld [vmem:[%s1524 + $0x60] sm:$0x7f]
  %v1538 = vld [vmem:[%s1524 + $0x68] sm:$0x7f]
  %v1539 = vld [vmem:[%s1524 + $0x70] sm:$0x7f]
  %v1540 = vld [vmem:[%s1524 + $0x78] sm:$0x7f]
  %v1541 = vld [vmem:[%s1524 + $0x80] sm:$0x7f]
  %v1542 = vld [vmem:[%s1524 + $0x88] sm:$0x7f]
  %v1543 = vld [vmem:[%s1524 + $0x90] sm:$0x7f]
  %v1544 = vld [vmem:[%s1524 + $0x98] sm:$0x7f]
  %v1545 = vld [vmem:[%s1524 + $0xa0] sm:$0x7f]
  %v1546 = vld [vmem:[%s1524 + $0xa8] sm:$0x7f]
  %v1547 = vld [vmem:[%s1524 + $0xb0] sm:$0x7f]
  %v1548 = vld [vmem:[%s1524 + $0xb8] sm:$0x7f]
  %v1549 = vld [vmem:[%s1524 + $0xc0] sm:$0x7f]
  %v1550 = vld [vmem:[%s1524 + $0xc8] sm:$0x7f]
  %v1551 = vld [vmem:[%s1524 + $0xd0] sm:$0x7f]
  %v1552 = vld [vmem:[%s1524 + $0xd8] sm:$0x7f]
  %v1553 = vld [vmem:[%s1524 + $0xe0] sm:$0x7f]
  %v1554 = vld [vmem:[%s1524 + $0xe8] sm:$0x7f]
  %v1555 = vld [vmem:[%s1524 + $0xf0] sm:$0x7f]
  %v1556 = vld [vmem:[%s1524 + $0xf8] sm:$0x7f]
  %v1557 = vld [vmem:[%s1524 + $0x100] sm:$0x7f]
  %v1558 = vld [vmem:[%s1524 + $0x108] sm:$0x7f]
  %v1559 = vld [vmem:[%s1524 + $0x110] sm:$0x7f]
  %v1560 = vld [vmem:[%s1524 + $0x118] sm:$0x7f]
  %v1561 = vld [vmem:[%s1524 + $0x120] sm:$0x7f]
  %v1562 = vld [vmem:[%s1524 + $0x128] sm:$0x7f]
  %v1563 = vld [vmem:[%s1524 + $0x130] sm:$0x7f]
  %v1564 = vld [vmem:[%s1524 + $0x138] sm:$0x7f]
  %v1565 = vld [vmem:[%s1524 + $0x140] sm:$0x7f]
  %v1566 = vld [vmem:[%s1524 + $0x148] sm:$0x7f]
  %v1567 = vld [vmem:[%s1524 + $0x150] sm:$0x7f]
  %v1568 = vld [vmem:[%s1524 + $0x158] sm:$0x7f]
  %v1569 = vld [vmem:[%s1524 + $0x160] sm:$0x7f]
  %v1570 = vld [vmem:[%s1524 + $0x168] sm:$0x7f]
  %v1571 = vld [vmem:[%s1524 + $0x170] sm:$0x7f]
  %v1572 = vld [vmem:[%s1524 + $0x178] sm:$0x7f]
  %v1573 = vld [vmem:[%s1524 + $0x180] sm:$0x7f]
  %v1575 = vlaneseq
  %v1576 = vshrl.u32 %v1575, 7
  %v1577 = vsub.s32 0, %v1576
  %v1578 = vrot.slane %v1523, %v1577
  %v1579 = vlaneseq
  %v1580 = vshrl.u32 %v1579, 7
  %v1581 = vsub.s32 1, %v1580
  %v1582 = vrot.slane %v1523, %v1581
  %v1583 = vlaneseq
  %v1584 = vshrl.u32 %v1583, 7
  %v1585 = vsub.s32 2, %v1584
  %v1586 = vrot.slane %v1523, %v1585
  %v1587 = vlaneseq
  %v1588 = vshrl.u32 %v1587, 7
  %v1589 = vsub.s32 3, %v1588
  %v1590 = vrot.slane %v1523, %v1589
  %v1591 = vlaneseq
  %v1592 = vshrl.u32 %v1591, 7
  %v1593 = vsub.s32 4, %v1592
  %v1594 = vrot.slane %v1523, %v1593
  %v1595 = vlaneseq
  %v1596 = vshrl.u32 %v1595, 7
  %v1597 = vsub.s32 5, %v1596
  %v1598 = vrot.slane %v1523, %v1597
  %v1599 = vlaneseq
  %v1600 = vshrl.u32 %v1599, 7
  %v1601 = vsub.s32 6, %v1600
  %v1602 = vrot.slane %v1523, %v1601
  %v1610 = vmul.f32 %v1525, %v1578
  %v1611 = vmul.f32 %v1526, %v1582
  %v1612 = vmul.f32 %v1527, %v1586
  %v1613 = vmul.f32 %v1528, %v1590
  %v1614 = vmul.f32 %v1529, %v1594
  %v1615 = vmul.f32 %v1530, %v1598
  %v1616 = vmul.f32 %v1531, %v1602
  %v1617 = vmul.f32 %v1532, %v1578
  %v1618 = vmul.f32 %v1533, %v1582
  %v1619 = vmul.f32 %v1534, %v1586
  %v1620 = vmul.f32 %v1535, %v1590
  %v1621 = vmul.f32 %v1536, %v1594
  %v1622 = vmul.f32 %v1537, %v1598
  %v1623 = vmul.f32 %v1538, %v1602
  %v1624 = vmul.f32 %v1539, %v1578
  %v1625 = vmul.f32 %v1540, %v1582
  %v1626 = vmul.f32 %v1541, %v1586
  %v1627 = vmul.f32 %v1542, %v1590
  %v1628 = vmul.f32 %v1543, %v1594
  %v1629 = vmul.f32 %v1544, %v1598
  %v1630 = vmul.f32 %v1545, %v1602
  %v1631 = vmul.f32 %v1546, %v1578
  %v1632 = vmul.f32 %v1547, %v1582
  %v1633 = vmul.f32 %v1548, %v1586
  %v1634 = vmul.f32 %v1549, %v1590
  %v1635 = vmul.f32 %v1550, %v1594
  %v1636 = vmul.f32 %v1551, %v1598
  %v1637 = vmul.f32 %v1552, %v1602
  %v1638 = vmul.f32 %v1553, %v1578
  %v1639 = vmul.f32 %v1554, %v1582
  %v1640 = vmul.f32 %v1555, %v1586
  %v1641 = vmul.f32 %v1556, %v1590
  %v1642 = vmul.f32 %v1557, %v1594
  %v1643 = vmul.f32 %v1558, %v1598
  %v1644 = vmul.f32 %v1559, %v1602
  %v1645 = vmul.f32 %v1560, %v1578
  %v1646 = vmul.f32 %v1561, %v1582
  %v1647 = vmul.f32 %v1562, %v1586
  %v1648 = vmul.f32 %v1563, %v1590
  %v1649 = vmul.f32 %v1564, %v1594
  %v1650 = vmul.f32 %v1565, %v1598
  %v1651 = vmul.f32 %v1566, %v1602
  %v1652 = vmul.f32 %v1567, %v1578
  %v1653 = vmul.f32 %v1568, %v1582
  %v1654 = vmul.f32 %v1569, %v1586
  %v1655 = vmul.f32 %v1570, %v1590
  %v1656 = vmul.f32 %v1571, %v1594
  %v1657 = vmul.f32 %v1572, %v1598
  %v1658 = vmul.f32 %v1573, %v1602
  %v1659 = vadd.f32 %v1471, %v1610
  %v1660 = vadd.f32 %v1472, %v1611
  %v1661 = vadd.f32 %v1473, %v1612
  %v1662 = vadd.f32 %v1474, %v1613
  %v1663 = vadd.f32 %v1475, %v1614
  %v1664 = vadd.f32 %v1476, %v1615
  %v1665 = vadd.f32 %v1477, %v1616
  %v1666 = vadd.f32 %v1478, %v1617
  %v1667 = vadd.f32 %v1479, %v1618
  %v1668 = vadd.f32 %v1480, %v1619
  %v1669 = vadd.f32 %v1481, %v1620
  %v1670 = vadd.f32 %v1482, %v1621
  %v1671 = vadd.f32 %v1483, %v1622
  %v1672 = vadd.f32 %v1484, %v1623
  %v1673 = vadd.f32 %v1485, %v1624
  %v1674 = vadd.f32 %v1486, %v1625
  %v1675 = vadd.f32 %v1487, %v1626
  %v1676 = vadd.f32 %v1488, %v1627
  %v1677 = vadd.f32 %v1489, %v1628
  %v1678 = vadd.f32 %v1490, %v1629
  %v1679 = vadd.f32 %v1491, %v1630
  %v1680 = vadd.f32 %v1492, %v1631
  %v1681 = vadd.f32 %v1493, %v1632
  %v1682 = vadd.f32 %v1494, %v1633
  %v1683 = vadd.f32 %v1495, %v1634
  %v1684 = vadd.f32 %v1496, %v1635
  %v1685 = vadd.f32 %v1497, %v1636
  %v1686 = vadd.f32 %v1498, %v1637
  %v1687 = vadd.f32 %v1499, %v1638
  %v1688 = vadd.f32 %v1500, %v1639
  %v1689 = vadd.f32 %v1501, %v1640
  %v1690 = vadd.f32 %v1502, %v1641
  %v1691 = vadd.f32 %v1503, %v1642
  %v1692 = vadd.f32 %v1504, %v1643
  %v1693 = vadd.f32 %v1505, %v1644
  %v1694 = vadd.f32 %v1506, %v1645
  %v1695 = vadd.f32 %v1507, %v1646
  %v1696 = vadd.f32 %v1508, %v1647
  %v1697 = vadd.f32 %v1509, %v1648
  %v1698 = vadd.f32 %v1510, %v1649
  %v1699 = vadd.f32 %v1511, %v1650
  %v1700 = vadd.f32 %v1512, %v1651
  %v1701 = vadd.f32 %v1513, %v1652
  %v1702 = vadd.f32 %v1514, %v1653
  %v1703 = vadd.f32 %v1515, %v1654
  %v1704 = vadd.f32 %v1516, %v1655
  %v1705 = vadd.f32 %v1517, %v1656
  %v1706 = vadd.f32 %v1518, %v1657
  %v1707 = vadd.f32 %v1519, %v1658
  %s1708 = scalar_lea.vmem %s3, 58
  %v1709 = vld [vmem:[%s1708] ss:$8 sm:$0xf]
  %v1710 = vld [vmem:[%s1708] ss:$8 sm:$0x70]
  %v1711 = vor.u32 %v1709, %v1710
  %s1712 = scalar_lea.vmem [#allocation3], 112
  %v1713 = vld [vmem:[%s1712] sm:$0x7f]
  %v1714 = vld [vmem:[%s1712 + $0x8] sm:$0x7f]
  %v1715 = vld [vmem:[%s1712 + $0x10] sm:$0x7f]
  %v1716 = vld [vmem:[%s1712 + $0x18] sm:$0x7f]
  %v1717 = vld [vmem:[%s1712 + $0x20] sm:$0x7f]
  %v1718 = vld [vmem:[%s1712 + $0x28] sm:$0x7f]
  %v1719 = vld [vmem:[%s1712 + $0x30] sm:$0x7f]
  %v1720 = vld [vmem:[%s1712 + $0x38] sm:$0x7f]
  %v1721 = vld [vmem:[%s1712 + $0x40] sm:$0x7f]
  %v1722 = vld [vmem:[%s1712 + $0x48] sm:$0x7f]
  %v1723 = vld [vmem:[%s1712 + $0x50] sm:$0x7f]
  %v1724 = vld [vmem:[%s1712 + $0x58] sm:$0x7f]
  %v1725 = vld [vmem:[%s1712 + $0x60] sm:$0x7f]
  %v1726 = vld [vmem:[%s1712 + $0x68] sm:$0x7f]
  %v1727 = vld [vmem:[%s1712 + $0x70] sm:$0x7f]
  %v1728 = vld [vmem:[%s1712 + $0x78] sm:$0x7f]
  %v1729 = vld [vmem:[%s1712 + $0x80] sm:$0x7f]
  %v1730 = vld [vmem:[%s1712 + $0x88] sm:$0x7f]
  %v1731 = vld [vmem:[%s1712 + $0x90] sm:$0x7f]
  %v1732 = vld [vmem:[%s1712 + $0x98] sm:$0x7f]
  %v1733 = vld [vmem:[%s1712 + $0xa0] sm:$0x7f]
  %v1734 = vld [vmem:[%s1712 + $0xa8] sm:$0x7f]
  %v1735 = vld [vmem:[%s1712 + $0xb0] sm:$0x7f]
  %v1736 = vld [vmem:[%s1712 + $0xb8] sm:$0x7f]
  %v1737 = vld [vmem:[%s1712 + $0xc0] sm:$0x7f]
  %v1738 = vld [vmem:[%s1712 + $0xc8] sm:$0x7f]
  %v1739 = vld [vmem:[%s1712 + $0xd0] sm:$0x7f]
  %v1740 = vld [vmem:[%s1712 + $0xd8] sm:$0x7f]
  %v1741 = vld [vmem:[%s1712 + $0xe0] sm:$0x7f]
  %v1742 = vld [vmem:[%s1712 + $0xe8] sm:$0x7f]
  %v1743 = vld [vmem:[%s1712 + $0xf0] sm:$0x7f]
  %v1744 = vld [vmem:[%s1712 + $0xf8] sm:$0x7f]
  %v1745 = vld [vmem:[%s1712 + $0x100] sm:$0x7f]
  %v1746 = vld [vmem:[%s1712 + $0x108] sm:$0x7f]
  %v1747 = vld [vmem:[%s1712 + $0x110] sm:$0x7f]
  %v1748 = vld [vmem:[%s1712 + $0x118] sm:$0x7f]
  %v1749 = vld [vmem:[%s1712 + $0x120] sm:$0x7f]
  %v1750 = vld [vmem:[%s1712 + $0x128] sm:$0x7f]
  %v1751 = vld [vmem:[%s1712 + $0x130] sm:$0x7f]
  %v1752 = vld [vmem:[%s1712 + $0x138] sm:$0x7f]
  %v1753 = vld [vmem:[%s1712 + $0x140] sm:$0x7f]
  %v1754 = vld [vmem:[%s1712 + $0x148] sm:$0x7f]
  %v1755 = vld [vmem:[%s1712 + $0x150] sm:$0x7f]
  %v1756 = vld [vmem:[%s1712 + $0x158] sm:$0x7f]
  %v1757 = vld [vmem:[%s1712 + $0x160] sm:$0x7f]
  %v1758 = vld [vmem:[%s1712 + $0x168] sm:$0x7f]
  %v1759 = vld [vmem:[%s1712 + $0x170] sm:$0x7f]
  %v1760 = vld [vmem:[%s1712 + $0x178] sm:$0x7f]
  %v1761 = vld [vmem:[%s1712 + $0x180] sm:$0x7f]
  %v1763 = vlaneseq
  %v1764 = vshrl.u32 %v1763, 7
  %v1765 = vsub.s32 0, %v1764
  %v1766 = vrot.slane %v1711, %v1765
  %v1767 = vlaneseq
  %v1768 = vshrl.u32 %v1767, 7
  %v1769 = vsub.s32 1, %v1768
  %v1770 = vrot.slane %v1711, %v1769
  %v1771 = vlaneseq
  %v1772 = vshrl.u32 %v1771, 7
  %v1773 = vsub.s32 2, %v1772
  %v1774 = vrot.slane %v1711, %v1773
  %v1775 = vlaneseq
  %v1776 = vshrl.u32 %v1775, 7
  %v1777 = vsub.s32 3, %v1776
  %v1778 = vrot.slane %v1711, %v1777
  %v1779 = vlaneseq
  %v1780 = vshrl.u32 %v1779, 7
  %v1781 = vsub.s32 4, %v1780
  %v1782 = vrot.slane %v1711, %v1781
  %v1783 = vlaneseq
  %v1784 = vshrl.u32 %v1783, 7
  %v1785 = vsub.s32 5, %v1784
  %v1786 = vrot.slane %v1711, %v1785
  %v1787 = vlaneseq
  %v1788 = vshrl.u32 %v1787, 7
  %v1789 = vsub.s32 6, %v1788
  %v1790 = vrot.slane %v1711, %v1789
  %v1798 = vmul.f32 %v1713, %v1766
  %v1799 = vmul.f32 %v1714, %v1770
  %v1800 = vmul.f32 %v1715, %v1774
  %v1801 = vmul.f32 %v1716, %v1778
  %v1802 = vmul.f32 %v1717, %v1782
  %v1803 = vmul.f32 %v1718, %v1786
  %v1804 = vmul.f32 %v1719, %v1790
  %v1805 = vmul.f32 %v1720, %v1766
  %v1806 = vmul.f32 %v1721, %v1770
  %v1807 = vmul.f32 %v1722, %v1774
  %v1808 = vmul.f32 %v1723, %v1778
  %v1809 = vmul.f32 %v1724, %v1782
  %v1810 = vmul.f32 %v1725, %v1786
  %v1811 = vmul.f32 %v1726, %v1790
  %v1812 = vmul.f32 %v1727, %v1766
  %v1813 = vmul.f32 %v1728, %v1770
  %v1814 = vmul.f32 %v1729, %v1774
  %v1815 = vmul.f32 %v1730, %v1778
  %v1816 = vmul.f32 %v1731, %v1782
  %v1817 = vmul.f32 %v1732, %v1786
  %v1818 = vmul.f32 %v1733, %v1790
  %v1819 = vmul.f32 %v1734, %v1766
  %v1820 = vmul.f32 %v1735, %v1770
  %v1821 = vmul.f32 %v1736, %v1774
  %v1822 = vmul.f32 %v1737, %v1778
  %v1823 = vmul.f32 %v1738, %v1782
  %v1824 = vmul.f32 %v1739, %v1786
  %v1825 = vmul.f32 %v1740, %v1790
  %v1826 = vmul.f32 %v1741, %v1766
  %v1827 = vmul.f32 %v1742, %v1770
  %v1828 = vmul.f32 %v1743, %v1774
  %v1829 = vmul.f32 %v1744, %v1778
  %v1830 = vmul.f32 %v1745, %v1782
  %v1831 = vmul.f32 %v1746, %v1786
  %v1832 = vmul.f32 %v1747, %v1790
  %v1833 = vmul.f32 %v1748, %v1766
  %v1834 = vmul.f32 %v1749, %v1770
  %v1835 = vmul.f32 %v1750, %v1774
  %v1836 = vmul.f32 %v1751, %v1778
  %v1837 = vmul.f32 %v1752, %v1782
  %v1838 = vmul.f32 %v1753, %v1786
  %v1839 = vmul.f32 %v1754, %v1790
  %v1840 = vmul.f32 %v1755, %v1766
  %v1841 = vmul.f32 %v1756, %v1770
  %v1842 = vmul.f32 %v1757, %v1774
  %v1843 = vmul.f32 %v1758, %v1778
  %v1844 = vmul.f32 %v1759, %v1782
  %v1845 = vmul.f32 %v1760, %v1786
  %v1846 = vmul.f32 %v1761, %v1790
  %v1847 = vadd.f32 %v1659, %v1798
  %v1848 = vadd.f32 %v1660, %v1799
  %v1849 = vadd.f32 %v1661, %v1800
  %v1850 = vadd.f32 %v1662, %v1801
  %v1851 = vadd.f32 %v1663, %v1802
  %v1852 = vadd.f32 %v1664, %v1803
  %v1853 = vadd.f32 %v1665, %v1804
  %v1854 = vadd.f32 %v1666, %v1805
  %v1855 = vadd.f32 %v1667, %v1806
  %v1856 = vadd.f32 %v1668, %v1807
  %v1857 = vadd.f32 %v1669, %v1808
  %v1858 = vadd.f32 %v1670, %v1809
  %v1859 = vadd.f32 %v1671, %v1810
  %v1860 = vadd.f32 %v1672, %v1811
  %v1861 = vadd.f32 %v1673, %v1812
  %v1862 = vadd.f32 %v1674, %v1813
  %v1863 = vadd.f32 %v1675, %v1814
  %v1864 = vadd.f32 %v1676, %v1815
  %v1865 = vadd.f32 %v1677, %v1816
  %v1866 = vadd.f32 %v1678, %v1817
  %v1867 = vadd.f32 %v1679, %v1818
  %v1868 = vadd.f32 %v1680, %v1819
  %v1869 = vadd.f32 %v1681, %v1820
  %v1870 = vadd.f32 %v1682, %v1821
  %v1871 = vadd.f32 %v1683, %v1822
  %v1872 = vadd.f32 %v1684, %v1823
  %v1873 = vadd.f32 %v1685, %v1824
  %v1874 = vadd.f32 %v1686, %v1825
  %v1875 = vadd.f32 %v1687, %v1826
  %v1876 = vadd.f32 %v1688, %v1827
  %v1877 = vadd.f32 %v1689, %v1828
  %v1878 = vadd.f32 %v1690, %v1829
  %v1879 = vadd.f32 %v1691, %v1830
  %v1880 = vadd.f32 %v1692, %v1831
  %v1881 = vadd.f32 %v1693, %v1832
  %v1882 = vadd.f32 %v1694, %v1833
  %v1883 = vadd.f32 %v1695, %v1834
  %v1884 = vadd.f32 %v1696, %v1835
  %v1885 = vadd.f32 %v1697, %v1836
  %v1886 = vadd.f32 %v1698, %v1837
  %v1887 = vadd.f32 %v1699, %v1838
  %v1888 = vadd.f32 %v1700, %v1839
  %v1889 = vadd.f32 %v1701, %v1840
  %v1890 = vadd.f32 %v1702, %v1841
  %v1891 = vadd.f32 %v1703, %v1842
  %v1892 = vadd.f32 %v1704, %v1843
  %v1893 = vadd.f32 %v1705, %v1844
  %v1894 = vadd.f32 %v1706, %v1845
  %v1895 = vadd.f32 %v1707, %v1846
  %s1896 = scalar_lea.vmem %s3, 63
  %v1897 = vld [vmem:[%s1896] ss:$8 sm:$0xf]
  %v1898 = vld [vmem:[%s1896] ss:$8 sm:$0x70]
  %v1899 = vor.u32 %v1897, %v1898
  %s1900 = scalar_lea.vmem [#allocation3], 168
  %v1901 = vld [vmem:[%s1900] sm:$0x7f]
  %v1902 = vld [vmem:[%s1900 + $0x8] sm:$0x7f]
  %v1903 = vld [vmem:[%s1900 + $0x10] sm:$0x7f]
  %v1904 = vld [vmem:[%s1900 + $0x18] sm:$0x7f]
  %v1905 = vld [vmem:[%s1900 + $0x20] sm:$0x7f]
  %v1906 = vld [vmem:[%s1900 + $0x28] sm:$0x7f]
  %v1907 = vld [vmem:[%s1900 + $0x30] sm:$0x7f]
  %v1908 = vld [vmem:[%s1900 + $0x38] sm:$0x7f]
  %v1909 = vld [vmem:[%s1900 + $0x40] sm:$0x7f]
  %v1910 = vld [vmem:[%s1900 + $0x48] sm:$0x7f]
  %v1911 = vld [vmem:[%s1900 + $0x50] sm:$0x7f]
  %v1912 = vld [vmem:[%s1900 + $0x58] sm:$0x7f]
  %v1913 = vld [vmem:[%s1900 + $0x60] sm:$0x7f]
  %v1914 = vld [vmem:[%s1900 + $0x68] sm:$0x7f]
  %v1915 = vld [vmem:[%s1900 + $0x70] sm:$0x7f]
  %v1916 = vld [vmem:[%s1900 + $0x78] sm:$0x7f]
  %v1917 = vld [vmem:[%s1900 + $0x80] sm:$0x7f]
  %v1918 = vld [vmem:[%s1900 + $0x88] sm:$0x7f]
  %v1919 = vld [vmem:[%s1900 + $0x90] sm:$0x7f]
  %v1920 = vld [vmem:[%s1900 + $0x98] sm:$0x7f]
  %v1921 = vld [vmem:[%s1900 + $0xa0] sm:$0x7f]
  %v1922 = vld [vmem:[%s1900 + $0xa8] sm:$0x7f]
  %v1923 = vld [vmem:[%s1900 + $0xb0] sm:$0x7f]
  %v1924 = vld [vmem:[%s1900 + $0xb8] sm:$0x7f]
  %v1925 = vld [vmem:[%s1900 + $0xc0] sm:$0x7f]
  %v1926 = vld [vmem:[%s1900 + $0xc8] sm:$0x7f]
  %v1927 = vld [vmem:[%s1900 + $0xd0] sm:$0x7f]
  %v1928 = vld [vmem:[%s1900 + $0xd8] sm:$0x7f]
  %v1929 = vld [vmem:[%s1900 + $0xe0] sm:$0x7f]
  %v1930 = vld [vmem:[%s1900 + $0xe8] sm:$0x7f]
  %v1931 = vld [vmem:[%s1900 + $0xf0] sm:$0x7f]
  %v1932 = vld [vmem:[%s1900 + $0xf8] sm:$0x7f]
  %v1933 = vld [vmem:[%s1900 + $0x100] sm:$0x7f]
  %v1934 = vld [vmem:[%s1900 + $0x108] sm:$0x7f]
  %v1935 = vld [vmem:[%s1900 + $0x110] sm:$0x7f]
  %v1936 = vld [vmem:[%s1900 + $0x118] sm:$0x7f]
  %v1937 = vld [vmem:[%s1900 + $0x120] sm:$0x7f]
  %v1938 = vld [vmem:[%s1900 + $0x128] sm:$0x7f]
  %v1939 = vld [vmem:[%s1900 + $0x130] sm:$0x7f]
  %v1940 = vld [vmem:[%s1900 + $0x138] sm:$0x7f]
  %v1941 = vld [vmem:[%s1900 + $0x140] sm:$0x7f]
  %v1942 = vld [vmem:[%s1900 + $0x148] sm:$0x7f]
  %v1943 = vld [vmem:[%s1900 + $0x150] sm:$0x7f]
  %v1944 = vld [vmem:[%s1900 + $0x158] sm:$0x7f]
  %v1945 = vld [vmem:[%s1900 + $0x160] sm:$0x7f]
  %v1946 = vld [vmem:[%s1900 + $0x168] sm:$0x7f]
  %v1947 = vld [vmem:[%s1900 + $0x170] sm:$0x7f]
  %v1948 = vld [vmem:[%s1900 + $0x178] sm:$0x7f]
  %v1949 = vld [vmem:[%s1900 + $0x180] sm:$0x7f]
  %v1951 = vlaneseq
  %v1952 = vshrl.u32 %v1951, 7
  %v1953 = vsub.s32 0, %v1952
  %v1954 = vrot.slane %v1899, %v1953
  %v1955 = vlaneseq
  %v1956 = vshrl.u32 %v1955, 7
  %v1957 = vsub.s32 1, %v1956
  %v1958 = vrot.slane %v1899, %v1957
  %v1959 = vlaneseq
  %v1960 = vshrl.u32 %v1959, 7
  %v1961 = vsub.s32 2, %v1960
  %v1962 = vrot.slane %v1899, %v1961
  %v1963 = vlaneseq
  %v1964 = vshrl.u32 %v1963, 7
  %v1965 = vsub.s32 3, %v1964
  %v1966 = vrot.slane %v1899, %v1965
  %v1967 = vlaneseq
  %v1968 = vshrl.u32 %v1967, 7
  %v1969 = vsub.s32 4, %v1968
  %v1970 = vrot.slane %v1899, %v1969
  %v1971 = vlaneseq
  %v1972 = vshrl.u32 %v1971, 7
  %v1973 = vsub.s32 5, %v1972
  %v1974 = vrot.slane %v1899, %v1973
  %v1975 = vlaneseq
  %v1976 = vshrl.u32 %v1975, 7
  %v1977 = vsub.s32 6, %v1976
  %v1978 = vrot.slane %v1899, %v1977
  %v1986 = vmul.f32 %v1901, %v1954
  %v1987 = vmul.f32 %v1902, %v1958
  %v1988 = vmul.f32 %v1903, %v1962
  %v1989 = vmul.f32 %v1904, %v1966
  %v1990 = vmul.f32 %v1905, %v1970
  %v1991 = vmul.f32 %v1906, %v1974
  %v1992 = vmul.f32 %v1907, %v1978
  %v1993 = vmul.f32 %v1908, %v1954
  %v1994 = vmul.f32 %v1909, %v1958
  %v1995 = vmul.f32 %v1910, %v1962
  %v1996 = vmul.f32 %v1911, %v1966
  %v1997 = vmul.f32 %v1912, %v1970
  %v1998 = vmul.f32 %v1913, %v1974
  %v1999 = vmul.f32 %v1914, %v1978
  %v2000 = vmul.f32 %v1915, %v1954
  %v2001 = vmul.f32 %v1916, %v1958
  %v2002 = vmul.f32 %v1917, %v1962
  %v2003 = vmul.f32 %v1918, %v1966
  %v2004 = vmul.f32 %v1919, %v1970
  %v2005 = vmul.f32 %v1920, %v1974
  %v2006 = vmul.f32 %v1921, %v1978
  %v2007 = vmul.f32 %v1922, %v1954
  %v2008 = vmul.f32 %v1923, %v1958
  %v2009 = vmul.f32 %v1924, %v1962
  %v2010 = vmul.f32 %v1925, %v1966
  %v2011 = vmul.f32 %v1926, %v1970
  %v2012 = vmul.f32 %v1927, %v1974
  %v2013 = vmul.f32 %v1928, %v1978
  %v2014 = vmul.f32 %v1929, %v1954
  %v2015 = vmul.f32 %v1930, %v1958
  %v2016 = vmul.f32 %v1931, %v1962
  %v2017 = vmul.f32 %v1932, %v1966
  %v2018 = vmul.f32 %v1933, %v1970
  %v2019 = vmul.f32 %v1934, %v1974
  %v2020 = vmul.f32 %v1935, %v1978
  %v2021 = vmul.f32 %v1936, %v1954
  %v2022 = vmul.f32 %v1937, %v1958
  %v2023 = vmul.f32 %v1938, %v1962
  %v2024 = vmul.f32 %v1939, %v1966
  %v2025 = vmul.f32 %v1940, %v1970
  %v2026 = vmul.f32 %v1941, %v1974
  %v2027 = vmul.f32 %v1942, %v1978
  %v2028 = vmul.f32 %v1943, %v1954
  %v2029 = vmul.f32 %v1944, %v1958
  %v2030 = vmul.f32 %v1945, %v1962
  %v2031 = vmul.f32 %v1946, %v1966
  %v2032 = vmul.f32 %v1947, %v1970
  %v2033 = vmul.f32 %v1948, %v1974
  %v2034 = vmul.f32 %v1949, %v1978
  %v2035 = vadd.f32 %v1847, %v1986
  %v2036 = vadd.f32 %v1848, %v1987
  %v2037 = vadd.f32 %v1849, %v1988
  %v2038 = vadd.f32 %v1850, %v1989
  %v2039 = vadd.f32 %v1851, %v1990
  %v2040 = vadd.f32 %v1852, %v1991
  %v2041 = vadd.f32 %v1853, %v1992
  %v2042 = vadd.f32 %v1854, %v1993
  %v2043 = vadd.f32 %v1855, %v1994
  %v2044 = vadd.f32 %v1856, %v1995
  %v2045 = vadd.f32 %v1857, %v1996
  %v2046 = vadd.f32 %v1858, %v1997
  %v2047 = vadd.f32 %v1859, %v1998
  %v2048 = vadd.f32 %v1860, %v1999
  %v2049 = vadd.f32 %v1861, %v2000
  %v2050 = vadd.f32 %v1862, %v2001
  %v2051 = vadd.f32 %v1863, %v2002
  %v2052 = vadd.f32 %v1864, %v2003
  %v2053 = vadd.f32 %v1865, %v2004
  %v2054 = vadd.f32 %v1866, %v2005
  %v2055 = vadd.f32 %v1867, %v2006
  %v2056 = vadd.f32 %v1868, %v2007
  %v2057 = vadd.f32 %v1869, %v2008
  %v2058 = vadd.f32 %v1870, %v2009
  %v2059 = vadd.f32 %v1871, %v2010
  %v2060 = vadd.f32 %v1872, %v2011
  %v2061 = vadd.f32 %v1873, %v2012
  %v2062 = vadd.f32 %v1874, %v2013
  %v2063 = vadd.f32 %v1875, %v2014
  %v2064 = vadd.f32 %v1876, %v2015
  %v2065 = vadd.f32 %v1877, %v2016
  %v2066 = vadd.f32 %v1878, %v2017
  %v2067 = vadd.f32 %v1879, %v2018
  %v2068 = vadd.f32 %v1880, %v2019
  %v2069 = vadd.f32 %v1881, %v2020
  %v2070 = vadd.f32 %v1882, %v2021
  %v2071 = vadd.f32 %v1883, %v2022
  %v2072 = vadd.f32 %v1884, %v2023
  %v2073 = vadd.f32 %v1885, %v2024
  %v2074 = vadd.f32 %v1886, %v2025
  %v2075 = vadd.f32 %v1887, %v2026
  %v2076 = vadd.f32 %v1888, %v2027
  %v2077 = vadd.f32 %v1889, %v2028
  %v2078 = vadd.f32 %v1890, %v2029
  %v2079 = vadd.f32 %v1891, %v2030
  %v2080 = vadd.f32 %v1892, %v2031
  %v2081 = vadd.f32 %v1893, %v2032
  %v2082 = vadd.f32 %v1894, %v2033
  %v2083 = vadd.f32 %v1895, %v2034
  %s2084 = scalar_lea.vmem %s3, 116
  %v2085 = vld [vmem:[%s2084] ss:$8 sm:$0xf]
  %v2086 = vld [vmem:[%s2084] ss:$8 sm:$0x70]
  %v2087 = vor.u32 %v2085, %v2086
  %s2088 = scalar_lea.vmem [#allocation3], 224
  %v2089 = vld [vmem:[%s2088] sm:$0x7f]
  %v2090 = vld [vmem:[%s2088 + $0x8] sm:$0x7f]
  %v2091 = vld [vmem:[%s2088 + $0x10] sm:$0x7f]
  %v2092 = vld [vmem:[%s2088 + $0x18] sm:$0x7f]
  %v2093 = vld [vmem:[%s2088 + $0x20] sm:$0x7f]
  %v2094 = vld [vmem:[%s2088 + $0x28] sm:$0x7f]
  %v2095 = vld [vmem:[%s2088 + $0x30] sm:$0x7f]
  %v2096 = vld [vmem:[%s2088 + $0x38] sm:$0x7f]
  %v2097 = vld [vmem:[%s2088 + $0x40] sm:$0x7f]
  %v2098 = vld [vmem:[%s2088 + $0x48] sm:$0x7f]
  %v2099 = vld [vmem:[%s2088 + $0x50] sm:$0x7f]
  %v2100 = vld [vmem:[%s2088 + $0x58] sm:$0x7f]
  %v2101 = vld [vmem:[%s2088 + $0x60] sm:$0x7f]
  %v2102 = vld [vmem:[%s2088 + $0x68] sm:$0x7f]
  %v2103 = vld [vmem:[%s2088 + $0x70] sm:$0x7f]
  %v2104 = vld [vmem:[%s2088 + $0x78] sm:$0x7f]
  %v2105 = vld [vmem:[%s2088 + $0x80] sm:$0x7f]
  %v2106 = vld [vmem:[%s2088 + $0x88] sm:$0x7f]
  %v2107 = vld [vmem:[%s2088 + $0x90] sm:$0x7f]
  %v2108 = vld [vmem:[%s2088 + $0x98] sm:$0x7f]
  %v2109 = vld [vmem:[%s2088 + $0xa0] sm:$0x7f]
  %v2110 = vld [vmem:[%s2088 + $0xa8] sm:$0x7f]
  %v2111 = vld [vmem:[%s2088 + $0xb0] sm:$0x7f]
  %v2112 = vld [vmem:[%s2088 + $0xb8] sm:$0x7f]
  %v2113 = vld [vmem:[%s2088 + $0xc0] sm:$0x7f]
  %v2114 = vld [vmem:[%s2088 + $0xc8] sm:$0x7f]
  %v2115 = vld [vmem:[%s2088 + $0xd0] sm:$0x7f]
  %v2116 = vld [vmem:[%s2088 + $0xd8] sm:$0x7f]
  %v2117 = vld [vmem:[%s2088 + $0xe0] sm:$0x7f]
  %v2118 = vld [vmem:[%s2088 + $0xe8] sm:$0x7f]
  %v2119 = vld [vmem:[%s2088 + $0xf0] sm:$0x7f]
  %v2120 = vld [vmem:[%s2088 + $0xf8] sm:$0x7f]
  %v2121 = vld [vmem:[%s2088 + $0x100] sm:$0x7f]
  %v2122 = vld [vmem:[%s2088 + $0x108] sm:$0x7f]
  %v2123 = vld [vmem:[%s2088 + $0x110] sm:$0x7f]
  %v2124 = vld [vmem:[%s2088 + $0x118] sm:$0x7f]
  %v2125 = vld [vmem:[%s2088 + $0x120] sm:$0x7f]
  %v2126 = vld [vmem:[%s2088 + $0x128] sm:$0x7f]
  %v2127 = vld [vmem:[%s2088 + $0x130] sm:$0x7f]
  %v2128 = vld [vmem:[%s2088 + $0x138] sm:$0x7f]
  %v2129 = vld [vmem:[%s2088 + $0x140] sm:$0x7f]
  %v2130 = vld [vmem:[%s2088 + $0x148] sm:$0x7f]
  %v2131 = vld [vmem:[%s2088 + $0x150] sm:$0x7f]
  %v2132 = vld [vmem:[%s2088 + $0x158] sm:$0x7f]
  %v2133 = vld [vmem:[%s2088 + $0x160] sm:$0x7f]
  %v2134 = vld [vmem:[%s2088 + $0x168] sm:$0x7f]
  %v2135 = vld [vmem:[%s2088 + $0x170] sm:$0x7f]
  %v2136 = vld [vmem:[%s2088 + $0x178] sm:$0x7f]
  %v2137 = vld [vmem:[%s2088 + $0x180] sm:$0x7f]
  %v2139 = vlaneseq
  %v2140 = vshrl.u32 %v2139, 7
  %v2141 = vsub.s32 0, %v2140
  %v2142 = vrot.slane %v2087, %v2141
  %v2143 = vlaneseq
  %v2144 = vshrl.u32 %v2143, 7
  %v2145 = vsub.s32 1, %v2144
  %v2146 = vrot.slane %v2087, %v2145
  %v2147 = vlaneseq
  %v2148 = vshrl.u32 %v2147, 7
  %v2149 = vsub.s32 2, %v2148
  %v2150 = vrot.slane %v2087, %v2149
  %v2151 = vlaneseq
  %v2152 = vshrl.u32 %v2151, 7
  %v2153 = vsub.s32 3, %v2152
  %v2154 = vrot.slane %v2087, %v2153
  %v2155 = vlaneseq
  %v2156 = vshrl.u32 %v2155, 7
  %v2157 = vsub.s32 4, %v2156
  %v2158 = vrot.slane %v2087, %v2157
  %v2159 = vlaneseq
  %v2160 = vshrl.u32 %v2159, 7
  %v2161 = vsub.s32 5, %v2160
  %v2162 = vrot.slane %v2087, %v2161
  %v2163 = vlaneseq
  %v2164 = vshrl.u32 %v2163, 7
  %v2165 = vsub.s32 6, %v2164
  %v2166 = vrot.slane %v2087, %v2165
  %v2174 = vmul.f32 %v2089, %v2142
  %v2175 = vmul.f32 %v2090, %v2146
  %v2176 = vmul.f32 %v2091, %v2150
  %v2177 = vmul.f32 %v2092, %v2154
  %v2178 = vmul.f32 %v2093, %v2158
  %v2179 = vmul.f32 %v2094, %v2162
  %v2180 = vmul.f32 %v2095, %v2166
  %v2181 = vmul.f32 %v2096, %v2142
  %v2182 = vmul.f32 %v2097, %v2146
  %v2183 = vmul.f32 %v2098, %v2150
  %v2184 = vmul.f32 %v2099, %v2154
  %v2185 = vmul.f32 %v2100, %v2158
  %v2186 = vmul.f32 %v2101, %v2162
  %v2187 = vmul.f32 %v2102, %v2166
  %v2188 = vmul.f32 %v2103, %v2142
  %v2189 = vmul.f32 %v2104, %v2146
  %v2190 = vmul.f32 %v2105, %v2150
  %v2191 = vmul.f32 %v2106, %v2154
  %v2192 = vmul.f32 %v2107, %v2158
  %v2193 = vmul.f32 %v2108, %v2162
  %v2194 = vmul.f32 %v2109, %v2166
  %v2195 = vmul.f32 %v2110, %v2142
  %v2196 = vmul.f32 %v2111, %v2146
  %v2197 = vmul.f32 %v2112, %v2150
  %v2198 = vmul.f32 %v2113, %v2154
  %v2199 = vmul.f32 %v2114, %v2158
  %v2200 = vmul.f32 %v2115, %v2162
  %v2201 = vmul.f32 %v2116, %v2166
  %v2202 = vmul.f32 %v2117, %v2142
  %v2203 = vmul.f32 %v2118, %v2146
  %v2204 = vmul.f32 %v2119, %v2150
  %v2205 = vmul.f32 %v2120, %v2154
  %v2206 = vmul.f32 %v2121, %v2158
  %v2207 = vmul.f32 %v2122, %v2162
  %v2208 = vmul.f32 %v2123, %v2166
  %v2209 = vmul.f32 %v2124, %v2142
  %v2210 = vmul.f32 %v2125, %v2146
  %v2211 = vmul.f32 %v2126, %v2150
  %v2212 = vmul.f32 %v2127, %v2154
  %v2213 = vmul.f32 %v2128, %v2158
  %v2214 = vmul.f32 %v2129, %v2162
  %v2215 = vmul.f32 %v2130, %v2166
  %v2216 = vmul.f32 %v2131, %v2142
  %v2217 = vmul.f32 %v2132, %v2146
  %v2218 = vmul.f32 %v2133, %v2150
  %v2219 = vmul.f32 %v2134, %v2154
  %v2220 = vmul.f32 %v2135, %v2158
  %v2221 = vmul.f32 %v2136, %v2162
  %v2222 = vmul.f32 %v2137, %v2166
  %v2223 = vadd.f32 %v2035, %v2174
  %v2224 = vadd.f32 %v2036, %v2175
  %v2225 = vadd.f32 %v2037, %v2176
  %v2226 = vadd.f32 %v2038, %v2177
  %v2227 = vadd.f32 %v2039, %v2178
  %v2228 = vadd.f32 %v2040, %v2179
  %v2229 = vadd.f32 %v2041, %v2180
  %v2230 = vadd.f32 %v2042, %v2181
  %v2231 = vadd.f32 %v2043, %v2182
  %v2232 = vadd.f32 %v2044, %v2183
  %v2233 = vadd.f32 %v2045, %v2184
  %v2234 = vadd.f32 %v2046, %v2185
  %v2235 = vadd.f32 %v2047, %v2186
  %v2236 = vadd.f32 %v2048, %v2187
  %v2237 = vadd.f32 %v2049, %v2188
  %v2238 = vadd.f32 %v2050, %v2189
  %v2239 = vadd.f32 %v2051, %v2190
  %v2240 = vadd.f32 %v2052, %v2191
  %v2241 = vadd.f32 %v2053, %v2192
  %v2242 = vadd.f32 %v2054, %v2193
  %v2243 = vadd.f32 %v2055, %v2194
  %v2244 = vadd.f32 %v2056, %v2195
  %v2245 = vadd.f32 %v2057, %v2196
  %v2246 = vadd.f32 %v2058, %v2197
  %v2247 = vadd.f32 %v2059, %v2198
  %v2248 = vadd.f32 %v2060, %v2199
  %v2249 = vadd.f32 %v2061, %v2200
  %v2250 = vadd.f32 %v2062, %v2201
  %v2251 = vadd.f32 %v2063, %v2202
  %v2252 = vadd.f32 %v2064, %v2203
  %v2253 = vadd.f32 %v2065, %v2204
  %v2254 = vadd.f32 %v2066, %v2205
  %v2255 = vadd.f32 %v2067, %v2206
  %v2256 = vadd.f32 %v2068, %v2207
  %v2257 = vadd.f32 %v2069, %v2208
  %v2258 = vadd.f32 %v2070, %v2209
  %v2259 = vadd.f32 %v2071, %v2210
  %v2260 = vadd.f32 %v2072, %v2211
  %v2261 = vadd.f32 %v2073, %v2212
  %v2262 = vadd.f32 %v2074, %v2213
  %v2263 = vadd.f32 %v2075, %v2214
  %v2264 = vadd.f32 %v2076, %v2215
  %v2265 = vadd.f32 %v2077, %v2216
  %v2266 = vadd.f32 %v2078, %v2217
  %v2267 = vadd.f32 %v2079, %v2218
  %v2268 = vadd.f32 %v2080, %v2219
  %v2269 = vadd.f32 %v2081, %v2220
  %v2270 = vadd.f32 %v2082, %v2221
  %v2271 = vadd.f32 %v2083, %v2222
  %v2272 = vld [vmem:[#allocation2] sm:$0xfe]
  %v2273 = vld [vmem:[#allocation2 + $0x8] sm:$0xfe]
  %v2274 = vld [vmem:[#allocation2 + $0x10] sm:$0xfe]
  %v2275 = vld [vmem:[#allocation2 + $0x18] sm:$0xfe]
  %v2276 = vld [vmem:[#allocation2 + $0x20] sm:$0xfe]
  %v2277 = vld [vmem:[#allocation2 + $0x28] sm:$0xfe]
  %v2278 = vld [vmem:[#allocation2 + $0x30] sm:$0xfe]
  %v2279 = vld [vmem:[#allocation2 + $0x70] sm:$0xfe]
  %v2280 = vld [vmem:[#allocation2 + $0x78] sm:$0xfe]
  %v2281 = vld [vmem:[#allocation2 + $0x80] sm:$0xfe]
  %v2282 = vld [vmem:[#allocation2 + $0x88] sm:$0xfe]
  %v2283 = vld [vmem:[#allocation2 + $0x90] sm:$0xfe]
  %v2284 = vld [vmem:[#allocation2 + $0x98] sm:$0xfe]
  %v2285 = vld [vmem:[#allocation2 + $0xa0] sm:$0xfe]
  %v2286 = vld [vmem:[#allocation2 + $0xe0] sm:$0xfe]
  %v2287 = vld [vmem:[#allocation2 + $0xe8] sm:$0xfe]
  %v2288 = vld [vmem:[#allocation2 + $0xf0] sm:$0xfe]
  %v2289 = vld [vmem:[#allocation2 + $0xf8] sm:$0xfe]
  %v2290 = vld [vmem:[#allocation2 + $0x100] sm:$0xfe]
  %v2291 = vld [vmem:[#allocation2 + $0x108] sm:$0xfe]
  %v2292 = vld [vmem:[#allocation2 + $0x110] sm:$0xfe]
  %v2293 = vld [vmem:[#allocation2 + $0x150] sm:$0xfe]
  %v2294 = vld [vmem:[#allocation2 + $0x158] sm:$0xfe]
  %v2295 = vld [vmem:[#allocation2 + $0x160] sm:$0xfe]
  %v2296 = vld [vmem:[#allocation2 + $0x168] sm:$0xfe]
  %v2297 = vld [vmem:[#allocation2 + $0x170] sm:$0xfe]
  %v2298 = vld [vmem:[#allocation2 + $0x178] sm:$0xfe]
  %v2299 = vld [vmem:[#allocation2 + $0x180] sm:$0xfe]
  %v2300 = vld [vmem:[#allocation2 + $0x1c0] sm:$0xfe]
  %v2301 = vld [vmem:[#allocation2 + $0x1c8] sm:$0xfe]
  %v2302 = vld [vmem:[#allocation2 + $0x1d0] sm:$0xfe]
  %v2303 = vld [vmem:[#allocation2 + $0x1d8] sm:$0xfe]
  %v2304 = vld [vmem:[#allocation2 + $0x1e0] sm:$0xfe]
  %v2305 = vld [vmem:[#allocation2 + $0x1e8] sm:$0xfe]
  %v2306 = vld [vmem:[#allocation2 + $0x1f0] sm:$0xfe]
  %v2307 = vld [vmem:[#allocation2 + $0x230] sm:$0xfe]
  %v2308 = vld [vmem:[#allocation2 + $0x238] sm:$0xfe]
  %v2309 = vld [vmem:[#allocation2 + $0x240] sm:$0xfe]
  %v2310 = vld [vmem:[#allocation2 + $0x248] sm:$0xfe]
  %v2311 = vld [vmem:[#allocation2 + $0x250] sm:$0xfe]
  %v2312 = vld [vmem:[#allocation2 + $0x258] sm:$0xfe]
  %v2313 = vld [vmem:[#allocation2 + $0x260] sm:$0xfe]
  %v2314 = vld [vmem:[#allocation2 + $0x2a0] sm:$0xfe]
  %v2315 = vld [vmem:[#allocation2 + $0x2a8] sm:$0xfe]
  %v2316 = vld [vmem:[#allocation2 + $0x2b0] sm:$0xfe]
  %v2317 = vld [vmem:[#allocation2 + $0x2b8] sm:$0xfe]
  %v2318 = vld [vmem:[#allocation2 + $0x2c0] sm:$0xfe]
  %v2319 = vld [vmem:[#allocation2 + $0x2c8] sm:$0xfe]
  %v2320 = vld [vmem:[#allocation2 + $0x2d0] sm:$0xfe]
  %v2321 = vld [vmem:[#allocation2 + $0x310] sm:$0xfe]
  %v2322 = vld [vmem:[#allocation2 + $0x318] sm:$0xfe]
  %v2323 = vld [vmem:[#allocation2 + $0x320] sm:$0xfe]
  %v2324 = vld [vmem:[#allocation2 + $0x328] sm:$0xfe]
  %v2325 = vld [vmem:[#allocation2 + $0x330] sm:$0xfe]
  %v2326 = vld [vmem:[#allocation2 + $0x338] sm:$0xfe]
  %v2327 = vld [vmem:[#allocation2 + $0x340] sm:$0xfe]
  %v2328 = vld [vmem:[#allocation2 + $0x380] sm:$0xfe]
  %v2329 = vld [vmem:[#allocation2 + $0x388] sm:$0xfe]
  %v2330 = vld [vmem:[#allocation2 + $0x390] sm:$0xfe]
  %v2331 = vld [vmem:[#allocation2 + $0x398] sm:$0xfe]
  %v2332 = vld [vmem:[#allocation2 + $0x3a0] sm:$0xfe]
  %v2333 = vld [vmem:[#allocation2 + $0x3a8] sm:$0xfe]
  %v2334 = vld [vmem:[#allocation2 + $0x3b0] sm:$0xfe]
  %v2335 = vld [vmem:[#allocation2 + $0x3f0] sm:$0xfe]
  %v2336 = vld [vmem:[#allocation2 + $0x3f8] sm:$0xfe]
  %v2337 = vld [vmem:[#allocation2 + $0x400] sm:$0xfe]
  %v2338 = vld [vmem:[#allocation2 + $0x408] sm:$0xfe]
  %v2339 = vld [vmem:[#allocation2 + $0x410] sm:$0xfe]
  %v2340 = vld [vmem:[#allocation2 + $0x418] sm:$0xfe]
  %v2341 = vld [vmem:[#allocation2 + $0x420] sm:$0xfe]
  %v2342 = vld [vmem:[#allocation2 + $0x460] sm:$0xfe]
  %v2343 = vld [vmem:[#allocation2 + $0x468] sm:$0xfe]
  %v2344 = vld [vmem:[#allocation2 + $0x470] sm:$0xfe]
  %v2345 = vld [vmem:[#allocation2 + $0x478] sm:$0xfe]
  %v2346 = vld [vmem:[#allocation2 + $0x480] sm:$0xfe]
  %v2347 = vld [vmem:[#allocation2 + $0x488] sm:$0xfe]
  %v2348 = vld [vmem:[#allocation2 + $0x490] sm:$0xfe]
  %v2426 = vrot.slane %v2272, 1
  %v2427 = vrot.slane %v2273, 1
  %v2428 = vrot.slane %v2274, 1
  %v2429 = vrot.slane %v2275, 1
  %v2430 = vrot.slane %v2276, 1
  %v2431 = vrot.slane %v2277, 1
  %v2432 = vrot.slane %v2278, 1
  %v2433 = vrot.slane %v2279, 1
  %v2434 = vrot.slane %v2280, 1
  %v2435 = vrot.slane %v2281, 1
  %v2436 = vrot.slane %v2282, 1
  %v2437 = vrot.slane %v2283, 1
  %v2438 = vrot.slane %v2284, 1
  %v2439 = vrot.slane %v2285, 1
  %v2440 = vrot.slane %v2286, 1
  %v2441 = vrot.slane %v2287, 1
  %v2442 = vrot.slane %v2288, 1
  %v2443 = vrot.slane %v2289, 1
  %v2444 = vrot.slane %v2290, 1
  %v2445 = vrot.slane %v2291, 1
  %v2446 = vrot.slane %v2292, 1
  %v2447 = vrot.slane %v2293, 1
  %v2448 = vrot.slane %v2294, 1
  %v2449 = vrot.slane %v2295, 1
  %v2450 = vrot.slane %v2296, 1
  %v2451 = vrot.slane %v2297, 1
  %v2452 = vrot.slane %v2298, 1
  %v2453 = vrot.slane %v2299, 1
  %v2454 = vrot.slane %v2300, 1
  %v2455 = vrot.slane %v2301, 1
  %v2456 = vrot.slane %v2302, 1
  %v2457 = vrot.slane %v2303, 1
  %v2458 = vrot.slane %v2304, 1
  %v2459 = vrot.slane %v2305, 1
  %v2460 = vrot.slane %v2306, 1
  %v2461 = vrot.slane %v2307, 1
  %v2462 = vrot.slane %v2308, 1
  %v2463 = vrot.slane %v2309, 1
  %v2464 = vrot.slane %v2310, 1
  %v2465 = vrot.slane %v2311, 1
  %v2466 = vrot.slane %v2312, 1
  %v2467 = vrot.slane %v2313, 1
  %v2468 = vrot.slane %v2314, 1
  %v2469 = vrot.slane %v2315, 1
  %v2470 = vrot.slane %v2316, 1
  %v2471 = vrot.slane %v2317, 1
  %v2472 = vrot.slane %v2318, 1
  %v2473 = vrot.slane %v2319, 1
  %v2474 = vrot.slane %v2320, 1
  %v2475 = vrot.slane %v2321, 1
  %v2476 = vrot.slane %v2322, 1
  %v2477 = vrot.slane %v2323, 1
  %v2478 = vrot.slane %v2324, 1
  %v2479 = vrot.slane %v2325, 1
  %v2480 = vrot.slane %v2326, 1
  %v2481 = vrot.slane %v2327, 1
  %v2482 = vrot.slane %v2328, 1
  %v2483 = vrot.slane %v2329, 1
  %v2484 = vrot.slane %v2330, 1
  %v2485 = vrot.slane %v2331, 1
  %v2486 = vrot.slane %v2332, 1
  %v2487 = vrot.slane %v2333, 1
  %v2488 = vrot.slane %v2334, 1
  %v2489 = vrot.slane %v2335, 1
  %v2490 = vrot.slane %v2336, 1
  %v2491 = vrot.slane %v2337, 1
  %v2492 = vrot.slane %v2338, 1
  %v2493 = vrot.slane %v2339, 1
  %v2494 = vrot.slane %v2340, 1
  %v2495 = vrot.slane %v2341, 1
  %v2496 = vrot.slane %v2342, 1
  %v2497 = vrot.slane %v2343, 1
  %v2498 = vrot.slane %v2344, 1
  %v2499 = vrot.slane %v2345, 1
  %v2500 = vrot.slane %v2346, 1
  %v2501 = vrot.slane %v2347, 1
  %v2502 = vrot.slane %v2348, 1
  %2580 = vst [vmem:[#allocation3] sm:$0x7f] %v2426
  %2581 = vst [vmem:[#allocation3 + $0x8] sm:$0x7f] %v2427
  %2582 = vst [vmem:[#allocation3 + $0x10] sm:$0x7f] %v2428
  %2583 = vst [vmem:[#allocation3 + $0x18] sm:$0x7f] %v2429
  %2584 = vst [vmem:[#allocation3 + $0x20] sm:$0x7f] %v2430
  %2585 = vst [vmem:[#allocation3 + $0x28] sm:$0x7f] %v2431
  %2586 = vst.msk [vmem:[#allocation3 + $0x30] sm:$0x7f] %vm187, %v2432
  %2587 = vst [vmem:[#allocation3 + $0x38] sm:$0x7f] %v2433
  %2588 = vst [vmem:[#allocation3 + $0x40] sm:$0x7f] %v2434
  %2589 = vst [vmem:[#allocation3 + $0x48] sm:$0x7f] %v2435
  %2590 = vst [vmem:[#allocation3 + $0x50] sm:$0x7f] %v2436
  %2591 = vst [vmem:[#allocation3 + $0x58] sm:$0x7f] %v2437
  %2592 = vst [vmem:[#allocation3 + $0x60] sm:$0x7f] %v2438
  %2593 = vst.msk [vmem:[#allocation3 + $0x68] sm:$0x7f] %vm187, %v2439
  %2594 = vst [vmem:[#allocation3 + $0x70] sm:$0x7f] %v2440
  %2595 = vst [vmem:[#allocation3 + $0x78] sm:$0x7f] %v2441
  %2596 = vst [vmem:[#allocation3 + $0x80] sm:$0x7f] %v2442
  %2597 = vst [vmem:[#allocation3 + $0x88] sm:$0x7f] %v2443
  %2598 = vst [vmem:[#allocation3 + $0x90] sm:$0x7f] %v2444
  %2599 = vst [vmem:[#allocation3 + $0x98] sm:$0x7f] %v2445
  %2600 = vst.msk [vmem:[#allocation3 + $0xa0] sm:$0x7f] %vm187, %v2446
  %2601 = vst [vmem:[#allocation3 + $0xa8] sm:$0x7f] %v2447
  %2602 = vst [vmem:[#allocation3 + $0xb0] sm:$0x7f] %v2448
  %2603 = vst [vmem:[#allocation3 + $0xb8] sm:$0x7f] %v2449
  %2604 = vst [vmem:[#allocation3 + $0xc0] sm:$0x7f] %v2450
  %2605 = vst [vmem:[#allocation3 + $0xc8] sm:$0x7f] %v2451
  %2606 = vst [vmem:[#allocation3 + $0xd0] sm:$0x7f] %v2452
  %2607 = vst.msk [vmem:[#allocation3 + $0xd8] sm:$0x7f] %vm187, %v2453
  %2608 = vst [vmem:[#allocation3 + $0xe0] sm:$0x7f] %v2454
  %2609 = vst [vmem:[#allocation3 + $0xe8] sm:$0x7f] %v2455
  %2610 = vst [vmem:[#allocation3 + $0xf0] sm:$0x7f] %v2456
  %2611 = vst [vmem:[#allocation3 + $0xf8] sm:$0x7f] %v2457
  %2612 = vst [vmem:[#allocation3 + $0x100] sm:$0x7f] %v2458
  %2613 = vst [vmem:[#allocation3 + $0x108] sm:$0x7f] %v2459
  %2614 = vst.msk [vmem:[#allocation3 + $0x110] sm:$0x7f] %vm187, %v2460
  %2615 = vst [vmem:[#allocation3 + $0x118] sm:$0x7f] %v2461
  %2616 = vst [vmem:[#allocation3 + $0x120] sm:$0x7f] %v2462
  %2617 = vst [vmem:[#allocation3 + $0x128] sm:$0x7f] %v2463
  %2618 = vst [vmem:[#allocation3 + $0x130] sm:$0x7f] %v2464
  %2619 = vst [vmem:[#allocation3 + $0x138] sm:$0x7f] %v2465
  %2620 = vst [vmem:[#allocation3 + $0x140] sm:$0x7f] %v2466
  %2621 = vst.msk [vmem:[#allocation3 + $0x148] sm:$0x7f] %vm187, %v2467
  %2622 = vst [vmem:[#allocation3 + $0x150] sm:$0x7f] %v2468
  %2623 = vst [vmem:[#allocation3 + $0x158] sm:$0x7f] %v2469
  %2624 = vst [vmem:[#allocation3 + $0x160] sm:$0x7f] %v2470
  %2625 = vst [vmem:[#allocation3 + $0x168] sm:$0x7f] %v2471
  %2626 = vst [vmem:[#allocation3 + $0x170] sm:$0x7f] %v2472
  %2627 = vst [vmem:[#allocation3 + $0x178] sm:$0x7f] %v2473
  %2628 = vst.msk [vmem:[#allocation3 + $0x180] sm:$0x7f] %vm187, %v2474
  %2629 = vst [vmem:[#allocation3 + $0x188] sm:$0x7f] %v2475
  %2630 = vst [vmem:[#allocation3 + $0x190] sm:$0x7f] %v2476
  %2631 = vst [vmem:[#allocation3 + $0x198] sm:$0x7f] %v2477
  %2632 = vst [vmem:[#allocation3 + $0x1a0] sm:$0x7f] %v2478
  %2633 = vst [vmem:[#allocation3 + $0x1a8] sm:$0x7f] %v2479
  %2634 = vst [vmem:[#allocation3 + $0x1b0] sm:$0x7f] %v2480
  %2635 = vst.msk [vmem:[#allocation3 + $0x1b8] sm:$0x7f] %vm187, %v2481
  %2636 = vst [vmem:[#allocation3 + $0x1c0] sm:$0x7f] %v2482
  %2637 = vst [vmem:[#allocation3 + $0x1c8] sm:$0x7f] %v2483
  %2638 = vst [vmem:[#allocation3 + $0x1d0] sm:$0x7f] %v2484
  %2639 = vst [vmem:[#allocation3 + $0x1d8] sm:$0x7f] %v2485
  %2640 = vst [vmem:[#allocation3 + $0x1e0] sm:$0x7f] %v2486
  %2641 = vst [vmem:[#allocation3 + $0x1e8] sm:$0x7f] %v2487
  %2642 = vst.msk [vmem:[#allocation3 + $0x1f0] sm:$0x7f] %vm187, %v2488
  %2643 = vst [vmem:[#allocation3 + $0x1f8] sm:$0x7f] %v2489
  %2644 = vst [vmem:[#allocation3 + $0x200] sm:$0x7f] %v2490
  %2645 = vst [vmem:[#allocation3 + $0x208] sm:$0x7f] %v2491
  %2646 = vst [vmem:[#allocation3 + $0x210] sm:$0x7f] %v2492
  %2647 = vst [vmem:[#allocation3 + $0x218] sm:$0x7f] %v2493
  %2648 = vst [vmem:[#allocation3 + $0x220] sm:$0x7f] %v2494
  %2649 = vst.msk [vmem:[#allocation3 + $0x228] sm:$0x7f] %vm187, %v2495
  %2650 = vst [vmem:[#allocation3 + $0x230] sm:$0x7f] %v2496
  %2651 = vst [vmem:[#allocation3 + $0x238] sm:$0x7f] %v2497
  %2652 = vst [vmem:[#allocation3 + $0x240] sm:$0x7f] %v2498
  %2653 = vst [vmem:[#allocation3 + $0x248] sm:$0x7f] %v2499
  %2654 = vst [vmem:[#allocation3 + $0x250] sm:$0x7f] %v2500
  %2655 = vst [vmem:[#allocation3 + $0x258] sm:$0x7f] %v2501
  %2656 = vst.msk [vmem:[#allocation3 + $0x260] sm:$0x7f] %vm187, %v2502
  %s2657 = scalar_lea.vmem %s3, 1
  %v2658 = vld [vmem:[%s2657] ss:$8 sm:$0xf]
  %v2659 = vld [vmem:[%s2657] ss:$8 sm:$0x70]
  %v2660 = vor.u32 %v2658, %v2659
  %v2661 = vld [vmem:[#allocation3] sm:$0x7f]
  %v2662 = vld [vmem:[#allocation3 + $0x8] sm:$0x7f]
  %v2663 = vld [vmem:[#allocation3 + $0x10] sm:$0x7f]
  %v2664 = vld [vmem:[#allocation3 + $0x18] sm:$0x7f]
  %v2665 = vld [vmem:[#allocation3 + $0x20] sm:$0x7f]
  %v2666 = vld [vmem:[#allocation3 + $0x28] sm:$0x7f]
  %v2667 = vld [vmem:[#allocation3 + $0x30] sm:$0x7f]
  %v2668 = vld [vmem:[#allocation3 + $0x38] sm:$0x7f]
  %v2669 = vld [vmem:[#allocation3 + $0x40] sm:$0x7f]
  %v2670 = vld [vmem:[#allocation3 + $0x48] sm:$0x7f]
  %v2671 = vld [vmem:[#allocation3 + $0x50] sm:$0x7f]
  %v2672 = vld [vmem:[#allocation3 + $0x58] sm:$0x7f]
  %v2673 = vld [vmem:[#allocation3 + $0x60] sm:$0x7f]
  %v2674 = vld [vmem:[#allocation3 + $0x68] sm:$0x7f]
  %v2675 = vld [vmem:[#allocation3 + $0x70] sm:$0x7f]
  %v2676 = vld [vmem:[#allocation3 + $0x78] sm:$0x7f]
  %v2677 = vld [vmem:[#allocation3 + $0x80] sm:$0x7f]
  %v2678 = vld [vmem:[#allocation3 + $0x88] sm:$0x7f]
  %v2679 = vld [vmem:[#allocation3 + $0x90] sm:$0x7f]
  %v2680 = vld [vmem:[#allocation3 + $0x98] sm:$0x7f]
  %v2681 = vld [vmem:[#allocation3 + $0xa0] sm:$0x7f]
  %v2682 = vld [vmem:[#allocation3 + $0xa8] sm:$0x7f]
  %v2683 = vld [vmem:[#allocation3 + $0xb0] sm:$0x7f]
  %v2684 = vld [vmem:[#allocation3 + $0xb8] sm:$0x7f]
  %v2685 = vld [vmem:[#allocation3 + $0xc0] sm:$0x7f]
  %v2686 = vld [vmem:[#allocation3 + $0xc8] sm:$0x7f]
  %v2687 = vld [vmem:[#allocation3 + $0xd0] sm:$0x7f]
  %v2688 = vld [vmem:[#allocation3 + $0xd8] sm:$0x7f]
  %v2689 = vld [vmem:[#allocation3 + $0xe0] sm:$0x7f]
  %v2690 = vld [vmem:[#allocation3 + $0xe8] sm:$0x7f]
  %v2691 = vld [vmem:[#allocation3 + $0xf0] sm:$0x7f]
  %v2692 = vld [vmem:[#allocation3 + $0xf8] sm:$0x7f]
  %v2693 = vld [vmem:[#allocation3 + $0x100] sm:$0x7f]
  %v2694 = vld [vmem:[#allocation3 + $0x108] sm:$0x7f]
  %v2695 = vld [vmem:[#allocation3 + $0x110] sm:$0x7f]
  %v2696 = vld [vmem:[#allocation3 + $0x118] sm:$0x7f]
  %v2697 = vld [vmem:[#allocation3 + $0x120] sm:$0x7f]
  %v2698 = vld [vmem:[#allocation3 + $0x128] sm:$0x7f]
  %v2699 = vld [vmem:[#allocation3 + $0x130] sm:$0x7f]
  %v2700 = vld [vmem:[#allocation3 + $0x138] sm:$0x7f]
  %v2701 = vld [vmem:[#allocation3 + $0x140] sm:$0x7f]
  %v2702 = vld [vmem:[#allocation3 + $0x148] sm:$0x7f]
  %v2703 = vld [vmem:[#allocation3 + $0x150] sm:$0x7f]
  %v2704 = vld [vmem:[#allocation3 + $0x158] sm:$0x7f]
  %v2705 = vld [vmem:[#allocation3 + $0x160] sm:$0x7f]
  %v2706 = vld [vmem:[#allocation3 + $0x168] sm:$0x7f]
  %v2707 = vld [vmem:[#allocation3 + $0x170] sm:$0x7f]
  %v2708 = vld [vmem:[#allocation3 + $0x178] sm:$0x7f]
  %v2709 = vld [vmem:[#allocation3 + $0x180] sm:$0x7f]
  %v2711 = vlaneseq
  %v2712 = vshrl.u32 %v2711, 7
  %v2713 = vsub.s32 0, %v2712
  %v2714 = vrot.slane %v2660, %v2713
  %v2715 = vlaneseq
  %v2716 = vshrl.u32 %v2715, 7
  %v2717 = vsub.s32 1, %v2716
  %v2718 = vrot.slane %v2660, %v2717
  %v2719 = vlaneseq
  %v2720 = vshrl.u32 %v2719, 7
  %v2721 = vsub.s32 2, %v2720
  %v2722 = vrot.slane %v2660, %v2721
  %v2723 = vlaneseq
  %v2724 = vshrl.u32 %v2723, 7
  %v2725 = vsub.s32 3, %v2724
  %v2726 = vrot.slane %v2660, %v2725
  %v2727 = vlaneseq
  %v2728 = vshrl.u32 %v2727, 7
  %v2729 = vsub.s32 4, %v2728
  %v2730 = vrot.slane %v2660, %v2729
  %v2731 = vlaneseq
  %v2732 = vshrl.u32 %v2731, 7
  %v2733 = vsub.s32 5, %v2732
  %v2734 = vrot.slane %v2660, %v2733
  %v2735 = vlaneseq
  %v2736 = vshrl.u32 %v2735, 7
  %v2737 = vsub.s32 6, %v2736
  %v2738 = vrot.slane %v2660, %v2737
  %v2746 = vmul.f32 %v2661, %v2714
  %v2747 = vmul.f32 %v2662, %v2718
  %v2748 = vmul.f32 %v2663, %v2722
  %v2749 = vmul.f32 %v2664, %v2726
  %v2750 = vmul.f32 %v2665, %v2730
  %v2751 = vmul.f32 %v2666, %v2734
  %v2752 = vmul.f32 %v2667, %v2738
  %v2753 = vmul.f32 %v2668, %v2714
  %v2754 = vmul.f32 %v2669, %v2718
  %v2755 = vmul.f32 %v2670, %v2722
  %v2756 = vmul.f32 %v2671, %v2726
  %v2757 = vmul.f32 %v2672, %v2730
  %v2758 = vmul.f32 %v2673, %v2734
  %v2759 = vmul.f32 %v2674, %v2738
  %v2760 = vmul.f32 %v2675, %v2714
  %v2761 = vmul.f32 %v2676, %v2718
  %v2762 = vmul.f32 %v2677, %v2722
  %v2763 = vmul.f32 %v2678, %v2726
  %v2764 = vmul.f32 %v2679, %v2730
  %v2765 = vmul.f32 %v2680, %v2734
  %v2766 = vmul.f32 %v2681, %v2738
  %v2767 = vmul.f32 %v2682, %v2714
  %v2768 = vmul.f32 %v2683, %v2718
  %v2769 = vmul.f32 %v2684, %v2722
  %v2770 = vmul.f32 %v2685, %v2726
  %v2771 = vmul.f32 %v2686, %v2730
  %v2772 = vmul.f32 %v2687, %v2734
  %v2773 = vmul.f32 %v2688, %v2738
  %v2774 = vmul.f32 %v2689, %v2714
  %v2775 = vmul.f32 %v2690, %v2718
  %v2776 = vmul.f32 %v2691, %v2722
  %v2777 = vmul.f32 %v2692, %v2726
  %v2778 = vmul.f32 %v2693, %v2730
  %v2779 = vmul.f32 %v2694, %v2734
  %v2780 = vmul.f32 %v2695, %v2738
  %v2781 = vmul.f32 %v2696, %v2714
  %v2782 = vmul.f32 %v2697, %v2718
  %v2783 = vmul.f32 %v2698, %v2722
  %v2784 = vmul.f32 %v2699, %v2726
  %v2785 = vmul.f32 %v2700, %v2730
  %v2786 = vmul.f32 %v2701, %v2734
  %v2787 = vmul.f32 %v2702, %v2738
  %v2788 = vmul.f32 %v2703, %v2714
  %v2789 = vmul.f32 %v2704, %v2718
  %v2790 = vmul.f32 %v2705, %v2722
  %v2791 = vmul.f32 %v2706, %v2726
  %v2792 = vmul.f32 %v2707, %v2730
  %v2793 = vmul.f32 %v2708, %v2734
  %v2794 = vmul.f32 %v2709, %v2738
  %v2795 = vadd.f32 %v2223, %v2746
  %v2796 = vadd.f32 %v2224, %v2747
  %v2797 = vadd.f32 %v2225, %v2748
  %v2798 = vadd.f32 %v2226, %v2749
  %v2799 = vadd.f32 %v2227, %v2750
  %v2800 = vadd.f32 %v2228, %v2751
  %v2801 = vadd.f32 %v2229, %v2752
  %v2802 = vadd.f32 %v2230, %v2753
  %v2803 = vadd.f32 %v2231, %v2754
  %v2804 = vadd.f32 %v2232, %v2755
  %v2805 = vadd.f32 %v2233, %v2756
  %v2806 = vadd.f32 %v2234, %v2757
  %v2807 = vadd.f32 %v2235, %v2758
  %v2808 = vadd.f32 %v2236, %v2759
  %v2809 = vadd.f32 %v2237, %v2760
  %v2810 = vadd.f32 %v2238, %v2761
  %v2811 = vadd.f32 %v2239, %v2762
  %v2812 = vadd.f32 %v2240, %v2763
  %v2813 = vadd.f32 %v2241, %v2764
  %v2814 = vadd.f32 %v2242, %v2765
  %v2815 = vadd.f32 %v2243, %v2766
  %v2816 = vadd.f32 %v2244, %v2767
  %v2817 = vadd.f32 %v2245, %v2768
  %v2818 = vadd.f32 %v2246, %v2769
  %v2819 = vadd.f32 %v2247, %v2770
  %v2820 = vadd.f32 %v2248, %v2771
  %v2821 = vadd.f32 %v2249, %v2772
  %v2822 = vadd.f32 %v2250, %v2773
  %v2823 = vadd.f32 %v2251, %v2774
  %v2824 = vadd.f32 %v2252, %v2775
  %v2825 = vadd.f32 %v2253, %v2776
  %v2826 = vadd.f32 %v2254, %v2777
  %v2827 = vadd.f32 %v2255, %v2778
  %v2828 = vadd.f32 %v2256, %v2779
  %v2829 = vadd.f32 %v2257, %v2780
  %v2830 = vadd.f32 %v2258, %v2781
  %v2831 = vadd.f32 %v2259, %v2782
  %v2832 = vadd.f32 %v2260, %v2783
  %v2833 = vadd.f32 %v2261, %v2784
  %v2834 = vadd.f32 %v2262, %v2785
  %v2835 = vadd.f32 %v2263, %v2786
  %v2836 = vadd.f32 %v2264, %v2787
  %v2837 = vadd.f32 %v2265, %v2788
  %v2838 = vadd.f32 %v2266, %v2789
  %v2839 = vadd.f32 %v2267, %v2790
  %v2840 = vadd.f32 %v2268, %v2791
  %v2841 = vadd.f32 %v2269, %v2792
  %v2842 = vadd.f32 %v2270, %v2793
  %v2843 = vadd.f32 %v2271, %v2794
  %s2844 = scalar_lea.vmem %s3, 6
  %v2845 = vld [vmem:[%s2844] ss:$8 sm:$0xf]
  %v2846 = vld [vmem:[%s2844] ss:$8 sm:$0x70]
  %v2847 = vor.u32 %v2845, %v2846
  %v2848 = vld [vmem:[%s1524] sm:$0x7f]
  %v2849 = vld [vmem:[%s1524 + $0x8] sm:$0x7f]
  %v2850 = vld [vmem:[%s1524 + $0x10] sm:$0x7f]
  %v2851 = vld [vmem:[%s1524 + $0x18] sm:$0x7f]
  %v2852 = vld [vmem:[%s1524 + $0x20] sm:$0x7f]
  %v2853 = vld [vmem:[%s1524 + $0x28] sm:$0x7f]
  %v2854 = vld [vmem:[%s1524 + $0x30] sm:$0x7f]
  %v2855 = vld [vmem:[%s1524 + $0x38] sm:$0x7f]
  %v2856 = vld [vmem:[%s1524 + $0x40] sm:$0x7f]
  %v2857 = vld [vmem:[%s1524 + $0x48] sm:$0x7f]
  %v2858 = vld [vmem:[%s1524 + $0x50] sm:$0x7f]
  %v2859 = vld [vmem:[%s1524 + $0x58] sm:$0x7f]
  %v2860 = vld [vmem:[%s1524 + $0x60] sm:$0x7f]
  %v2861 = vld [vmem:[%s1524 + $0x68] sm:$0x7f]
  %v2862 = vld [vmem:[%s1524 + $0x70] sm:$0x7f]
  %v2863 = vld [vmem:[%s1524 + $0x78] sm:$0x7f]
  %v2864 = vld [vmem:[%s1524 + $0x80] sm:$0x7f]
  %v2865 = vld [vmem:[%s1524 + $0x88] sm:$0x7f]
  %v2866 = vld [vmem:[%s1524 + $0x90] sm:$0x7f]
  %v2867 = vld [vmem:[%s1524 + $0x98] sm:$0x7f]
  %v2868 = vld [vmem:[%s1524 + $0xa0] sm:$0x7f]
  %v2869 = vld [vmem:[%s1524 + $0xa8] sm:$0x7f]
  %v2870 = vld [vmem:[%s1524 + $0xb0] sm:$0x7f]
  %v2871 = vld [vmem:[%s1524 + $0xb8] sm:$0x7f]
  %v2872 = vld [vmem:[%s1524 + $0xc0] sm:$0x7f]
  %v2873 = vld [vmem:[%s1524 + $0xc8] sm:$0x7f]
  %v2874 = vld [vmem:[%s1524 + $0xd0] sm:$0x7f]
  %v2875 = vld [vmem:[%s1524 + $0xd8] sm:$0x7f]
  %v2876 = vld [vmem:[%s1524 + $0xe0] sm:$0x7f]
  %v2877 = vld [vmem:[%s1524 + $0xe8] sm:$0x7f]
  %v2878 = vld [vmem:[%s1524 + $0xf0] sm:$0x7f]
  %v2879 = vld [vmem:[%s1524 + $0xf8] sm:$0x7f]
  %v2880 = vld [vmem:[%s1524 + $0x100] sm:$0x7f]
  %v2881 = vld [vmem:[%s1524 + $0x108] sm:$0x7f]
  %v2882 = vld [vmem:[%s1524 + $0x110] sm:$0x7f]
  %v2883 = vld [vmem:[%s1524 + $0x118] sm:$0x7f]
  %v2884 = vld [vmem:[%s1524 + $0x120] sm:$0x7f]
  %v2885 = vld [vmem:[%s1524 + $0x128] sm:$0x7f]
  %v2886 = vld [vmem:[%s1524 + $0x130] sm:$0x7f]
  %v2887 = vld [vmem:[%s1524 + $0x138] sm:$0x7f]
  %v2888 = vld [vmem:[%s1524 + $0x140] sm:$0x7f]
  %v2889 = vld [vmem:[%s1524 + $0x148] sm:$0x7f]
  %v2890 = vld [vmem:[%s1524 + $0x150] sm:$0x7f]
  %v2891 = vld [vmem:[%s1524 + $0x158] sm:$0x7f]
  %v2892 = vld [vmem:[%s1524 + $0x160] sm:$0x7f]
  %v2893 = vld [vmem:[%s1524 + $0x168] sm:$0x7f]
  %v2894 = vld [vmem:[%s1524 + $0x170] sm:$0x7f]
  %v2895 = vld [vmem:[%s1524 + $0x178] sm:$0x7f]
  %v2896 = vld [vmem:[%s1524 + $0x180] sm:$0x7f]
  %v2898 = vlaneseq
  %v2899 = vshrl.u32 %v2898, 7
  %v2900 = vsub.s32 0, %v2899
  %v2901 = vrot.slane %v2847, %v2900
  %v2902 = vlaneseq
  %v2903 = vshrl.u32 %v2902, 7
  %v2904 = vsub.s32 1, %v2903
  %v2905 = vrot.slane %v2847, %v2904
  %v2906 = vlaneseq
  %v2907 = vshrl.u32 %v2906, 7
  %v2908 = vsub.s32 2, %v2907
  %v2909 = vrot.slane %v2847, %v2908
  %v2910 = vlaneseq
  %v2911 = vshrl.u32 %v2910, 7
  %v2912 = vsub.s32 3, %v2911
  %v2913 = vrot.slane %v2847, %v2912
  %v2914 = vlaneseq
  %v2915 = vshrl.u32 %v2914, 7
  %v2916 = vsub.s32 4, %v2915
  %v2917 = vrot.slane %v2847, %v2916
  %v2918 = vlaneseq
  %v2919 = vshrl.u32 %v2918, 7
  %v2920 = vsub.s32 5, %v2919
  %v2921 = vrot.slane %v2847, %v2920
  %v2922 = vlaneseq
  %v2923 = vshrl.u32 %v2922, 7
  %v2924 = vsub.s32 6, %v2923
  %v2925 = vrot.slane %v2847, %v2924
  %v2933 = vmul.f32 %v2848, %v2901
  %v2934 = vmul.f32 %v2849, %v2905
  %v2935 = vmul.f32 %v2850, %v2909
  %v2936 = vmul.f32 %v2851, %v2913
  %v2937 = vmul.f32 %v2852, %v2917
  %v2938 = vmul.f32 %v2853, %v2921
  %v2939 = vmul.f32 %v2854, %v2925
  %v2940 = vmul.f32 %v2855, %v2901
  %v2941 = vmul.f32 %v2856, %v2905
  %v2942 = vmul.f32 %v2857, %v2909
  %v2943 = vmul.f32 %v2858, %v2913
  %v2944 = vmul.f32 %v2859, %v2917
  %v2945 = vmul.f32 %v2860, %v2921
  %v2946 = vmul.f32 %v2861, %v2925
  %v2947 = vmul.f32 %v2862, %v2901
  %v2948 = vmul.f32 %v2863, %v2905
  %v2949 = vmul.f32 %v2864, %v2909
  %v2950 = vmul.f32 %v2865, %v2913
  %v2951 = vmul.f32 %v2866, %v2917
  %v2952 = vmul.f32 %v2867, %v2921
  %v2953 = vmul.f32 %v2868, %v2925
  %v2954 = vmul.f32 %v2869, %v2901
  %v2955 = vmul.f32 %v2870, %v2905
  %v2956 = vmul.f32 %v2871, %v2909
  %v2957 = vmul.f32 %v2872, %v2913
  %v2958 = vmul.f32 %v2873, %v2917
  %v2959 = vmul.f32 %v2874, %v2921
  %v2960 = vmul.f32 %v2875, %v2925
  %v2961 = vmul.f32 %v2876, %v2901
  %v2962 = vmul.f32 %v2877, %v2905
  %v2963 = vmul.f32 %v2878, %v2909
  %v2964 = vmul.f32 %v2879, %v2913
  %v2965 = vmul.f32 %v2880, %v2917
  %v2966 = vmul.f32 %v2881, %v2921
  %v2967 = vmul.f32 %v2882, %v2925
  %v2968 = vmul.f32 %v2883, %v2901
  %v2969 = vmul.f32 %v2884, %v2905
  %v2970 = vmul.f32 %v2885, %v2909
  %v2971 = vmul.f32 %v2886, %v2913
  %v2972 = vmul.f32 %v2887, %v2917
  %v2973 = vmul.f32 %v2888, %v2921
  %v2974 = vmul.f32 %v2889, %v2925
  %v2975 = vmul.f32 %v2890, %v2901
  %v2976 = vmul.f32 %v2891, %v2905
  %v2977 = vmul.f32 %v2892, %v2909
  %v2978 = vmul.f32 %v2893, %v2913
  %v2979 = vmul.f32 %v2894, %v2917
  %v2980 = vmul.f32 %v2895, %v2921
  %v2981 = vmul.f32 %v2896, %v2925
  %v2982 = vadd.f32 %v2795, %v2933
  %v2983 = vadd.f32 %v2796, %v2934
  %v2984 = vadd.f32 %v2797, %v2935
  %v2985 = vadd.f32 %v2798, %v2936
  %v2986 = vadd.f32 %v2799, %v2937
  %v2987 = vadd.f32 %v2800, %v2938
  %v2988 = vadd.f32 %v2801, %v2939
  %v2989 = vadd.f32 %v2802, %v2940
  %v2990 = vadd.f32 %v2803, %v2941
  %v2991 = vadd.f32 %v2804, %v2942
  %v2992 = vadd.f32 %v2805, %v2943
  %v2993 = vadd.f32 %v2806, %v2944
  %v2994 = vadd.f32 %v2807, %v2945
  %v2995 = vadd.f32 %v2808, %v2946
  %v2996 = vadd.f32 %v2809, %v2947
  %v2997 = vadd.f32 %v2810, %v2948
  %v2998 = vadd.f32 %v2811, %v2949
  %v2999 = vadd.f32 %v2812, %v2950
  %v3000 = vadd.f32 %v2813, %v2951
  %v3001 = vadd.f32 %v2814, %v2952
  %v3002 = vadd.f32 %v2815, %v2953
  %v3003 = vadd.f32 %v2816, %v2954
  %v3004 = vadd.f32 %v2817, %v2955
  %v3005 = vadd.f32 %v2818, %v2956
  %v3006 = vadd.f32 %v2819, %v2957
  %v3007 = vadd.f32 %v2820, %v2958
  %v3008 = vadd.f32 %v2821, %v2959
  %v3009 = vadd.f32 %v2822, %v2960
  %v3010 = vadd.f32 %v2823, %v2961
  %v3011 = vadd.f32 %v2824, %v2962
  %v3012 = vadd.f32 %v2825, %v2963
  %v3013 = vadd.f32 %v2826, %v2964
  %v3014 = vadd.f32 %v2827, %v2965
  %v3015 = vadd.f32 %v2828, %v2966
  %v3016 = vadd.f32 %v2829, %v2967
  %v3017 = vadd.f32 %v2830, %v2968
  %v3018 = vadd.f32 %v2831, %v2969
  %v3019 = vadd.f32 %v2832, %v2970
  %v3020 = vadd.f32 %v2833, %v2971
  %v3021 = vadd.f32 %v2834, %v2972
  %v3022 = vadd.f32 %v2835, %v2973
  %v3023 = vadd.f32 %v2836, %v2974
  %v3024 = vadd.f32 %v2837, %v2975
  %v3025 = vadd.f32 %v2838, %v2976
  %v3026 = vadd.f32 %v2839, %v2977
  %v3027 = vadd.f32 %v2840, %v2978
  %v3028 = vadd.f32 %v2841, %v2979
  %v3029 = vadd.f32 %v2842, %v2980
  %v3030 = vadd.f32 %v2843, %v2981
  %s3031 = scalar_lea.vmem %s3, 59
  %v3032 = vld [vmem:[%s3031] ss:$8 sm:$0xf]
  %v3033 = vld [vmem:[%s3031] ss:$8 sm:$0x70]
  %v3034 = vor.u32 %v3032, %v3033
  %v3035 = vld [vmem:[%s1712] sm:$0x7f]
  %v3036 = vld [vmem:[%s1712 + $0x8] sm:$0x7f]
  %v3037 = vld [vmem:[%s1712 + $0x10] sm:$0x7f]
  %v3038 = vld [vmem:[%s1712 + $0x18] sm:$0x7f]
  %v3039 = vld [vmem:[%s1712 + $0x20] sm:$0x7f]
  %v3040 = vld [vmem:[%s1712 + $0x28] sm:$0x7f]
  %v3041 = vld [vmem:[%s1712 + $0x30] sm:$0x7f]
  %v3042 = vld [vmem:[%s1712 + $0x38] sm:$0x7f]
  %v3043 = vld [vmem:[%s1712 + $0x40] sm:$0x7f]
  %v3044 = vld [vmem:[%s1712 + $0x48] sm:$0x7f]
  %v3045 = vld [vmem:[%s1712 + $0x50] sm:$0x7f]
  %v3046 = vld [vmem:[%s1712 + $0x58] sm:$0x7f]
  %v3047 = vld [vmem:[%s1712 + $0x60] sm:$0x7f]
  %v3048 = vld [vmem:[%s1712 + $0x68] sm:$0x7f]
  %v3049 = vld [vmem:[%s1712 + $0x70] sm:$0x7f]
  %v3050 = vld [vmem:[%s1712 + $0x78] sm:$0x7f]
  %v3051 = vld [vmem:[%s1712 + $0x80] sm:$0x7f]
  %v3052 = vld [vmem:[%s1712 + $0x88] sm:$0x7f]
  %v3053 = vld [vmem:[%s1712 + $0x90] sm:$0x7f]
  %v3054 = vld [vmem:[%s1712 + $0x98] sm:$0x7f]
  %v3055 = vld [vmem:[%s1712 + $0xa0] sm:$0x7f]
  %v3056 = vld [vmem:[%s1712 + $0xa8] sm:$0x7f]
  %v3057 = vld [vmem:[%s1712 + $0xb0] sm:$0x7f]
  %v3058 = vld [vmem:[%s1712 + $0xb8] sm:$0x7f]
  %v3059 = vld [vmem:[%s1712 + $0xc0] sm:$0x7f]
  %v3060 = vld [vmem:[%s1712 + $0xc8] sm:$0x7f]
  %v3061 = vld [vmem:[%s1712 + $0xd0] sm:$0x7f]
  %v3062 = vld [vmem:[%s1712 + $0xd8] sm:$0x7f]
  %v3063 = vld [vmem:[%s1712 + $0xe0] sm:$0x7f]
  %v3064 = vld [vmem:[%s1712 + $0xe8] sm:$0x7f]
  %v3065 = vld [vmem:[%s1712 + $0xf0] sm:$0x7f]
  %v3066 = vld [vmem:[%s1712 + $0xf8] sm:$0x7f]
  %v3067 = vld [vmem:[%s1712 + $0x100] sm:$0x7f]
  %v3068 = vld [vmem:[%s1712 + $0x108] sm:$0x7f]
  %v3069 = vld [vmem:[%s1712 + $0x110] sm:$0x7f]
  %v3070 = vld [vmem:[%s1712 + $0x118] sm:$0x7f]
  %v3071 = vld [vmem:[%s1712 + $0x120] sm:$0x7f]
  %v3072 = vld [vmem:[%s1712 + $0x128] sm:$0x7f]
  %v3073 = vld [vmem:[%s1712 + $0x130] sm:$0x7f]
  %v3074 = vld [vmem:[%s1712 + $0x138] sm:$0x7f]
  %v3075 = vld [vmem:[%s1712 + $0x140] sm:$0x7f]
  %v3076 = vld [vmem:[%s1712 + $0x148] sm:$0x7f]
  %v3077 = vld [vmem:[%s1712 + $0x150] sm:$0x7f]
  %v3078 = vld [vmem:[%s1712 + $0x158] sm:$0x7f]
  %v3079 = vld [vmem:[%s1712 + $0x160] sm:$0x7f]
  %v3080 = vld [vmem:[%s1712 + $0x168] sm:$0x7f]
  %v3081 = vld [vmem:[%s1712 + $0x170] sm:$0x7f]
  %v3082 = vld [vmem:[%s1712 + $0x178] sm:$0x7f]
  %v3083 = vld [vmem:[%s1712 + $0x180] sm:$0x7f]
  %v3085 = vlaneseq
  %v3086 = vshrl.u32 %v3085, 7
  %v3087 = vsub.s32 0, %v3086
  %v3088 = vrot.slane %v3034, %v3087
  %v3089 = vlaneseq
  %v3090 = vshrl.u32 %v3089, 7
  %v3091 = vsub.s32 1, %v3090
  %v3092 = vrot.slane %v3034, %v3091
  %v3093 = vlaneseq
  %v3094 = vshrl.u32 %v3093, 7
  %v3095 = vsub.s32 2, %v3094
  %v3096 = vrot.slane %v3034, %v3095
  %v3097 = vlaneseq
  %v3098 = vshrl.u32 %v3097, 7
  %v3099 = vsub.s32 3, %v3098
  %v3100 = vrot.slane %v3034, %v3099
  %v3101 = vlaneseq
  %v3102 = vshrl.u32 %v3101, 7
  %v3103 = vsub.s32 4, %v3102
  %v3104 = vrot.slane %v3034, %v3103
  %v3105 = vlaneseq
  %v3106 = vshrl.u32 %v3105, 7
  %v3107 = vsub.s32 5, %v3106
  %v3108 = vrot.slane %v3034, %v3107
  %v3109 = vlaneseq
  %v3110 = vshrl.u32 %v3109, 7
  %v3111 = vsub.s32 6, %v3110
  %v3112 = vrot.slane %v3034, %v3111
  %v3120 = vmul.f32 %v3035, %v3088
  %v3121 = vmul.f32 %v3036, %v3092
  %v3122 = vmul.f32 %v3037, %v3096
  %v3123 = vmul.f32 %v3038, %v3100
  %v3124 = vmul.f32 %v3039, %v3104
  %v3125 = vmul.f32 %v3040, %v3108
  %v3126 = vmul.f32 %v3041, %v3112
  %v3127 = vmul.f32 %v3042, %v3088
  %v3128 = vmul.f32 %v3043, %v3092
  %v3129 = vmul.f32 %v3044, %v3096
  %v3130 = vmul.f32 %v3045, %v3100
  %v3131 = vmul.f32 %v3046, %v3104
  %v3132 = vmul.f32 %v3047, %v3108
  %v3133 = vmul.f32 %v3048, %v3112
  %v3134 = vmul.f32 %v3049, %v3088
  %v3135 = vmul.f32 %v3050, %v3092
  %v3136 = vmul.f32 %v3051, %v3096
  %v3137 = vmul.f32 %v3052, %v3100
  %v3138 = vmul.f32 %v3053, %v3104
  %v3139 = vmul.f32 %v3054, %v3108
  %v3140 = vmul.f32 %v3055, %v3112
  %v3141 = vmul.f32 %v3056, %v3088
  %v3142 = vmul.f32 %v3057, %v3092
  %v3143 = vmul.f32 %v3058, %v3096
  %v3144 = vmul.f32 %v3059, %v3100
  %v3145 = vmul.f32 %v3060, %v3104
  %v3146 = vmul.f32 %v3061, %v3108
  %v3147 = vmul.f32 %v3062, %v3112
  %v3148 = vmul.f32 %v3063, %v3088
  %v3149 = vmul.f32 %v3064, %v3092
  %v3150 = vmul.f32 %v3065, %v3096
  %v3151 = vmul.f32 %v3066, %v3100
  %v3152 = vmul.f32 %v3067, %v3104
  %v3153 = vmul.f32 %v3068, %v3108
  %v3154 = vmul.f32 %v3069, %v3112
  %v3155 = vmul.f32 %v3070, %v3088
  %v3156 = vmul.f32 %v3071, %v3092
  %v3157 = vmul.f32 %v3072, %v3096
  %v3158 = vmul.f32 %v3073, %v3100
  %v3159 = vmul.f32 %v3074, %v3104
  %v3160 = vmul.f32 %v3075, %v3108
  %v3161 = vmul.f32 %v3076, %v3112
  %v3162 = vmul.f32 %v3077, %v3088
  %v3163 = vmul.f32 %v3078, %v3092
  %v3164 = vmul.f32 %v3079, %v3096
  %v3165 = vmul.f32 %v3080, %v3100
  %v3166 = vmul.f32 %v3081, %v3104
  %v3167 = vmul.f32 %v3082, %v3108
  %v3168 = vmul.f32 %v3083, %v3112
  %v3169 = vadd.f32 %v2982, %v3120
  %v3170 = vadd.f32 %v2983, %v3121
  %v3171 = vadd.f32 %v2984, %v3122
  %v3172 = vadd.f32 %v2985, %v3123
  %v3173 = vadd.f32 %v2986, %v3124
  %v3174 = vadd.f32 %v2987, %v3125
  %v3175 = vadd.f32 %v2988, %v3126
  %v3176 = vadd.f32 %v2989, %v3127
  %v3177 = vadd.f32 %v2990, %v3128
  %v3178 = vadd.f32 %v2991, %v3129
  %v3179 = vadd.f32 %v2992, %v3130
  %v3180 = vadd.f32 %v2993, %v3131
  %v3181 = vadd.f32 %v2994, %v3132
  %v3182 = vadd.f32 %v2995, %v3133
  %v3183 = vadd.f32 %v2996, %v3134
  %v3184 = vadd.f32 %v2997, %v3135
  %v3185 = vadd.f32 %v2998, %v3136
  %v3186 = vadd.f32 %v2999, %v3137
  %v3187 = vadd.f32 %v3000, %v3138
  %v3188 = vadd.f32 %v3001, %v3139
  %v3189 = vadd.f32 %v3002, %v3140
  %v3190 = vadd.f32 %v3003, %v3141
  %v3191 = vadd.f32 %v3004, %v3142
  %v3192 = vadd.f32 %v3005, %v3143
  %v3193 = vadd.f32 %v3006, %v3144
  %v3194 = vadd.f32 %v3007, %v3145
  %v3195 = vadd.f32 %v3008, %v3146
  %v3196 = vadd.f32 %v3009, %v3147
  %v3197 = vadd.f32 %v3010, %v3148
  %v3198 = vadd.f32 %v3011, %v3149
  %v3199 = vadd.f32 %v3012, %v3150
  %v3200 = vadd.f32 %v3013, %v3151
  %v3201 = vadd.f32 %v3014, %v3152
  %v3202 = vadd.f32 %v3015, %v3153
  %v3203 = vadd.f32 %v3016, %v3154
  %v3204 = vadd.f32 %v3017, %v3155
  %v3205 = vadd.f32 %v3018, %v3156
  %v3206 = vadd.f32 %v3019, %v3157
  %v3207 = vadd.f32 %v3020, %v3158
  %v3208 = vadd.f32 %v3021, %v3159
  %v3209 = vadd.f32 %v3022, %v3160
  %v3210 = vadd.f32 %v3023, %v3161
  %v3211 = vadd.f32 %v3024, %v3162
  %v3212 = vadd.f32 %v3025, %v3163
  %v3213 = vadd.f32 %v3026, %v3164
  %v3214 = vadd.f32 %v3027, %v3165
  %v3215 = vadd.f32 %v3028, %v3166
  %v3216 = vadd.f32 %v3029, %v3167
  %v3217 = vadd.f32 %v3030, %v3168
  %s3218 = scalar_lea.vmem %s3, 112
  %v3219 = vld [vmem:[%s3218] ss:$8 sm:$0xf]
  %v3220 = vld [vmem:[%s3218] ss:$8 sm:$0x70]
  %v3221 = vor.u32 %v3219, %v3220
  %v3222 = vld [vmem:[%s1900] sm:$0x7f]
  %v3223 = vld [vmem:[%s1900 + $0x8] sm:$0x7f]
  %v3224 = vld [vmem:[%s1900 + $0x10] sm:$0x7f]
  %v3225 = vld [vmem:[%s1900 + $0x18] sm:$0x7f]
  %v3226 = vld [vmem:[%s1900 + $0x20] sm:$0x7f]
  %v3227 = vld [vmem:[%s1900 + $0x28] sm:$0x7f]
  %v3228 = vld [vmem:[%s1900 + $0x30] sm:$0x7f]
  %v3229 = vld [vmem:[%s1900 + $0x38] sm:$0x7f]
  %v3230 = vld [vmem:[%s1900 + $0x40] sm:$0x7f]
  %v3231 = vld [vmem:[%s1900 + $0x48] sm:$0x7f]
  %v3232 = vld [vmem:[%s1900 + $0x50] sm:$0x7f]
  %v3233 = vld [vmem:[%s1900 + $0x58] sm:$0x7f]
  %v3234 = vld [vmem:[%s1900 + $0x60] sm:$0x7f]
  %v3235 = vld [vmem:[%s1900 + $0x68] sm:$0x7f]
  %v3236 = vld [vmem:[%s1900 + $0x70] sm:$0x7f]
  %v3237 = vld [vmem:[%s1900 + $0x78] sm:$0x7f]
  %v3238 = vld [vmem:[%s1900 + $0x80] sm:$0x7f]
  %v3239 = vld [vmem:[%s1900 + $0x88] sm:$0x7f]
  %v3240 = vld [vmem:[%s1900 + $0x90] sm:$0x7f]
  %v3241 = vld [vmem:[%s1900 + $0x98] sm:$0x7f]
  %v3242 = vld [vmem:[%s1900 + $0xa0] sm:$0x7f]
  %v3243 = vld [vmem:[%s1900 + $0xa8] sm:$0x7f]
  %v3244 = vld [vmem:[%s1900 + $0xb0] sm:$0x7f]
  %v3245 = vld [vmem:[%s1900 + $0xb8] sm:$0x7f]
  %v3246 = vld [vmem:[%s1900 + $0xc0] sm:$0x7f]
  %v3247 = vld [vmem:[%s1900 + $0xc8] sm:$0x7f]
  %v3248 = vld [vmem:[%s1900 + $0xd0] sm:$0x7f]
  %v3249 = vld [vmem:[%s1900 + $0xd8] sm:$0x7f]
  %v3250 = vld [vmem:[%s1900 + $0xe0] sm:$0x7f]
  %v3251 = vld [vmem:[%s1900 + $0xe8] sm:$0x7f]
  %v3252 = vld [vmem:[%s1900 + $0xf0] sm:$0x7f]
  %v3253 = vld [vmem:[%s1900 + $0xf8] sm:$0x7f]
  %v3254 = vld [vmem:[%s1900 + $0x100] sm:$0x7f]
  %v3255 = vld [vmem:[%s1900 + $0x108] sm:$0x7f]
  %v3256 = vld [vmem:[%s1900 + $0x110] sm:$0x7f]
  %v3257 = vld [vmem:[%s1900 + $0x118] sm:$0x7f]
  %v3258 = vld [vmem:[%s1900 + $0x120] sm:$0x7f]
  %v3259 = vld [vmem:[%s1900 + $0x128] sm:$0x7f]
  %v3260 = vld [vmem:[%s1900 + $0x130] sm:$0x7f]
  %v3261 = vld [vmem:[%s1900 + $0x138] sm:$0x7f]
  %v3262 = vld [vmem:[%s1900 + $0x140] sm:$0x7f]
  %v3263 = vld [vmem:[%s1900 + $0x148] sm:$0x7f]
  %v3264 = vld [vmem:[%s1900 + $0x150] sm:$0x7f]
  %v3265 = vld [vmem:[%s1900 + $0x158] sm:$0x7f]
  %v3266 = vld [vmem:[%s1900 + $0x160] sm:$0x7f]
  %v3267 = vld [vmem:[%s1900 + $0x168] sm:$0x7f]
  %v3268 = vld [vmem:[%s1900 + $0x170] sm:$0x7f]
  %v3269 = vld [vmem:[%s1900 + $0x178] sm:$0x7f]
  %v3270 = vld [vmem:[%s1900 + $0x180] sm:$0x7f]
  %v3272 = vlaneseq
  %v3273 = vshrl.u32 %v3272, 7
  %v3274 = vsub.s32 0, %v3273
  %v3275 = vrot.slane %v3221, %v3274
  %v3276 = vlaneseq
  %v3277 = vshrl.u32 %v3276, 7
  %v3278 = vsub.s32 1, %v3277
  %v3279 = vrot.slane %v3221, %v3278
  %v3280 = vlaneseq
  %v3281 = vshrl.u32 %v3280, 7
  %v3282 = vsub.s32 2, %v3281
  %v3283 = vrot.slane %v3221, %v3282
  %v3284 = vlaneseq
  %v3285 = vshrl.u32 %v3284, 7
  %v3286 = vsub.s32 3, %v3285
  %v3287 = vrot.slane %v3221, %v3286
  %v3288 = vlaneseq
  %v3289 = vshrl.u32 %v3288, 7
  %v3290 = vsub.s32 4, %v3289
  %v3291 = vrot.slane %v3221, %v3290
  %v3292 = vlaneseq
  %v3293 = vshrl.u32 %v3292, 7
  %v3294 = vsub.s32 5, %v3293
  %v3295 = vrot.slane %v3221, %v3294
  %v3296 = vlaneseq
  %v3297 = vshrl.u32 %v3296, 7
  %v3298 = vsub.s32 6, %v3297
  %v3299 = vrot.slane %v3221, %v3298
  %v3307 = vmul.f32 %v3222, %v3275
  %v3308 = vmul.f32 %v3223, %v3279
  %v3309 = vmul.f32 %v3224, %v3283
  %v3310 = vmul.f32 %v3225, %v3287
  %v3311 = vmul.f32 %v3226, %v3291
  %v3312 = vmul.f32 %v3227, %v3295
  %v3313 = vmul.f32 %v3228, %v3299
  %v3314 = vmul.f32 %v3229, %v3275
  %v3315 = vmul.f32 %v3230, %v3279
  %v3316 = vmul.f32 %v3231, %v3283
  %v3317 = vmul.f32 %v3232, %v3287
  %v3318 = vmul.f32 %v3233, %v3291
  %v3319 = vmul.f32 %v3234, %v3295
  %v3320 = vmul.f32 %v3235, %v3299
  %v3321 = vmul.f32 %v3236, %v3275
  %v3322 = vmul.f32 %v3237, %v3279
  %v3323 = vmul.f32 %v3238, %v3283
  %v3324 = vmul.f32 %v3239, %v3287
  %v3325 = vmul.f32 %v3240, %v3291
  %v3326 = vmul.f32 %v3241, %v3295
  %v3327 = vmul.f32 %v3242, %v3299
  %v3328 = vmul.f32 %v3243, %v3275
  %v3329 = vmul.f32 %v3244, %v3279
  %v3330 = vmul.f32 %v3245, %v3283
  %v3331 = vmul.f32 %v3246, %v3287
  %v3332 = vmul.f32 %v3247, %v3291
  %v3333 = vmul.f32 %v3248, %v3295
  %v3334 = vmul.f32 %v3249, %v3299
  %v3335 = vmul.f32 %v3250, %v3275
  %v3336 = vmul.f32 %v3251, %v3279
  %v3337 = vmul.f32 %v3252, %v3283
  %v3338 = vmul.f32 %v3253, %v3287
  %v3339 = vmul.f32 %v3254, %v3291
  %v3340 = vmul.f32 %v3255, %v3295
  %v3341 = vmul.f32 %v3256, %v3299
  %v3342 = vmul.f32 %v3257, %v3275
  %v3343 = vmul.f32 %v3258, %v3279
  %v3344 = vmul.f32 %v3259, %v3283
  %v3345 = vmul.f32 %v3260, %v3287
  %v3346 = vmul.f32 %v3261, %v3291
  %v3347 = vmul.f32 %v3262, %v3295
  %v3348 = vmul.f32 %v3263, %v3299
  %v3349 = vmul.f32 %v3264, %v3275
  %v3350 = vmul.f32 %v3265, %v3279
  %v3351 = vmul.f32 %v3266, %v3283
  %v3352 = vmul.f32 %v3267, %v3287
  %v3353 = vmul.f32 %v3268, %v3291
  %v3354 = vmul.f32 %v3269, %v3295
  %v3355 = vmul.f32 %v3270, %v3299
  %v3356 = vadd.f32 %v3169, %v3307
  %v3357 = vadd.f32 %v3170, %v3308
  %v3358 = vadd.f32 %v3171, %v3309
  %v3359 = vadd.f32 %v3172, %v3310
  %v3360 = vadd.f32 %v3173, %v3311
  %v3361 = vadd.f32 %v3174, %v3312
  %v3362 = vadd.f32 %v3175, %v3313
  %v3363 = vadd.f32 %v3176, %v3314
  %v3364 = vadd.f32 %v3177, %v3315
  %v3365 = vadd.f32 %v3178, %v3316
  %v3366 = vadd.f32 %v3179, %v3317
  %v3367 = vadd.f32 %v3180, %v3318
  %v3368 = vadd.f32 %v3181, %v3319
  %v3369 = vadd.f32 %v3182, %v3320
  %v3370 = vadd.f32 %v3183, %v3321
  %v3371 = vadd.f32 %v3184, %v3322
  %v3372 = vadd.f32 %v3185, %v3323
  %v3373 = vadd.f32 %v3186, %v3324
  %v3374 = vadd.f32 %v3187, %v3325
  %v3375 = vadd.f32 %v3188, %v3326
  %v3376 = vadd.f32 %v3189, %v3327
  %v3377 = vadd.f32 %v3190, %v3328
  %v3378 = vadd.f32 %v3191, %v3329
  %v3379 = vadd.f32 %v3192, %v3330
  %v3380 = vadd.f32 %v3193, %v3331
  %v3381 = vadd.f32 %v3194, %v3332
  %v3382 = vadd.f32 %v3195, %v3333
  %v3383 = vadd.f32 %v3196, %v3334
  %v3384 = vadd.f32 %v3197, %v3335
  %v3385 = vadd.f32 %v3198, %v3336
  %v3386 = vadd.f32 %v3199, %v3337
  %v3387 = vadd.f32 %v3200, %v3338
  %v3388 = vadd.f32 %v3201, %v3339
  %v3389 = vadd.f32 %v3202, %v3340
  %v3390 = vadd.f32 %v3203, %v3341
  %v3391 = vadd.f32 %v3204, %v3342
  %v3392 = vadd.f32 %v3205, %v3343
  %v3393 = vadd.f32 %v3206, %v3344
  %v3394 = vadd.f32 %v3207, %v3345
  %v3395 = vadd.f32 %v3208, %v3346
  %v3396 = vadd.f32 %v3209, %v3347
  %v3397 = vadd.f32 %v3210, %v3348
  %v3398 = vadd.f32 %v3211, %v3349
  %v3399 = vadd.f32 %v3212, %v3350
  %v3400 = vadd.f32 %v3213, %v3351
  %v3401 = vadd.f32 %v3214, %v3352
  %v3402 = vadd.f32 %v3215, %v3353
  %v3403 = vadd.f32 %v3216, %v3354
  %v3404 = vadd.f32 %v3217, %v3355
  %s3405 = scalar_lea.vmem %s3, 117
  %v3406 = vld [vmem:[%s3405] ss:$8 sm:$0xf]
  %v3407 = vld [vmem:[%s3405] ss:$8 sm:$0x70]
  %v3408 = vor.u32 %v3406, %v3407
  %v3409 = vld [vmem:[%s2088] sm:$0x7f]
  %v3410 = vld [vmem:[%s2088 + $0x8] sm:$0x7f]
  %v3411 = vld [vmem:[%s2088 + $0x10] sm:$0x7f]
  %v3412 = vld [vmem:[%s2088 + $0x18] sm:$0x7f]
  %v3413 = vld [vmem:[%s2088 + $0x20] sm:$0x7f]
  %v3414 = vld [vmem:[%s2088 + $0x28] sm:$0x7f]
  %v3415 = vld [vmem:[%s2088 + $0x30] sm:$0x7f]
  %v3416 = vld [vmem:[%s2088 + $0x38] sm:$0x7f]
  %v3417 = vld [vmem:[%s2088 + $0x40] sm:$0x7f]
  %v3418 = vld [vmem:[%s2088 + $0x48] sm:$0x7f]
  %v3419 = vld [vmem:[%s2088 + $0x50] sm:$0x7f]
  %v3420 = vld [vmem:[%s2088 + $0x58] sm:$0x7f]
  %v3421 = vld [vmem:[%s2088 + $0x60] sm:$0x7f]
  %v3422 = vld [vmem:[%s2088 + $0x68] sm:$0x7f]
  %v3423 = vld [vmem:[%s2088 + $0x70] sm:$0x7f]
  %v3424 = vld [vmem:[%s2088 + $0x78] sm:$0x7f]
  %v3425 = vld [vmem:[%s2088 + $0x80] sm:$0x7f]
  %v3426 = vld [vmem:[%s2088 + $0x88] sm:$0x7f]
  %v3427 = vld [vmem:[%s2088 + $0x90] sm:$0x7f]
  %v3428 = vld [vmem:[%s2088 + $0x98] sm:$0x7f]
  %v3429 = vld [vmem:[%s2088 + $0xa0] sm:$0x7f]
  %v3430 = vld [vmem:[%s2088 + $0xa8] sm:$0x7f]
  %v3431 = vld [vmem:[%s2088 + $0xb0] sm:$0x7f]
  %v3432 = vld [vmem:[%s2088 + $0xb8] sm:$0x7f]
  %v3433 = vld [vmem:[%s2088 + $0xc0] sm:$0x7f]
  %v3434 = vld [vmem:[%s2088 + $0xc8] sm:$0x7f]
  %v3435 = vld [vmem:[%s2088 + $0xd0] sm:$0x7f]
  %v3436 = vld [vmem:[%s2088 + $0xd8] sm:$0x7f]
  %v3437 = vld [vmem:[%s2088 + $0xe0] sm:$0x7f]
  %v3438 = vld [vmem:[%s2088 + $0xe8] sm:$0x7f]
  %v3439 = vld [vmem:[%s2088 + $0xf0] sm:$0x7f]
  %v3440 = vld [vmem:[%s2088 + $0xf8] sm:$0x7f]
  %v3441 = vld [vmem:[%s2088 + $0x100] sm:$0x7f]
  %v3442 = vld [vmem:[%s2088 + $0x108] sm:$0x7f]
  %v3443 = vld [vmem:[%s2088 + $0x110] sm:$0x7f]
  %v3444 = vld [vmem:[%s2088 + $0x118] sm:$0x7f]
  %v3445 = vld [vmem:[%s2088 + $0x120] sm:$0x7f]
  %v3446 = vld [vmem:[%s2088 + $0x128] sm:$0x7f]
  %v3447 = vld [vmem:[%s2088 + $0x130] sm:$0x7f]
  %v3448 = vld [vmem:[%s2088 + $0x138] sm:$0x7f]
  %v3449 = vld [vmem:[%s2088 + $0x140] sm:$0x7f]
  %v3450 = vld [vmem:[%s2088 + $0x148] sm:$0x7f]
  %v3451 = vld [vmem:[%s2088 + $0x150] sm:$0x7f]
  %v3452 = vld [vmem:[%s2088 + $0x158] sm:$0x7f]
  %v3453 = vld [vmem:[%s2088 + $0x160] sm:$0x7f]
  %v3454 = vld [vmem:[%s2088 + $0x168] sm:$0x7f]
  %v3455 = vld [vmem:[%s2088 + $0x170] sm:$0x7f]
  %v3456 = vld [vmem:[%s2088 + $0x178] sm:$0x7f]
  %v3457 = vld [vmem:[%s2088 + $0x180] sm:$0x7f]
  %v3459 = vlaneseq
  %v3460 = vshrl.u32 %v3459, 7
  %v3461 = vsub.s32 0, %v3460
  %v3462 = vrot.slane %v3408, %v3461
  %v3463 = vlaneseq
  %v3464 = vshrl.u32 %v3463, 7
  %v3465 = vsub.s32 1, %v3464
  %v3466 = vrot.slane %v3408, %v3465
  %v3467 = vlaneseq
  %v3468 = vshrl.u32 %v3467, 7
  %v3469 = vsub.s32 2, %v3468
  %v3470 = vrot.slane %v3408, %v3469
  %v3471 = vlaneseq
  %v3472 = vshrl.u32 %v3471, 7
  %v3473 = vsub.s32 3, %v3472
  %v3474 = vrot.slane %v3408, %v3473
  %v3475 = vlaneseq
  %v3476 = vshrl.u32 %v3475, 7
  %v3477 = vsub.s32 4, %v3476
  %v3478 = vrot.slane %v3408, %v3477
  %v3479 = vlaneseq
  %v3480 = vshrl.u32 %v3479, 7
  %v3481 = vsub.s32 5, %v3480
  %v3482 = vrot.slane %v3408, %v3481
  %v3483 = vlaneseq
  %v3484 = vshrl.u32 %v3483, 7
  %v3485 = vsub.s32 6, %v3484
  %v3486 = vrot.slane %v3408, %v3485
  %v3494 = vmul.f32 %v3409, %v3462
  %v3495 = vmul.f32 %v3410, %v3466
  %v3496 = vmul.f32 %v3411, %v3470
  %v3497 = vmul.f32 %v3412, %v3474
  %v3498 = vmul.f32 %v3413, %v3478
  %v3499 = vmul.f32 %v3414, %v3482
  %v3500 = vmul.f32 %v3415, %v3486
  %v3501 = vmul.f32 %v3416, %v3462
  %v3502 = vmul.f32 %v3417, %v3466
  %v3503 = vmul.f32 %v3418, %v3470
  %v3504 = vmul.f32 %v3419, %v3474
  %v3505 = vmul.f32 %v3420, %v3478
  %v3506 = vmul.f32 %v3421, %v3482
  %v3507 = vmul.f32 %v3422, %v3486
  %v3508 = vmul.f32 %v3423, %v3462
  %v3509 = vmul.f32 %v3424, %v3466
  %v3510 = vmul.f32 %v3425, %v3470
  %v3511 = vmul.f32 %v3426, %v3474
  %v3512 = vmul.f32 %v3427, %v3478
  %v3513 = vmul.f32 %v3428, %v3482
  %v3514 = vmul.f32 %v3429, %v3486
  %v3515 = vmul.f32 %v3430, %v3462
  %v3516 = vmul.f32 %v3431, %v3466
  %v3517 = vmul.f32 %v3432, %v3470
  %v3518 = vmul.f32 %v3433, %v3474
  %v3519 = vmul.f32 %v3434, %v3478
  %v3520 = vmul.f32 %v3435, %v3482
  %v3521 = vmul.f32 %v3436, %v3486
  %v3522 = vmul.f32 %v3437, %v3462
  %v3523 = vmul.f32 %v3438, %v3466
  %v3524 = vmul.f32 %v3439, %v3470
  %v3525 = vmul.f32 %v3440, %v3474
  %v3526 = vmul.f32 %v3441, %v3478
  %v3527 = vmul.f32 %v3442, %v3482
  %v3528 = vmul.f32 %v3443, %v3486
  %v3529 = vmul.f32 %v3444, %v3462
  %v3530 = vmul.f32 %v3445, %v3466
  %v3531 = vmul.f32 %v3446, %v3470
  %v3532 = vmul.f32 %v3447, %v3474
  %v3533 = vmul.f32 %v3448, %v3478
  %v3534 = vmul.f32 %v3449, %v3482
  %v3535 = vmul.f32 %v3450, %v3486
  %v3536 = vmul.f32 %v3451, %v3462
  %v3537 = vmul.f32 %v3452, %v3466
  %v3538 = vmul.f32 %v3453, %v3470
  %v3539 = vmul.f32 %v3454, %v3474
  %v3540 = vmul.f32 %v3455, %v3478
  %v3541 = vmul.f32 %v3456, %v3482
  %v3542 = vmul.f32 %v3457, %v3486
  %v3543 = vadd.f32 %v3356, %v3494
  %v3544 = vadd.f32 %v3357, %v3495
  %v3545 = vadd.f32 %v3358, %v3496
  %v3546 = vadd.f32 %v3359, %v3497
  %v3547 = vadd.f32 %v3360, %v3498
  %v3548 = vadd.f32 %v3361, %v3499
  %v3549 = vadd.f32 %v3362, %v3500
  %v3550 = vadd.f32 %v3363, %v3501
  %v3551 = vadd.f32 %v3364, %v3502
  %v3552 = vadd.f32 %v3365, %v3503
  %v3553 = vadd.f32 %v3366, %v3504
  %v3554 = vadd.f32 %v3367, %v3505
  %v3555 = vadd.f32 %v3368, %v3506
  %v3556 = vadd.f32 %v3369, %v3507
  %v3557 = vadd.f32 %v3370, %v3508
  %v3558 = vadd.f32 %v3371, %v3509
  %v3559 = vadd.f32 %v3372, %v3510
  %v3560 = vadd.f32 %v3373, %v3511
  %v3561 = vadd.f32 %v3374, %v3512
  %v3562 = vadd.f32 %v3375, %v3513
  %v3563 = vadd.f32 %v3376, %v3514
  %v3564 = vadd.f32 %v3377, %v3515
  %v3565 = vadd.f32 %v3378, %v3516
  %v3566 = vadd.f32 %v3379, %v3517
  %v3567 = vadd.f32 %v3380, %v3518
  %v3568 = vadd.f32 %v3381, %v3519
  %v3569 = vadd.f32 %v3382, %v3520
  %v3570 = vadd.f32 %v3383, %v3521
  %v3571 = vadd.f32 %v3384, %v3522
  %v3572 = vadd.f32 %v3385, %v3523
  %v3573 = vadd.f32 %v3386, %v3524
  %v3574 = vadd.f32 %v3387, %v3525
  %v3575 = vadd.f32 %v3388, %v3526
  %v3576 = vadd.f32 %v3389, %v3527
  %v3577 = vadd.f32 %v3390, %v3528
  %v3578 = vadd.f32 %v3391, %v3529
  %v3579 = vadd.f32 %v3392, %v3530
  %v3580 = vadd.f32 %v3393, %v3531
  %v3581 = vadd.f32 %v3394, %v3532
  %v3582 = vadd.f32 %v3395, %v3533
  %v3583 = vadd.f32 %v3396, %v3534
  %v3584 = vadd.f32 %v3397, %v3535
  %v3585 = vadd.f32 %v3398, %v3536
  %v3586 = vadd.f32 %v3399, %v3537
  %v3587 = vadd.f32 %v3400, %v3538
  %v3588 = vadd.f32 %v3401, %v3539
  %v3589 = vadd.f32 %v3402, %v3540
  %v3590 = vadd.f32 %v3403, %v3541
  %v3591 = vadd.f32 %v3404, %v3542
  %v3592 = vld [vmem:[#allocation2] sm:$0xfc]
  %v3593 = vld [vmem:[#allocation2 + $0x8] sm:$0xfc]
  %v3594 = vld [vmem:[#allocation2 + $0x10] sm:$0xfc]
  %v3595 = vld [vmem:[#allocation2 + $0x18] sm:$0xfc]
  %v3596 = vld [vmem:[#allocation2 + $0x20] sm:$0xfc]
  %v3597 = vld [vmem:[#allocation2 + $0x28] sm:$0xfc]
  %v3598 = vld [vmem:[#allocation2 + $0x30] sm:$0xfc]
  %v3599 = vld [vmem:[#allocation2 + $0x38] sm:$0x1]
  %v3600 = vld [vmem:[#allocation2 + $0x40] sm:$0x1]
  %v3601 = vld [vmem:[#allocation2 + $0x48] sm:$0x1]
  %v3602 = vld [vmem:[#allocation2 + $0x50] sm:$0x1]
  %v3603 = vld [vmem:[#allocation2 + $0x58] sm:$0x1]
  %v3604 = vld [vmem:[#allocation2 + $0x60] sm:$0x1]
  %v3605 = vld [vmem:[#allocation2 + $0x68] sm:$0x1]
  %v3606 = vld [vmem:[#allocation2 + $0x70] sm:$0xfc]
  %v3607 = vld [vmem:[#allocation2 + $0x78] sm:$0xfc]
  %v3608 = vld [vmem:[#allocation2 + $0x80] sm:$0xfc]
  %v3609 = vld [vmem:[#allocation2 + $0x88] sm:$0xfc]
  %v3610 = vld [vmem:[#allocation2 + $0x90] sm:$0xfc]
  %v3611 = vld [vmem:[#allocation2 + $0x98] sm:$0xfc]
  %v3612 = vld [vmem:[#allocation2 + $0xa0] sm:$0xfc]
  %v3613 = vld [vmem:[#allocation2 + $0xa8] sm:$0x1]
  %v3614 = vld [vmem:[#allocation2 + $0xb0] sm:$0x1]
  %v3615 = vld [vmem:[#allocation2 + $0xb8] sm:$0x1]
  %v3616 = vld [vmem:[#allocation2 + $0xc0] sm:$0x1]
  %v3617 = vld [vmem:[#allocation2 + $0xc8] sm:$0x1]
  %v3618 = vld [vmem:[#allocation2 + $0xd0] sm:$0x1]
  %v3619 = vld [vmem:[#allocation2 + $0xd8] sm:$0x1]
  %v3620 = vld [vmem:[#allocation2 + $0xe0] sm:$0xfc]
  %v3621 = vld [vmem:[#allocation2 + $0xe8] sm:$0xfc]
  %v3622 = vld [vmem:[#allocation2 + $0xf0] sm:$0xfc]
  %v3623 = vld [vmem:[#allocation2 + $0xf8] sm:$0xfc]
  %v3624 = vld [vmem:[#allocation2 + $0x100] sm:$0xfc]
  %v3625 = vld [vmem:[#allocation2 + $0x108] sm:$0xfc]
  %v3626 = vld [vmem:[#allocation2 + $0x110] sm:$0xfc]
  %v3627 = vld [vmem:[#allocation2 + $0x118] sm:$0x1]
  %v3628 = vld [vmem:[#allocation2 + $0x120] sm:$0x1]
  %v3629 = vld [vmem:[#allocation2 + $0x128] sm:$0x1]
  %v3630 = vld [vmem:[#allocation2 + $0x130] sm:$0x1]
  %v3631 = vld [vmem:[#allocation2 + $0x138] sm:$0x1]
  %v3632 = vld [vmem:[#allocation2 + $0x140] sm:$0x1]
  %v3633 = vld [vmem:[#allocation2 + $0x148] sm:$0x1]
  %v3634 = vld [vmem:[#allocation2 + $0x150] sm:$0xfc]
  %v3635 = vld [vmem:[#allocation2 + $0x158] sm:$0xfc]
  %v3636 = vld [vmem:[#allocation2 + $0x160] sm:$0xfc]
  %v3637 = vld [vmem:[#allocation2 + $0x168] sm:$0xfc]
  %v3638 = vld [vmem:[#allocation2 + $0x170] sm:$0xfc]
  %v3639 = vld [vmem:[#allocation2 + $0x178] sm:$0xfc]
  %v3640 = vld [vmem:[#allocation2 + $0x180] sm:$0xfc]
  %v3641 = vld [vmem:[#allocation2 + $0x188] sm:$0x1]
  %v3642 = vld [vmem:[#allocation2 + $0x190] sm:$0x1]
  %v3643 = vld [vmem:[#allocation2 + $0x198] sm:$0x1]
  %v3644 = vld [vmem:[#allocation2 + $0x1a0] sm:$0x1]
  %v3645 = vld [vmem:[#allocation2 + $0x1a8] sm:$0x1]
  %v3646 = vld [vmem:[#allocation2 + $0x1b0] sm:$0x1]
  %v3647 = vld [vmem:[#allocation2 + $0x1b8] sm:$0x1]
  %v3648 = vld [vmem:[#allocation2 + $0x1c0] sm:$0xfc]
  %v3649 = vld [vmem:[#allocation2 + $0x1c8] sm:$0xfc]
  %v3650 = vld [vmem:[#allocation2 + $0x1d0] sm:$0xfc]
  %v3651 = vld [vmem:[#allocation2 + $0x1d8] sm:$0xfc]
  %v3652 = vld [vmem:[#allocation2 + $0x1e0] sm:$0xfc]
  %v3653 = vld [vmem:[#allocation2 + $0x1e8] sm:$0xfc]
  %v3654 = vld [vmem:[#allocation2 + $0x1f0] sm:$0xfc]
  %v3655 = vld [vmem:[#allocation2 + $0x1f8] sm:$0x1]
  %v3656 = vld [vmem:[#allocation2 + $0x200] sm:$0x1]
  %v3657 = vld [vmem:[#allocation2 + $0x208] sm:$0x1]
  %v3658 = vld [vmem:[#allocation2 + $0x210] sm:$0x1]
  %v3659 = vld [vmem:[#allocation2 + $0x218] sm:$0x1]
  %v3660 = vld [vmem:[#allocation2 + $0x220] sm:$0x1]
  %v3661 = vld [vmem:[#allocation2 + $0x228] sm:$0x1]
  %v3662 = vld [vmem:[#allocation2 + $0x230] sm:$0xfc]
  %v3663 = vld [vmem:[#allocation2 + $0x238] sm:$0xfc]
  %v3664 = vld [vmem:[#allocation2 + $0x240] sm:$0xfc]
  %v3665 = vld [vmem:[#allocation2 + $0x248] sm:$0xfc]
  %v3666 = vld [vmem:[#allocation2 + $0x250] sm:$0xfc]
  %v3667 = vld [vmem:[#allocation2 + $0x258] sm:$0xfc]
  %v3668 = vld [vmem:[#allocation2 + $0x260] sm:$0xfc]
  %v3669 = vld [vmem:[#allocation2 + $0x268] sm:$0x1]
  %v3670 = vld [vmem:[#allocation2 + $0x270] sm:$0x1]
  %v3671 = vld [vmem:[#allocation2 + $0x278] sm:$0x1]
  %v3672 = vld [vmem:[#allocation2 + $0x280] sm:$0x1]
  %v3673 = vld [vmem:[#allocation2 + $0x288] sm:$0x1]
  %v3674 = vld [vmem:[#allocation2 + $0x290] sm:$0x1]
  %v3675 = vld [vmem:[#allocation2 + $0x298] sm:$0x1]
  %v3676 = vld [vmem:[#allocation2 + $0x2a0] sm:$0xfc]
  %v3677 = vld [vmem:[#allocation2 + $0x2a8] sm:$0xfc]
  %v3678 = vld [vmem:[#allocation2 + $0x2b0] sm:$0xfc]
  %v3679 = vld [vmem:[#allocation2 + $0x2b8] sm:$0xfc]
  %v3680 = vld [vmem:[#allocation2 + $0x2c0] sm:$0xfc]
  %v3681 = vld [vmem:[#allocation2 + $0x2c8] sm:$0xfc]
  %v3682 = vld [vmem:[#allocation2 + $0x2d0] sm:$0xfc]
  %v3683 = vld [vmem:[#allocation2 + $0x2d8] sm:$0x1]
  %v3684 = vld [vmem:[#allocation2 + $0x2e0] sm:$0x1]
  %v3685 = vld [vmem:[#allocation2 + $0x2e8] sm:$0x1]
  %v3686 = vld [vmem:[#allocation2 + $0x2f0] sm:$0x1]
  %v3687 = vld [vmem:[#allocation2 + $0x2f8] sm:$0x1]
  %v3688 = vld [vmem:[#allocation2 + $0x300] sm:$0x1]
  %v3689 = vld [vmem:[#allocation2 + $0x308] sm:$0x1]
  %v3690 = vld [vmem:[#allocation2 + $0x310] sm:$0xfc]
  %v3691 = vld [vmem:[#allocation2 + $0x318] sm:$0xfc]
  %v3692 = vld [vmem:[#allocation2 + $0x320] sm:$0xfc]
  %v3693 = vld [vmem:[#allocation2 + $0x328] sm:$0xfc]
  %v3694 = vld [vmem:[#allocation2 + $0x330] sm:$0xfc]
  %v3695 = vld [vmem:[#allocation2 + $0x338] sm:$0xfc]
  %v3696 = vld [vmem:[#allocation2 + $0x340] sm:$0xfc]
  %v3697 = vld [vmem:[#allocation2 + $0x348] sm:$0x1]
  %v3698 = vld [vmem:[#allocation2 + $0x350] sm:$0x1]
  %v3699 = vld [vmem:[#allocation2 + $0x358] sm:$0x1]
  %v3700 = vld [vmem:[#allocation2 + $0x360] sm:$0x1]
  %v3701 = vld [vmem:[#allocation2 + $0x368] sm:$0x1]
  %v3702 = vld [vmem:[#allocation2 + $0x370] sm:$0x1]
  %v3703 = vld [vmem:[#allocation2 + $0x378] sm:$0x1]
  %v3704 = vld [vmem:[#allocation2 + $0x380] sm:$0xfc]
  %v3705 = vld [vmem:[#allocation2 + $0x388] sm:$0xfc]
  %v3706 = vld [vmem:[#allocation2 + $0x390] sm:$0xfc]
  %v3707 = vld [vmem:[#allocation2 + $0x398] sm:$0xfc]
  %v3708 = vld [vmem:[#allocation2 + $0x3a0] sm:$0xfc]
  %v3709 = vld [vmem:[#allocation2 + $0x3a8] sm:$0xfc]
  %v3710 = vld [vmem:[#allocation2 + $0x3b0] sm:$0xfc]
  %v3711 = vld [vmem:[#allocation2 + $0x3b8] sm:$0x1]
  %v3712 = vld [vmem:[#allocation2 + $0x3c0] sm:$0x1]
  %v3713 = vld [vmem:[#allocation2 + $0x3c8] sm:$0x1]
  %v3714 = vld [vmem:[#allocation2 + $0x3d0] sm:$0x1]
  %v3715 = vld [vmem:[#allocation2 + $0x3d8] sm:$0x1]
  %v3716 = vld [vmem:[#allocation2 + $0x3e0] sm:$0x1]
  %v3717 = vld [vmem:[#allocation2 + $0x3e8] sm:$0x1]
  %v3718 = vld [vmem:[#allocation2 + $0x3f0] sm:$0xfc]
  %v3719 = vld [vmem:[#allocation2 + $0x3f8] sm:$0xfc]
  %v3720 = vld [vmem:[#allocation2 + $0x400] sm:$0xfc]
  %v3721 = vld [vmem:[#allocation2 + $0x408] sm:$0xfc]
  %v3722 = vld [vmem:[#allocation2 + $0x410] sm:$0xfc]
  %v3723 = vld [vmem:[#allocation2 + $0x418] sm:$0xfc]
  %v3724 = vld [vmem:[#allocation2 + $0x420] sm:$0xfc]
  %v3725 = vld [vmem:[#allocation2 + $0x428] sm:$0x1]
  %v3726 = vld [vmem:[#allocation2 + $0x430] sm:$0x1]
  %v3727 = vld [vmem:[#allocation2 + $0x438] sm:$0x1]
  %v3728 = vld [vmem:[#allocation2 + $0x440] sm:$0x1]
  %v3729 = vld [vmem:[#allocation2 + $0x448] sm:$0x1]
  %v3730 = vld [vmem:[#allocation2 + $0x450] sm:$0x1]
  %v3731 = vld [vmem:[#allocation2 + $0x458] sm:$0x1]
  %v3732 = vld [vmem:[#allocation2 + $0x460] sm:$0xfc]
  %v3733 = vld [vmem:[#allocation2 + $0x468] sm:$0xfc]
  %v3734 = vld [vmem:[#allocation2 + $0x470] sm:$0xfc]
  %v3735 = vld [vmem:[#allocation2 + $0x478] sm:$0xfc]
  %v3736 = vld [vmem:[#allocation2 + $0x480] sm:$0xfc]
  %v3737 = vld [vmem:[#allocation2 + $0x488] sm:$0xfc]
  %v3738 = vld [vmem:[#allocation2 + $0x490] sm:$0xfc]
  %v3739 = vld [vmem:[#allocation2 + $0x498] sm:$0x1]
  %v3740 = vld [vmem:[#allocation2 + $0x4a0] sm:$0x1]
  %v3741 = vld [vmem:[#allocation2 + $0x4a8] sm:$0x1]
  %v3742 = vld [vmem:[#allocation2 + $0x4b0] sm:$0x1]
  %v3743 = vld [vmem:[#allocation2 + $0x4b8] sm:$0x1]
  %v3744 = vld [vmem:[#allocation2 + $0x4c0] sm:$0x1]
  %v3745 = vld [vmem:[#allocation2 + $0x4c8] sm:$0x1]
  %vm3900 = vcmask 1045504
  %v3901 = vrot.slane %v3592, 2
  %v3902 = vrot.slane %v3599, 2
  %v3903 = vsel %vm3900, %v3901, %v3902
  %v3904 = vrot.slane %v3593, 2
  %v3905 = vrot.slane %v3600, 2
  %v3906 = vsel %vm3900, %v3904, %v3905
  %v3907 = vrot.slane %v3594, 2
  %v3908 = vrot.slane %v3601, 2
  %v3909 = vsel %vm3900, %v3907, %v3908
  %v3910 = vrot.slane %v3595, 2
  %v3911 = vrot.slane %v3602, 2
  %v3912 = vsel %vm3900, %v3910, %v3911
  %v3913 = vrot.slane %v3596, 2
  %v3914 = vrot.slane %v3603, 2
  %v3915 = vsel %vm3900, %v3913, %v3914
  %v3916 = vrot.slane %v3597, 2
  %v3917 = vrot.slane %v3604, 2
  %v3918 = vsel %vm3900, %v3916, %v3917
  %v3919 = vrot.slane %v3598, 2
  %v3920 = vrot.slane %v3605, 2
  %v3921 = vsel %vm3900, %v3919, %v3920
  %v3922 = vrot.slane %v3606, 2
  %v3923 = vrot.slane %v3613, 2
  %v3924 = vsel %vm3900, %v3922, %v3923
  %v3925 = vrot.slane %v3607, 2
  %v3926 = vrot.slane %v3614, 2
  %v3927 = vsel %vm3900, %v3925, %v3926
  %v3928 = vrot.slane %v3608, 2
  %v3929 = vrot.slane %v3615, 2
  %v3930 = vsel %vm3900, %v3928, %v3929
  %v3931 = vrot.slane %v3609, 2
  %v3932 = vrot.slane %v3616, 2
  %v3933 = vsel %vm3900, %v3931, %v3932
  %v3934 = vrot.slane %v3610, 2
  %v3935 = vrot.slane %v3617, 2
  %v3936 = vsel %vm3900, %v3934, %v3935
  %v3937 = vrot.slane %v3611, 2
  %v3938 = vrot.slane %v3618, 2
  %v3939 = vsel %vm3900, %v3937, %v3938
  %v3940 = vrot.slane %v3612, 2
  %v3941 = vrot.slane %v3619, 2
  %v3942 = vsel %vm3900, %v3940, %v3941
  %v3943 = vrot.slane %v3620, 2
  %v3944 = vrot.slane %v3627, 2
  %v3945 = vsel %vm3900, %v3943, %v3944
  %v3946 = vrot.slane %v3621, 2
  %v3947 = vrot.slane %v3628, 2
  %v3948 = vsel %vm3900, %v3946, %v3947
  %v3949 = vrot.slane %v3622, 2
  %v3950 = vrot.slane %v3629, 2
  %v3951 = vsel %vm3900, %v3949, %v3950
  %v3952 = vrot.slane %v3623, 2
  %v3953 = vrot.slane %v3630, 2
  %v3954 = vsel %vm3900, %v3952, %v3953
  %v3955 = vrot.slane %v3624, 2
  %v3956 = vrot.slane %v3631, 2
  %v3957 = vsel %vm3900, %v3955, %v3956
  %v3958 = vrot.slane %v3625, 2
  %v3959 = vrot.slane %v3632, 2
  %v3960 = vsel %vm3900, %v3958, %v3959
  %v3961 = vrot.slane %v3626, 2
  %v3962 = vrot.slane %v3633, 2
  %v3963 = vsel %vm3900, %v3961, %v3962
  %v3964 = vrot.slane %v3634, 2
  %v3965 = vrot.slane %v3641, 2
  %v3966 = vsel %vm3900, %v3964, %v3965
  %v3967 = vrot.slane %v3635, 2
  %v3968 = vrot.slane %v3642, 2
  %v3969 = vsel %vm3900, %v3967, %v3968
  %v3970 = vrot.slane %v3636, 2
  %v3971 = vrot.slane %v3643, 2
  %v3972 = vsel %vm3900, %v3970, %v3971
  %v3973 = vrot.slane %v3637, 2
  %v3974 = vrot.slane %v3644, 2
  %v3975 = vsel %vm3900, %v3973, %v3974
  %v3976 = vrot.slane %v3638, 2
  %v3977 = vrot.slane %v3645, 2
  %v3978 = vsel %vm3900, %v3976, %v3977
  %v3979 = vrot.slane %v3639, 2
  %v3980 = vrot.slane %v3646, 2
  %v3981 = vsel %vm3900, %v3979, %v3980
  %v3982 = vrot.slane %v3640, 2
  %v3983 = vrot.slane %v3647, 2
  %v3984 = vsel %vm3900, %v3982, %v3983
  %v3985 = vrot.slane %v3648, 2
  %v3986 = vrot.slane %v3655, 2
  %v3987 = vsel %vm3900, %v3985, %v3986
  %v3988 = vrot.slane %v3649, 2
  %v3989 = vrot.slane %v3656, 2
  %v3990 = vsel %vm3900, %v3988, %v3989
  %v3991 = vrot.slane %v3650, 2
  %v3992 = vrot.slane %v3657, 2
  %v3993 = vsel %vm3900, %v3991, %v3992
  %v3994 = vrot.slane %v3651, 2
  %v3995 = vrot.slane %v3658, 2
  %v3996 = vsel %vm3900, %v3994, %v3995
  %v3997 = vrot.slane %v3652, 2
  %v3998 = vrot.slane %v3659, 2
  %v3999 = vsel %vm3900, %v3997, %v3998
  %v4000 = vrot.slane %v3653, 2
  %v4001 = vrot.slane %v3660, 2
  %v4002 = vsel %vm3900, %v4000, %v4001
  %v4003 = vrot.slane %v3654, 2
  %v4004 = vrot.slane %v3661, 2
  %v4005 = vsel %vm3900, %v4003, %v4004
  %v4006 = vrot.slane %v3662, 2
  %v4007 = vrot.slane %v3669, 2
  %v4008 = vsel %vm3900, %v4006, %v4007
  %v4009 = vrot.slane %v3663, 2
  %v4010 = vrot.slane %v3670, 2
  %v4011 = vsel %vm3900, %v4009, %v4010
  %v4012 = vrot.slane %v3664, 2
  %v4013 = vrot.slane %v3671, 2
  %v4014 = vsel %vm3900, %v4012, %v4013
  %v4015 = vrot.slane %v3665, 2
  %v4016 = vrot.slane %v3672, 2
  %v4017 = vsel %vm3900, %v4015, %v4016
  %v4018 = vrot.slane %v3666, 2
  %v4019 = vrot.slane %v3673, 2
  %v4020 = vsel %vm3900, %v4018, %v4019
  %v4021 = vrot.slane %v3667, 2
  %v4022 = vrot.slane %v3674, 2
  %v4023 = vsel %vm3900, %v4021, %v4022
  %v4024 = vrot.slane %v3668, 2
  %v4025 = vrot.slane %v3675, 2
  %v4026 = vsel %vm3900, %v4024, %v4025
  %v4027 = vrot.slane %v3676, 2
  %v4028 = vrot.slane %v3683, 2
  %v4029 = vsel %vm3900, %v4027, %v4028
  %v4030 = vrot.slane %v3677, 2
  %v4031 = vrot.slane %v3684, 2
  %v4032 = vsel %vm3900, %v4030, %v4031
  %v4033 = vrot.slane %v3678, 2
  %v4034 = vrot.slane %v3685, 2
  %v4035 = vsel %vm3900, %v4033, %v4034
  %v4036 = vrot.slane %v3679, 2
  %v4037 = vrot.slane %v3686, 2
  %v4038 = vsel %vm3900, %v4036, %v4037
  %v4039 = vrot.slane %v3680, 2
  %v4040 = vrot.slane %v3687, 2
  %v4041 = vsel %vm3900, %v4039, %v4040
  %v4042 = vrot.slane %v3681, 2
  %v4043 = vrot.slane %v3688, 2
  %v4044 = vsel %vm3900, %v4042, %v4043
  %v4045 = vrot.slane %v3682, 2
  %v4046 = vrot.slane %v3689, 2
  %v4047 = vsel %vm3900, %v4045, %v4046
  %v4048 = vrot.slane %v3690, 2
  %v4049 = vrot.slane %v3697, 2
  %v4050 = vsel %vm3900, %v4048, %v4049
  %v4051 = vrot.slane %v3691, 2
  %v4052 = vrot.slane %v3698, 2
  %v4053 = vsel %vm3900, %v4051, %v4052
  %v4054 = vrot.slane %v3692, 2
  %v4055 = vrot.slane %v3699, 2
  %v4056 = vsel %vm3900, %v4054, %v4055
  %v4057 = vrot.slane %v3693, 2
  %v4058 = vrot.slane %v3700, 2
  %v4059 = vsel %vm3900, %v4057, %v4058
  %v4060 = vrot.slane %v3694, 2
  %v4061 = vrot.slane %v3701, 2
  %v4062 = vsel %vm3900, %v4060, %v4061
  %v4063 = vrot.slane %v3695, 2
  %v4064 = vrot.slane %v3702, 2
  %v4065 = vsel %vm3900, %v4063, %v4064
  %v4066 = vrot.slane %v3696, 2
  %v4067 = vrot.slane %v3703, 2
  %v4068 = vsel %vm3900, %v4066, %v4067
  %v4069 = vrot.slane %v3704, 2
  %v4070 = vrot.slane %v3711, 2
  %v4071 = vsel %vm3900, %v4069, %v4070
  %v4072 = vrot.slane %v3705, 2
  %v4073 = vrot.slane %v3712, 2
  %v4074 = vsel %vm3900, %v4072, %v4073
  %v4075 = vrot.slane %v3706, 2
  %v4076 = vrot.slane %v3713, 2
  %v4077 = vsel %vm3900, %v4075, %v4076
  %v4078 = vrot.slane %v3707, 2
  %v4079 = vrot.slane %v3714, 2
  %v4080 = vsel %vm3900, %v4078, %v4079
  %v4081 = vrot.slane %v3708, 2
  %v4082 = vrot.slane %v3715, 2
  %v4083 = vsel %vm3900, %v4081, %v4082
  %v4084 = vrot.slane %v3709, 2
  %v4085 = vrot.slane %v3716, 2
  %v4086 = vsel %vm3900, %v4084, %v4085
  %v4087 = vrot.slane %v3710, 2
  %v4088 = vrot.slane %v3717, 2
  %v4089 = vsel %vm3900, %v4087, %v4088
  %v4090 = vrot.slane %v3718, 2
  %v4091 = vrot.slane %v3725, 2
  %v4092 = vsel %vm3900, %v4090, %v4091
  %v4093 = vrot.slane %v3719, 2
  %v4094 = vrot.slane %v3726, 2
  %v4095 = vsel %vm3900, %v4093, %v4094
  %v4096 = vrot.slane %v3720, 2
  %v4097 = vrot.slane %v3727, 2
  %v4098 = vsel %vm3900, %v4096, %v4097
  %v4099 = vrot.slane %v3721, 2
  %v4100 = vrot.slane %v3728, 2
  %v4101 = vsel %vm3900, %v4099, %v4100
  %v4102 = vrot.slane %v3722, 2
  %v4103 = vrot.slane %v3729, 2
  %v4104 = vsel %vm3900, %v4102, %v4103
  %v4105 = vrot.slane %v3723, 2
  %v4106 = vrot.slane %v3730, 2
  %v4107 = vsel %vm3900, %v4105, %v4106
  %v4108 = vrot.slane %v3724, 2
  %v4109 = vrot.slane %v3731, 2
  %v4110 = vsel %vm3900, %v4108, %v4109
  %v4111 = vrot.slane %v3732, 2
  %v4112 = vrot.slane %v3739, 2
  %v4113 = vsel %vm3900, %v4111, %v4112
  %v4114 = vrot.slane %v3733, 2
  %v4115 = vrot.slane %v3740, 2
  %v4116 = vsel %vm3900, %v4114, %v4115
  %v4117 = vrot.slane %v3734, 2
  %v4118 = vrot.slane %v3741, 2
  %v4119 = vsel %vm3900, %v4117, %v4118
  %v4120 = vrot.slane %v3735, 2
  %v4121 = vrot.slane %v3742, 2
  %v4122 = vsel %vm3900, %v4120, %v4121
  %v4123 = vrot.slane %v3736, 2
  %v4124 = vrot.slane %v3743, 2
  %v4125 = vsel %vm3900, %v4123, %v4124
  %v4126 = vrot.slane %v3737, 2
  %v4127 = vrot.slane %v3744, 2
  %v4128 = vsel %vm3900, %v4126, %v4127
  %v4129 = vrot.slane %v3738, 2
  %v4130 = vrot.slane %v3745, 2
  %v4131 = vsel %vm3900, %v4129, %v4130
  %4209 = vst [vmem:[#allocation3] sm:$0x7f] %v3903
  %4210 = vst [vmem:[#allocation3 + $0x8] sm:$0x7f] %v3906
  %4211 = vst [vmem:[#allocation3 + $0x10] sm:$0x7f] %v3909
  %4212 = vst [vmem:[#allocation3 + $0x18] sm:$0x7f] %v3912
  %4213 = vst [vmem:[#allocation3 + $0x20] sm:$0x7f] %v3915
  %4214 = vst [vmem:[#allocation3 + $0x28] sm:$0x7f] %v3918
  %4215 = vst.msk [vmem:[#allocation3 + $0x30] sm:$0x7f] %vm187, %v3921
  %4216 = vst [vmem:[#allocation3 + $0x38] sm:$0x7f] %v3924
  %4217 = vst [vmem:[#allocation3 + $0x40] sm:$0x7f] %v3927
  %4218 = vst [vmem:[#allocation3 + $0x48] sm:$0x7f] %v3930
  %4219 = vst [vmem:[#allocation3 + $0x50] sm:$0x7f] %v3933
  %4220 = vst [vmem:[#allocation3 + $0x58] sm:$0x7f] %v3936
  %4221 = vst [vmem:[#allocation3 + $0x60] sm:$0x7f] %v3939
  %4222 = vst.msk [vmem:[#allocation3 + $0x68] sm:$0x7f] %vm187, %v3942
  %4223 = vst [vmem:[#allocation3 + $0x70] sm:$0x7f] %v3945
  %4224 = vst [vmem:[#allocation3 + $0x78] sm:$0x7f] %v3948
  %4225 = vst [vmem:[#allocation3 + $0x80] sm:$0x7f] %v3951
  %4226 = vst [vmem:[#allocation3 + $0x88] sm:$0x7f] %v3954
  %4227 = vst [vmem:[#allocation3 + $0x90] sm:$0x7f] %v3957
  %4228 = vst [vmem:[#allocation3 + $0x98] sm:$0x7f] %v3960
  %4229 = vst.msk [vmem:[#allocation3 + $0xa0] sm:$0x7f] %vm187, %v3963
  %4230 = vst [vmem:[#allocation3 + $0xa8] sm:$0x7f] %v3966
  %4231 = vst [vmem:[#allocation3 + $0xb0] sm:$0x7f] %v3969
  %4232 = vst [vmem:[#allocation3 + $0xb8] sm:$0x7f] %v3972
  %4233 = vst [vmem:[#allocation3 + $0xc0] sm:$0x7f] %v3975
  %4234 = vst [vmem:[#allocation3 + $0xc8] sm:$0x7f] %v3978
  %4235 = vst [vmem:[#allocation3 + $0xd0] sm:$0x7f] %v3981
  %4236 = vst.msk [vmem:[#allocation3 + $0xd8] sm:$0x7f] %vm187, %v3984
  %4237 = vst [vmem:[#allocation3 + $0xe0] sm:$0x7f] %v3987
  %4238 = vst [vmem:[#allocation3 + $0xe8] sm:$0x7f] %v3990
  %4239 = vst [vmem:[#allocation3 + $0xf0] sm:$0x7f] %v3993
  %4240 = vst [vmem:[#allocation3 + $0xf8] sm:$0x7f] %v3996
  %4241 = vst [vmem:[#allocation3 + $0x100] sm:$0x7f] %v3999
  %4242 = vst [vmem:[#allocation3 + $0x108] sm:$0x7f] %v4002
  %4243 = vst.msk [vmem:[#allocation3 + $0x110] sm:$0x7f] %vm187, %v4005
  %4244 = vst [vmem:[#allocation3 + $0x118] sm:$0x7f] %v4008
  %4245 = vst [vmem:[#allocation3 + $0x120] sm:$0x7f] %v4011
  %4246 = vst [vmem:[#allocation3 + $0x128] sm:$0x7f] %v4014
  %4247 = vst [vmem:[#allocation3 + $0x130] sm:$0x7f] %v4017
  %4248 = vst [vmem:[#allocation3 + $0x138] sm:$0x7f] %v4020
  %4249 = vst [vmem:[#allocation3 + $0x140] sm:$0x7f] %v4023
  %4250 = vst.msk [vmem:[#allocation3 + $0x148] sm:$0x7f] %vm187, %v4026
  %4251 = vst [vmem:[#allocation3 + $0x150] sm:$0x7f] %v4029
  %4252 = vst [vmem:[#allocation3 + $0x158] sm:$0x7f] %v4032
  %4253 = vst [vmem:[#allocation3 + $0x160] sm:$0x7f] %v4035
  %4254 = vst [vmem:[#allocation3 + $0x168] sm:$0x7f] %v4038
  %4255 = vst [vmem:[#allocation3 + $0x170] sm:$0x7f] %v4041
  %4256 = vst [vmem:[#allocation3 + $0x178] sm:$0x7f] %v4044
  %4257 = vst.msk [vmem:[#allocation3 + $0x180] sm:$0x7f] %vm187, %v4047
  %4258 = vst [vmem:[#allocation3 + $0x188] sm:$0x7f] %v4050
  %4259 = vst [vmem:[#allocation3 + $0x190] sm:$0x7f] %v4053
  %4260 = vst [vmem:[#allocation3 + $0x198] sm:$0x7f] %v4056
  %4261 = vst [vmem:[#allocation3 + $0x1a0] sm:$0x7f] %v4059
  %4262 = vst [vmem:[#allocation3 + $0x1a8] sm:$0x7f] %v4062
  %4263 = vst [vmem:[#allocation3 + $0x1b0] sm:$0x7f] %v4065
  %4264 = vst.msk [vmem:[#allocation3 + $0x1b8] sm:$0x7f] %vm187, %v4068
  %4265 = vst [vmem:[#allocation3 + $0x1c0] sm:$0x7f] %v4071
  %4266 = vst [vmem:[#allocation3 + $0x1c8] sm:$0x7f] %v4074
  %4267 = vst [vmem:[#allocation3 + $0x1d0] sm:$0x7f] %v4077
  %4268 = vst [vmem:[#allocation3 + $0x1d8] sm:$0x7f] %v4080
  %4269 = vst [vmem:[#allocation3 + $0x1e0] sm:$0x7f] %v4083
  %4270 = vst [vmem:[#allocation3 + $0x1e8] sm:$0x7f] %v4086
  %4271 = vst.msk [vmem:[#allocation3 + $0x1f0] sm:$0x7f] %vm187, %v4089
  %4272 = vst [vmem:[#allocation3 + $0x1f8] sm:$0x7f] %v4092
  %4273 = vst [vmem:[#allocation3 + $0x200] sm:$0x7f] %v4095
  %4274 = vst [vmem:[#allocation3 + $0x208] sm:$0x7f] %v4098
  %4275 = vst [vmem:[#allocation3 + $0x210] sm:$0x7f] %v4101
  %4276 = vst [vmem:[#allocation3 + $0x218] sm:$0x7f] %v4104
  %4277 = vst [vmem:[#allocation3 + $0x220] sm:$0x7f] %v4107
  %4278 = vst.msk [vmem:[#allocation3 + $0x228] sm:$0x7f] %vm187, %v4110
  %4279 = vst [vmem:[#allocation3 + $0x230] sm:$0x7f] %v4113
  %4280 = vst [vmem:[#allocation3 + $0x238] sm:$0x7f] %v4116
  %4281 = vst [vmem:[#allocation3 + $0x240] sm:$0x7f] %v4119
  %4282 = vst [vmem:[#allocation3 + $0x248] sm:$0x7f] %v4122
  %4283 = vst [vmem:[#allocation3 + $0x250] sm:$0x7f] %v4125
  %4284 = vst [vmem:[#allocation3 + $0x258] sm:$0x7f] %v4128
  %4285 = vst.msk [vmem:[#allocation3 + $0x260] sm:$0x7f] %vm187, %v4131
  %s4286 = scalar_lea.vmem %s3, 2
  %v4287 = vld [vmem:[%s4286] ss:$8 sm:$0xf]
  %v4288 = vld [vmem:[%s4286] ss:$8 sm:$0x70]
  %v4289 = vor.u32 %v4287, %v4288
  %v4290 = vld [vmem:[#allocation3] sm:$0x7f]
  %v4291 = vld [vmem:[#allocation3 + $0x8] sm:$0x7f]
  %v4292 = vld [vmem:[#allocation3 + $0x10] sm:$0x7f]
  %v4293 = vld [vmem:[#allocation3 + $0x18] sm:$0x7f]
  %v4294 = vld [vmem:[#allocation3 + $0x20] sm:$0x7f]
  %v4295 = vld [vmem:[#allocation3 + $0x28] sm:$0x7f]
  %v4296 = vld [vmem:[#allocation3 + $0x30] sm:$0x7f]
  %v4297 = vld [vmem:[#allocation3 + $0x38] sm:$0x7f]
  %v4298 = vld [vmem:[#allocation3 + $0x40] sm:$0x7f]
  %v4299 = vld [vmem:[#allocation3 + $0x48] sm:$0x7f]
  %v4300 = vld [vmem:[#allocation3 + $0x50] sm:$0x7f]
  %v4301 = vld [vmem:[#allocation3 + $0x58] sm:$0x7f]
  %v4302 = vld [vmem:[#allocation3 + $0x60] sm:$0x7f]
  %v4303 = vld [vmem:[#allocation3 + $0x68] sm:$0x7f]
  %v4304 = vld [vmem:[#allocation3 + $0x70] sm:$0x7f]
  %v4305 = vld [vmem:[#allocation3 + $0x78] sm:$0x7f]
  %v4306 = vld [vmem:[#allocation3 + $0x80] sm:$0x7f]
  %v4307 = vld [vmem:[#allocation3 + $0x88] sm:$0x7f]
  %v4308 = vld [vmem:[#allocation3 + $0x90] sm:$0x7f]
  %v4309 = vld [vmem:[#allocation3 + $0x98] sm:$0x7f]
  %v4310 = vld [vmem:[#allocation3 + $0xa0] sm:$0x7f]
  %v4311 = vld [vmem:[#allocation3 + $0xa8] sm:$0x7f]
  %v4312 = vld [vmem:[#allocation3 + $0xb0] sm:$0x7f]
  %v4313 = vld [vmem:[#allocation3 + $0xb8] sm:$0x7f]
  %v4314 = vld [vmem:[#allocation3 + $0xc0] sm:$0x7f]
  %v4315 = vld [vmem:[#allocation3 + $0xc8] sm:$0x7f]
  %v4316 = vld [vmem:[#allocation3 + $0xd0] sm:$0x7f]
  %v4317 = vld [vmem:[#allocation3 + $0xd8] sm:$0x7f]
  %v4318 = vld [vmem:[#allocation3 + $0xe0] sm:$0x7f]
  %v4319 = vld [vmem:[#allocation3 + $0xe8] sm:$0x7f]
  %v4320 = vld [vmem:[#allocation3 + $0xf0] sm:$0x7f]
  %v4321 = vld [vmem:[#allocation3 + $0xf8] sm:$0x7f]
  %v4322 = vld [vmem:[#allocation3 + $0x100] sm:$0x7f]
  %v4323 = vld [vmem:[#allocation3 + $0x108] sm:$0x7f]
  %v4324 = vld [vmem:[#allocation3 + $0x110] sm:$0x7f]
  %v4325 = vld [vmem:[#allocation3 + $0x118] sm:$0x7f]
  %v4326 = vld [vmem:[#allocation3 + $0x120] sm:$0x7f]
  %v4327 = vld [vmem:[#allocation3 + $0x128] sm:$0x7f]
  %v4328 = vld [vmem:[#allocation3 + $0x130] sm:$0x7f]
  %v4329 = vld [vmem:[#allocation3 + $0x138] sm:$0x7f]
  %v4330 = vld [vmem:[#allocation3 + $0x140] sm:$0x7f]
  %v4331 = vld [vmem:[#allocation3 + $0x148] sm:$0x7f]
  %v4332 = vld [vmem:[#allocation3 + $0x150] sm:$0x7f]
  %v4333 = vld [vmem:[#allocation3 + $0x158] sm:$0x7f]
  %v4334 = vld [vmem:[#allocation3 + $0x160] sm:$0x7f]
  %v4335 = vld [vmem:[#allocation3 + $0x168] sm:$0x7f]
  %v4336 = vld [vmem:[#allocation3 + $0x170] sm:$0x7f]
  %v4337 = vld [vmem:[#allocation3 + $0x178] sm:$0x7f]
  %v4338 = vld [vmem:[#allocation3 + $0x180] sm:$0x7f]
  %v4340 = vlaneseq
  %v4341 = vshrl.u32 %v4340, 7
  %v4342 = vsub.s32 0, %v4341
  %v4343 = vrot.slane %v4289, %v4342
  %v4344 = vlaneseq
  %v4345 = vshrl.u32 %v4344, 7
  %v4346 = vsub.s32 1, %v4345
  %v4347 = vrot.slane %v4289, %v4346
  %v4348 = vlaneseq
  %v4349 = vshrl.u32 %v4348, 7
  %v4350 = vsub.s32 2, %v4349
  %v4351 = vrot.slane %v4289, %v4350
  %v4352 = vlaneseq
  %v4353 = vshrl.u32 %v4352, 7
  %v4354 = vsub.s32 3, %v4353
  %v4355 = vrot.slane %v4289, %v4354
  %v4356 = vlaneseq
  %v4357 = vshrl.u32 %v4356, 7
  %v4358 = vsub.s32 4, %v4357
  %v4359 = vrot.slane %v4289, %v4358
  %v4360 = vlaneseq
  %v4361 = vshrl.u32 %v4360, 7
  %v4362 = vsub.s32 5, %v4361
  %v4363 = vrot.slane %v4289, %v4362
  %v4364 = vlaneseq
  %v4365 = vshrl.u32 %v4364, 7
  %v4366 = vsub.s32 6, %v4365
  %v4367 = vrot.slane %v4289, %v4366
  %v4375 = vmul.f32 %v4290, %v4343
  %v4376 = vmul.f32 %v4291, %v4347
  %v4377 = vmul.f32 %v4292, %v4351
  %v4378 = vmul.f32 %v4293, %v4355
  %v4379 = vmul.f32 %v4294, %v4359
  %v4380 = vmul.f32 %v4295, %v4363
  %v4381 = vmul.f32 %v4296, %v4367
  %v4382 = vmul.f32 %v4297, %v4343
  %v4383 = vmul.f32 %v4298, %v4347
  %v4384 = vmul.f32 %v4299, %v4351
  %v4385 = vmul.f32 %v4300, %v4355
  %v4386 = vmul.f32 %v4301, %v4359
  %v4387 = vmul.f32 %v4302, %v4363
  %v4388 = vmul.f32 %v4303, %v4367
  %v4389 = vmul.f32 %v4304, %v4343
  %v4390 = vmul.f32 %v4305, %v4347
  %v4391 = vmul.f32 %v4306, %v4351
  %v4392 = vmul.f32 %v4307, %v4355
  %v4393 = vmul.f32 %v4308, %v4359
  %v4394 = vmul.f32 %v4309, %v4363
  %v4395 = vmul.f32 %v4310, %v4367
  %v4396 = vmul.f32 %v4311, %v4343
  %v4397 = vmul.f32 %v4312, %v4347
  %v4398 = vmul.f32 %v4313, %v4351
  %v4399 = vmul.f32 %v4314, %v4355
  %v4400 = vmul.f32 %v4315, %v4359
  %v4401 = vmul.f32 %v4316, %v4363
  %v4402 = vmul.f32 %v4317, %v4367
  %v4403 = vmul.f32 %v4318, %v4343
  %v4404 = vmul.f32 %v4319, %v4347
  %v4405 = vmul.f32 %v4320, %v4351
  %v4406 = vmul.f32 %v4321, %v4355
  %v4407 = vmul.f32 %v4322, %v4359
  %v4408 = vmul.f32 %v4323, %v4363
  %v4409 = vmul.f32 %v4324, %v4367
  %v4410 = vmul.f32 %v4325, %v4343
  %v4411 = vmul.f32 %v4326, %v4347
  %v4412 = vmul.f32 %v4327, %v4351
  %v4413 = vmul.f32 %v4328, %v4355
  %v4414 = vmul.f32 %v4329, %v4359
  %v4415 = vmul.f32 %v4330, %v4363
  %v4416 = vmul.f32 %v4331, %v4367
  %v4417 = vmul.f32 %v4332, %v4343
  %v4418 = vmul.f32 %v4333, %v4347
  %v4419 = vmul.f32 %v4334, %v4351
  %v4420 = vmul.f32 %v4335, %v4355
  %v4421 = vmul.f32 %v4336, %v4359
  %v4422 = vmul.f32 %v4337, %v4363
  %v4423 = vmul.f32 %v4338, %v4367
  %v4424 = vadd.f32 %v3543, %v4375
  %v4425 = vadd.f32 %v3544, %v4376
  %v4426 = vadd.f32 %v3545, %v4377
  %v4427 = vadd.f32 %v3546, %v4378
  %v4428 = vadd.f32 %v3547, %v4379
  %v4429 = vadd.f32 %v3548, %v4380
  %v4430 = vadd.f32 %v3549, %v4381
  %v4431 = vadd.f32 %v3550, %v4382
  %v4432 = vadd.f32 %v3551, %v4383
  %v4433 = vadd.f32 %v3552, %v4384
  %v4434 = vadd.f32 %v3553, %v4385
  %v4435 = vadd.f32 %v3554, %v4386
  %v4436 = vadd.f32 %v3555, %v4387
  %v4437 = vadd.f32 %v3556, %v4388
  %v4438 = vadd.f32 %v3557, %v4389
  %v4439 = vadd.f32 %v3558, %v4390
  %v4440 = vadd.f32 %v3559, %v4391
  %v4441 = vadd.f32 %v3560, %v4392
  %v4442 = vadd.f32 %v3561, %v4393
  %v4443 = vadd.f32 %v3562, %v4394
  %v4444 = vadd.f32 %v3563, %v4395
  %v4445 = vadd.f32 %v3564, %v4396
  %v4446 = vadd.f32 %v3565, %v4397
  %v4447 = vadd.f32 %v3566, %v4398
  %v4448 = vadd.f32 %v3567, %v4399
  %v4449 = vadd.f32 %v3568, %v4400
  %v4450 = vadd.f32 %v3569, %v4401
  %v4451 = vadd.f32 %v3570, %v4402
  %v4452 = vadd.f32 %v3571, %v4403
  %v4453 = vadd.f32 %v3572, %v4404
  %v4454 = vadd.f32 %v3573, %v4405
  %v4455 = vadd.f32 %v3574, %v4406
  %v4456 = vadd.f32 %v3575, %v4407
  %v4457 = vadd.f32 %v3576, %v4408
  %v4458 = vadd.f32 %v3577, %v4409
  %v4459 = vadd.f32 %v3578, %v4410
  %v4460 = vadd.f32 %v3579, %v4411
  %v4461 = vadd.f32 %v3580, %v4412
  %v4462 = vadd.f32 %v3581, %v4413
  %v4463 = vadd.f32 %v3582, %v4414
  %v4464 = vadd.f32 %v3583, %v4415
  %v4465 = vadd.f32 %v3584, %v4416
  %v4466 = vadd.f32 %v3585, %v4417
  %v4467 = vadd.f32 %v3586, %v4418
  %v4468 = vadd.f32 %v3587, %v4419
  %v4469 = vadd.f32 %v3588, %v4420
  %v4470 = vadd.f32 %v3589, %v4421
  %v4471 = vadd.f32 %v3590, %v4422
  %v4472 = vadd.f32 %v3591, %v4423
  %s4473 = scalar_lea.vmem %s3, 7
  %v4474 = vld [vmem:[%s4473] ss:$8 sm:$0xf]
  %v4475 = vld [vmem:[%s4473] ss:$8 sm:$0x70]
  %v4476 = vor.u32 %v4474, %v4475
  %v4477 = vld [vmem:[%s1524] sm:$0x7f]
  %v4478 = vld [vmem:[%s1524 + $0x8] sm:$0x7f]
  %v4479 = vld [vmem:[%s1524 + $0x10] sm:$0x7f]
  %v4480 = vld [vmem:[%s1524 + $0x18] sm:$0x7f]
  %v4481 = vld [vmem:[%s1524 + $0x20] sm:$0x7f]
  %v4482 = vld [vmem:[%s1524 + $0x28] sm:$0x7f]
  %v4483 = vld [vmem:[%s1524 + $0x30] sm:$0x7f]
  %v4484 = vld [vmem:[%s1524 + $0x38] sm:$0x7f]
  %v4485 = vld [vmem:[%s1524 + $0x40] sm:$0x7f]
  %v4486 = vld [vmem:[%s1524 + $0x48] sm:$0x7f]
  %v4487 = vld [vmem:[%s1524 + $0x50] sm:$0x7f]
  %v4488 = vld [vmem:[%s1524 + $0x58] sm:$0x7f]
  %v4489 = vld [vmem:[%s1524 + $0x60] sm:$0x7f]
  %v4490 = vld [vmem:[%s1524 + $0x68] sm:$0x7f]
  %v4491 = vld [vmem:[%s1524 + $0x70] sm:$0x7f]
  %v4492 = vld [vmem:[%s1524 + $0x78] sm:$0x7f]
  %v4493 = vld [vmem:[%s1524 + $0x80] sm:$0x7f]
  %v4494 = vld [vmem:[%s1524 + $0x88] sm:$0x7f]
  %v4495 = vld [vmem:[%s1524 + $0x90] sm:$0x7f]
  %v4496 = vld [vmem:[%s1524 + $0x98] sm:$0x7f]
  %v4497 = vld [vmem:[%s1524 + $0xa0] sm:$0x7f]
  %v4498 = vld [vmem:[%s1524 + $0xa8] sm:$0x7f]
  %v4499 = vld [vmem:[%s1524 + $0xb0] sm:$0x7f]
  %v4500 = vld [vmem:[%s1524 + $0xb8] sm:$0x7f]
  %v4501 = vld [vmem:[%s1524 + $0xc0] sm:$0x7f]
  %v4502 = vld [vmem:[%s1524 + $0xc8] sm:$0x7f]
  %v4503 = vld [vmem:[%s1524 + $0xd0] sm:$0x7f]
  %v4504 = vld [vmem:[%s1524 + $0xd8] sm:$0x7f]
  %v4505 = vld [vmem:[%s1524 + $0xe0] sm:$0x7f]
  %v4506 = vld [vmem:[%s1524 + $0xe8] sm:$0x7f]
  %v4507 = vld [vmem:[%s1524 + $0xf0] sm:$0x7f]
  %v4508 = vld [vmem:[%s1524 + $0xf8] sm:$0x7f]
  %v4509 = vld [vmem:[%s1524 + $0x100] sm:$0x7f]
  %v4510 = vld [vmem:[%s1524 + $0x108] sm:$0x7f]
  %v4511 = vld [vmem:[%s1524 + $0x110] sm:$0x7f]
  %v4512 = vld [vmem:[%s1524 + $0x118] sm:$0x7f]
  %v4513 = vld [vmem:[%s1524 + $0x120] sm:$0x7f]
  %v4514 = vld [vmem:[%s1524 + $0x128] sm:$0x7f]
  %v4515 = vld [vmem:[%s1524 + $0x130] sm:$0x7f]
  %v4516 = vld [vmem:[%s1524 + $0x138] sm:$0x7f]
  %v4517 = vld [vmem:[%s1524 + $0x140] sm:$0x7f]
  %v4518 = vld [vmem:[%s1524 + $0x148] sm:$0x7f]
  %v4519 = vld [vmem:[%s1524 + $0x150] sm:$0x7f]
  %v4520 = vld [vmem:[%s1524 + $0x158] sm:$0x7f]
  %v4521 = vld [vmem:[%s1524 + $0x160] sm:$0x7f]
  %v4522 = vld [vmem:[%s1524 + $0x168] sm:$0x7f]
  %v4523 = vld [vmem:[%s1524 + $0x170] sm:$0x7f]
  %v4524 = vld [vmem:[%s1524 + $0x178] sm:$0x7f]
  %v4525 = vld [vmem:[%s1524 + $0x180] sm:$0x7f]
  %v4527 = vlaneseq
  %v4528 = vshrl.u32 %v4527, 7
  %v4529 = vsub.s32 0, %v4528
  %v4530 = vrot.slane %v4476, %v4529
  %v4531 = vlaneseq
  %v4532 = vshrl.u32 %v4531, 7
  %v4533 = vsub.s32 1, %v4532
  %v4534 = vrot.slane %v4476, %v4533
  %v4535 = vlaneseq
  %v4536 = vshrl.u32 %v4535, 7
  %v4537 = vsub.s32 2, %v4536
  %v4538 = vrot.slane %v4476, %v4537
  %v4539 = vlaneseq
  %v4540 = vshrl.u32 %v4539, 7
  %v4541 = vsub.s32 3, %v4540
  %v4542 = vrot.slane %v4476, %v4541
  %v4543 = vlaneseq
  %v4544 = vshrl.u32 %v4543, 7
  %v4545 = vsub.s32 4, %v4544
  %v4546 = vrot.slane %v4476, %v4545
  %v4547 = vlaneseq
  %v4548 = vshrl.u32 %v4547, 7
  %v4549 = vsub.s32 5, %v4548
  %v4550 = vrot.slane %v4476, %v4549
  %v4551 = vlaneseq
  %v4552 = vshrl.u32 %v4551, 7
  %v4553 = vsub.s32 6, %v4552
  %v4554 = vrot.slane %v4476, %v4553
  %v4562 = vmul.f32 %v4477, %v4530
  %v4563 = vmul.f32 %v4478, %v4534
  %v4564 = vmul.f32 %v4479, %v4538
  %v4565 = vmul.f32 %v4480, %v4542
  %v4566 = vmul.f32 %v4481, %v4546
  %v4567 = vmul.f32 %v4482, %v4550
  %v4568 = vmul.f32 %v4483, %v4554
  %v4569 = vmul.f32 %v4484, %v4530
  %v4570 = vmul.f32 %v4485, %v4534
  %v4571 = vmul.f32 %v4486, %v4538
  %v4572 = vmul.f32 %v4487, %v4542
  %v4573 = vmul.f32 %v4488, %v4546
  %v4574 = vmul.f32 %v4489, %v4550
  %v4575 = vmul.f32 %v4490, %v4554
  %v4576 = vmul.f32 %v4491, %v4530
  %v4577 = vmul.f32 %v4492, %v4534
  %v4578 = vmul.f32 %v4493, %v4538
  %v4579 = vmul.f32 %v4494, %v4542
  %v4580 = vmul.f32 %v4495, %v4546
  %v4581 = vmul.f32 %v4496, %v4550
  %v4582 = vmul.f32 %v4497, %v4554
  %v4583 = vmul.f32 %v4498, %v4530
  %v4584 = vmul.f32 %v4499, %v4534
  %v4585 = vmul.f32 %v4500, %v4538
  %v4586 = vmul.f32 %v4501, %v4542
  %v4587 = vmul.f32 %v4502, %v4546
  %v4588 = vmul.f32 %v4503, %v4550
  %v4589 = vmul.f32 %v4504, %v4554
  %v4590 = vmul.f32 %v4505, %v4530
  %v4591 = vmul.f32 %v4506, %v4534
  %v4592 = vmul.f32 %v4507, %v4538
  %v4593 = vmul.f32 %v4508, %v4542
  %v4594 = vmul.f32 %v4509, %v4546
  %v4595 = vmul.f32 %v4510, %v4550
  %v4596 = vmul.f32 %v4511, %v4554
  %v4597 = vmul.f32 %v4512, %v4530
  %v4598 = vmul.f32 %v4513, %v4534
  %v4599 = vmul.f32 %v4514, %v4538
  %v4600 = vmul.f32 %v4515, %v4542
  %v4601 = vmul.f32 %v4516, %v4546
  %v4602 = vmul.f32 %v4517, %v4550
  %v4603 = vmul.f32 %v4518, %v4554
  %v4604 = vmul.f32 %v4519, %v4530
  %v4605 = vmul.f32 %v4520, %v4534
  %v4606 = vmul.f32 %v4521, %v4538
  %v4607 = vmul.f32 %v4522, %v4542
  %v4608 = vmul.f32 %v4523, %v4546
  %v4609 = vmul.f32 %v4524, %v4550
  %v4610 = vmul.f32 %v4525, %v4554
  %v4611 = vadd.f32 %v4424, %v4562
  %v4612 = vadd.f32 %v4425, %v4563
  %v4613 = vadd.f32 %v4426, %v4564
  %v4614 = vadd.f32 %v4427, %v4565
  %v4615 = vadd.f32 %v4428, %v4566
  %v4616 = vadd.f32 %v4429, %v4567
  %v4617 = vadd.f32 %v4430, %v4568
  %v4618 = vadd.f32 %v4431, %v4569
  %v4619 = vadd.f32 %v4432, %v4570
  %v4620 = vadd.f32 %v4433, %v4571
  %v4621 = vadd.f32 %v4434, %v4572
  %v4622 = vadd.f32 %v4435, %v4573
  %v4623 = vadd.f32 %v4436, %v4574
  %v4624 = vadd.f32 %v4437, %v4575
  %v4625 = vadd.f32 %v4438, %v4576
  %v4626 = vadd.f32 %v4439, %v4577
  %v4627 = vadd.f32 %v4440, %v4578
  %v4628 = vadd.f32 %v4441, %v4579
  %v4629 = vadd.f32 %v4442, %v4580
  %v4630 = vadd.f32 %v4443, %v4581
  %v4631 = vadd.f32 %v4444, %v4582
  %v4632 = vadd.f32 %v4445, %v4583
  %v4633 = vadd.f32 %v4446, %v4584
  %v4634 = vadd.f32 %v4447, %v4585
  %v4635 = vadd.f32 %v4448, %v4586
  %v4636 = vadd.f32 %v4449, %v4587
  %v4637 = vadd.f32 %v4450, %v4588
  %v4638 = vadd.f32 %v4451, %v4589
  %v4639 = vadd.f32 %v4452, %v4590
  %v4640 = vadd.f32 %v4453, %v4591
  %v4641 = vadd.f32 %v4454, %v4592
  %v4642 = vadd.f32 %v4455, %v4593
  %v4643 = vadd.f32 %v4456, %v4594
  %v4644 = vadd.f32 %v4457, %v4595
  %v4645 = vadd.f32 %v4458, %v4596
  %v4646 = vadd.f32 %v4459, %v4597
  %v4647 = vadd.f32 %v4460, %v4598
  %v4648 = vadd.f32 %v4461, %v4599
  %v4649 = vadd.f32 %v4462, %v4600
  %v4650 = vadd.f32 %v4463, %v4601
  %v4651 = vadd.f32 %v4464, %v4602
  %v4652 = vadd.f32 %v4465, %v4603
  %v4653 = vadd.f32 %v4466, %v4604
  %v4654 = vadd.f32 %v4467, %v4605
  %v4655 = vadd.f32 %v4468, %v4606
  %v4656 = vadd.f32 %v4469, %v4607
  %v4657 = vadd.f32 %v4470, %v4608
  %v4658 = vadd.f32 %v4471, %v4609
  %v4659 = vadd.f32 %v4472, %v4610
  %s4660 = scalar_lea.vmem %s3, 60
  %v4661 = vld [vmem:[%s4660] ss:$8 sm:$0xf]
  %v4662 = vld [vmem:[%s4660] ss:$8 sm:$0x70]
  %v4663 = vor.u32 %v4661, %v4662
  %v4664 = vld [vmem:[%s1712] sm:$0x7f]
  %v4665 = vld [vmem:[%s1712 + $0x8] sm:$0x7f]
  %v4666 = vld [vmem:[%s1712 + $0x10] sm:$0x7f]
  %v4667 = vld [vmem:[%s1712 + $0x18] sm:$0x7f]
  %v4668 = vld [vmem:[%s1712 + $0x20] sm:$0x7f]
  %v4669 = vld [vmem:[%s1712 + $0x28] sm:$0x7f]
  %v4670 = vld [vmem:[%s1712 + $0x30] sm:$0x7f]
  %v4671 = vld [vmem:[%s1712 + $0x38] sm:$0x7f]
  %v4672 = vld [vmem:[%s1712 + $0x40] sm:$0x7f]
  %v4673 = vld [vmem:[%s1712 + $0x48] sm:$0x7f]
  %v4674 = vld [vmem:[%s1712 + $0x50] sm:$0x7f]
  %v4675 = vld [vmem:[%s1712 + $0x58] sm:$0x7f]
  %v4676 = vld [vmem:[%s1712 + $0x60] sm:$0x7f]
  %v4677 = vld [vmem:[%s1712 + $0x68] sm:$0x7f]
  %v4678 = vld [vmem:[%s1712 + $0x70] sm:$0x7f]
  %v4679 = vld [vmem:[%s1712 + $0x78] sm:$0x7f]
  %v4680 = vld [vmem:[%s1712 + $0x80] sm:$0x7f]
  %v4681 = vld [vmem:[%s1712 + $0x88] sm:$0x7f]
  %v4682 = vld [vmem:[%s1712 + $0x90] sm:$0x7f]
  %v4683 = vld [vmem:[%s1712 + $0x98] sm:$0x7f]
  %v4684 = vld [vmem:[%s1712 + $0xa0] sm:$0x7f]
  %v4685 = vld [vmem:[%s1712 + $0xa8] sm:$0x7f]
  %v4686 = vld [vmem:[%s1712 + $0xb0] sm:$0x7f]
  %v4687 = vld [vmem:[%s1712 + $0xb8] sm:$0x7f]
  %v4688 = vld [vmem:[%s1712 + $0xc0] sm:$0x7f]
  %v4689 = vld [vmem:[%s1712 + $0xc8] sm:$0x7f]
  %v4690 = vld [vmem:[%s1712 + $0xd0] sm:$0x7f]
  %v4691 = vld [vmem:[%s1712 + $0xd8] sm:$0x7f]
  %v4692 = vld [vmem:[%s1712 + $0xe0] sm:$0x7f]
  %v4693 = vld [vmem:[%s1712 + $0xe8] sm:$0x7f]
  %v4694 = vld [vmem:[%s1712 + $0xf0] sm:$0x7f]
  %v4695 = vld [vmem:[%s1712 + $0xf8] sm:$0x7f]
  %v4696 = vld [vmem:[%s1712 + $0x100] sm:$0x7f]
  %v4697 = vld [vmem:[%s1712 + $0x108] sm:$0x7f]
  %v4698 = vld [vmem:[%s1712 + $0x110] sm:$0x7f]
  %v4699 = vld [vmem:[%s1712 + $0x118] sm:$0x7f]
  %v4700 = vld [vmem:[%s1712 + $0x120] sm:$0x7f]
  %v4701 = vld [vmem:[%s1712 + $0x128] sm:$0x7f]
  %v4702 = vld [vmem:[%s1712 + $0x130] sm:$0x7f]
  %v4703 = vld [vmem:[%s1712 + $0x138] sm:$0x7f]
  %v4704 = vld [vmem:[%s1712 + $0x140] sm:$0x7f]
  %v4705 = vld [vmem:[%s1712 + $0x148] sm:$0x7f]
  %v4706 = vld [vmem:[%s1712 + $0x150] sm:$0x7f]
  %v4707 = vld [vmem:[%s1712 + $0x158] sm:$0x7f]
  %v4708 = vld [vmem:[%s1712 + $0x160] sm:$0x7f]
  %v4709 = vld [vmem:[%s1712 + $0x168] sm:$0x7f]
  %v4710 = vld [vmem:[%s1712 + $0x170] sm:$0x7f]
  %v4711 = vld [vmem:[%s1712 + $0x178] sm:$0x7f]
  %v4712 = vld [vmem:[%s1712 + $0x180] sm:$0x7f]
  %v4714 = vlaneseq
  %v4715 = vshrl.u32 %v4714, 7
  %v4716 = vsub.s32 0, %v4715
  %v4717 = vrot.slane %v4663, %v4716
  %v4718 = vlaneseq
  %v4719 = vshrl.u32 %v4718, 7
  %v4720 = vsub.s32 1, %v4719
  %v4721 = vrot.slane %v4663, %v4720
  %v4722 = vlaneseq
  %v4723 = vshrl.u32 %v4722, 7
  %v4724 = vsub.s32 2, %v4723
  %v4725 = vrot.slane %v4663, %v4724
  %v4726 = vlaneseq
  %v4727 = vshrl.u32 %v4726, 7
  %v4728 = vsub.s32 3, %v4727
  %v4729 = vrot.slane %v4663, %v4728
  %v4730 = vlaneseq
  %v4731 = vshrl.u32 %v4730, 7
  %v4732 = vsub.s32 4, %v4731
  %v4733 = vrot.slane %v4663, %v4732
  %v4734 = vlaneseq
  %v4735 = vshrl.u32 %v4734, 7
  %v4736 = vsub.s32 5, %v4735
  %v4737 = vrot.slane %v4663, %v4736
  %v4738 = vlaneseq
  %v4739 = vshrl.u32 %v4738, 7
  %v4740 = vsub.s32 6, %v4739
  %v4741 = vrot.slane %v4663, %v4740
  %v4749 = vmul.f32 %v4664, %v4717
  %v4750 = vmul.f32 %v4665, %v4721
  %v4751 = vmul.f32 %v4666, %v4725
  %v4752 = vmul.f32 %v4667, %v4729
  %v4753 = vmul.f32 %v4668, %v4733
  %v4754 = vmul.f32 %v4669, %v4737
  %v4755 = vmul.f32 %v4670, %v4741
  %v4756 = vmul.f32 %v4671, %v4717
  %v4757 = vmul.f32 %v4672, %v4721
  %v4758 = vmul.f32 %v4673, %v4725
  %v4759 = vmul.f32 %v4674, %v4729
  %v4760 = vmul.f32 %v4675, %v4733
  %v4761 = vmul.f32 %v4676, %v4737
  %v4762 = vmul.f32 %v4677, %v4741
  %v4763 = vmul.f32 %v4678, %v4717
  %v4764 = vmul.f32 %v4679, %v4721
  %v4765 = vmul.f32 %v4680, %v4725
  %v4766 = vmul.f32 %v4681, %v4729
  %v4767 = vmul.f32 %v4682, %v4733
  %v4768 = vmul.f32 %v4683, %v4737
  %v4769 = vmul.f32 %v4684, %v4741
  %v4770 = vmul.f32 %v4685, %v4717
  %v4771 = vmul.f32 %v4686, %v4721
  %v4772 = vmul.f32 %v4687, %v4725
  %v4773 = vmul.f32 %v4688, %v4729
  %v4774 = vmul.f32 %v4689, %v4733
  %v4775 = vmul.f32 %v4690, %v4737
  %v4776 = vmul.f32 %v4691, %v4741
  %v4777 = vmul.f32 %v4692, %v4717
  %v4778 = vmul.f32 %v4693, %v4721
  %v4779 = vmul.f32 %v4694, %v4725
  %v4780 = vmul.f32 %v4695, %v4729
  %v4781 = vmul.f32 %v4696, %v4733
  %v4782 = vmul.f32 %v4697, %v4737
  %v4783 = vmul.f32 %v4698, %v4741
  %v4784 = vmul.f32 %v4699, %v4717
  %v4785 = vmul.f32 %v4700, %v4721
  %v4786 = vmul.f32 %v4701, %v4725
  %v4787 = vmul.f32 %v4702, %v4729
  %v4788 = vmul.f32 %v4703, %v4733
  %v4789 = vmul.f32 %v4704, %v4737
  %v4790 = vmul.f32 %v4705, %v4741
  %v4791 = vmul.f32 %v4706, %v4717
  %v4792 = vmul.f32 %v4707, %v4721
  %v4793 = vmul.f32 %v4708, %v4725
  %v4794 = vmul.f32 %v4709, %v4729
  %v4795 = vmul.f32 %v4710, %v4733
  %v4796 = vmul.f32 %v4711, %v4737
  %v4797 = vmul.f32 %v4712, %v4741
  %v4798 = vadd.f32 %v4611, %v4749
  %v4799 = vadd.f32 %v4612, %v4750
  %v4800 = vadd.f32 %v4613, %v4751
  %v4801 = vadd.f32 %v4614, %v4752
  %v4802 = vadd.f32 %v4615, %v4753
  %v4803 = vadd.f32 %v4616, %v4754
  %v4804 = vadd.f32 %v4617, %v4755
  %v4805 = vadd.f32 %v4618, %v4756
  %v4806 = vadd.f32 %v4619, %v4757
  %v4807 = vadd.f32 %v4620, %v4758
  %v4808 = vadd.f32 %v4621, %v4759
  %v4809 = vadd.f32 %v4622, %v4760
  %v4810 = vadd.f32 %v4623, %v4761
  %v4811 = vadd.f32 %v4624, %v4762
  %v4812 = vadd.f32 %v4625, %v4763
  %v4813 = vadd.f32 %v4626, %v4764
  %v4814 = vadd.f32 %v4627, %v4765
  %v4815 = vadd.f32 %v4628, %v4766
  %v4816 = vadd.f32 %v4629, %v4767
  %v4817 = vadd.f32 %v4630, %v4768
  %v4818 = vadd.f32 %v4631, %v4769
  %v4819 = vadd.f32 %v4632, %v4770
  %v4820 = vadd.f32 %v4633, %v4771
  %v4821 = vadd.f32 %v4634, %v4772
  %v4822 = vadd.f32 %v4635, %v4773
  %v4823 = vadd.f32 %v4636, %v4774
  %v4824 = vadd.f32 %v4637, %v4775
  %v4825 = vadd.f32 %v4638, %v4776
  %v4826 = vadd.f32 %v4639, %v4777
  %v4827 = vadd.f32 %v4640, %v4778
  %v4828 = vadd.f32 %v4641, %v4779
  %v4829 = vadd.f32 %v4642, %v4780
  %v4830 = vadd.f32 %v4643, %v4781
  %v4831 = vadd.f32 %v4644, %v4782
  %v4832 = vadd.f32 %v4645, %v4783
  %v4833 = vadd.f32 %v4646, %v4784
  %v4834 = vadd.f32 %v4647, %v4785
  %v4835 = vadd.f32 %v4648, %v4786
  %v4836 = vadd.f32 %v4649, %v4787
  %v4837 = vadd.f32 %v4650, %v4788
  %v4838 = vadd.f32 %v4651, %v4789
  %v4839 = vadd.f32 %v4652, %v4790
  %v4840 = vadd.f32 %v4653, %v4791
  %v4841 = vadd.f32 %v4654, %v4792
  %v4842 = vadd.f32 %v4655, %v4793
  %v4843 = vadd.f32 %v4656, %v4794
  %v4844 = vadd.f32 %v4657, %v4795
  %v4845 = vadd.f32 %v4658, %v4796
  %v4846 = vadd.f32 %v4659, %v4797
  %s4847 = scalar_lea.vmem %s3, 113
  %v4848 = vld [vmem:[%s4847] ss:$8 sm:$0xf]
  %v4849 = vld [vmem:[%s4847] ss:$8 sm:$0x70]
  %v4850 = vor.u32 %v4848, %v4849
  %v4851 = vld [vmem:[%s1900] sm:$0x7f]
  %v4852 = vld [vmem:[%s1900 + $0x8] sm:$0x7f]
  %v4853 = vld [vmem:[%s1900 + $0x10] sm:$0x7f]
  %v4854 = vld [vmem:[%s1900 + $0x18] sm:$0x7f]
  %v4855 = vld [vmem:[%s1900 + $0x20] sm:$0x7f]
  %v4856 = vld [vmem:[%s1900 + $0x28] sm:$0x7f]
  %v4857 = vld [vmem:[%s1900 + $0x30] sm:$0x7f]
  %v4858 = vld [vmem:[%s1900 + $0x38] sm:$0x7f]
  %v4859 = vld [vmem:[%s1900 + $0x40] sm:$0x7f]
  %v4860 = vld [vmem:[%s1900 + $0x48] sm:$0x7f]
  %v4861 = vld [vmem:[%s1900 + $0x50] sm:$0x7f]
  %v4862 = vld [vmem:[%s1900 + $0x58] sm:$0x7f]
  %v4863 = vld [vmem:[%s1900 + $0x60] sm:$0x7f]
  %v4864 = vld [vmem:[%s1900 + $0x68] sm:$0x7f]
  %v4865 = vld [vmem:[%s1900 + $0x70] sm:$0x7f]
  %v4866 = vld [vmem:[%s1900 + $0x78] sm:$0x7f]
  %v4867 = vld [vmem:[%s1900 + $0x80] sm:$0x7f]
  %v4868 = vld [vmem:[%s1900 + $0x88] sm:$0x7f]
  %v4869 = vld [vmem:[%s1900 + $0x90] sm:$0x7f]
  %v4870 = vld [vmem:[%s1900 + $0x98] sm:$0x7f]
  %v4871 = vld [vmem:[%s1900 + $0xa0] sm:$0x7f]
  %v4872 = vld [vmem:[%s1900 + $0xa8] sm:$0x7f]
  %v4873 = vld [vmem:[%s1900 + $0xb0] sm:$0x7f]
  %v4874 = vld [vmem:[%s1900 + $0xb8] sm:$0x7f]
  %v4875 = vld [vmem:[%s1900 + $0xc0] sm:$0x7f]
  %v4876 = vld [vmem:[%s1900 + $0xc8] sm:$0x7f]
  %v4877 = vld [vmem:[%s1900 + $0xd0] sm:$0x7f]
  %v4878 = vld [vmem:[%s1900 + $0xd8] sm:$0x7f]
  %v4879 = vld [vmem:[%s1900 + $0xe0] sm:$0x7f]
  %v4880 = vld [vmem:[%s1900 + $0xe8] sm:$0x7f]
  %v4881 = vld [vmem:[%s1900 + $0xf0] sm:$0x7f]
  %v4882 = vld [vmem:[%s1900 + $0xf8] sm:$0x7f]
  %v4883 = vld [vmem:[%s1900 + $0x100] sm:$0x7f]
  %v4884 = vld [vmem:[%s1900 + $0x108] sm:$0x7f]
  %v4885 = vld [vmem:[%s1900 + $0x110] sm:$0x7f]
  %v4886 = vld [vmem:[%s1900 + $0x118] sm:$0x7f]
  %v4887 = vld [vmem:[%s1900 + $0x120] sm:$0x7f]
  %v4888 = vld [vmem:[%s1900 + $0x128] sm:$0x7f]
  %v4889 = vld [vmem:[%s1900 + $0x130] sm:$0x7f]
  %v4890 = vld [vmem:[%s1900 + $0x138] sm:$0x7f]
  %v4891 = vld [vmem:[%s1900 + $0x140] sm:$0x7f]
  %v4892 = vld [vmem:[%s1900 + $0x148] sm:$0x7f]
  %v4893 = vld [vmem:[%s1900 + $0x150] sm:$0x7f]
  %v4894 = vld [vmem:[%s1900 + $0x158] sm:$0x7f]
  %v4895 = vld [vmem:[%s1900 + $0x160] sm:$0x7f]
  %v4896 = vld [vmem:[%s1900 + $0x168] sm:$0x7f]
  %v4897 = vld [vmem:[%s1900 + $0x170] sm:$0x7f]
  %v4898 = vld [vmem:[%s1900 + $0x178] sm:$0x7f]
  %v4899 = vld [vmem:[%s1900 + $0x180] sm:$0x7f]
  %v4901 = vlaneseq
  %v4902 = vshrl.u32 %v4901, 7
  %v4903 = vsub.s32 0, %v4902
  %v4904 = vrot.slane %v4850, %v4903
  %v4905 = vlaneseq
  %v4906 = vshrl.u32 %v4905, 7
  %v4907 = vsub.s32 1, %v4906
  %v4908 = vrot.slane %v4850, %v4907
  %v4909 = vlaneseq
  %v4910 = vshrl.u32 %v4909, 7
  %v4911 = vsub.s32 2, %v4910
  %v4912 = vrot.slane %v4850, %v4911
  %v4913 = vlaneseq
  %v4914 = vshrl.u32 %v4913, 7
  %v4915 = vsub.s32 3, %v4914
  %v4916 = vrot.slane %v4850, %v4915
  %v4917 = vlaneseq
  %v4918 = vshrl.u32 %v4917, 7
  %v4919 = vsub.s32 4, %v4918
  %v4920 = vrot.slane %v4850, %v4919
  %v4921 = vlaneseq
  %v4922 = vshrl.u32 %v4921, 7
  %v4923 = vsub.s32 5, %v4922
  %v4924 = vrot.slane %v4850, %v4923
  %v4925 = vlaneseq
  %v4926 = vshrl.u32 %v4925, 7
  %v4927 = vsub.s32 6, %v4926
  %v4928 = vrot.slane %v4850, %v4927
  %v4936 = vmul.f32 %v4851, %v4904
  %v4937 = vmul.f32 %v4852, %v4908
  %v4938 = vmul.f32 %v4853, %v4912
  %v4939 = vmul.f32 %v4854, %v4916
  %v4940 = vmul.f32 %v4855, %v4920
  %v4941 = vmul.f32 %v4856, %v4924
  %v4942 = vmul.f32 %v4857, %v4928
  %v4943 = vmul.f32 %v4858, %v4904
  %v4944 = vmul.f32 %v4859, %v4908
  %v4945 = vmul.f32 %v4860, %v4912
  %v4946 = vmul.f32 %v4861, %v4916
  %v4947 = vmul.f32 %v4862, %v4920
  %v4948 = vmul.f32 %v4863, %v4924
  %v4949 = vmul.f32 %v4864, %v4928
  %v4950 = vmul.f32 %v4865, %v4904
  %v4951 = vmul.f32 %v4866, %v4908
  %v4952 = vmul.f32 %v4867, %v4912
  %v4953 = vmul.f32 %v4868, %v4916
  %v4954 = vmul.f32 %v4869, %v4920
  %v4955 = vmul.f32 %v4870, %v4924
  %v4956 = vmul.f32 %v4871, %v4928
  %v4957 = vmul.f32 %v4872, %v4904
  %v4958 = vmul.f32 %v4873, %v4908
  %v4959 = vmul.f32 %v4874, %v4912
  %v4960 = vmul.f32 %v4875, %v4916
  %v4961 = vmul.f32 %v4876, %v4920
  %v4962 = vmul.f32 %v4877, %v4924
  %v4963 = vmul.f32 %v4878, %v4928
  %v4964 = vmul.f32 %v4879, %v4904
  %v4965 = vmul.f32 %v4880, %v4908
  %v4966 = vmul.f32 %v4881, %v4912
  %v4967 = vmul.f32 %v4882, %v4916
  %v4968 = vmul.f32 %v4883, %v4920
  %v4969 = vmul.f32 %v4884, %v4924
  %v4970 = vmul.f32 %v4885, %v4928
  %v4971 = vmul.f32 %v4886, %v4904
  %v4972 = vmul.f32 %v4887, %v4908
  %v4973 = vmul.f32 %v4888, %v4912
  %v4974 = vmul.f32 %v4889, %v4916
  %v4975 = vmul.f32 %v4890, %v4920
  %v4976 = vmul.f32 %v4891, %v4924
  %v4977 = vmul.f32 %v4892, %v4928
  %v4978 = vmul.f32 %v4893, %v4904
  %v4979 = vmul.f32 %v4894, %v4908
  %v4980 = vmul.f32 %v4895, %v4912
  %v4981 = vmul.f32 %v4896, %v4916
  %v4982 = vmul.f32 %v4897, %v4920
  %v4983 = vmul.f32 %v4898, %v4924
  %v4984 = vmul.f32 %v4899, %v4928
  %v4985 = vadd.f32 %v4798, %v4936
  %v4986 = vadd.f32 %v4799, %v4937
  %v4987 = vadd.f32 %v4800, %v4938
  %v4988 = vadd.f32 %v4801, %v4939
  %v4989 = vadd.f32 %v4802, %v4940
  %v4990 = vadd.f32 %v4803, %v4941
  %v4991 = vadd.f32 %v4804, %v4942
  %v4992 = vadd.f32 %v4805, %v4943
  %v4993 = vadd.f32 %v4806, %v4944
  %v4994 = vadd.f32 %v4807, %v4945
  %v4995 = vadd.f32 %v4808, %v4946
  %v4996 = vadd.f32 %v4809, %v4947
  %v4997 = vadd.f32 %v4810, %v4948
  %v4998 = vadd.f32 %v4811, %v4949
  %v4999 = vadd.f32 %v4812, %v4950
  %v5000 = vadd.f32 %v4813, %v4951
  %v5001 = vadd.f32 %v4814, %v4952
  %v5002 = vadd.f32 %v4815, %v4953
  %v5003 = vadd.f32 %v4816, %v4954
  %v5004 = vadd.f32 %v4817, %v4955
  %v5005 = vadd.f32 %v4818, %v4956
  %v5006 = vadd.f32 %v4819, %v4957
  %v5007 = vadd.f32 %v4820, %v4958
  %v5008 = vadd.f32 %v4821, %v4959
  %v5009 = vadd.f32 %v4822, %v4960
  %v5010 = vadd.f32 %v4823, %v4961
  %v5011 = vadd.f32 %v4824, %v4962
  %v5012 = vadd.f32 %v4825, %v4963
  %v5013 = vadd.f32 %v4826, %v4964
  %v5014 = vadd.f32 %v4827, %v4965
  %v5015 = vadd.f32 %v4828, %v4966
  %v5016 = vadd.f32 %v4829, %v4967
  %v5017 = vadd.f32 %v4830, %v4968
  %v5018 = vadd.f32 %v4831, %v4969
  %v5019 = vadd.f32 %v4832, %v4970
  %v5020 = vadd.f32 %v4833, %v4971
  %v5021 = vadd.f32 %v4834, %v4972
  %v5022 = vadd.f32 %v4835, %v4973
  %v5023 = vadd.f32 %v4836, %v4974
  %v5024 = vadd.f32 %v4837, %v4975
  %v5025 = vadd.f32 %v4838, %v4976
  %v5026 = vadd.f32 %v4839, %v4977
  %v5027 = vadd.f32 %v4840, %v4978
  %v5028 = vadd.f32 %v4841, %v4979
  %v5029 = vadd.f32 %v4842, %v4980
  %v5030 = vadd.f32 %v4843, %v4981
  %v5031 = vadd.f32 %v4844, %v4982
  %v5032 = vadd.f32 %v4845, %v4983
  %v5033 = vadd.f32 %v4846, %v4984
  %s5034 = scalar_lea.vmem %s3, 118
  %v5035 = vld [vmem:[%s5034] ss:$8 sm:$0xf]
  %v5036 = vld [vmem:[%s5034] ss:$8 sm:$0x70]
  %v5037 = vor.u32 %v5035, %v5036
  %v5038 = vld [vmem:[%s2088] sm:$0x7f]
  %v5039 = vld [vmem:[%s2088 + $0x8] sm:$0x7f]
  %v5040 = vld [vmem:[%s2088 + $0x10] sm:$0x7f]
  %v5041 = vld [vmem:[%s2088 + $0x18] sm:$0x7f]
  %v5042 = vld [vmem:[%s2088 + $0x20] sm:$0x7f]
  %v5043 = vld [vmem:[%s2088 + $0x28] sm:$0x7f]
  %v5044 = vld [vmem:[%s2088 + $0x30] sm:$0x7f]
  %v5045 = vld [vmem:[%s2088 + $0x38] sm:$0x7f]
  %v5046 = vld [vmem:[%s2088 + $0x40] sm:$0x7f]
  %v5047 = vld [vmem:[%s2088 + $0x48] sm:$0x7f]
  %v5048 = vld [vmem:[%s2088 + $0x50] sm:$0x7f]
  %v5049 = vld [vmem:[%s2088 + $0x58] sm:$0x7f]
  %v5050 = vld [vmem:[%s2088 + $0x60] sm:$0x7f]
  %v5051 = vld [vmem:[%s2088 + $0x68] sm:$0x7f]
  %v5052 = vld [vmem:[%s2088 + $0x70] sm:$0x7f]
  %v5053 = vld [vmem:[%s2088 + $0x78] sm:$0x7f]
  %v5054 = vld [vmem:[%s2088 + $0x80] sm:$0x7f]
  %v5055 = vld [vmem:[%s2088 + $0x88] sm:$0x7f]
  %v5056 = vld [vmem:[%s2088 + $0x90] sm:$0x7f]
  %v5057 = vld [vmem:[%s2088 + $0x98] sm:$0x7f]
  %v5058 = vld [vmem:[%s2088 + $0xa0] sm:$0x7f]
  %v5059 = vld [vmem:[%s2088 + $0xa8] sm:$0x7f]
  %v5060 = vld [vmem:[%s2088 + $0xb0] sm:$0x7f]
  %v5061 = vld [vmem:[%s2088 + $0xb8] sm:$0x7f]
  %v5062 = vld [vmem:[%s2088 + $0xc0] sm:$0x7f]
  %v5063 = vld [vmem:[%s2088 + $0xc8] sm:$0x7f]
  %v5064 = vld [vmem:[%s2088 + $0xd0] sm:$0x7f]
  %v5065 = vld [vmem:[%s2088 + $0xd8] sm:$0x7f]
  %v5066 = vld [vmem:[%s2088 + $0xe0] sm:$0x7f]
  %v5067 = vld [vmem:[%s2088 + $0xe8] sm:$0x7f]
  %v5068 = vld [vmem:[%s2088 + $0xf0] sm:$0x7f]
  %v5069 = vld [vmem:[%s2088 + $0xf8] sm:$0x7f]
  %v5070 = vld [vmem:[%s2088 + $0x100] sm:$0x7f]
  %v5071 = vld [vmem:[%s2088 + $0x108] sm:$0x7f]
  %v5072 = vld [vmem:[%s2088 + $0x110] sm:$0x7f]
  %v5073 = vld [vmem:[%s2088 + $0x118] sm:$0x7f]
  %v5074 = vld [vmem:[%s2088 + $0x120] sm:$0x7f]
  %v5075 = vld [vmem:[%s2088 + $0x128] sm:$0x7f]
  %v5076 = vld [vmem:[%s2088 + $0x130] sm:$0x7f]
  %v5077 = vld [vmem:[%s2088 + $0x138] sm:$0x7f]
  %v5078 = vld [vmem:[%s2088 + $0x140] sm:$0x7f]
  %v5079 = vld [vmem:[%s2088 + $0x148] sm:$0x7f]
  %v5080 = vld [vmem:[%s2088 + $0x150] sm:$0x7f]
  %v5081 = vld [vmem:[%s2088 + $0x158] sm:$0x7f]
  %v5082 = vld [vmem:[%s2088 + $0x160] sm:$0x7f]
  %v5083 = vld [vmem:[%s2088 + $0x168] sm:$0x7f]
  %v5084 = vld [vmem:[%s2088 + $0x170] sm:$0x7f]
  %v5085 = vld [vmem:[%s2088 + $0x178] sm:$0x7f]
  %v5086 = vld [vmem:[%s2088 + $0x180] sm:$0x7f]
  %v5088 = vlaneseq
  %v5089 = vshrl.u32 %v5088, 7
  %v5090 = vsub.s32 0, %v5089
  %v5091 = vrot.slane %v5037, %v5090
  %v5092 = vlaneseq
  %v5093 = vshrl.u32 %v5092, 7
  %v5094 = vsub.s32 1, %v5093
  %v5095 = vrot.slane %v5037, %v5094
  %v5096 = vlaneseq
  %v5097 = vshrl.u32 %v5096, 7
  %v5098 = vsub.s32 2, %v5097
  %v5099 = vrot.slane %v5037, %v5098
  %v5100 = vlaneseq
  %v5101 = vshrl.u32 %v5100, 7
  %v5102 = vsub.s32 3, %v5101
  %v5103 = vrot.slane %v5037, %v5102
  %v5104 = vlaneseq
  %v5105 = vshrl.u32 %v5104, 7
  %v5106 = vsub.s32 4, %v5105
  %v5107 = vrot.slane %v5037, %v5106
  %v5108 = vlaneseq
  %v5109 = vshrl.u32 %v5108, 7
  %v5110 = vsub.s32 5, %v5109
  %v5111 = vrot.slane %v5037, %v5110
  %v5112 = vlaneseq
  %v5113 = vshrl.u32 %v5112, 7
  %v5114 = vsub.s32 6, %v5113
  %v5115 = vrot.slane %v5037, %v5114
  %v5123 = vmul.f32 %v5038, %v5091
  %v5124 = vmul.f32 %v5039, %v5095
  %v5125 = vmul.f32 %v5040, %v5099
  %v5126 = vmul.f32 %v5041, %v5103
  %v5127 = vmul.f32 %v5042, %v5107
  %v5128 = vmul.f32 %v5043, %v5111
  %v5129 = vmul.f32 %v5044, %v5115
  %v5130 = vmul.f32 %v5045, %v5091
  %v5131 = vmul.f32 %v5046, %v5095
  %v5132 = vmul.f32 %v5047, %v5099
  %v5133 = vmul.f32 %v5048, %v5103
  %v5134 = vmul.f32 %v5049, %v5107
  %v5135 = vmul.f32 %v5050, %v5111
  %v5136 = vmul.f32 %v5051, %v5115
  %v5137 = vmul.f32 %v5052, %v5091
  %v5138 = vmul.f32 %v5053, %v5095
  %v5139 = vmul.f32 %v5054, %v5099
  %v5140 = vmul.f32 %v5055, %v5103
  %v5141 = vmul.f32 %v5056, %v5107
  %v5142 = vmul.f32 %v5057, %v5111
  %v5143 = vmul.f32 %v5058, %v5115
  %v5144 = vmul.f32 %v5059, %v5091
  %v5145 = vmul.f32 %v5060, %v5095
  %v5146 = vmul.f32 %v5061, %v5099
  %v5147 = vmul.f32 %v5062, %v5103
  %v5148 = vmul.f32 %v5063, %v5107
  %v5149 = vmul.f32 %v5064, %v5111
  %v5150 = vmul.f32 %v5065, %v5115
  %v5151 = vmul.f32 %v5066, %v5091
  %v5152 = vmul.f32 %v5067, %v5095
  %v5153 = vmul.f32 %v5068, %v5099
  %v5154 = vmul.f32 %v5069, %v5103
  %v5155 = vmul.f32 %v5070, %v5107
  %v5156 = vmul.f32 %v5071, %v5111
  %v5157 = vmul.f32 %v5072, %v5115
  %v5158 = vmul.f32 %v5073, %v5091
  %v5159 = vmul.f32 %v5074, %v5095
  %v5160 = vmul.f32 %v5075, %v5099
  %v5161 = vmul.f32 %v5076, %v5103
  %v5162 = vmul.f32 %v5077, %v5107
  %v5163 = vmul.f32 %v5078, %v5111
  %v5164 = vmul.f32 %v5079, %v5115
  %v5165 = vmul.f32 %v5080, %v5091
  %v5166 = vmul.f32 %v5081, %v5095
  %v5167 = vmul.f32 %v5082, %v5099
  %v5168 = vmul.f32 %v5083, %v5103
  %v5169 = vmul.f32 %v5084, %v5107
  %v5170 = vmul.f32 %v5085, %v5111
  %v5171 = vmul.f32 %v5086, %v5115
  %v5172 = vadd.f32 %v4985, %v5123
  %v5173 = vadd.f32 %v4986, %v5124
  %v5174 = vadd.f32 %v4987, %v5125
  %v5175 = vadd.f32 %v4988, %v5126
  %v5176 = vadd.f32 %v4989, %v5127
  %v5177 = vadd.f32 %v4990, %v5128
  %v5178 = vadd.f32 %v4991, %v5129
  %v5179 = vadd.f32 %v4992, %v5130
  %v5180 = vadd.f32 %v4993, %v5131
  %v5181 = vadd.f32 %v4994, %v5132
  %v5182 = vadd.f32 %v4995, %v5133
  %v5183 = vadd.f32 %v4996, %v5134
  %v5184 = vadd.f32 %v4997, %v5135
  %v5185 = vadd.f32 %v4998, %v5136
  %v5186 = vadd.f32 %v4999, %v5137
  %v5187 = vadd.f32 %v5000, %v5138
  %v5188 = vadd.f32 %v5001, %v5139
  %v5189 = vadd.f32 %v5002, %v5140
  %v5190 = vadd.f32 %v5003, %v5141
  %v5191 = vadd.f32 %v5004, %v5142
  %v5192 = vadd.f32 %v5005, %v5143
  %v5193 = vadd.f32 %v5006, %v5144
  %v5194 = vadd.f32 %v5007, %v5145
  %v5195 = vadd.f32 %v5008, %v5146
  %v5196 = vadd.f32 %v5009, %v5147
  %v5197 = vadd.f32 %v5010, %v5148
  %v5198 = vadd.f32 %v5011, %v5149
  %v5199 = vadd.f32 %v5012, %v5150
  %v5200 = vadd.f32 %v5013, %v5151
  %v5201 = vadd.f32 %v5014, %v5152
  %v5202 = vadd.f32 %v5015, %v5153
  %v5203 = vadd.f32 %v5016, %v5154
  %v5204 = vadd.f32 %v5017, %v5155
  %v5205 = vadd.f32 %v5018, %v5156
  %v5206 = vadd.f32 %v5019, %v5157
  %v5207 = vadd.f32 %v5020, %v5158
  %v5208 = vadd.f32 %v5021, %v5159
  %v5209 = vadd.f32 %v5022, %v5160
  %v5210 = vadd.f32 %v5023, %v5161
  %v5211 = vadd.f32 %v5024, %v5162
  %v5212 = vadd.f32 %v5025, %v5163
  %v5213 = vadd.f32 %v5026, %v5164
  %v5214 = vadd.f32 %v5027, %v5165
  %v5215 = vadd.f32 %v5028, %v5166
  %v5216 = vadd.f32 %v5029, %v5167
  %v5217 = vadd.f32 %v5030, %v5168
  %v5218 = vadd.f32 %v5031, %v5169
  %v5219 = vadd.f32 %v5032, %v5170
  %v5220 = vadd.f32 %v5033, %v5171
  %v5221 = vld [vmem:[#allocation2] sm:$0xf8]
  %v5222 = vld [vmem:[#allocation2 + $0x8] sm:$0xf8]
  %v5223 = vld [vmem:[#allocation2 + $0x10] sm:$0xf8]
  %v5224 = vld [vmem:[#allocation2 + $0x18] sm:$0xf8]
  %v5225 = vld [vmem:[#allocation2 + $0x20] sm:$0xf8]
  %v5226 = vld [vmem:[#allocation2 + $0x28] sm:$0xf8]
  %v5227 = vld [vmem:[#allocation2 + $0x30] sm:$0xf8]
  %v5228 = vld [vmem:[#allocation2 + $0x38] sm:$0x3]
  %v5229 = vld [vmem:[#allocation2 + $0x40] sm:$0x3]
  %v5230 = vld [vmem:[#allocation2 + $0x48] sm:$0x3]
  %v5231 = vld [vmem:[#allocation2 + $0x50] sm:$0x3]
  %v5232 = vld [vmem:[#allocation2 + $0x58] sm:$0x3]
  %v5233 = vld [vmem:[#allocation2 + $0x60] sm:$0x3]
  %v5234 = vld [vmem:[#allocation2 + $0x68] sm:$0x3]
  %v5235 = vld [vmem:[#allocation2 + $0x70] sm:$0xf8]
  %v5236 = vld [vmem:[#allocation2 + $0x78] sm:$0xf8]
  %v5237 = vld [vmem:[#allocation2 + $0x80] sm:$0xf8]
  %v5238 = vld [vmem:[#allocation2 + $0x88] sm:$0xf8]
  %v5239 = vld [vmem:[#allocation2 + $0x90] sm:$0xf8]
  %v5240 = vld [vmem:[#allocation2 + $0x98] sm:$0xf8]
  %v5241 = vld [vmem:[#allocation2 + $0xa0] sm:$0xf8]
  %v5242 = vld [vmem:[#allocation2 + $0xa8] sm:$0x3]
  %v5243 = vld [vmem:[#allocation2 + $0xb0] sm:$0x3]
  %v5244 = vld [vmem:[#allocation2 + $0xb8] sm:$0x3]
  %v5245 = vld [vmem:[#allocation2 + $0xc0] sm:$0x3]
  %v5246 = vld [vmem:[#allocation2 + $0xc8] sm:$0x3]
  %v5247 = vld [vmem:[#allocation2 + $0xd0] sm:$0x3]
  %v5248 = vld [vmem:[#allocation2 + $0xd8] sm:$0x3]
  %v5249 = vld [vmem:[#allocation2 + $0xe0] sm:$0xf8]
  %v5250 = vld [vmem:[#allocation2 + $0xe8] sm:$0xf8]
  %v5251 = vld [vmem:[#allocation2 + $0xf0] sm:$0xf8]
  %v5252 = vld [vmem:[#allocation2 + $0xf8] sm:$0xf8]
  %v5253 = vld [vmem:[#allocation2 + $0x100] sm:$0xf8]
  %v5254 = vld [vmem:[#allocation2 + $0x108] sm:$0xf8]
  %v5255 = vld [vmem:[#allocation2 + $0x110] sm:$0xf8]
  %v5256 = vld [vmem:[#allocation2 + $0x118] sm:$0x3]
  %v5257 = vld [vmem:[#allocation2 + $0x120] sm:$0x3]
  %v5258 = vld [vmem:[#allocation2 + $0x128] sm:$0x3]
  %v5259 = vld [vmem:[#allocation2 + $0x130] sm:$0x3]
  %v5260 = vld [vmem:[#allocation2 + $0x138] sm:$0x3]
  %v5261 = vld [vmem:[#allocation2 + $0x140] sm:$0x3]
  %v5262 = vld [vmem:[#allocation2 + $0x148] sm:$0x3]
  %v5263 = vld [vmem:[#allocation2 + $0x150] sm:$0xf8]
  %v5264 = vld [vmem:[#allocation2 + $0x158] sm:$0xf8]
  %v5265 = vld [vmem:[#allocation2 + $0x160] sm:$0xf8]
  %v5266 = vld [vmem:[#allocation2 + $0x168] sm:$0xf8]
  %v5267 = vld [vmem:[#allocation2 + $0x170] sm:$0xf8]
  %v5268 = vld [vmem:[#allocation2 + $0x178] sm:$0xf8]
  %v5269 = vld [vmem:[#allocation2 + $0x180] sm:$0xf8]
  %v5270 = vld [vmem:[#allocation2 + $0x188] sm:$0x3]
  %v5271 = vld [vmem:[#allocation2 + $0x190] sm:$0x3]
  %v5272 = vld [vmem:[#allocation2 + $0x198] sm:$0x3]
  %v5273 = vld [vmem:[#allocation2 + $0x1a0] sm:$0x3]
  %v5274 = vld [vmem:[#allocation2 + $0x1a8] sm:$0x3]
  %v5275 = vld [vmem:[#allocation2 + $0x1b0] sm:$0x3]
  %v5276 = vld [vmem:[#allocation2 + $0x1b8] sm:$0x3]
  %v5277 = vld [vmem:[#allocation2 + $0x1c0] sm:$0xf8]
  %v5278 = vld [vmem:[#allocation2 + $0x1c8] sm:$0xf8]
  %v5279 = vld [vmem:[#allocation2 + $0x1d0] sm:$0xf8]
  %v5280 = vld [vmem:[#allocation2 + $0x1d8] sm:$0xf8]
  %v5281 = vld [vmem:[#allocation2 + $0x1e0] sm:$0xf8]
  %v5282 = vld [vmem:[#allocation2 + $0x1e8] sm:$0xf8]
  %v5283 = vld [vmem:[#allocation2 + $0x1f0] sm:$0xf8]
  %v5284 = vld [vmem:[#allocation2 + $0x1f8] sm:$0x3]
  %v5285 = vld [vmem:[#allocation2 + $0x200] sm:$0x3]
  %v5286 = vld [vmem:[#allocation2 + $0x208] sm:$0x3]
  %v5287 = vld [vmem:[#allocation2 + $0x210] sm:$0x3]
  %v5288 = vld [vmem:[#allocation2 + $0x218] sm:$0x3]
  %v5289 = vld [vmem:[#allocation2 + $0x220] sm:$0x3]
  %v5290 = vld [vmem:[#allocation2 + $0x228] sm:$0x3]
  %v5291 = vld [vmem:[#allocation2 + $0x230] sm:$0xf8]
  %v5292 = vld [vmem:[#allocation2 + $0x238] sm:$0xf8]
  %v5293 = vld [vmem:[#allocation2 + $0x240] sm:$0xf8]
  %v5294 = vld [vmem:[#allocation2 + $0x248] sm:$0xf8]
  %v5295 = vld [vmem:[#allocation2 + $0x250] sm:$0xf8]
  %v5296 = vld [vmem:[#allocation2 + $0x258] sm:$0xf8]
  %v5297 = vld [vmem:[#allocation2 + $0x260] sm:$0xf8]
  %v5298 = vld [vmem:[#allocation2 + $0x268] sm:$0x3]
  %v5299 = vld [vmem:[#allocation2 + $0x270] sm:$0x3]
  %v5300 = vld [vmem:[#allocation2 + $0x278] sm:$0x3]
  %v5301 = vld [vmem:[#allocation2 + $0x280] sm:$0x3]
  %v5302 = vld [vmem:[#allocation2 + $0x288] sm:$0x3]
  %v5303 = vld [vmem:[#allocation2 + $0x290] sm:$0x3]
  %v5304 = vld [vmem:[#allocation2 + $0x298] sm:$0x3]
  %v5305 = vld [vmem:[#allocation2 + $0x2a0] sm:$0xf8]
  %v5306 = vld [vmem:[#allocation2 + $0x2a8] sm:$0xf8]
  %v5307 = vld [vmem:[#allocation2 + $0x2b0] sm:$0xf8]
  %v5308 = vld [vmem:[#allocation2 + $0x2b8] sm:$0xf8]
  %v5309 = vld [vmem:[#allocation2 + $0x2c0] sm:$0xf8]
  %v5310 = vld [vmem:[#allocation2 + $0x2c8] sm:$0xf8]
  %v5311 = vld [vmem:[#allocation2 + $0x2d0] sm:$0xf8]
  %v5312 = vld [vmem:[#allocation2 + $0x2d8] sm:$0x3]
  %v5313 = vld [vmem:[#allocation2 + $0x2e0] sm:$0x3]
  %v5314 = vld [vmem:[#allocation2 + $0x2e8] sm:$0x3]
  %v5315 = vld [vmem:[#allocation2 + $0x2f0] sm:$0x3]
  %v5316 = vld [vmem:[#allocation2 + $0x2f8] sm:$0x3]
  %v5317 = vld [vmem:[#allocation2 + $0x300] sm:$0x3]
  %v5318 = vld [vmem:[#allocation2 + $0x308] sm:$0x3]
  %v5319 = vld [vmem:[#allocation2 + $0x310] sm:$0xf8]
  %v5320 = vld [vmem:[#allocation2 + $0x318] sm:$0xf8]
  %v5321 = vld [vmem:[#allocation2 + $0x320] sm:$0xf8]
  %v5322 = vld [vmem:[#allocation2 + $0x328] sm:$0xf8]
  %v5323 = vld [vmem:[#allocation2 + $0x330] sm:$0xf8]
  %v5324 = vld [vmem:[#allocation2 + $0x338] sm:$0xf8]
  %v5325 = vld [vmem:[#allocation2 + $0x340] sm:$0xf8]
  %v5326 = vld [vmem:[#allocation2 + $0x348] sm:$0x3]
  %v5327 = vld [vmem:[#allocation2 + $0x350] sm:$0x3]
  %v5328 = vld [vmem:[#allocation2 + $0x358] sm:$0x3]
  %v5329 = vld [vmem:[#allocation2 + $0x360] sm:$0x3]
  %v5330 = vld [vmem:[#allocation2 + $0x368] sm:$0x3]
  %v5331 = vld [vmem:[#allocation2 + $0x370] sm:$0x3]
  %v5332 = vld [vmem:[#allocation2 + $0x378] sm:$0x3]
  %v5333 = vld [vmem:[#allocation2 + $0x380] sm:$0xf8]
  %v5334 = vld [vmem:[#allocation2 + $0x388] sm:$0xf8]
  %v5335 = vld [vmem:[#allocation2 + $0x390] sm:$0xf8]
  %v5336 = vld [vmem:[#allocation2 + $0x398] sm:$0xf8]
  %v5337 = vld [vmem:[#allocation2 + $0x3a0] sm:$0xf8]
  %v5338 = vld [vmem:[#allocation2 + $0x3a8] sm:$0xf8]
  %v5339 = vld [vmem:[#allocation2 + $0x3b0] sm:$0xf8]
  %v5340 = vld [vmem:[#allocation2 + $0x3b8] sm:$0x3]
  %v5341 = vld [vmem:[#allocation2 + $0x3c0] sm:$0x3]
  %v5342 = vld [vmem:[#allocation2 + $0x3c8] sm:$0x3]
  %v5343 = vld [vmem:[#allocation2 + $0x3d0] sm:$0x3]
  %v5344 = vld [vmem:[#allocation2 + $0x3d8] sm:$0x3]
  %v5345 = vld [vmem:[#allocation2 + $0x3e0] sm:$0x3]
  %v5346 = vld [vmem:[#allocation2 + $0x3e8] sm:$0x3]
  %v5347 = vld [vmem:[#allocation2 + $0x3f0] sm:$0xf8]
  %v5348 = vld [vmem:[#allocation2 + $0x3f8] sm:$0xf8]
  %v5349 = vld [vmem:[#allocation2 + $0x400] sm:$0xf8]
  %v5350 = vld [vmem:[#allocation2 + $0x408] sm:$0xf8]
  %v5351 = vld [vmem:[#allocation2 + $0x410] sm:$0xf8]
  %v5352 = vld [vmem:[#allocation2 + $0x418] sm:$0xf8]
  %v5353 = vld [vmem:[#allocation2 + $0x420] sm:$0xf8]
  %v5354 = vld [vmem:[#allocation2 + $0x428] sm:$0x3]
  %v5355 = vld [vmem:[#allocation2 + $0x430] sm:$0x3]
  %v5356 = vld [vmem:[#allocation2 + $0x438] sm:$0x3]
  %v5357 = vld [vmem:[#allocation2 + $0x440] sm:$0x3]
  %v5358 = vld [vmem:[#allocation2 + $0x448] sm:$0x3]
  %v5359 = vld [vmem:[#allocation2 + $0x450] sm:$0x3]
  %v5360 = vld [vmem:[#allocation2 + $0x458] sm:$0x3]
  %v5361 = vld [vmem:[#allocation2 + $0x460] sm:$0xf8]
  %v5362 = vld [vmem:[#allocation2 + $0x468] sm:$0xf8]
  %v5363 = vld [vmem:[#allocation2 + $0x470] sm:$0xf8]
  %v5364 = vld [vmem:[#allocation2 + $0x478] sm:$0xf8]
  %v5365 = vld [vmem:[#allocation2 + $0x480] sm:$0xf8]
  %v5366 = vld [vmem:[#allocation2 + $0x488] sm:$0xf8]
  %v5367 = vld [vmem:[#allocation2 + $0x490] sm:$0xf8]
  %v5368 = vld [vmem:[#allocation2 + $0x498] sm:$0x3]
  %v5369 = vld [vmem:[#allocation2 + $0x4a0] sm:$0x3]
  %v5370 = vld [vmem:[#allocation2 + $0x4a8] sm:$0x3]
  %v5371 = vld [vmem:[#allocation2 + $0x4b0] sm:$0x3]
  %v5372 = vld [vmem:[#allocation2 + $0x4b8] sm:$0x3]
  %v5373 = vld [vmem:[#allocation2 + $0x4c0] sm:$0x3]
  %v5374 = vld [vmem:[#allocation2 + $0x4c8] sm:$0x3]
  %vm5529 = vcmask 1044480
  %v5530 = vrot.slane %v5221, 3
  %v5531 = vrot.slane %v5228, 3
  %v5532 = vsel %vm5529, %v5530, %v5531
  %v5533 = vrot.slane %v5222, 3
  %v5534 = vrot.slane %v5229, 3
  %v5535 = vsel %vm5529, %v5533, %v5534
  %v5536 = vrot.slane %v5223, 3
  %v5537 = vrot.slane %v5230, 3
  %v5538 = vsel %vm5529, %v5536, %v5537
  %v5539 = vrot.slane %v5224, 3
  %v5540 = vrot.slane %v5231, 3
  %v5541 = vsel %vm5529, %v5539, %v5540
  %v5542 = vrot.slane %v5225, 3
  %v5543 = vrot.slane %v5232, 3
  %v5544 = vsel %vm5529, %v5542, %v5543
  %v5545 = vrot.slane %v5226, 3
  %v5546 = vrot.slane %v5233, 3
  %v5547 = vsel %vm5529, %v5545, %v5546
  %v5548 = vrot.slane %v5227, 3
  %v5549 = vrot.slane %v5234, 3
  %v5550 = vsel %vm5529, %v5548, %v5549
  %v5551 = vrot.slane %v5235, 3
  %v5552 = vrot.slane %v5242, 3
  %v5553 = vsel %vm5529, %v5551, %v5552
  %v5554 = vrot.slane %v5236, 3
  %v5555 = vrot.slane %v5243, 3
  %v5556 = vsel %vm5529, %v5554, %v5555
  %v5557 = vrot.slane %v5237, 3
  %v5558 = vrot.slane %v5244, 3
  %v5559 = vsel %vm5529, %v5557, %v5558
  %v5560 = vrot.slane %v5238, 3
  %v5561 = vrot.slane %v5245, 3
  %v5562 = vsel %vm5529, %v5560, %v5561
  %v5563 = vrot.slane %v5239, 3
  %v5564 = vrot.slane %v5246, 3
  %v5565 = vsel %vm5529, %v5563, %v5564
  %v5566 = vrot.slane %v5240, 3
  %v5567 = vrot.slane %v5247, 3
  %v5568 = vsel %vm5529, %v5566, %v5567
  %v5569 = vrot.slane %v5241, 3
  %v5570 = vrot.slane %v5248, 3
  %v5571 = vsel %vm5529, %v5569, %v5570
  %v5572 = vrot.slane %v5249, 3
  %v5573 = vrot.slane %v5256, 3
  %v5574 = vsel %vm5529, %v5572, %v5573
  %v5575 = vrot.slane %v5250, 3
  %v5576 = vrot.slane %v5257, 3
  %v5577 = vsel %vm5529, %v5575, %v5576
  %v5578 = vrot.slane %v5251, 3
  %v5579 = vrot.slane %v5258, 3
  %v5580 = vsel %vm5529, %v5578, %v5579
  %v5581 = vrot.slane %v5252, 3
  %v5582 = vrot.slane %v5259, 3
  %v5583 = vsel %vm5529, %v5581, %v5582
  %v5584 = vrot.slane %v5253, 3
  %v5585 = vrot.slane %v5260, 3
  %v5586 = vsel %vm5529, %v5584, %v5585
  %v5587 = vrot.slane %v5254, 3
  %v5588 = vrot.slane %v5261, 3
  %v5589 = vsel %vm5529, %v5587, %v5588
  %v5590 = vrot.slane %v5255, 3
  %v5591 = vrot.slane %v5262, 3
  %v5592 = vsel %vm5529, %v5590, %v5591
  %v5593 = vrot.slane %v5263, 3
  %v5594 = vrot.slane %v5270, 3
  %v5595 = vsel %vm5529, %v5593, %v5594
  %v5596 = vrot.slane %v5264, 3
  %v5597 = vrot.slane %v5271, 3
  %v5598 = vsel %vm5529, %v5596, %v5597
  %v5599 = vrot.slane %v5265, 3
  %v5600 = vrot.slane %v5272, 3
  %v5601 = vsel %vm5529, %v5599, %v5600
  %v5602 = vrot.slane %v5266, 3
  %v5603 = vrot.slane %v5273, 3
  %v5604 = vsel %vm5529, %v5602, %v5603
  %v5605 = vrot.slane %v5267, 3
  %v5606 = vrot.slane %v5274, 3
  %v5607 = vsel %vm5529, %v5605, %v5606
  %v5608 = vrot.slane %v5268, 3
  %v5609 = vrot.slane %v5275, 3
  %v5610 = vsel %vm5529, %v5608, %v5609
  %v5611 = vrot.slane %v5269, 3
  %v5612 = vrot.slane %v5276, 3
  %v5613 = vsel %vm5529, %v5611, %v5612
  %v5614 = vrot.slane %v5277, 3
  %v5615 = vrot.slane %v5284, 3
  %v5616 = vsel %vm5529, %v5614, %v5615
  %v5617 = vrot.slane %v5278, 3
  %v5618 = vrot.slane %v5285, 3
  %v5619 = vsel %vm5529, %v5617, %v5618
  %v5620 = vrot.slane %v5279, 3
  %v5621 = vrot.slane %v5286, 3
  %v5622 = vsel %vm5529, %v5620, %v5621
  %v5623 = vrot.slane %v5280, 3
  %v5624 = vrot.slane %v5287, 3
  %v5625 = vsel %vm5529, %v5623, %v5624
  %v5626 = vrot.slane %v5281, 3
  %v5627 = vrot.slane %v5288, 3
  %v5628 = vsel %vm5529, %v5626, %v5627
  %v5629 = vrot.slane %v5282, 3
  %v5630 = vrot.slane %v5289, 3
  %v5631 = vsel %vm5529, %v5629, %v5630
  %v5632 = vrot.slane %v5283, 3
  %v5633 = vrot.slane %v5290, 3
  %v5634 = vsel %vm5529, %v5632, %v5633
  %v5635 = vrot.slane %v5291, 3
  %v5636 = vrot.slane %v5298, 3
  %v5637 = vsel %vm5529, %v5635, %v5636
  %v5638 = vrot.slane %v5292, 3
  %v5639 = vrot.slane %v5299, 3
  %v5640 = vsel %vm5529, %v5638, %v5639
  %v5641 = vrot.slane %v5293, 3
  %v5642 = vrot.slane %v5300, 3
  %v5643 = vsel %vm5529, %v5641, %v5642
  %v5644 = vrot.slane %v5294, 3
  %v5645 = vrot.slane %v5301, 3
  %v5646 = vsel %vm5529, %v5644, %v5645
  %v5647 = vrot.slane %v5295, 3
  %v5648 = vrot.slane %v5302, 3
  %v5649 = vsel %vm5529, %v5647, %v5648
  %v5650 = vrot.slane %v5296, 3
  %v5651 = vrot.slane %v5303, 3
  %v5652 = vsel %vm5529, %v5650, %v5651
  %v5653 = vrot.slane %v5297, 3
  %v5654 = vrot.slane %v5304, 3
  %v5655 = vsel %vm5529, %v5653, %v5654
  %v5656 = vrot.slane %v5305, 3
  %v5657 = vrot.slane %v5312, 3
  %v5658 = vsel %vm5529, %v5656, %v5657
  %v5659 = vrot.slane %v5306, 3
  %v5660 = vrot.slane %v5313, 3
  %v5661 = vsel %vm5529, %v5659, %v5660
  %v5662 = vrot.slane %v5307, 3
  %v5663 = vrot.slane %v5314, 3
  %v5664 = vsel %vm5529, %v5662, %v5663
  %v5665 = vrot.slane %v5308, 3
  %v5666 = vrot.slane %v5315, 3
  %v5667 = vsel %vm5529, %v5665, %v5666
  %v5668 = vrot.slane %v5309, 3
  %v5669 = vrot.slane %v5316, 3
  %v5670 = vsel %vm5529, %v5668, %v5669
  %v5671 = vrot.slane %v5310, 3
  %v5672 = vrot.slane %v5317, 3
  %v5673 = vsel %vm5529, %v5671, %v5672
  %v5674 = vrot.slane %v5311, 3
  %v5675 = vrot.slane %v5318, 3
  %v5676 = vsel %vm5529, %v5674, %v5675
  %v5677 = vrot.slane %v5319, 3
  %v5678 = vrot.slane %v5326, 3
  %v5679 = vsel %vm5529, %v5677, %v5678
  %v5680 = vrot.slane %v5320, 3
  %v5681 = vrot.slane %v5327, 3
  %v5682 = vsel %vm5529, %v5680, %v5681
  %v5683 = vrot.slane %v5321, 3
  %v5684 = vrot.slane %v5328, 3
  %v5685 = vsel %vm5529, %v5683, %v5684
  %v5686 = vrot.slane %v5322, 3
  %v5687 = vrot.slane %v5329, 3
  %v5688 = vsel %vm5529, %v5686, %v5687
  %v5689 = vrot.slane %v5323, 3
  %v5690 = vrot.slane %v5330, 3
  %v5691 = vsel %vm5529, %v5689, %v5690
  %v5692 = vrot.slane %v5324, 3
  %v5693 = vrot.slane %v5331, 3
  %v5694 = vsel %vm5529, %v5692, %v5693
  %v5695 = vrot.slane %v5325, 3
  %v5696 = vrot.slane %v5332, 3
  %v5697 = vsel %vm5529, %v5695, %v5696
  %v5698 = vrot.slane %v5333, 3
  %v5699 = vrot.slane %v5340, 3
  %v5700 = vsel %vm5529, %v5698, %v5699
  %v5701 = vrot.slane %v5334, 3
  %v5702 = vrot.slane %v5341, 3
  %v5703 = vsel %vm5529, %v5701, %v5702
  %v5704 = vrot.slane %v5335, 3
  %v5705 = vrot.slane %v5342, 3
  %v5706 = vsel %vm5529, %v5704, %v5705
  %v5707 = vrot.slane %v5336, 3
  %v5708 = vrot.slane %v5343, 3
  %v5709 = vsel %vm5529, %v5707, %v5708
  %v5710 = vrot.slane %v5337, 3
  %v5711 = vrot.slane %v5344, 3
  %v5712 = vsel %vm5529, %v5710, %v5711
  %v5713 = vrot.slane %v5338, 3
  %v5714 = vrot.slane %v5345, 3
  %v5715 = vsel %vm5529, %v5713, %v5714
  %v5716 = vrot.slane %v5339, 3
  %v5717 = vrot.slane %v5346, 3
  %v5718 = vsel %vm5529, %v5716, %v5717
  %v5719 = vrot.slane %v5347, 3
  %v5720 = vrot.slane %v5354, 3
  %v5721 = vsel %vm5529, %v5719, %v5720
  %v5722 = vrot.slane %v5348, 3
  %v5723 = vrot.slane %v5355, 3
  %v5724 = vsel %vm5529, %v5722, %v5723
  %v5725 = vrot.slane %v5349, 3
  %v5726 = vrot.slane %v5356, 3
  %v5727 = vsel %vm5529, %v5725, %v5726
  %v5728 = vrot.slane %v5350, 3
  %v5729 = vrot.slane %v5357, 3
  %v5730 = vsel %vm5529, %v5728, %v5729
  %v5731 = vrot.slane %v5351, 3
  %v5732 = vrot.slane %v5358, 3
  %v5733 = vsel %vm5529, %v5731, %v5732
  %v5734 = vrot.slane %v5352, 3
  %v5735 = vrot.slane %v5359, 3
  %v5736 = vsel %vm5529, %v5734, %v5735
  %v5737 = vrot.slane %v5353, 3
  %v5738 = vrot.slane %v5360, 3
  %v5739 = vsel %vm5529, %v5737, %v5738
  %v5740 = vrot.slane %v5361, 3
  %v5741 = vrot.slane %v5368, 3
  %v5742 = vsel %vm5529, %v5740, %v5741
  %v5743 = vrot.slane %v5362, 3
  %v5744 = vrot.slane %v5369, 3
  %v5745 = vsel %vm5529, %v5743, %v5744
  %v5746 = vrot.slane %v5363, 3
  %v5747 = vrot.slane %v5370, 3
  %v5748 = vsel %vm5529, %v5746, %v5747
  %v5749 = vrot.slane %v5364, 3
  %v5750 = vrot.slane %v5371, 3
  %v5751 = vsel %vm5529, %v5749, %v5750
  %v5752 = vrot.slane %v5365, 3
  %v5753 = vrot.slane %v5372, 3
  %v5754 = vsel %vm5529, %v5752, %v5753
  %v5755 = vrot.slane %v5366, 3
  %v5756 = vrot.slane %v5373, 3
  %v5757 = vsel %vm5529, %v5755, %v5756
  %v5758 = vrot.slane %v5367, 3
  %v5759 = vrot.slane %v5374, 3
  %v5760 = vsel %vm5529, %v5758, %v5759
  %5838 = vst [vmem:[#allocation3] sm:$0x7f] %v5532
  %5839 = vst [vmem:[#allocation3 + $0x8] sm:$0x7f] %v5535
  %5840 = vst [vmem:[#allocation3 + $0x10] sm:$0x7f] %v5538
  %5841 = vst [vmem:[#allocation3 + $0x18] sm:$0x7f] %v5541
  %5842 = vst [vmem:[#allocation3 + $0x20] sm:$0x7f] %v5544
  %5843 = vst [vmem:[#allocation3 + $0x28] sm:$0x7f] %v5547
  %5844 = vst.msk [vmem:[#allocation3 + $0x30] sm:$0x7f] %vm187, %v5550
  %5845 = vst [vmem:[#allocation3 + $0x38] sm:$0x7f] %v5553
  %5846 = vst [vmem:[#allocation3 + $0x40] sm:$0x7f] %v5556
  %5847 = vst [vmem:[#allocation3 + $0x48] sm:$0x7f] %v5559
  %5848 = vst [vmem:[#allocation3 + $0x50] sm:$0x7f] %v5562
  %5849 = vst [vmem:[#allocation3 + $0x58] sm:$0x7f] %v5565
  %5850 = vst [vmem:[#allocation3 + $0x60] sm:$0x7f] %v5568
  %5851 = vst.msk [vmem:[#allocation3 + $0x68] sm:$0x7f] %vm187, %v5571
  %5852 = vst [vmem:[#allocation3 + $0x70] sm:$0x7f] %v5574
  %5853 = vst [vmem:[#allocation3 + $0x78] sm:$0x7f] %v5577
  %5854 = vst [vmem:[#allocation3 + $0x80] sm:$0x7f] %v5580
  %5855 = vst [vmem:[#allocation3 + $0x88] sm:$0x7f] %v5583
  %5856 = vst [vmem:[#allocation3 + $0x90] sm:$0x7f] %v5586
  %5857 = vst [vmem:[#allocation3 + $0x98] sm:$0x7f] %v5589
  %5858 = vst.msk [vmem:[#allocation3 + $0xa0] sm:$0x7f] %vm187, %v5592
  %5859 = vst [vmem:[#allocation3 + $0xa8] sm:$0x7f] %v5595
  %5860 = vst [vmem:[#allocation3 + $0xb0] sm:$0x7f] %v5598
  %5861 = vst [vmem:[#allocation3 + $0xb8] sm:$0x7f] %v5601
  %5862 = vst [vmem:[#allocation3 + $0xc0] sm:$0x7f] %v5604
  %5863 = vst [vmem:[#allocation3 + $0xc8] sm:$0x7f] %v5607
  %5864 = vst [vmem:[#allocation3 + $0xd0] sm:$0x7f] %v5610
  %5865 = vst.msk [vmem:[#allocation3 + $0xd8] sm:$0x7f] %vm187, %v5613
  %5866 = vst [vmem:[#allocation3 + $0xe0] sm:$0x7f] %v5616
  %5867 = vst [vmem:[#allocation3 + $0xe8] sm:$0x7f] %v5619
  %5868 = vst [vmem:[#allocation3 + $0xf0] sm:$0x7f] %v5622
  %5869 = vst [vmem:[#allocation3 + $0xf8] sm:$0x7f] %v5625
  %5870 = vst [vmem:[#allocation3 + $0x100] sm:$0x7f] %v5628
  %5871 = vst [vmem:[#allocation3 + $0x108] sm:$0x7f] %v5631
  %5872 = vst.msk [vmem:[#allocation3 + $0x110] sm:$0x7f] %vm187, %v5634
  %5873 = vst [vmem:[#allocation3 + $0x118] sm:$0x7f] %v5637
  %5874 = vst [vmem:[#allocation3 + $0x120] sm:$0x7f] %v5640
  %5875 = vst [vmem:[#allocation3 + $0x128] sm:$0x7f] %v5643
  %5876 = vst [vmem:[#allocation3 + $0x130] sm:$0x7f] %v5646
  %5877 = vst [vmem:[#allocation3 + $0x138] sm:$0x7f] %v5649
  %5878 = vst [vmem:[#allocation3 + $0x140] sm:$0x7f] %v5652
  %5879 = vst.msk [vmem:[#allocation3 + $0x148] sm:$0x7f] %vm187, %v5655
  %5880 = vst [vmem:[#allocation3 + $0x150] sm:$0x7f] %v5658
  %5881 = vst [vmem:[#allocation3 + $0x158] sm:$0x7f] %v5661
  %5882 = vst [vmem:[#allocation3 + $0x160] sm:$0x7f] %v5664
  %5883 = vst [vmem:[#allocation3 + $0x168] sm:$0x7f] %v5667
  %5884 = vst [vmem:[#allocation3 + $0x170] sm:$0x7f] %v5670
  %5885 = vst [vmem:[#allocation3 + $0x178] sm:$0x7f] %v5673
  %5886 = vst.msk [vmem:[#allocation3 + $0x180] sm:$0x7f] %vm187, %v5676
  %5887 = vst [vmem:[#allocation3 + $0x188] sm:$0x7f] %v5679
  %5888 = vst [vmem:[#allocation3 + $0x190] sm:$0x7f] %v5682
  %5889 = vst [vmem:[#allocation3 + $0x198] sm:$0x7f] %v5685
  %5890 = vst [vmem:[#allocation3 + $0x1a0] sm:$0x7f] %v5688
  %5891 = vst [vmem:[#allocation3 + $0x1a8] sm:$0x7f] %v5691
  %5892 = vst [vmem:[#allocation3 + $0x1b0] sm:$0x7f] %v5694
  %5893 = vst.msk [vmem:[#allocation3 + $0x1b8] sm:$0x7f] %vm187, %v5697
  %5894 = vst [vmem:[#allocation3 + $0x1c0] sm:$0x7f] %v5700
  %5895 = vst [vmem:[#allocation3 + $0x1c8] sm:$0x7f] %v5703
  %5896 = vst [vmem:[#allocation3 + $0x1d0] sm:$0x7f] %v5706
  %5897 = vst [vmem:[#allocation3 + $0x1d8] sm:$0x7f] %v5709
  %5898 = vst [vmem:[#allocation3 + $0x1e0] sm:$0x7f] %v5712
  %5899 = vst [vmem:[#allocation3 + $0x1e8] sm:$0x7f] %v5715
  %5900 = vst.msk [vmem:[#allocation3 + $0x1f0] sm:$0x7f] %vm187, %v5718
  %5901 = vst [vmem:[#allocation3 + $0x1f8] sm:$0x7f] %v5721
  %5902 = vst [vmem:[#allocation3 + $0x200] sm:$0x7f] %v5724
  %5903 = vst [vmem:[#allocation3 + $0x208] sm:$0x7f] %v5727
  %5904 = vst [vmem:[#allocation3 + $0x210] sm:$0x7f] %v5730
  %5905 = vst [vmem:[#allocation3 + $0x218] sm:$0x7f] %v5733
  %5906 = vst [vmem:[#allocation3 + $0x220] sm:$0x7f] %v5736
  %5907 = vst.msk [vmem:[#allocation3 + $0x228] sm:$0x7f] %vm187, %v5739
  %5908 = vst [vmem:[#allocation3 + $0x230] sm:$0x7f] %v5742
  %5909 = vst [vmem:[#allocation3 + $0x238] sm:$0x7f] %v5745
  %5910 = vst [vmem:[#allocation3 + $0x240] sm:$0x7f] %v5748
  %5911 = vst [vmem:[#allocation3 + $0x248] sm:$0x7f] %v5751
  %5912 = vst [vmem:[#allocation3 + $0x250] sm:$0x7f] %v5754
  %5913 = vst [vmem:[#allocation3 + $0x258] sm:$0x7f] %v5757
  %5914 = vst.msk [vmem:[#allocation3 + $0x260] sm:$0x7f] %vm187, %v5760
  %s5915 = scalar_lea.vmem %s3, 3
  %v5916 = vld [vmem:[%s5915] ss:$8 sm:$0xf]
  %v5917 = vld [vmem:[%s5915] ss:$8 sm:$0x70]
  %v5918 = vor.u32 %v5916, %v5917
  %v5919 = vld [vmem:[#allocation3] sm:$0x7f]
  %v5920 = vld [vmem:[#allocation3 + $0x8] sm:$0x7f]
  %v5921 = vld [vmem:[#allocation3 + $0x10] sm:$0x7f]
  %v5922 = vld [vmem:[#allocation3 + $0x18] sm:$0x7f]
  %v5923 = vld [vmem:[#allocation3 + $0x20] sm:$0x7f]
  %v5924 = vld [vmem:[#allocation3 + $0x28] sm:$0x7f]
  %v5925 = vld [vmem:[#allocation3 + $0x30] sm:$0x7f]
  %v5926 = vld [vmem:[#allocation3 + $0x38] sm:$0x7f]
  %v5927 = vld [vmem:[#allocation3 + $0x40] sm:$0x7f]
  %v5928 = vld [vmem:[#allocation3 + $0x48] sm:$0x7f]
  %v5929 = vld [vmem:[#allocation3 + $0x50] sm:$0x7f]
  %v5930 = vld [vmem:[#allocation3 + $0x58] sm:$0x7f]
  %v5931 = vld [vmem:[#allocation3 + $0x60] sm:$0x7f]
  %v5932 = vld [vmem:[#allocation3 + $0x68] sm:$0x7f]
  %v5933 = vld [vmem:[#allocation3 + $0x70] sm:$0x7f]
  %v5934 = vld [vmem:[#allocation3 + $0x78] sm:$0x7f]
  %v5935 = vld [vmem:[#allocation3 + $0x80] sm:$0x7f]
  %v5936 = vld [vmem:[#allocation3 + $0x88] sm:$0x7f]
  %v5937 = vld [vmem:[#allocation3 + $0x90] sm:$0x7f]
  %v5938 = vld [vmem:[#allocation3 + $0x98] sm:$0x7f]
  %v5939 = vld [vmem:[#allocation3 + $0xa0] sm:$0x7f]
  %v5940 = vld [vmem:[#allocation3 + $0xa8] sm:$0x7f]
  %v5941 = vld [vmem:[#allocation3 + $0xb0] sm:$0x7f]
  %v5942 = vld [vmem:[#allocation3 + $0xb8] sm:$0x7f]
  %v5943 = vld [vmem:[#allocation3 + $0xc0] sm:$0x7f]
  %v5944 = vld [vmem:[#allocation3 + $0xc8] sm:$0x7f]
  %v5945 = vld [vmem:[#allocation3 + $0xd0] sm:$0x7f]
  %v5946 = vld [vmem:[#allocation3 + $0xd8] sm:$0x7f]
  %v5947 = vld [vmem:[#allocation3 + $0xe0] sm:$0x7f]
  %v5948 = vld [vmem:[#allocation3 + $0xe8] sm:$0x7f]
  %v5949 = vld [vmem:[#allocation3 + $0xf0] sm:$0x7f]
  %v5950 = vld [vmem:[#allocation3 + $0xf8] sm:$0x7f]
  %v5951 = vld [vmem:[#allocation3 + $0x100] sm:$0x7f]
  %v5952 = vld [vmem:[#allocation3 + $0x108] sm:$0x7f]
  %v5953 = vld [vmem:[#allocation3 + $0x110] sm:$0x7f]
  %v5954 = vld [vmem:[#allocation3 + $0x118] sm:$0x7f]
  %v5955 = vld [vmem:[#allocation3 + $0x120] sm:$0x7f]
  %v5956 = vld [vmem:[#allocation3 + $0x128] sm:$0x7f]
  %v5957 = vld [vmem:[#allocation3 + $0x130] sm:$0x7f]
  %v5958 = vld [vmem:[#allocation3 + $0x138] sm:$0x7f]
  %v5959 = vld [vmem:[#allocation3 + $0x140] sm:$0x7f]
  %v5960 = vld [vmem:[#allocation3 + $0x148] sm:$0x7f]
  %v5961 = vld [vmem:[#allocation3 + $0x150] sm:$0x7f]
  %v5962 = vld [vmem:[#allocation3 + $0x158] sm:$0x7f]
  %v5963 = vld [vmem:[#allocation3 + $0x160] sm:$0x7f]
  %v5964 = vld [vmem:[#allocation3 + $0x168] sm:$0x7f]
  %v5965 = vld [vmem:[#allocation3 + $0x170] sm:$0x7f]
  %v5966 = vld [vmem:[#allocation3 + $0x178] sm:$0x7f]
  %v5967 = vld [vmem:[#allocation3 + $0x180] sm:$0x7f]
  %v5969 = vlaneseq
  %v5970 = vshrl.u32 %v5969, 7
  %v5971 = vsub.s32 0, %v5970
  %v5972 = vrot.slane %v5918, %v5971
  %v5973 = vlaneseq
  %v5974 = vshrl.u32 %v5973, 7
  %v5975 = vsub.s32 1, %v5974
  %v5976 = vrot.slane %v5918, %v5975
  %v5977 = vlaneseq
  %v5978 = vshrl.u32 %v5977, 7
  %v5979 = vsub.s32 2, %v5978
  %v5980 = vrot.slane %v5918, %v5979
  %v5981 = vlaneseq
  %v5982 = vshrl.u32 %v5981, 7
  %v5983 = vsub.s32 3, %v5982
  %v5984 = vrot.slane %v5918, %v5983
  %v5985 = vlaneseq
  %v5986 = vshrl.u32 %v5985, 7
  %v5987 = vsub.s32 4, %v5986
  %v5988 = vrot.slane %v5918, %v5987
  %v5989 = vlaneseq
  %v5990 = vshrl.u32 %v5989, 7
  %v5991 = vsub.s32 5, %v5990
  %v5992 = vrot.slane %v5918, %v5991
  %v5993 = vlaneseq
  %v5994 = vshrl.u32 %v5993, 7
  %v5995 = vsub.s32 6, %v5994
  %v5996 = vrot.slane %v5918, %v5995
  %v6004 = vmul.f32 %v5919, %v5972
  %v6005 = vmul.f32 %v5920, %v5976
  %v6006 = vmul.f32 %v5921, %v5980
  %v6007 = vmul.f32 %v5922, %v5984
  %v6008 = vmul.f32 %v5923, %v5988
  %v6009 = vmul.f32 %v5924, %v5992
  %v6010 = vmul.f32 %v5925, %v5996
  %v6011 = vmul.f32 %v5926, %v5972
  %v6012 = vmul.f32 %v5927, %v5976
  %v6013 = vmul.f32 %v5928, %v5980
  %v6014 = vmul.f32 %v5929, %v5984
  %v6015 = vmul.f32 %v5930, %v5988
  %v6016 = vmul.f32 %v5931, %v5992
  %v6017 = vmul.f32 %v5932, %v5996
  %v6018 = vmul.f32 %v5933, %v5972
  %v6019 = vmul.f32 %v5934, %v5976
  %v6020 = vmul.f32 %v5935, %v5980
  %v6021 = vmul.f32 %v5936, %v5984
  %v6022 = vmul.f32 %v5937, %v5988
  %v6023 = vmul.f32 %v5938, %v5992
  %v6024 = vmul.f32 %v5939, %v5996
  %v6025 = vmul.f32 %v5940, %v5972
  %v6026 = vmul.f32 %v5941, %v5976
  %v6027 = vmul.f32 %v5942, %v5980
  %v6028 = vmul.f32 %v5943, %v5984
  %v6029 = vmul.f32 %v5944, %v5988
  %v6030 = vmul.f32 %v5945, %v5992
  %v6031 = vmul.f32 %v5946, %v5996
  %v6032 = vmul.f32 %v5947, %v5972
  %v6033 = vmul.f32 %v5948, %v5976
  %v6034 = vmul.f32 %v5949, %v5980
  %v6035 = vmul.f32 %v5950, %v5984
  %v6036 = vmul.f32 %v5951, %v5988
  %v6037 = vmul.f32 %v5952, %v5992
  %v6038 = vmul.f32 %v5953, %v5996
  %v6039 = vmul.f32 %v5954, %v5972
  %v6040 = vmul.f32 %v5955, %v5976
  %v6041 = vmul.f32 %v5956, %v5980
  %v6042 = vmul.f32 %v5957, %v5984
  %v6043 = vmul.f32 %v5958, %v5988
  %v6044 = vmul.f32 %v5959, %v5992
  %v6045 = vmul.f32 %v5960, %v5996
  %v6046 = vmul.f32 %v5961, %v5972
  %v6047 = vmul.f32 %v5962, %v5976
  %v6048 = vmul.f32 %v5963, %v5980
  %v6049 = vmul.f32 %v5964, %v5984
  %v6050 = vmul.f32 %v5965, %v5988
  %v6051 = vmul.f32 %v5966, %v5992
  %v6052 = vmul.f32 %v5967, %v5996
  %v6053 = vadd.f32 %v5172, %v6004
  %v6054 = vadd.f32 %v5173, %v6005
  %v6055 = vadd.f32 %v5174, %v6006
  %v6056 = vadd.f32 %v5175, %v6007
  %v6057 = vadd.f32 %v5176, %v6008
  %v6058 = vadd.f32 %v5177, %v6009
  %v6059 = vadd.f32 %v5178, %v6010
  %v6060 = vadd.f32 %v5179, %v6011
  %v6061 = vadd.f32 %v5180, %v6012
  %v6062 = vadd.f32 %v5181, %v6013
  %v6063 = vadd.f32 %v5182, %v6014
  %v6064 = vadd.f32 %v5183, %v6015
  %v6065 = vadd.f32 %v5184, %v6016
  %v6066 = vadd.f32 %v5185, %v6017
  %v6067 = vadd.f32 %v5186, %v6018
  %v6068 = vadd.f32 %v5187, %v6019
  %v6069 = vadd.f32 %v5188, %v6020
  %v6070 = vadd.f32 %v5189, %v6021
  %v6071 = vadd.f32 %v5190, %v6022
  %v6072 = vadd.f32 %v5191, %v6023
  %v6073 = vadd.f32 %v5192, %v6024
  %v6074 = vadd.f32 %v5193, %v6025
  %v6075 = vadd.f32 %v5194, %v6026
  %v6076 = vadd.f32 %v5195, %v6027
  %v6077 = vadd.f32 %v5196, %v6028
  %v6078 = vadd.f32 %v5197, %v6029
  %v6079 = vadd.f32 %v5198, %v6030
  %v6080 = vadd.f32 %v5199, %v6031
  %v6081 = vadd.f32 %v5200, %v6032
  %v6082 = vadd.f32 %v5201, %v6033
  %v6083 = vadd.f32 %v5202, %v6034
  %v6084 = vadd.f32 %v5203, %v6035
  %v6085 = vadd.f32 %v5204, %v6036
  %v6086 = vadd.f32 %v5205, %v6037
  %v6087 = vadd.f32 %v5206, %v6038
  %v6088 = vadd.f32 %v5207, %v6039
  %v6089 = vadd.f32 %v5208, %v6040
  %v6090 = vadd.f32 %v5209, %v6041
  %v6091 = vadd.f32 %v5210, %v6042
  %v6092 = vadd.f32 %v5211, %v6043
  %v6093 = vadd.f32 %v5212, %v6044
  %v6094 = vadd.f32 %v5213, %v6045
  %v6095 = vadd.f32 %v5214, %v6046
  %v6096 = vadd.f32 %v5215, %v6047
  %v6097 = vadd.f32 %v5216, %v6048
  %v6098 = vadd.f32 %v5217, %v6049
  %v6099 = vadd.f32 %v5218, %v6050
  %v6100 = vadd.f32 %v5219, %v6051
  %v6101 = vadd.f32 %v5220, %v6052
  %s6102 = scalar_lea.vmem %s3, 56
  %v6103 = vld [vmem:[%s6102] ss:$8 sm:$0xf]
  %v6104 = vld [vmem:[%s6102] ss:$8 sm:$0x70]
  %v6105 = vor.u32 %v6103, %v6104
  %v6106 = vld [vmem:[%s1524] sm:$0x7f]
  %v6107 = vld [vmem:[%s1524 + $0x8] sm:$0x7f]
  %v6108 = vld [vmem:[%s1524 + $0x10] sm:$0x7f]
  %v6109 = vld [vmem:[%s1524 + $0x18] sm:$0x7f]
  %v6110 = vld [vmem:[%s1524 + $0x20] sm:$0x7f]
  %v6111 = vld [vmem:[%s1524 + $0x28] sm:$0x7f]
  %v6112 = vld [vmem:[%s1524 + $0x30] sm:$0x7f]
  %v6113 = vld [vmem:[%s1524 + $0x38] sm:$0x7f]
  %v6114 = vld [vmem:[%s1524 + $0x40] sm:$0x7f]
  %v6115 = vld [vmem:[%s1524 + $0x48] sm:$0x7f]
  %v6116 = vld [vmem:[%s1524 + $0x50] sm:$0x7f]
  %v6117 = vld [vmem:[%s1524 + $0x58] sm:$0x7f]
  %v6118 = vld [vmem:[%s1524 + $0x60] sm:$0x7f]
  %v6119 = vld [vmem:[%s1524 + $0x68] sm:$0x7f]
  %v6120 = vld [vmem:[%s1524 + $0x70] sm:$0x7f]
  %v6121 = vld [vmem:[%s1524 + $0x78] sm:$0x7f]
  %v6122 = vld [vmem:[%s1524 + $0x80] sm:$0x7f]
  %v6123 = vld [vmem:[%s1524 + $0x88] sm:$0x7f]
  %v6124 = vld [vmem:[%s1524 + $0x90] sm:$0x7f]
  %v6125 = vld [vmem:[%s1524 + $0x98] sm:$0x7f]
  %v6126 = vld [vmem:[%s1524 + $0xa0] sm:$0x7f]
  %v6127 = vld [vmem:[%s1524 + $0xa8] sm:$0x7f]
  %v6128 = vld [vmem:[%s1524 + $0xb0] sm:$0x7f]
  %v6129 = vld [vmem:[%s1524 + $0xb8] sm:$0x7f]
  %v6130 = vld [vmem:[%s1524 + $0xc0] sm:$0x7f]
  %v6131 = vld [vmem:[%s1524 + $0xc8] sm:$0x7f]
  %v6132 = vld [vmem:[%s1524 + $0xd0] sm:$0x7f]
  %v6133 = vld [vmem:[%s1524 + $0xd8] sm:$0x7f]
  %v6134 = vld [vmem:[%s1524 + $0xe0] sm:$0x7f]
  %v6135 = vld [vmem:[%s1524 + $0xe8] sm:$0x7f]
  %v6136 = vld [vmem:[%s1524 + $0xf0] sm:$0x7f]
  %v6137 = vld [vmem:[%s1524 + $0xf8] sm:$0x7f]
  %v6138 = vld [vmem:[%s1524 + $0x100] sm:$0x7f]
  %v6139 = vld [vmem:[%s1524 + $0x108] sm:$0x7f]
  %v6140 = vld [vmem:[%s1524 + $0x110] sm:$0x7f]
  %v6141 = vld [vmem:[%s1524 + $0x118] sm:$0x7f]
  %v6142 = vld [vmem:[%s1524 + $0x120] sm:$0x7f]
  %v6143 = vld [vmem:[%s1524 + $0x128] sm:$0x7f]
  %v6144 = vld [vmem:[%s1524 + $0x130] sm:$0x7f]
  %v6145 = vld [vmem:[%s1524 + $0x138] sm:$0x7f]
  %v6146 = vld [vmem:[%s1524 + $0x140] sm:$0x7f]
  %v6147 = vld [vmem:[%s1524 + $0x148] sm:$0x7f]
  %v6148 = vld [vmem:[%s1524 + $0x150] sm:$0x7f]
  %v6149 = vld [vmem:[%s1524 + $0x158] sm:$0x7f]
  %v6150 = vld [vmem:[%s1524 + $0x160] sm:$0x7f]
  %v6151 = vld [vmem:[%s1524 + $0x168] sm:$0x7f]
  %v6152 = vld [vmem:[%s1524 + $0x170] sm:$0x7f]
  %v6153 = vld [vmem:[%s1524 + $0x178] sm:$0x7f]
  %v6154 = vld [vmem:[%s1524 + $0x180] sm:$0x7f]
  %v6156 = vlaneseq
  %v6157 = vshrl.u32 %v6156, 7
  %v6158 = vsub.s32 0, %v6157
  %v6159 = vrot.slane %v6105, %v6158
  %v6160 = vlaneseq
  %v6161 = vshrl.u32 %v6160, 7
  %v6162 = vsub.s32 1, %v6161
  %v6163 = vrot.slane %v6105, %v6162
  %v6164 = vlaneseq
  %v6165 = vshrl.u32 %v6164, 7
  %v6166 = vsub.s32 2, %v6165
  %v6167 = vrot.slane %v6105, %v6166
  %v6168 = vlaneseq
  %v6169 = vshrl.u32 %v6168, 7
  %v6170 = vsub.s32 3, %v6169
  %v6171 = vrot.slane %v6105, %v6170
  %v6172 = vlaneseq
  %v6173 = vshrl.u32 %v6172, 7
  %v6174 = vsub.s32 4, %v6173
  %v6175 = vrot.slane %v6105, %v6174
  %v6176 = vlaneseq
  %v6177 = vshrl.u32 %v6176, 7
  %v6178 = vsub.s32 5, %v6177
  %v6179 = vrot.slane %v6105, %v6178
  %v6180 = vlaneseq
  %v6181 = vshrl.u32 %v6180, 7
  %v6182 = vsub.s32 6, %v6181
  %v6183 = vrot.slane %v6105, %v6182
  %v6191 = vmul.f32 %v6106, %v6159
  %v6192 = vmul.f32 %v6107, %v6163
  %v6193 = vmul.f32 %v6108, %v6167
  %v6194 = vmul.f32 %v6109, %v6171
  %v6195 = vmul.f32 %v6110, %v6175
  %v6196 = vmul.f32 %v6111, %v6179
  %v6197 = vmul.f32 %v6112, %v6183
  %v6198 = vmul.f32 %v6113, %v6159
  %v6199 = vmul.f32 %v6114, %v6163
  %v6200 = vmul.f32 %v6115, %v6167
  %v6201 = vmul.f32 %v6116, %v6171
  %v6202 = vmul.f32 %v6117, %v6175
  %v6203 = vmul.f32 %v6118, %v6179
  %v6204 = vmul.f32 %v6119, %v6183
  %v6205 = vmul.f32 %v6120, %v6159
  %v6206 = vmul.f32 %v6121, %v6163
  %v6207 = vmul.f32 %v6122, %v6167
  %v6208 = vmul.f32 %v6123, %v6171
  %v6209 = vmul.f32 %v6124, %v6175
  %v6210 = vmul.f32 %v6125, %v6179
  %v6211 = vmul.f32 %v6126, %v6183
  %v6212 = vmul.f32 %v6127, %v6159
  %v6213 = vmul.f32 %v6128, %v6163
  %v6214 = vmul.f32 %v6129, %v6167
  %v6215 = vmul.f32 %v6130, %v6171
  %v6216 = vmul.f32 %v6131, %v6175
  %v6217 = vmul.f32 %v6132, %v6179
  %v6218 = vmul.f32 %v6133, %v6183
  %v6219 = vmul.f32 %v6134, %v6159
  %v6220 = vmul.f32 %v6135, %v6163
  %v6221 = vmul.f32 %v6136, %v6167
  %v6222 = vmul.f32 %v6137, %v6171
  %v6223 = vmul.f32 %v6138, %v6175
  %v6224 = vmul.f32 %v6139, %v6179
  %v6225 = vmul.f32 %v6140, %v6183
  %v6226 = vmul.f32 %v6141, %v6159
  %v6227 = vmul.f32 %v6142, %v6163
  %v6228 = vmul.f32 %v6143, %v6167
  %v6229 = vmul.f32 %v6144, %v6171
  %v6230 = vmul.f32 %v6145, %v6175
  %v6231 = vmul.f32 %v6146, %v6179
  %v6232 = vmul.f32 %v6147, %v6183
  %v6233 = vmul.f32 %v6148, %v6159
  %v6234 = vmul.f32 %v6149, %v6163
  %v6235 = vmul.f32 %v6150, %v6167
  %v6236 = vmul.f32 %v6151, %v6171
  %v6237 = vmul.f32 %v6152, %v6175
  %v6238 = vmul.f32 %v6153, %v6179
  %v6239 = vmul.f32 %v6154, %v6183
  %v6240 = vadd.f32 %v6053, %v6191
  %v6241 = vadd.f32 %v6054, %v6192
  %v6242 = vadd.f32 %v6055, %v6193
  %v6243 = vadd.f32 %v6056, %v6194
  %v6244 = vadd.f32 %v6057, %v6195
  %v6245 = vadd.f32 %v6058, %v6196
  %v6246 = vadd.f32 %v6059, %v6197
  %v6247 = vadd.f32 %v6060, %v6198
  %v6248 = vadd.f32 %v6061, %v6199
  %v6249 = vadd.f32 %v6062, %v6200
  %v6250 = vadd.f32 %v6063, %v6201
  %v6251 = vadd.f32 %v6064, %v6202
  %v6252 = vadd.f32 %v6065, %v6203
  %v6253 = vadd.f32 %v6066, %v6204
  %v6254 = vadd.f32 %v6067, %v6205
  %v6255 = vadd.f32 %v6068, %v6206
  %v6256 = vadd.f32 %v6069, %v6207
  %v6257 = vadd.f32 %v6070, %v6208
  %v6258 = vadd.f32 %v6071, %v6209
  %v6259 = vadd.f32 %v6072, %v6210
  %v6260 = vadd.f32 %v6073, %v6211
  %v6261 = vadd.f32 %v6074, %v6212
  %v6262 = vadd.f32 %v6075, %v6213
  %v6263 = vadd.f32 %v6076, %v6214
  %v6264 = vadd.f32 %v6077, %v6215
  %v6265 = vadd.f32 %v6078, %v6216
  %v6266 = vadd.f32 %v6079, %v6217
  %v6267 = vadd.f32 %v6080, %v6218
  %v6268 = vadd.f32 %v6081, %v6219
  %v6269 = vadd.f32 %v6082, %v6220
  %v6270 = vadd.f32 %v6083, %v6221
  %v6271 = vadd.f32 %v6084, %v6222
  %v6272 = vadd.f32 %v6085, %v6223
  %v6273 = vadd.f32 %v6086, %v6224
  %v6274 = vadd.f32 %v6087, %v6225
  %v6275 = vadd.f32 %v6088, %v6226
  %v6276 = vadd.f32 %v6089, %v6227
  %v6277 = vadd.f32 %v6090, %v6228
  %v6278 = vadd.f32 %v6091, %v6229
  %v6279 = vadd.f32 %v6092, %v6230
  %v6280 = vadd.f32 %v6093, %v6231
  %v6281 = vadd.f32 %v6094, %v6232
  %v6282 = vadd.f32 %v6095, %v6233
  %v6283 = vadd.f32 %v6096, %v6234
  %v6284 = vadd.f32 %v6097, %v6235
  %v6285 = vadd.f32 %v6098, %v6236
  %v6286 = vadd.f32 %v6099, %v6237
  %v6287 = vadd.f32 %v6100, %v6238
  %v6288 = vadd.f32 %v6101, %v6239
  %s6289 = scalar_lea.vmem %s3, 61
  %v6290 = vld [vmem:[%s6289] ss:$8 sm:$0xf]
  %v6291 = vld [vmem:[%s6289] ss:$8 sm:$0x70]
  %v6292 = vor.u32 %v6290, %v6291
  %v6293 = vld [vmem:[%s1712] sm:$0x7f]
  %v6294 = vld [vmem:[%s1712 + $0x8] sm:$0x7f]
  %v6295 = vld [vmem:[%s1712 + $0x10] sm:$0x7f]
  %v6296 = vld [vmem:[%s1712 + $0x18] sm:$0x7f]
  %v6297 = vld [vmem:[%s1712 + $0x20] sm:$0x7f]
  %v6298 = vld [vmem:[%s1712 + $0x28] sm:$0x7f]
  %v6299 = vld [vmem:[%s1712 + $0x30] sm:$0x7f]
  %v6300 = vld [vmem:[%s1712 + $0x38] sm:$0x7f]
  %v6301 = vld [vmem:[%s1712 + $0x40] sm:$0x7f]
  %v6302 = vld [vmem:[%s1712 + $0x48] sm:$0x7f]
  %v6303 = vld [vmem:[%s1712 + $0x50] sm:$0x7f]
  %v6304 = vld [vmem:[%s1712 + $0x58] sm:$0x7f]
  %v6305 = vld [vmem:[%s1712 + $0x60] sm:$0x7f]
  %v6306 = vld [vmem:[%s1712 + $0x68] sm:$0x7f]
  %v6307 = vld [vmem:[%s1712 + $0x70] sm:$0x7f]
  %v6308 = vld [vmem:[%s1712 + $0x78] sm:$0x7f]
  %v6309 = vld [vmem:[%s1712 + $0x80] sm:$0x7f]
  %v6310 = vld [vmem:[%s1712 + $0x88] sm:$0x7f]
  %v6311 = vld [vmem:[%s1712 + $0x90] sm:$0x7f]
  %v6312 = vld [vmem:[%s1712 + $0x98] sm:$0x7f]
  %v6313 = vld [vmem:[%s1712 + $0xa0] sm:$0x7f]
  %v6314 = vld [vmem:[%s1712 + $0xa8] sm:$0x7f]
  %v6315 = vld [vmem:[%s1712 + $0xb0] sm:$0x7f]
  %v6316 = vld [vmem:[%s1712 + $0xb8] sm:$0x7f]
  %v6317 = vld [vmem:[%s1712 + $0xc0] sm:$0x7f]
  %v6318 = vld [vmem:[%s1712 + $0xc8] sm:$0x7f]
  %v6319 = vld [vmem:[%s1712 + $0xd0] sm:$0x7f]
  %v6320 = vld [vmem:[%s1712 + $0xd8] sm:$0x7f]
  %v6321 = vld [vmem:[%s1712 + $0xe0] sm:$0x7f]
  %v6322 = vld [vmem:[%s1712 + $0xe8] sm:$0x7f]
  %v6323 = vld [vmem:[%s1712 + $0xf0] sm:$0x7f]
  %v6324 = vld [vmem:[%s1712 + $0xf8] sm:$0x7f]
  %v6325 = vld [vmem:[%s1712 + $0x100] sm:$0x7f]
  %v6326 = vld [vmem:[%s1712 + $0x108] sm:$0x7f]
  %v6327 = vld [vmem:[%s1712 + $0x110] sm:$0x7f]
  %v6328 = vld [vmem:[%s1712 + $0x118] sm:$0x7f]
  %v6329 = vld [vmem:[%s1712 + $0x120] sm:$0x7f]
  %v6330 = vld [vmem:[%s1712 + $0x128] sm:$0x7f]
  %v6331 = vld [vmem:[%s1712 + $0x130] sm:$0x7f]
  %v6332 = vld [vmem:[%s1712 + $0x138] sm:$0x7f]
  %v6333 = vld [vmem:[%s1712 + $0x140] sm:$0x7f]
  %v6334 = vld [vmem:[%s1712 + $0x148] sm:$0x7f]
  %v6335 = vld [vmem:[%s1712 + $0x150] sm:$0x7f]
  %v6336 = vld [vmem:[%s1712 + $0x158] sm:$0x7f]
  %v6337 = vld [vmem:[%s1712 + $0x160] sm:$0x7f]
  %v6338 = vld [vmem:[%s1712 + $0x168] sm:$0x7f]
  %v6339 = vld [vmem:[%s1712 + $0x170] sm:$0x7f]
  %v6340 = vld [vmem:[%s1712 + $0x178] sm:$0x7f]
  %v6341 = vld [vmem:[%s1712 + $0x180] sm:$0x7f]
  %v6343 = vlaneseq
  %v6344 = vshrl.u32 %v6343, 7
  %v6345 = vsub.s32 0, %v6344
  %v6346 = vrot.slane %v6292, %v6345
  %v6347 = vlaneseq
  %v6348 = vshrl.u32 %v6347, 7
  %v6349 = vsub.s32 1, %v6348
  %v6350 = vrot.slane %v6292, %v6349
  %v6351 = vlaneseq
  %v6352 = vshrl.u32 %v6351, 7
  %v6353 = vsub.s32 2, %v6352
  %v6354 = vrot.slane %v6292, %v6353
  %v6355 = vlaneseq
  %v6356 = vshrl.u32 %v6355, 7
  %v6357 = vsub.s32 3, %v6356
  %v6358 = vrot.slane %v6292, %v6357
  %v6359 = vlaneseq
  %v6360 = vshrl.u32 %v6359, 7
  %v6361 = vsub.s32 4, %v6360
  %v6362 = vrot.slane %v6292, %v6361
  %v6363 = vlaneseq
  %v6364 = vshrl.u32 %v6363, 7
  %v6365 = vsub.s32 5, %v6364
  %v6366 = vrot.slane %v6292, %v6365
  %v6367 = vlaneseq
  %v6368 = vshrl.u32 %v6367, 7
  %v6369 = vsub.s32 6, %v6368
  %v6370 = vrot.slane %v6292, %v6369
  %v6378 = vmul.f32 %v6293, %v6346
  %v6379 = vmul.f32 %v6294, %v6350
  %v6380 = vmul.f32 %v6295, %v6354
  %v6381 = vmul.f32 %v6296, %v6358
  %v6382 = vmul.f32 %v6297, %v6362
  %v6383 = vmul.f32 %v6298, %v6366
  %v6384 = vmul.f32 %v6299, %v6370
  %v6385 = vmul.f32 %v6300, %v6346
  %v6386 = vmul.f32 %v6301, %v6350
  %v6387 = vmul.f32 %v6302, %v6354
  %v6388 = vmul.f32 %v6303, %v6358
  %v6389 = vmul.f32 %v6304, %v6362
  %v6390 = vmul.f32 %v6305, %v6366
  %v6391 = vmul.f32 %v6306, %v6370
  %v6392 = vmul.f32 %v6307, %v6346
  %v6393 = vmul.f32 %v6308, %v6350
  %v6394 = vmul.f32 %v6309, %v6354
  %v6395 = vmul.f32 %v6310, %v6358
  %v6396 = vmul.f32 %v6311, %v6362
  %v6397 = vmul.f32 %v6312, %v6366
  %v6398 = vmul.f32 %v6313, %v6370
  %v6399 = vmul.f32 %v6314, %v6346
  %v6400 = vmul.f32 %v6315, %v6350
  %v6401 = vmul.f32 %v6316, %v6354
  %v6402 = vmul.f32 %v6317, %v6358
  %v6403 = vmul.f32 %v6318, %v6362
  %v6404 = vmul.f32 %v6319, %v6366
  %v6405 = vmul.f32 %v6320, %v6370
  %v6406 = vmul.f32 %v6321, %v6346
  %v6407 = vmul.f32 %v6322, %v6350
  %v6408 = vmul.f32 %v6323, %v6354
  %v6409 = vmul.f32 %v6324, %v6358
  %v6410 = vmul.f32 %v6325, %v6362
  %v6411 = vmul.f32 %v6326, %v6366
  %v6412 = vmul.f32 %v6327, %v6370
  %v6413 = vmul.f32 %v6328, %v6346
  %v6414 = vmul.f32 %v6329, %v6350
  %v6415 = vmul.f32 %v6330, %v6354
  %v6416 = vmul.f32 %v6331, %v6358
  %v6417 = vmul.f32 %v6332, %v6362
  %v6418 = vmul.f32 %v6333, %v6366
  %v6419 = vmul.f32 %v6334, %v6370
  %v6420 = vmul.f32 %v6335, %v6346
  %v6421 = vmul.f32 %v6336, %v6350
  %v6422 = vmul.f32 %v6337, %v6354
  %v6423 = vmul.f32 %v6338, %v6358
  %v6424 = vmul.f32 %v6339, %v6362
  %v6425 = vmul.f32 %v6340, %v6366
  %v6426 = vmul.f32 %v6341, %v6370
  %v6427 = vadd.f32 %v6240, %v6378
  %v6428 = vadd.f32 %v6241, %v6379
  %v6429 = vadd.f32 %v6242, %v6380
  %v6430 = vadd.f32 %v6243, %v6381
  %v6431 = vadd.f32 %v6244, %v6382
  %v6432 = vadd.f32 %v6245, %v6383
  %v6433 = vadd.f32 %v6246, %v6384
  %v6434 = vadd.f32 %v6247, %v6385
  %v6435 = vadd.f32 %v6248, %v6386
  %v6436 = vadd.f32 %v6249, %v6387
  %v6437 = vadd.f32 %v6250, %v6388
  %v6438 = vadd.f32 %v6251, %v6389
  %v6439 = vadd.f32 %v6252, %v6390
  %v6440 = vadd.f32 %v6253, %v6391
  %v6441 = vadd.f32 %v6254, %v6392
  %v6442 = vadd.f32 %v6255, %v6393
  %v6443 = vadd.f32 %v6256, %v6394
  %v6444 = vadd.f32 %v6257, %v6395
  %v6445 = vadd.f32 %v6258, %v6396
  %v6446 = vadd.f32 %v6259, %v6397
  %v6447 = vadd.f32 %v6260, %v6398
  %v6448 = vadd.f32 %v6261, %v6399
  %v6449 = vadd.f32 %v6262, %v6400
  %v6450 = vadd.f32 %v6263, %v6401
  %v6451 = vadd.f32 %v6264, %v6402
  %v6452 = vadd.f32 %v6265, %v6403
  %v6453 = vadd.f32 %v6266, %v6404
  %v6454 = vadd.f32 %v6267, %v6405
  %v6455 = vadd.f32 %v6268, %v6406
  %v6456 = vadd.f32 %v6269, %v6407
  %v6457 = vadd.f32 %v6270, %v6408
  %v6458 = vadd.f32 %v6271, %v6409
  %v6459 = vadd.f32 %v6272, %v6410
  %v6460 = vadd.f32 %v6273, %v6411
  %v6461 = vadd.f32 %v6274, %v6412
  %v6462 = vadd.f32 %v6275, %v6413
  %v6463 = vadd.f32 %v6276, %v6414
  %v6464 = vadd.f32 %v6277, %v6415
  %v6465 = vadd.f32 %v6278, %v6416
  %v6466 = vadd.f32 %v6279, %v6417
  %v6467 = vadd.f32 %v6280, %v6418
  %v6468 = vadd.f32 %v6281, %v6419
  %v6469 = vadd.f32 %v6282, %v6420
  %v6470 = vadd.f32 %v6283, %v6421
  %v6471 = vadd.f32 %v6284, %v6422
  %v6472 = vadd.f32 %v6285, %v6423
  %v6473 = vadd.f32 %v6286, %v6424
  %v6474 = vadd.f32 %v6287, %v6425
  %v6475 = vadd.f32 %v6288, %v6426
  %s6476 = scalar_lea.vmem %s3, 114
  %v6477 = vld [vmem:[%s6476] ss:$8 sm:$0xf]
  %v6478 = vld [vmem:[%s6476] ss:$8 sm:$0x70]
  %v6479 = vor.u32 %v6477, %v6478
  %v6480 = vld [vmem:[%s1900] sm:$0x7f]
  %v6481 = vld [vmem:[%s1900 + $0x8] sm:$0x7f]
  %v6482 = vld [vmem:[%s1900 + $0x10] sm:$0x7f]
  %v6483 = vld [vmem:[%s1900 + $0x18] sm:$0x7f]
  %v6484 = vld [vmem:[%s1900 + $0x20] sm:$0x7f]
  %v6485 = vld [vmem:[%s1900 + $0x28] sm:$0x7f]
  %v6486 = vld [vmem:[%s1900 + $0x30] sm:$0x7f]
  %v6487 = vld [vmem:[%s1900 + $0x38] sm:$0x7f]
  %v6488 = vld [vmem:[%s1900 + $0x40] sm:$0x7f]
  %v6489 = vld [vmem:[%s1900 + $0x48] sm:$0x7f]
  %v6490 = vld [vmem:[%s1900 + $0x50] sm:$0x7f]
  %v6491 = vld [vmem:[%s1900 + $0x58] sm:$0x7f]
  %v6492 = vld [vmem:[%s1900 + $0x60] sm:$0x7f]
  %v6493 = vld [vmem:[%s1900 + $0x68] sm:$0x7f]
  %v6494 = vld [vmem:[%s1900 + $0x70] sm:$0x7f]
  %v6495 = vld [vmem:[%s1900 + $0x78] sm:$0x7f]
  %v6496 = vld [vmem:[%s1900 + $0x80] sm:$0x7f]
  %v6497 = vld [vmem:[%s1900 + $0x88] sm:$0x7f]
  %v6498 = vld [vmem:[%s1900 + $0x90] sm:$0x7f]
  %v6499 = vld [vmem:[%s1900 + $0x98] sm:$0x7f]
  %v6500 = vld [vmem:[%s1900 + $0xa0] sm:$0x7f]
  %v6501 = vld [vmem:[%s1900 + $0xa8] sm:$0x7f]
  %v6502 = vld [vmem:[%s1900 + $0xb0] sm:$0x7f]
  %v6503 = vld [vmem:[%s1900 + $0xb8] sm:$0x7f]
  %v6504 = vld [vmem:[%s1900 + $0xc0] sm:$0x7f]
  %v6505 = vld [vmem:[%s1900 + $0xc8] sm:$0x7f]
  %v6506 = vld [vmem:[%s1900 + $0xd0] sm:$0x7f]
  %v6507 = vld [vmem:[%s1900 + $0xd8] sm:$0x7f]
  %v6508 = vld [vmem:[%s1900 + $0xe0] sm:$0x7f]
  %v6509 = vld [vmem:[%s1900 + $0xe8] sm:$0x7f]
  %v6510 = vld [vmem:[%s1900 + $0xf0] sm:$0x7f]
  %v6511 = vld [vmem:[%s1900 + $0xf8] sm:$0x7f]
  %v6512 = vld [vmem:[%s1900 + $0x100] sm:$0x7f]
  %v6513 = vld [vmem:[%s1900 + $0x108] sm:$0x7f]
  %v6514 = vld [vmem:[%s1900 + $0x110] sm:$0x7f]
  %v6515 = vld [vmem:[%s1900 + $0x118] sm:$0x7f]
  %v6516 = vld [vmem:[%s1900 + $0x120] sm:$0x7f]
  %v6517 = vld [vmem:[%s1900 + $0x128] sm:$0x7f]
  %v6518 = vld [vmem:[%s1900 + $0x130] sm:$0x7f]
  %v6519 = vld [vmem:[%s1900 + $0x138] sm:$0x7f]
  %v6520 = vld [vmem:[%s1900 + $0x140] sm:$0x7f]
  %v6521 = vld [vmem:[%s1900 + $0x148] sm:$0x7f]
  %v6522 = vld [vmem:[%s1900 + $0x150] sm:$0x7f]
  %v6523 = vld [vmem:[%s1900 + $0x158] sm:$0x7f]
  %v6524 = vld [vmem:[%s1900 + $0x160] sm:$0x7f]
  %v6525 = vld [vmem:[%s1900 + $0x168] sm:$0x7f]
  %v6526 = vld [vmem:[%s1900 + $0x170] sm:$0x7f]
  %v6527 = vld [vmem:[%s1900 + $0x178] sm:$0x7f]
  %v6528 = vld [vmem:[%s1900 + $0x180] sm:$0x7f]
  %v6530 = vlaneseq
  %v6531 = vshrl.u32 %v6530, 7
  %v6532 = vsub.s32 0, %v6531
  %v6533 = vrot.slane %v6479, %v6532
  %v6534 = vlaneseq
  %v6535 = vshrl.u32 %v6534, 7
  %v6536 = vsub.s32 1, %v6535
  %v6537 = vrot.slane %v6479, %v6536
  %v6538 = vlaneseq
  %v6539 = vshrl.u32 %v6538, 7
  %v6540 = vsub.s32 2, %v6539
  %v6541 = vrot.slane %v6479, %v6540
  %v6542 = vlaneseq
  %v6543 = vshrl.u32 %v6542, 7
  %v6544 = vsub.s32 3, %v6543
  %v6545 = vrot.slane %v6479, %v6544
  %v6546 = vlaneseq
  %v6547 = vshrl.u32 %v6546, 7
  %v6548 = vsub.s32 4, %v6547
  %v6549 = vrot.slane %v6479, %v6548
  %v6550 = vlaneseq
  %v6551 = vshrl.u32 %v6550, 7
  %v6552 = vsub.s32 5, %v6551
  %v6553 = vrot.slane %v6479, %v6552
  %v6554 = vlaneseq
  %v6555 = vshrl.u32 %v6554, 7
  %v6556 = vsub.s32 6, %v6555
  %v6557 = vrot.slane %v6479, %v6556
  %v6565 = vmul.f32 %v6480, %v6533
  %v6566 = vmul.f32 %v6481, %v6537
  %v6567 = vmul.f32 %v6482, %v6541
  %v6568 = vmul.f32 %v6483, %v6545
  %v6569 = vmul.f32 %v6484, %v6549
  %v6570 = vmul.f32 %v6485, %v6553
  %v6571 = vmul.f32 %v6486, %v6557
  %v6572 = vmul.f32 %v6487, %v6533
  %v6573 = vmul.f32 %v6488, %v6537
  %v6574 = vmul.f32 %v6489, %v6541
  %v6575 = vmul.f32 %v6490, %v6545
  %v6576 = vmul.f32 %v6491, %v6549
  %v6577 = vmul.f32 %v6492, %v6553
  %v6578 = vmul.f32 %v6493, %v6557
  %v6579 = vmul.f32 %v6494, %v6533
  %v6580 = vmul.f32 %v6495, %v6537
  %v6581 = vmul.f32 %v6496, %v6541
  %v6582 = vmul.f32 %v6497, %v6545
  %v6583 = vmul.f32 %v6498, %v6549
  %v6584 = vmul.f32 %v6499, %v6553
  %v6585 = vmul.f32 %v6500, %v6557
  %v6586 = vmul.f32 %v6501, %v6533
  %v6587 = vmul.f32 %v6502, %v6537
  %v6588 = vmul.f32 %v6503, %v6541
  %v6589 = vmul.f32 %v6504, %v6545
  %v6590 = vmul.f32 %v6505, %v6549
  %v6591 = vmul.f32 %v6506, %v6553
  %v6592 = vmul.f32 %v6507, %v6557
  %v6593 = vmul.f32 %v6508, %v6533
  %v6594 = vmul.f32 %v6509, %v6537
  %v6595 = vmul.f32 %v6510, %v6541
  %v6596 = vmul.f32 %v6511, %v6545
  %v6597 = vmul.f32 %v6512, %v6549
  %v6598 = vmul.f32 %v6513, %v6553
  %v6599 = vmul.f32 %v6514, %v6557
  %v6600 = vmul.f32 %v6515, %v6533
  %v6601 = vmul.f32 %v6516, %v6537
  %v6602 = vmul.f32 %v6517, %v6541
  %v6603 = vmul.f32 %v6518, %v6545
  %v6604 = vmul.f32 %v6519, %v6549
  %v6605 = vmul.f32 %v6520, %v6553
  %v6606 = vmul.f32 %v6521, %v6557
  %v6607 = vmul.f32 %v6522, %v6533
  %v6608 = vmul.f32 %v6523, %v6537
  %v6609 = vmul.f32 %v6524, %v6541
  %v6610 = vmul.f32 %v6525, %v6545
  %v6611 = vmul.f32 %v6526, %v6549
  %v6612 = vmul.f32 %v6527, %v6553
  %v6613 = vmul.f32 %v6528, %v6557
  %v6614 = vadd.f32 %v6427, %v6565
  %v6615 = vadd.f32 %v6428, %v6566
  %v6616 = vadd.f32 %v6429, %v6567
  %v6617 = vadd.f32 %v6430, %v6568
  %v6618 = vadd.f32 %v6431, %v6569
  %v6619 = vadd.f32 %v6432, %v6570
  %v6620 = vadd.f32 %v6433, %v6571
  %v6621 = vadd.f32 %v6434, %v6572
  %v6622 = vadd.f32 %v6435, %v6573
  %v6623 = vadd.f32 %v6436, %v6574
  %v6624 = vadd.f32 %v6437, %v6575
  %v6625 = vadd.f32 %v6438, %v6576
  %v6626 = vadd.f32 %v6439, %v6577
  %v6627 = vadd.f32 %v6440, %v6578
  %v6628 = vadd.f32 %v6441, %v6579
  %v6629 = vadd.f32 %v6442, %v6580
  %v6630 = vadd.f32 %v6443, %v6581
  %v6631 = vadd.f32 %v6444, %v6582
  %v6632 = vadd.f32 %v6445, %v6583
  %v6633 = vadd.f32 %v6446, %v6584
  %v6634 = vadd.f32 %v6447, %v6585
  %v6635 = vadd.f32 %v6448, %v6586
  %v6636 = vadd.f32 %v6449, %v6587
  %v6637 = vadd.f32 %v6450, %v6588
  %v6638 = vadd.f32 %v6451, %v6589
  %v6639 = vadd.f32 %v6452, %v6590
  %v6640 = vadd.f32 %v6453, %v6591
  %v6641 = vadd.f32 %v6454, %v6592
  %v6642 = vadd.f32 %v6455, %v6593
  %v6643 = vadd.f32 %v6456, %v6594
  %v6644 = vadd.f32 %v6457, %v6595
  %v6645 = vadd.f32 %v6458, %v6596
  %v6646 = vadd.f32 %v6459, %v6597
  %v6647 = vadd.f32 %v6460, %v6598
  %v6648 = vadd.f32 %v6461, %v6599
  %v6649 = vadd.f32 %v6462, %v6600
  %v6650 = vadd.f32 %v6463, %v6601
  %v6651 = vadd.f32 %v6464, %v6602
  %v6652 = vadd.f32 %v6465, %v6603
  %v6653 = vadd.f32 %v6466, %v6604
  %v6654 = vadd.f32 %v6467, %v6605
  %v6655 = vadd.f32 %v6468, %v6606
  %v6656 = vadd.f32 %v6469, %v6607
  %v6657 = vadd.f32 %v6470, %v6608
  %v6658 = vadd.f32 %v6471, %v6609
  %v6659 = vadd.f32 %v6472, %v6610
  %v6660 = vadd.f32 %v6473, %v6611
  %v6661 = vadd.f32 %v6474, %v6612
  %v6662 = vadd.f32 %v6475, %v6613
  %s6663 = scalar_lea.vmem %s3, 119
  %v6664 = vld [vmem:[%s6663] ss:$8 sm:$0xf]
  %v6665 = vld [vmem:[%s6663] ss:$8 sm:$0x70]
  %v6666 = vor.u32 %v6664, %v6665
  %v6667 = vld [vmem:[%s2088] sm:$0x7f]
  %v6668 = vld [vmem:[%s2088 + $0x8] sm:$0x7f]
  %v6669 = vld [vmem:[%s2088 + $0x10] sm:$0x7f]
  %v6670 = vld [vmem:[%s2088 + $0x18] sm:$0x7f]
  %v6671 = vld [vmem:[%s2088 + $0x20] sm:$0x7f]
  %v6672 = vld [vmem:[%s2088 + $0x28] sm:$0x7f]
  %v6673 = vld [vmem:[%s2088 + $0x30] sm:$0x7f]
  %v6674 = vld [vmem:[%s2088 + $0x38] sm:$0x7f]
  %v6675 = vld [vmem:[%s2088 + $0x40] sm:$0x7f]
  %v6676 = vld [vmem:[%s2088 + $0x48] sm:$0x7f]
  %v6677 = vld [vmem:[%s2088 + $0x50] sm:$0x7f]
  %v6678 = vld [vmem:[%s2088 + $0x58] sm:$0x7f]
  %v6679 = vld [vmem:[%s2088 + $0x60] sm:$0x7f]
  %v6680 = vld [vmem:[%s2088 + $0x68] sm:$0x7f]
  %v6681 = vld [vmem:[%s2088 + $0x70] sm:$0x7f]
  %v6682 = vld [vmem:[%s2088 + $0x78] sm:$0x7f]
  %v6683 = vld [vmem:[%s2088 + $0x80] sm:$0x7f]
  %v6684 = vld [vmem:[%s2088 + $0x88] sm:$0x7f]
  %v6685 = vld [vmem:[%s2088 + $0x90] sm:$0x7f]
  %v6686 = vld [vmem:[%s2088 + $0x98] sm:$0x7f]
  %v6687 = vld [vmem:[%s2088 + $0xa0] sm:$0x7f]
  %v6688 = vld [vmem:[%s2088 + $0xa8] sm:$0x7f]
  %v6689 = vld [vmem:[%s2088 + $0xb0] sm:$0x7f]
  %v6690 = vld [vmem:[%s2088 + $0xb8] sm:$0x7f]
  %v6691 = vld [vmem:[%s2088 + $0xc0] sm:$0x7f]
  %v6692 = vld [vmem:[%s2088 + $0xc8] sm:$0x7f]
  %v6693 = vld [vmem:[%s2088 + $0xd0] sm:$0x7f]
  %v6694 = vld [vmem:[%s2088 + $0xd8] sm:$0x7f]
  %v6695 = vld [vmem:[%s2088 + $0xe0] sm:$0x7f]
  %v6696 = vld [vmem:[%s2088 + $0xe8] sm:$0x7f]
  %v6697 = vld [vmem:[%s2088 + $0xf0] sm:$0x7f]
  %v6698 = vld [vmem:[%s2088 + $0xf8] sm:$0x7f]
  %v6699 = vld [vmem:[%s2088 + $0x100] sm:$0x7f]
  %v6700 = vld [vmem:[%s2088 + $0x108] sm:$0x7f]
  %v6701 = vld [vmem:[%s2088 + $0x110] sm:$0x7f]
  %v6702 = vld [vmem:[%s2088 + $0x118] sm:$0x7f]
  %v6703 = vld [vmem:[%s2088 + $0x120] sm:$0x7f]
  %v6704 = vld [vmem:[%s2088 + $0x128] sm:$0x7f]
  %v6705 = vld [vmem:[%s2088 + $0x130] sm:$0x7f]
  %v6706 = vld [vmem:[%s2088 + $0x138] sm:$0x7f]
  %v6707 = vld [vmem:[%s2088 + $0x140] sm:$0x7f]
  %v6708 = vld [vmem:[%s2088 + $0x148] sm:$0x7f]
  %v6709 = vld [vmem:[%s2088 + $0x150] sm:$0x7f]
  %v6710 = vld [vmem:[%s2088 + $0x158] sm:$0x7f]
  %v6711 = vld [vmem:[%s2088 + $0x160] sm:$0x7f]
  %v6712 = vld [vmem:[%s2088 + $0x168] sm:$0x7f]
  %v6713 = vld [vmem:[%s2088 + $0x170] sm:$0x7f]
  %v6714 = vld [vmem:[%s2088 + $0x178] sm:$0x7f]
  %v6715 = vld [vmem:[%s2088 + $0x180] sm:$0x7f]
  %v6717 = vlaneseq
  %v6718 = vshrl.u32 %v6717, 7
  %v6719 = vsub.s32 0, %v6718
  %v6720 = vrot.slane %v6666, %v6719
  %v6721 = vlaneseq
  %v6722 = vshrl.u32 %v6721, 7
  %v6723 = vsub.s32 1, %v6722
  %v6724 = vrot.slane %v6666, %v6723
  %v6725 = vlaneseq
  %v6726 = vshrl.u32 %v6725, 7
  %v6727 = vsub.s32 2, %v6726
  %v6728 = vrot.slane %v6666, %v6727
  %v6729 = vlaneseq
  %v6730 = vshrl.u32 %v6729, 7
  %v6731 = vsub.s32 3, %v6730
  %v6732 = vrot.slane %v6666, %v6731
  %v6733 = vlaneseq
  %v6734 = vshrl.u32 %v6733, 7
  %v6735 = vsub.s32 4, %v6734
  %v6736 = vrot.slane %v6666, %v6735
  %v6737 = vlaneseq
  %v6738 = vshrl.u32 %v6737, 7
  %v6739 = vsub.s32 5, %v6738
  %v6740 = vrot.slane %v6666, %v6739
  %v6741 = vlaneseq
  %v6742 = vshrl.u32 %v6741, 7
  %v6743 = vsub.s32 6, %v6742
  %v6744 = vrot.slane %v6666, %v6743
  %v6752 = vmul.f32 %v6667, %v6720
  %v6753 = vmul.f32 %v6668, %v6724
  %v6754 = vmul.f32 %v6669, %v6728
  %v6755 = vmul.f32 %v6670, %v6732
  %v6756 = vmul.f32 %v6671, %v6736
  %v6757 = vmul.f32 %v6672, %v6740
  %v6758 = vmul.f32 %v6673, %v6744
  %v6759 = vmul.f32 %v6674, %v6720
  %v6760 = vmul.f32 %v6675, %v6724
  %v6761 = vmul.f32 %v6676, %v6728
  %v6762 = vmul.f32 %v6677, %v6732
  %v6763 = vmul.f32 %v6678, %v6736
  %v6764 = vmul.f32 %v6679, %v6740
  %v6765 = vmul.f32 %v6680, %v6744
  %v6766 = vmul.f32 %v6681, %v6720
  %v6767 = vmul.f32 %v6682, %v6724
  %v6768 = vmul.f32 %v6683, %v6728
  %v6769 = vmul.f32 %v6684, %v6732
  %v6770 = vmul.f32 %v6685, %v6736
  %v6771 = vmul.f32 %v6686, %v6740
  %v6772 = vmul.f32 %v6687, %v6744
  %v6773 = vmul.f32 %v6688, %v6720
  %v6774 = vmul.f32 %v6689, %v6724
  %v6775 = vmul.f32 %v6690, %v6728
  %v6776 = vmul.f32 %v6691, %v6732
  %v6777 = vmul.f32 %v6692, %v6736
  %v6778 = vmul.f32 %v6693, %v6740
  %v6779 = vmul.f32 %v6694, %v6744
  %v6780 = vmul.f32 %v6695, %v6720
  %v6781 = vmul.f32 %v6696, %v6724
  %v6782 = vmul.f32 %v6697, %v6728
  %v6783 = vmul.f32 %v6698, %v6732
  %v6784 = vmul.f32 %v6699, %v6736
  %v6785 = vmul.f32 %v6700, %v6740
  %v6786 = vmul.f32 %v6701, %v6744
  %v6787 = vmul.f32 %v6702, %v6720
  %v6788 = vmul.f32 %v6703, %v6724
  %v6789 = vmul.f32 %v6704, %v6728
  %v6790 = vmul.f32 %v6705, %v6732
  %v6791 = vmul.f32 %v6706, %v6736
  %v6792 = vmul.f32 %v6707, %v6740
  %v6793 = vmul.f32 %v6708, %v6744
  %v6794 = vmul.f32 %v6709, %v6720
  %v6795 = vmul.f32 %v6710, %v6724
  %v6796 = vmul.f32 %v6711, %v6728
  %v6797 = vmul.f32 %v6712, %v6732
  %v6798 = vmul.f32 %v6713, %v6736
  %v6799 = vmul.f32 %v6714, %v6740
  %v6800 = vmul.f32 %v6715, %v6744
  %v6801 = vadd.f32 %v6614, %v6752
  %v6802 = vadd.f32 %v6615, %v6753
  %v6803 = vadd.f32 %v6616, %v6754
  %v6804 = vadd.f32 %v6617, %v6755
  %v6805 = vadd.f32 %v6618, %v6756
  %v6806 = vadd.f32 %v6619, %v6757
  %v6807 = vadd.f32 %v6620, %v6758
  %v6808 = vadd.f32 %v6621, %v6759
  %v6809 = vadd.f32 %v6622, %v6760
  %v6810 = vadd.f32 %v6623, %v6761
  %v6811 = vadd.f32 %v6624, %v6762
  %v6812 = vadd.f32 %v6625, %v6763
  %v6813 = vadd.f32 %v6626, %v6764
  %v6814 = vadd.f32 %v6627, %v6765
  %v6815 = vadd.f32 %v6628, %v6766
  %v6816 = vadd.f32 %v6629, %v6767
  %v6817 = vadd.f32 %v6630, %v6768
  %v6818 = vadd.f32 %v6631, %v6769
  %v6819 = vadd.f32 %v6632, %v6770
  %v6820 = vadd.f32 %v6633, %v6771
  %v6821 = vadd.f32 %v6634, %v6772
  %v6822 = vadd.f32 %v6635, %v6773
  %v6823 = vadd.f32 %v6636, %v6774
  %v6824 = vadd.f32 %v6637, %v6775
  %v6825 = vadd.f32 %v6638, %v6776
  %v6826 = vadd.f32 %v6639, %v6777
  %v6827 = vadd.f32 %v6640, %v6778
  %v6828 = vadd.f32 %v6641, %v6779
  %v6829 = vadd.f32 %v6642, %v6780
  %v6830 = vadd.f32 %v6643, %v6781
  %v6831 = vadd.f32 %v6644, %v6782
  %v6832 = vadd.f32 %v6645, %v6783
  %v6833 = vadd.f32 %v6646, %v6784
  %v6834 = vadd.f32 %v6647, %v6785
  %v6835 = vadd.f32 %v6648, %v6786
  %v6836 = vadd.f32 %v6649, %v6787
  %v6837 = vadd.f32 %v6650, %v6788
  %v6838 = vadd.f32 %v6651, %v6789
  %v6839 = vadd.f32 %v6652, %v6790
  %v6840 = vadd.f32 %v6653, %v6791
  %v6841 = vadd.f32 %v6654, %v6792
  %v6842 = vadd.f32 %v6655, %v6793
  %v6843 = vadd.f32 %v6656, %v6794
  %v6844 = vadd.f32 %v6657, %v6795
  %v6845 = vadd.f32 %v6658, %v6796
  %v6846 = vadd.f32 %v6659, %v6797
  %v6847 = vadd.f32 %v6660, %v6798
  %v6848 = vadd.f32 %v6661, %v6799
  %v6849 = vadd.f32 %v6662, %v6800
  %v6850 = vld [vmem:[#allocation2] sm:$0xf0]
  %v6851 = vld [vmem:[#allocation2 + $0x8] sm:$0xf0]
  %v6852 = vld [vmem:[#allocation2 + $0x10] sm:$0xf0]
  %v6853 = vld [vmem:[#allocation2 + $0x18] sm:$0xf0]
  %v6854 = vld [vmem:[#allocation2 + $0x20] sm:$0xf0]
  %v6855 = vld [vmem:[#allocation2 + $0x28] sm:$0xf0]
  %v6856 = vld [vmem:[#allocation2 + $0x30] sm:$0xf0]
  %v6857 = vld [vmem:[#allocation2 + $0x38] sm:$0x7]
  %v6858 = vld [vmem:[#allocation2 + $0x40] sm:$0x7]
  %v6859 = vld [vmem:[#allocation2 + $0x48] sm:$0x7]
  %v6860 = vld [vmem:[#allocation2 + $0x50] sm:$0x7]
  %v6861 = vld [vmem:[#allocation2 + $0x58] sm:$0x7]
  %v6862 = vld [vmem:[#allocation2 + $0x60] sm:$0x7]
  %v6863 = vld [vmem:[#allocation2 + $0x68] sm:$0x7]
  %v6864 = vld [vmem:[#allocation2 + $0x70] sm:$0xf0]
  %v6865 = vld [vmem:[#allocation2 + $0x78] sm:$0xf0]
  %v6866 = vld [vmem:[#allocation2 + $0x80] sm:$0xf0]
  %v6867 = vld [vmem:[#allocation2 + $0x88] sm:$0xf0]
  %v6868 = vld [vmem:[#allocation2 + $0x90] sm:$0xf0]
  %v6869 = vld [vmem:[#allocation2 + $0x98] sm:$0xf0]
  %v6870 = vld [vmem:[#allocation2 + $0xa0] sm:$0xf0]
  %v6871 = vld [vmem:[#allocation2 + $0xa8] sm:$0x7]
  %v6872 = vld [vmem:[#allocation2 + $0xb0] sm:$0x7]
  %v6873 = vld [vmem:[#allocation2 + $0xb8] sm:$0x7]
  %v6874 = vld [vmem:[#allocation2 + $0xc0] sm:$0x7]
  %v6875 = vld [vmem:[#allocation2 + $0xc8] sm:$0x7]
  %v6876 = vld [vmem:[#allocation2 + $0xd0] sm:$0x7]
  %v6877 = vld [vmem:[#allocation2 + $0xd8] sm:$0x7]
  %v6878 = vld [vmem:[#allocation2 + $0xe0] sm:$0xf0]
  %v6879 = vld [vmem:[#allocation2 + $0xe8] sm:$0xf0]
  %v6880 = vld [vmem:[#allocation2 + $0xf0] sm:$0xf0]
  %v6881 = vld [vmem:[#allocation2 + $0xf8] sm:$0xf0]
  %v6882 = vld [vmem:[#allocation2 + $0x100] sm:$0xf0]
  %v6883 = vld [vmem:[#allocation2 + $0x108] sm:$0xf0]
  %v6884 = vld [vmem:[#allocation2 + $0x110] sm:$0xf0]
  %v6885 = vld [vmem:[#allocation2 + $0x118] sm:$0x7]
  %v6886 = vld [vmem:[#allocation2 + $0x120] sm:$0x7]
  %v6887 = vld [vmem:[#allocation2 + $0x128] sm:$0x7]
  %v6888 = vld [vmem:[#allocation2 + $0x130] sm:$0x7]
  %v6889 = vld [vmem:[#allocation2 + $0x138] sm:$0x7]
  %v6890 = vld [vmem:[#allocation2 + $0x140] sm:$0x7]
  %v6891 = vld [vmem:[#allocation2 + $0x148] sm:$0x7]
  %v6892 = vld [vmem:[#allocation2 + $0x150] sm:$0xf0]
  %v6893 = vld [vmem:[#allocation2 + $0x158] sm:$0xf0]
  %v6894 = vld [vmem:[#allocation2 + $0x160] sm:$0xf0]
  %v6895 = vld [vmem:[#allocation2 + $0x168] sm:$0xf0]
  %v6896 = vld [vmem:[#allocation2 + $0x170] sm:$0xf0]
  %v6897 = vld [vmem:[#allocation2 + $0x178] sm:$0xf0]
  %v6898 = vld [vmem:[#allocation2 + $0x180] sm:$0xf0]
  %v6899 = vld [vmem:[#allocation2 + $0x188] sm:$0x7]
  %v6900 = vld [vmem:[#allocation2 + $0x190] sm:$0x7]
  %v6901 = vld [vmem:[#allocation2 + $0x198] sm:$0x7]
  %v6902 = vld [vmem:[#allocation2 + $0x1a0] sm:$0x7]
  %v6903 = vld [vmem:[#allocation2 + $0x1a8] sm:$0x7]
  %v6904 = vld [vmem:[#allocation2 + $0x1b0] sm:$0x7]
  %v6905 = vld [vmem:[#allocation2 + $0x1b8] sm:$0x7]
  %v6906 = vld [vmem:[#allocation2 + $0x1c0] sm:$0xf0]
  %v6907 = vld [vmem:[#allocation2 + $0x1c8] sm:$0xf0]
  %v6908 = vld [vmem:[#allocation2 + $0x1d0] sm:$0xf0]
  %v6909 = vld [vmem:[#allocation2 + $0x1d8] sm:$0xf0]
  %v6910 = vld [vmem:[#allocation2 + $0x1e0] sm:$0xf0]
  %v6911 = vld [vmem:[#allocation2 + $0x1e8] sm:$0xf0]
  %v6912 = vld [vmem:[#allocation2 + $0x1f0] sm:$0xf0]
  %v6913 = vld [vmem:[#allocation2 + $0x1f8] sm:$0x7]
  %v6914 = vld [vmem:[#allocation2 + $0x200] sm:$0x7]
  %v6915 = vld [vmem:[#allocation2 + $0x208] sm:$0x7]
  %v6916 = vld [vmem:[#allocation2 + $0x210] sm:$0x7]
  %v6917 = vld [vmem:[#allocation2 + $0x218] sm:$0x7]
  %v6918 = vld [vmem:[#allocation2 + $0x220] sm:$0x7]
  %v6919 = vld [vmem:[#allocation2 + $0x228] sm:$0x7]
  %v6920 = vld [vmem:[#allocation2 + $0x230] sm:$0xf0]
  %v6921 = vld [vmem:[#allocation2 + $0x238] sm:$0xf0]
  %v6922 = vld [vmem:[#allocation2 + $0x240] sm:$0xf0]
  %v6923 = vld [vmem:[#allocation2 + $0x248] sm:$0xf0]
  %v6924 = vld [vmem:[#allocation2 + $0x250] sm:$0xf0]
  %v6925 = vld [vmem:[#allocation2 + $0x258] sm:$0xf0]
  %v6926 = vld [vmem:[#allocation2 + $0x260] sm:$0xf0]
  %v6927 = vld [vmem:[#allocation2 + $0x268] sm:$0x7]
  %v6928 = vld [vmem:[#allocation2 + $0x270] sm:$0x7]
  %v6929 = vld [vmem:[#allocation2 + $0x278] sm:$0x7]
  %v6930 = vld [vmem:[#allocation2 + $0x280] sm:$0x7]
  %v6931 = vld [vmem:[#allocation2 + $0x288] sm:$0x7]
  %v6932 = vld [vmem:[#allocation2 + $0x290] sm:$0x7]
  %v6933 = vld [vmem:[#allocation2 + $0x298] sm:$0x7]
  %v6934 = vld [vmem:[#allocation2 + $0x2a0] sm:$0xf0]
  %v6935 = vld [vmem:[#allocation2 + $0x2a8] sm:$0xf0]
  %v6936 = vld [vmem:[#allocation2 + $0x2b0] sm:$0xf0]
  %v6937 = vld [vmem:[#allocation2 + $0x2b8] sm:$0xf0]
  %v6938 = vld [vmem:[#allocation2 + $0x2c0] sm:$0xf0]
  %v6939 = vld [vmem:[#allocation2 + $0x2c8] sm:$0xf0]
  %v6940 = vld [vmem:[#allocation2 + $0x2d0] sm:$0xf0]
  %v6941 = vld [vmem:[#allocation2 + $0x2d8] sm:$0x7]
  %v6942 = vld [vmem:[#allocation2 + $0x2e0] sm:$0x7]
  %v6943 = vld [vmem:[#allocation2 + $0x2e8] sm:$0x7]
  %v6944 = vld [vmem:[#allocation2 + $0x2f0] sm:$0x7]
  %v6945 = vld [vmem:[#allocation2 + $0x2f8] sm:$0x7]
  %v6946 = vld [vmem:[#allocation2 + $0x300] sm:$0x7]
  %v6947 = vld [vmem:[#allocation2 + $0x308] sm:$0x7]
  %v6948 = vld [vmem:[#allocation2 + $0x310] sm:$0xf0]
  %v6949 = vld [vmem:[#allocation2 + $0x318] sm:$0xf0]
  %v6950 = vld [vmem:[#allocation2 + $0x320] sm:$0xf0]
  %v6951 = vld [vmem:[#allocation2 + $0x328] sm:$0xf0]
  %v6952 = vld [vmem:[#allocation2 + $0x330] sm:$0xf0]
  %v6953 = vld [vmem:[#allocation2 + $0x338] sm:$0xf0]
  %v6954 = vld [vmem:[#allocation2 + $0x340] sm:$0xf0]
  %v6955 = vld [vmem:[#allocation2 + $0x348] sm:$0x7]
  %v6956 = vld [vmem:[#allocation2 + $0x350] sm:$0x7]
  %v6957 = vld [vmem:[#allocation2 + $0x358] sm:$0x7]
  %v6958 = vld [vmem:[#allocation2 + $0x360] sm:$0x7]
  %v6959 = vld [vmem:[#allocation2 + $0x368] sm:$0x7]
  %v6960 = vld [vmem:[#allocation2 + $0x370] sm:$0x7]
  %v6961 = vld [vmem:[#allocation2 + $0x378] sm:$0x7]
  %v6962 = vld [vmem:[#allocation2 + $0x380] sm:$0xf0]
  %v6963 = vld [vmem:[#allocation2 + $0x388] sm:$0xf0]
  %v6964 = vld [vmem:[#allocation2 + $0x390] sm:$0xf0]
  %v6965 = vld [vmem:[#allocation2 + $0x398] sm:$0xf0]
  %v6966 = vld [vmem:[#allocation2 + $0x3a0] sm:$0xf0]
  %v6967 = vld [vmem:[#allocation2 + $0x3a8] sm:$0xf0]
  %v6968 = vld [vmem:[#allocation2 + $0x3b0] sm:$0xf0]
  %v6969 = vld [vmem:[#allocation2 + $0x3b8] sm:$0x7]
  %v6970 = vld [vmem:[#allocation2 + $0x3c0] sm:$0x7]
  %v6971 = vld [vmem:[#allocation2 + $0x3c8] sm:$0x7]
  %v6972 = vld [vmem:[#allocation2 + $0x3d0] sm:$0x7]
  %v6973 = vld [vmem:[#allocation2 + $0x3d8] sm:$0x7]
  %v6974 = vld [vmem:[#allocation2 + $0x3e0] sm:$0x7]
  %v6975 = vld [vmem:[#allocation2 + $0x3e8] sm:$0x7]
  %v6976 = vld [vmem:[#allocation2 + $0x3f0] sm:$0xf0]
  %v6977 = vld [vmem:[#allocation2 + $0x3f8] sm:$0xf0]
  %v6978 = vld [vmem:[#allocation2 + $0x400] sm:$0xf0]
  %v6979 = vld [vmem:[#allocation2 + $0x408] sm:$0xf0]
  %v6980 = vld [vmem:[#allocation2 + $0x410] sm:$0xf0]
  %v6981 = vld [vmem:[#allocation2 + $0x418] sm:$0xf0]
  %v6982 = vld [vmem:[#allocation2 + $0x420] sm:$0xf0]
  %v6983 = vld [vmem:[#allocation2 + $0x428] sm:$0x7]
  %v6984 = vld [vmem:[#allocation2 + $0x430] sm:$0x7]
  %v6985 = vld [vmem:[#allocation2 + $0x438] sm:$0x7]
  %v6986 = vld [vmem:[#allocation2 + $0x440] sm:$0x7]
  %v6987 = vld [vmem:[#allocation2 + $0x448] sm:$0x7]
  %v6988 = vld [vmem:[#allocation2 + $0x450] sm:$0x7]
  %v6989 = vld [vmem:[#allocation2 + $0x458] sm:$0x7]
  %v6990 = vld [vmem:[#allocation2 + $0x460] sm:$0xf0]
  %v6991 = vld [vmem:[#allocation2 + $0x468] sm:$0xf0]
  %v6992 = vld [vmem:[#allocation2 + $0x470] sm:$0xf0]
  %v6993 = vld [vmem:[#allocation2 + $0x478] sm:$0xf0]
  %v6994 = vld [vmem:[#allocation2 + $0x480] sm:$0xf0]
  %v6995 = vld [vmem:[#allocation2 + $0x488] sm:$0xf0]
  %v6996 = vld [vmem:[#allocation2 + $0x490] sm:$0xf0]
  %v6997 = vld [vmem:[#allocation2 + $0x498] sm:$0x7]
  %v6998 = vld [vmem:[#allocation2 + $0x4a0] sm:$0x7]
  %v6999 = vld [vmem:[#allocation2 + $0x4a8] sm:$0x7]
  %v7000 = vld [vmem:[#allocation2 + $0x4b0] sm:$0x7]
  %v7001 = vld [vmem:[#allocation2 + $0x4b8] sm:$0x7]
  %v7002 = vld [vmem:[#allocation2 + $0x4c0] sm:$0x7]
  %v7003 = vld [vmem:[#allocation2 + $0x4c8] sm:$0x7]
  %vm7158 = vcmask 1043456
  %v7159 = vrot.slane %v6850, 4
  %v7160 = vrot.slane %v6857, 4
  %v7161 = vsel %vm7158, %v7159, %v7160
  %v7162 = vrot.slane %v6851, 4
  %v7163 = vrot.slane %v6858, 4
  %v7164 = vsel %vm7158, %v7162, %v7163
  %v7165 = vrot.slane %v6852, 4
  %v7166 = vrot.slane %v6859, 4
  %v7167 = vsel %vm7158, %v7165, %v7166
  %v7168 = vrot.slane %v6853, 4
  %v7169 = vrot.slane %v6860, 4
  %v7170 = vsel %vm7158, %v7168, %v7169
  %v7171 = vrot.slane %v6854, 4
  %v7172 = vrot.slane %v6861, 4
  %v7173 = vsel %vm7158, %v7171, %v7172
  %v7174 = vrot.slane %v6855, 4
  %v7175 = vrot.slane %v6862, 4
  %v7176 = vsel %vm7158, %v7174, %v7175
  %v7177 = vrot.slane %v6856, 4
  %v7178 = vrot.slane %v6863, 4
  %v7179 = vsel %vm7158, %v7177, %v7178
  %v7180 = vrot.slane %v6864, 4
  %v7181 = vrot.slane %v6871, 4
  %v7182 = vsel %vm7158, %v7180, %v7181
  %v7183 = vrot.slane %v6865, 4
  %v7184 = vrot.slane %v6872, 4
  %v7185 = vsel %vm7158, %v7183, %v7184
  %v7186 = vrot.slane %v6866, 4
  %v7187 = vrot.slane %v6873, 4
  %v7188 = vsel %vm7158, %v7186, %v7187
  %v7189 = vrot.slane %v6867, 4
  %v7190 = vrot.slane %v6874, 4
  %v7191 = vsel %vm7158, %v7189, %v7190
  %v7192 = vrot.slane %v6868, 4
  %v7193 = vrot.slane %v6875, 4
  %v7194 = vsel %vm7158, %v7192, %v7193
  %v7195 = vrot.slane %v6869, 4
  %v7196 = vrot.slane %v6876, 4
  %v7197 = vsel %vm7158, %v7195, %v7196
  %v7198 = vrot.slane %v6870, 4
  %v7199 = vrot.slane %v6877, 4
  %v7200 = vsel %vm7158, %v7198, %v7199
  %v7201 = vrot.slane %v6878, 4
  %v7202 = vrot.slane %v6885, 4
  %v7203 = vsel %vm7158, %v7201, %v7202
  %v7204 = vrot.slane %v6879, 4
  %v7205 = vrot.slane %v6886, 4
  %v7206 = vsel %vm7158, %v7204, %v7205
  %v7207 = vrot.slane %v6880, 4
  %v7208 = vrot.slane %v6887, 4
  %v7209 = vsel %vm7158, %v7207, %v7208
  %v7210 = vrot.slane %v6881, 4
  %v7211 = vrot.slane %v6888, 4
  %v7212 = vsel %vm7158, %v7210, %v7211
  %v7213 = vrot.slane %v6882, 4
  %v7214 = vrot.slane %v6889, 4
  %v7215 = vsel %vm7158, %v7213, %v7214
  %v7216 = vrot.slane %v6883, 4
  %v7217 = vrot.slane %v6890, 4
  %v7218 = vsel %vm7158, %v7216, %v7217
  %v7219 = vrot.slane %v6884, 4
  %v7220 = vrot.slane %v6891, 4
  %v7221 = vsel %vm7158, %v7219, %v7220
  %v7222 = vrot.slane %v6892, 4
  %v7223 = vrot.slane %v6899, 4
  %v7224 = vsel %vm7158, %v7222, %v7223
  %v7225 = vrot.slane %v6893, 4
  %v7226 = vrot.slane %v6900, 4
  %v7227 = vsel %vm7158, %v7225, %v7226
  %v7228 = vrot.slane %v6894, 4
  %v7229 = vrot.slane %v6901, 4
  %v7230 = vsel %vm7158, %v7228, %v7229
  %v7231 = vrot.slane %v6895, 4
  %v7232 = vrot.slane %v6902, 4
  %v7233 = vsel %vm7158, %v7231, %v7232
  %v7234 = vrot.slane %v6896, 4
  %v7235 = vrot.slane %v6903, 4
  %v7236 = vsel %vm7158, %v7234, %v7235
  %v7237 = vrot.slane %v6897, 4
  %v7238 = vrot.slane %v6904, 4
  %v7239 = vsel %vm7158, %v7237, %v7238
  %v7240 = vrot.slane %v6898, 4
  %v7241 = vrot.slane %v6905, 4
  %v7242 = vsel %vm7158, %v7240, %v7241
  %v7243 = vrot.slane %v6906, 4
  %v7244 = vrot.slane %v6913, 4
  %v7245 = vsel %vm7158, %v7243, %v7244
  %v7246 = vrot.slane %v6907, 4
  %v7247 = vrot.slane %v6914, 4
  %v7248 = vsel %vm7158, %v7246, %v7247
  %v7249 = vrot.slane %v6908, 4
  %v7250 = vrot.slane %v6915, 4
  %v7251 = vsel %vm7158, %v7249, %v7250
  %v7252 = vrot.slane %v6909, 4
  %v7253 = vrot.slane %v6916, 4
  %v7254 = vsel %vm7158, %v7252, %v7253
  %v7255 = vrot.slane %v6910, 4
  %v7256 = vrot.slane %v6917, 4
  %v7257 = vsel %vm7158, %v7255, %v7256
  %v7258 = vrot.slane %v6911, 4
  %v7259 = vrot.slane %v6918, 4
  %v7260 = vsel %vm7158, %v7258, %v7259
  %v7261 = vrot.slane %v6912, 4
  %v7262 = vrot.slane %v6919, 4
  %v7263 = vsel %vm7158, %v7261, %v7262
  %v7264 = vrot.slane %v6920, 4
  %v7265 = vrot.slane %v6927, 4
  %v7266 = vsel %vm7158, %v7264, %v7265
  %v7267 = vrot.slane %v6921, 4
  %v7268 = vrot.slane %v6928, 4
  %v7269 = vsel %vm7158, %v7267, %v7268
  %v7270 = vrot.slane %v6922, 4
  %v7271 = vrot.slane %v6929, 4
  %v7272 = vsel %vm7158, %v7270, %v7271
  %v7273 = vrot.slane %v6923, 4
  %v7274 = vrot.slane %v6930, 4
  %v7275 = vsel %vm7158, %v7273, %v7274
  %v7276 = vrot.slane %v6924, 4
  %v7277 = vrot.slane %v6931, 4
  %v7278 = vsel %vm7158, %v7276, %v7277
  %v7279 = vrot.slane %v6925, 4
  %v7280 = vrot.slane %v6932, 4
  %v7281 = vsel %vm7158, %v7279, %v7280
  %v7282 = vrot.slane %v6926, 4
  %v7283 = vrot.slane %v6933, 4
  %v7284 = vsel %vm7158, %v7282, %v7283
  %v7285 = vrot.slane %v6934, 4
  %v7286 = vrot.slane %v6941, 4
  %v7287 = vsel %vm7158, %v7285, %v7286
  %v7288 = vrot.slane %v6935, 4
  %v7289 = vrot.slane %v6942, 4
  %v7290 = vsel %vm7158, %v7288, %v7289
  %v7291 = vrot.slane %v6936, 4
  %v7292 = vrot.slane %v6943, 4
  %v7293 = vsel %vm7158, %v7291, %v7292
  %v7294 = vrot.slane %v6937, 4
  %v7295 = vrot.slane %v6944, 4
  %v7296 = vsel %vm7158, %v7294, %v7295
  %v7297 = vrot.slane %v6938, 4
  %v7298 = vrot.slane %v6945, 4
  %v7299 = vsel %vm7158, %v7297, %v7298
  %v7300 = vrot.slane %v6939, 4
  %v7301 = vrot.slane %v6946, 4
  %v7302 = vsel %vm7158, %v7300, %v7301
  %v7303 = vrot.slane %v6940, 4
  %v7304 = vrot.slane %v6947, 4
  %v7305 = vsel %vm7158, %v7303, %v7304
  %v7306 = vrot.slane %v6948, 4
  %v7307 = vrot.slane %v6955, 4
  %v7308 = vsel %vm7158, %v7306, %v7307
  %v7309 = vrot.slane %v6949, 4
  %v7310 = vrot.slane %v6956, 4
  %v7311 = vsel %vm7158, %v7309, %v7310
  %v7312 = vrot.slane %v6950, 4
  %v7313 = vrot.slane %v6957, 4
  %v7314 = vsel %vm7158, %v7312, %v7313
  %v7315 = vrot.slane %v6951, 4
  %v7316 = vrot.slane %v6958, 4
  %v7317 = vsel %vm7158, %v7315, %v7316
  %v7318 = vrot.slane %v6952, 4
  %v7319 = vrot.slane %v6959, 4
  %v7320 = vsel %vm7158, %v7318, %v7319
  %v7321 = vrot.slane %v6953, 4
  %v7322 = vrot.slane %v6960, 4
  %v7323 = vsel %vm7158, %v7321, %v7322
  %v7324 = vrot.slane %v6954, 4
  %v7325 = vrot.slane %v6961, 4
  %v7326 = vsel %vm7158, %v7324, %v7325
  %v7327 = vrot.slane %v6962, 4
  %v7328 = vrot.slane %v6969, 4
  %v7329 = vsel %vm7158, %v7327, %v7328
  %v7330 = vrot.slane %v6963, 4
  %v7331 = vrot.slane %v6970, 4
  %v7332 = vsel %vm7158, %v7330, %v7331
  %v7333 = vrot.slane %v6964, 4
  %v7334 = vrot.slane %v6971, 4
  %v7335 = vsel %vm7158, %v7333, %v7334
  %v7336 = vrot.slane %v6965, 4
  %v7337 = vrot.slane %v6972, 4
  %v7338 = vsel %vm7158, %v7336, %v7337
  %v7339 = vrot.slane %v6966, 4
  %v7340 = vrot.slane %v6973, 4
  %v7341 = vsel %vm7158, %v7339, %v7340
  %v7342 = vrot.slane %v6967, 4
  %v7343 = vrot.slane %v6974, 4
  %v7344 = vsel %vm7158, %v7342, %v7343
  %v7345 = vrot.slane %v6968, 4
  %v7346 = vrot.slane %v6975, 4
  %v7347 = vsel %vm7158, %v7345, %v7346
  %v7348 = vrot.slane %v6976, 4
  %v7349 = vrot.slane %v6983, 4
  %v7350 = vsel %vm7158, %v7348, %v7349
  %v7351 = vrot.slane %v6977, 4
  %v7352 = vrot.slane %v6984, 4
  %v7353 = vsel %vm7158, %v7351, %v7352
  %v7354 = vrot.slane %v6978, 4
  %v7355 = vrot.slane %v6985, 4
  %v7356 = vsel %vm7158, %v7354, %v7355
  %v7357 = vrot.slane %v6979, 4
  %v7358 = vrot.slane %v6986, 4
  %v7359 = vsel %vm7158, %v7357, %v7358
  %v7360 = vrot.slane %v6980, 4
  %v7361 = vrot.slane %v6987, 4
  %v7362 = vsel %vm7158, %v7360, %v7361
  %v7363 = vrot.slane %v6981, 4
  %v7364 = vrot.slane %v6988, 4
  %v7365 = vsel %vm7158, %v7363, %v7364
  %v7366 = vrot.slane %v6982, 4
  %v7367 = vrot.slane %v6989, 4
  %v7368 = vsel %vm7158, %v7366, %v7367
  %v7369 = vrot.slane %v6990, 4
  %v7370 = vrot.slane %v6997, 4
  %v7371 = vsel %vm7158, %v7369, %v7370
  %v7372 = vrot.slane %v6991, 4
  %v7373 = vrot.slane %v6998, 4
  %v7374 = vsel %vm7158, %v7372, %v7373
  %v7375 = vrot.slane %v6992, 4
  %v7376 = vrot.slane %v6999, 4
  %v7377 = vsel %vm7158, %v7375, %v7376
  %v7378 = vrot.slane %v6993, 4
  %v7379 = vrot.slane %v7000, 4
  %v7380 = vsel %vm7158, %v7378, %v7379
  %v7381 = vrot.slane %v6994, 4
  %v7382 = vrot.slane %v7001, 4
  %v7383 = vsel %vm7158, %v7381, %v7382
  %v7384 = vrot.slane %v6995, 4
  %v7385 = vrot.slane %v7002, 4
  %v7386 = vsel %vm7158, %v7384, %v7385
  %v7387 = vrot.slane %v6996, 4
  %v7388 = vrot.slane %v7003, 4
  %v7389 = vsel %vm7158, %v7387, %v7388
  %7467 = vst [vmem:[#allocation3] sm:$0x7f] %v7161
  %7468 = vst [vmem:[#allocation3 + $0x8] sm:$0x7f] %v7164
  %7469 = vst [vmem:[#allocation3 + $0x10] sm:$0x7f] %v7167
  %7470 = vst [vmem:[#allocation3 + $0x18] sm:$0x7f] %v7170
  %7471 = vst [vmem:[#allocation3 + $0x20] sm:$0x7f] %v7173
  %7472 = vst [vmem:[#allocation3 + $0x28] sm:$0x7f] %v7176
  %7473 = vst.msk [vmem:[#allocation3 + $0x30] sm:$0x7f] %vm187, %v7179
  %7474 = vst [vmem:[#allocation3 + $0x38] sm:$0x7f] %v7182
  %7475 = vst [vmem:[#allocation3 + $0x40] sm:$0x7f] %v7185
  %7476 = vst [vmem:[#allocation3 + $0x48] sm:$0x7f] %v7188
  %7477 = vst [vmem:[#allocation3 + $0x50] sm:$0x7f] %v7191
  %7478 = vst [vmem:[#allocation3 + $0x58] sm:$0x7f] %v7194
  %7479 = vst [vmem:[#allocation3 + $0x60] sm:$0x7f] %v7197
  %7480 = vst.msk [vmem:[#allocation3 + $0x68] sm:$0x7f] %vm187, %v7200
  %7481 = vst [vmem:[#allocation3 + $0x70] sm:$0x7f] %v7203
  %7482 = vst [vmem:[#allocation3 + $0x78] sm:$0x7f] %v7206
  %7483 = vst [vmem:[#allocation3 + $0x80] sm:$0x7f] %v7209
  %7484 = vst [vmem:[#allocation3 + $0x88] sm:$0x7f] %v7212
  %7485 = vst [vmem:[#allocation3 + $0x90] sm:$0x7f] %v7215
  %7486 = vst [vmem:[#allocation3 + $0x98] sm:$0x7f] %v7218
  %7487 = vst.msk [vmem:[#allocation3 + $0xa0] sm:$0x7f] %vm187, %v7221
  %7488 = vst [vmem:[#allocation3 + $0xa8] sm:$0x7f] %v7224
  %7489 = vst [vmem:[#allocation3 + $0xb0] sm:$0x7f] %v7227
  %7490 = vst [vmem:[#allocation3 + $0xb8] sm:$0x7f] %v7230
  %7491 = vst [vmem:[#allocation3 + $0xc0] sm:$0x7f] %v7233
  %7492 = vst [vmem:[#allocation3 + $0xc8] sm:$0x7f] %v7236
  %7493 = vst [vmem:[#allocation3 + $0xd0] sm:$0x7f] %v7239
  %7494 = vst.msk [vmem:[#allocation3 + $0xd8] sm:$0x7f] %vm187, %v7242
  %7495 = vst [vmem:[#allocation3 + $0xe0] sm:$0x7f] %v7245
  %7496 = vst [vmem:[#allocation3 + $0xe8] sm:$0x7f] %v7248
  %7497 = vst [vmem:[#allocation3 + $0xf0] sm:$0x7f] %v7251
  %7498 = vst [vmem:[#allocation3 + $0xf8] sm:$0x7f] %v7254
  %7499 = vst [vmem:[#allocation3 + $0x100] sm:$0x7f] %v7257
  %7500 = vst [vmem:[#allocation3 + $0x108] sm:$0x7f] %v7260
  %7501 = vst.msk [vmem:[#allocation3 + $0x110] sm:$0x7f] %vm187, %v7263
  %7502 = vst [vmem:[#allocation3 + $0x118] sm:$0x7f] %v7266
  %7503 = vst [vmem:[#allocation3 + $0x120] sm:$0x7f] %v7269
  %7504 = vst [vmem:[#allocation3 + $0x128] sm:$0x7f] %v7272
  %7505 = vst [vmem:[#allocation3 + $0x130] sm:$0x7f] %v7275
  %7506 = vst [vmem:[#allocation3 + $0x138] sm:$0x7f] %v7278
  %7507 = vst [vmem:[#allocation3 + $0x140] sm:$0x7f] %v7281
  %7508 = vst.msk [vmem:[#allocation3 + $0x148] sm:$0x7f] %vm187, %v7284
  %7509 = vst [vmem:[#allocation3 + $0x150] sm:$0x7f] %v7287
  %7510 = vst [vmem:[#allocation3 + $0x158] sm:$0x7f] %v7290
  %7511 = vst [vmem:[#allocation3 + $0x160] sm:$0x7f] %v7293
  %7512 = vst [vmem:[#allocation3 + $0x168] sm:$0x7f] %v7296
  %7513 = vst [vmem:[#allocation3 + $0x170] sm:$0x7f] %v7299
  %7514 = vst [vmem:[#allocation3 + $0x178] sm:$0x7f] %v7302
  %7515 = vst.msk [vmem:[#allocation3 + $0x180] sm:$0x7f] %vm187, %v7305
  %7516 = vst [vmem:[#allocation3 + $0x188] sm:$0x7f] %v7308
  %7517 = vst [vmem:[#allocation3 + $0x190] sm:$0x7f] %v7311
  %7518 = vst [vmem:[#allocation3 + $0x198] sm:$0x7f] %v7314
  %7519 = vst [vmem:[#allocation3 + $0x1a0] sm:$0x7f] %v7317
  %7520 = vst [vmem:[#allocation3 + $0x1a8] sm:$0x7f] %v7320
  %7521 = vst [vmem:[#allocation3 + $0x1b0] sm:$0x7f] %v7323
  %7522 = vst.msk [vmem:[#allocation3 + $0x1b8] sm:$0x7f] %vm187, %v7326
  %7523 = vst [vmem:[#allocation3 + $0x1c0] sm:$0x7f] %v7329
  %7524 = vst [vmem:[#allocation3 + $0x1c8] sm:$0x7f] %v7332
  %7525 = vst [vmem:[#allocation3 + $0x1d0] sm:$0x7f] %v7335
  %7526 = vst [vmem:[#allocation3 + $0x1d8] sm:$0x7f] %v7338
  %7527 = vst [vmem:[#allocation3 + $0x1e0] sm:$0x7f] %v7341
  %7528 = vst [vmem:[#allocation3 + $0x1e8] sm:$0x7f] %v7344
  %7529 = vst.msk [vmem:[#allocation3 + $0x1f0] sm:$0x7f] %vm187, %v7347
  %7530 = vst [vmem:[#allocation3 + $0x1f8] sm:$0x7f] %v7350
  %7531 = vst [vmem:[#allocation3 + $0x200] sm:$0x7f] %v7353
  %7532 = vst [vmem:[#allocation3 + $0x208] sm:$0x7f] %v7356
  %7533 = vst [vmem:[#allocation3 + $0x210] sm:$0x7f] %v7359
  %7534 = vst [vmem:[#allocation3 + $0x218] sm:$0x7f] %v7362
  %7535 = vst [vmem:[#allocation3 + $0x220] sm:$0x7f] %v7365
  %7536 = vst.msk [vmem:[#allocation3 + $0x228] sm:$0x7f] %vm187, %v7368
  %7537 = vst [vmem:[#allocation3 + $0x230] sm:$0x7f] %v7371
  %7538 = vst [vmem:[#allocation3 + $0x238] sm:$0x7f] %v7374
  %7539 = vst [vmem:[#allocation3 + $0x240] sm:$0x7f] %v7377
  %7540 = vst [vmem:[#allocation3 + $0x248] sm:$0x7f] %v7380
  %7541 = vst [vmem:[#allocation3 + $0x250] sm:$0x7f] %v7383
  %7542 = vst [vmem:[#allocation3 + $0x258] sm:$0x7f] %v7386
  %7543 = vst.msk [vmem:[#allocation3 + $0x260] sm:$0x7f] %vm187, %v7389
  %s7544 = scalar_lea.vmem %s3, 4
  %v7545 = vld [vmem:[%s7544] ss:$8 sm:$0xf]
  %v7546 = vld [vmem:[%s7544] ss:$8 sm:$0x70]
  %v7547 = vor.u32 %v7545, %v7546
  %v7548 = vld [vmem:[#allocation3] sm:$0x7f]
  %v7549 = vld [vmem:[#allocation3 + $0x8] sm:$0x7f]
  %v7550 = vld [vmem:[#allocation3 + $0x10] sm:$0x7f]
  %v7551 = vld [vmem:[#allocation3 + $0x18] sm:$0x7f]
  %v7552 = vld [vmem:[#allocation3 + $0x20] sm:$0x7f]
  %v7553 = vld [vmem:[#allocation3 + $0x28] sm:$0x7f]
  %v7554 = vld [vmem:[#allocation3 + $0x30] sm:$0x7f]
  %v7555 = vld [vmem:[#allocation3 + $0x38] sm:$0x7f]
  %v7556 = vld [vmem:[#allocation3 + $0x40] sm:$0x7f]
  %v7557 = vld [vmem:[#allocation3 + $0x48] sm:$0x7f]
  %v7558 = vld [vmem:[#allocation3 + $0x50] sm:$0x7f]
  %v7559 = vld [vmem:[#allocation3 + $0x58] sm:$0x7f]
  %v7560 = vld [vmem:[#allocation3 + $0x60] sm:$0x7f]
  %v7561 = vld [vmem:[#allocation3 + $0x68] sm:$0x7f]
  %v7562 = vld [vmem:[#allocation3 + $0x70] sm:$0x7f]
  %v7563 = vld [vmem:[#allocation3 + $0x78] sm:$0x7f]
  %v7564 = vld [vmem:[#allocation3 + $0x80] sm:$0x7f]
  %v7565 = vld [vmem:[#allocation3 + $0x88] sm:$0x7f]
  %v7566 = vld [vmem:[#allocation3 + $0x90] sm:$0x7f]
  %v7567 = vld [vmem:[#allocation3 + $0x98] sm:$0x7f]
  %v7568 = vld [vmem:[#allocation3 + $0xa0] sm:$0x7f]
  %v7569 = vld [vmem:[#allocation3 + $0xa8] sm:$0x7f]
  %v7570 = vld [vmem:[#allocation3 + $0xb0] sm:$0x7f]
  %v7571 = vld [vmem:[#allocation3 + $0xb8] sm:$0x7f]
  %v7572 = vld [vmem:[#allocation3 + $0xc0] sm:$0x7f]
  %v7573 = vld [vmem:[#allocation3 + $0xc8] sm:$0x7f]
  %v7574 = vld [vmem:[#allocation3 + $0xd0] sm:$0x7f]
  %v7575 = vld [vmem:[#allocation3 + $0xd8] sm:$0x7f]
  %v7576 = vld [vmem:[#allocation3 + $0xe0] sm:$0x7f]
  %v7577 = vld [vmem:[#allocation3 + $0xe8] sm:$0x7f]
  %v7578 = vld [vmem:[#allocation3 + $0xf0] sm:$0x7f]
  %v7579 = vld [vmem:[#allocation3 + $0xf8] sm:$0x7f]
  %v7580 = vld [vmem:[#allocation3 + $0x100] sm:$0x7f]
  %v7581 = vld [vmem:[#allocation3 + $0x108] sm:$0x7f]
  %v7582 = vld [vmem:[#allocation3 + $0x110] sm:$0x7f]
  %v7583 = vld [vmem:[#allocation3 + $0x118] sm:$0x7f]
  %v7584 = vld [vmem:[#allocation3 + $0x120] sm:$0x7f]
  %v7585 = vld [vmem:[#allocation3 + $0x128] sm:$0x7f]
  %v7586 = vld [vmem:[#allocation3 + $0x130] sm:$0x7f]
  %v7587 = vld [vmem:[#allocation3 + $0x138] sm:$0x7f]
  %v7588 = vld [vmem:[#allocation3 + $0x140] sm:$0x7f]
  %v7589 = vld [vmem:[#allocation3 + $0x148] sm:$0x7f]
  %v7590 = vld [vmem:[#allocation3 + $0x150] sm:$0x7f]
  %v7591 = vld [vmem:[#allocation3 + $0x158] sm:$0x7f]
  %v7592 = vld [vmem:[#allocation3 + $0x160] sm:$0x7f]
  %v7593 = vld [vmem:[#allocation3 + $0x168] sm:$0x7f]
  %v7594 = vld [vmem:[#allocation3 + $0x170] sm:$0x7f]
  %v7595 = vld [vmem:[#allocation3 + $0x178] sm:$0x7f]
  %v7596 = vld [vmem:[#allocation3 + $0x180] sm:$0x7f]
  %v7598 = vlaneseq
  %v7599 = vshrl.u32 %v7598, 7
  %v7600 = vsub.s32 0, %v7599
  %v7601 = vrot.slane %v7547, %v7600
  %v7602 = vlaneseq
  %v7603 = vshrl.u32 %v7602, 7
  %v7604 = vsub.s32 1, %v7603
  %v7605 = vrot.slane %v7547, %v7604
  %v7606 = vlaneseq
  %v7607 = vshrl.u32 %v7606, 7
  %v7608 = vsub.s32 2, %v7607
  %v7609 = vrot.slane %v7547, %v7608
  %v7610 = vlaneseq
  %v7611 = vshrl.u32 %v7610, 7
  %v7612 = vsub.s32 3, %v7611
  %v7613 = vrot.slane %v7547, %v7612
  %v7614 = vlaneseq
  %v7615 = vshrl.u32 %v7614, 7
  %v7616 = vsub.s32 4, %v7615
  %v7617 = vrot.slane %v7547, %v7616
  %v7618 = vlaneseq
  %v7619 = vshrl.u32 %v7618, 7
  %v7620 = vsub.s32 5, %v7619
  %v7621 = vrot.slane %v7547, %v7620
  %v7622 = vlaneseq
  %v7623 = vshrl.u32 %v7622, 7
  %v7624 = vsub.s32 6, %v7623
  %v7625 = vrot.slane %v7547, %v7624
  %v7633 = vmul.f32 %v7548, %v7601
  %v7634 = vmul.f32 %v7549, %v7605
  %v7635 = vmul.f32 %v7550, %v7609
  %v7636 = vmul.f32 %v7551, %v7613
  %v7637 = vmul.f32 %v7552, %v7617
  %v7638 = vmul.f32 %v7553, %v7621
  %v7639 = vmul.f32 %v7554, %v7625
  %v7640 = vmul.f32 %v7555, %v7601
  %v7641 = vmul.f32 %v7556, %v7605
  %v7642 = vmul.f32 %v7557, %v7609
  %v7643 = vmul.f32 %v7558, %v7613
  %v7644 = vmul.f32 %v7559, %v7617
  %v7645 = vmul.f32 %v7560, %v7621
  %v7646 = vmul.f32 %v7561, %v7625
  %v7647 = vmul.f32 %v7562, %v7601
  %v7648 = vmul.f32 %v7563, %v7605
  %v7649 = vmul.f32 %v7564, %v7609
  %v7650 = vmul.f32 %v7565, %v7613
  %v7651 = vmul.f32 %v7566, %v7617
  %v7652 = vmul.f32 %v7567, %v7621
  %v7653 = vmul.f32 %v7568, %v7625
  %v7654 = vmul.f32 %v7569, %v7601
  %v7655 = vmul.f32 %v7570, %v7605
  %v7656 = vmul.f32 %v7571, %v7609
  %v7657 = vmul.f32 %v7572, %v7613
  %v7658 = vmul.f32 %v7573, %v7617
  %v7659 = vmul.f32 %v7574, %v7621
  %v7660 = vmul.f32 %v7575, %v7625
  %v7661 = vmul.f32 %v7576, %v7601
  %v7662 = vmul.f32 %v7577, %v7605
  %v7663 = vmul.f32 %v7578, %v7609
  %v7664 = vmul.f32 %v7579, %v7613
  %v7665 = vmul.f32 %v7580, %v7617
  %v7666 = vmul.f32 %v7581, %v7621
  %v7667 = vmul.f32 %v7582, %v7625
  %v7668 = vmul.f32 %v7583, %v7601
  %v7669 = vmul.f32 %v7584, %v7605
  %v7670 = vmul.f32 %v7585, %v7609
  %v7671 = vmul.f32 %v7586, %v7613
  %v7672 = vmul.f32 %v7587, %v7617
  %v7673 = vmul.f32 %v7588, %v7621
  %v7674 = vmul.f32 %v7589, %v7625
  %v7675 = vmul.f32 %v7590, %v7601
  %v7676 = vmul.f32 %v7591, %v7605
  %v7677 = vmul.f32 %v7592, %v7609
  %v7678 = vmul.f32 %v7593, %v7613
  %v7679 = vmul.f32 %v7594, %v7617
  %v7680 = vmul.f32 %v7595, %v7621
  %v7681 = vmul.f32 %v7596, %v7625
  %v7682 = vadd.f32 %v6801, %v7633
  %v7683 = vadd.f32 %v6802, %v7634
  %v7684 = vadd.f32 %v6803, %v7635
  %v7685 = vadd.f32 %v6804, %v7636
  %v7686 = vadd.f32 %v6805, %v7637
  %v7687 = vadd.f32 %v6806, %v7638
  %v7688 = vadd.f32 %v6807, %v7639
  %v7689 = vadd.f32 %v6808, %v7640
  %v7690 = vadd.f32 %v6809, %v7641
  %v7691 = vadd.f32 %v6810, %v7642
  %v7692 = vadd.f32 %v6811, %v7643
  %v7693 = vadd.f32 %v6812, %v7644
  %v7694 = vadd.f32 %v6813, %v7645
  %v7695 = vadd.f32 %v6814, %v7646
  %v7696 = vadd.f32 %v6815, %v7647
  %v7697 = vadd.f32 %v6816, %v7648
  %v7698 = vadd.f32 %v6817, %v7649
  %v7699 = vadd.f32 %v6818, %v7650
  %v7700 = vadd.f32 %v6819, %v7651
  %v7701 = vadd.f32 %v6820, %v7652
  %v7702 = vadd.f32 %v6821, %v7653
  %v7703 = vadd.f32 %v6822, %v7654
  %v7704 = vadd.f32 %v6823, %v7655
  %v7705 = vadd.f32 %v6824, %v7656
  %v7706 = vadd.f32 %v6825, %v7657
  %v7707 = vadd.f32 %v6826, %v7658
  %v7708 = vadd.f32 %v6827, %v7659
  %v7709 = vadd.f32 %v6828, %v7660
  %v7710 = vadd.f32 %v6829, %v7661
  %v7711 = vadd.f32 %v6830, %v7662
  %v7712 = vadd.f32 %v6831, %v7663
  %v7713 = vadd.f32 %v6832, %v7664
  %v7714 = vadd.f32 %v6833, %v7665
  %v7715 = vadd.f32 %v6834, %v7666
  %v7716 = vadd.f32 %v6835, %v7667
  %v7717 = vadd.f32 %v6836, %v7668
  %v7718 = vadd.f32 %v6837, %v7669
  %v7719 = vadd.f32 %v6838, %v7670
  %v7720 = vadd.f32 %v6839, %v7671
  %v7721 = vadd.f32 %v6840, %v7672
  %v7722 = vadd.f32 %v6841, %v7673
  %v7723 = vadd.f32 %v6842, %v7674
  %v7724 = vadd.f32 %v6843, %v7675
  %v7725 = vadd.f32 %v6844, %v7676
  %v7726 = vadd.f32 %v6845, %v7677
  %v7727 = vadd.f32 %v6846, %v7678
  %v7728 = vadd.f32 %v6847, %v7679
  %v7729 = vadd.f32 %v6848, %v7680
  %v7730 = vadd.f32 %v6849, %v7681
  %s7731 = scalar_lea.vmem %s3, 57
  %v7732 = vld [vmem:[%s7731] ss:$8 sm:$0xf]
  %v7733 = vld [vmem:[%s7731] ss:$8 sm:$0x70]
  %v7734 = vor.u32 %v7732, %v7733
  %v7735 = vld [vmem:[%s1524] sm:$0x7f]
  %v7736 = vld [vmem:[%s1524 + $0x8] sm:$0x7f]
  %v7737 = vld [vmem:[%s1524 + $0x10] sm:$0x7f]
  %v7738 = vld [vmem:[%s1524 + $0x18] sm:$0x7f]
  %v7739 = vld [vmem:[%s1524 + $0x20] sm:$0x7f]
  %v7740 = vld [vmem:[%s1524 + $0x28] sm:$0x7f]
  %v7741 = vld [vmem:[%s1524 + $0x30] sm:$0x7f]
  %v7742 = vld [vmem:[%s1524 + $0x38] sm:$0x7f]
  %v7743 = vld [vmem:[%s1524 + $0x40] sm:$0x7f]
  %v7744 = vld [vmem:[%s1524 + $0x48] sm:$0x7f]
  %v7745 = vld [vmem:[%s1524 + $0x50] sm:$0x7f]
  %v7746 = vld [vmem:[%s1524 + $0x58] sm:$0x7f]
  %v7747 = vld [vmem:[%s1524 + $0x60] sm:$0x7f]
  %v7748 = vld [vmem:[%s1524 + $0x68] sm:$0x7f]
  %v7749 = vld [vmem:[%s1524 + $0x70] sm:$0x7f]
  %v7750 = vld [vmem:[%s1524 + $0x78] sm:$0x7f]
  %v7751 = vld [vmem:[%s1524 + $0x80] sm:$0x7f]
  %v7752 = vld [vmem:[%s1524 + $0x88] sm:$0x7f]
  %v7753 = vld [vmem:[%s1524 + $0x90] sm:$0x7f]
  %v7754 = vld [vmem:[%s1524 + $0x98] sm:$0x7f]
  %v7755 = vld [vmem:[%s1524 + $0xa0] sm:$0x7f]
  %v7756 = vld [vmem:[%s1524 + $0xa8] sm:$0x7f]
  %v7757 = vld [vmem:[%s1524 + $0xb0] sm:$0x7f]
  %v7758 = vld [vmem:[%s1524 + $0xb8] sm:$0x7f]
  %v7759 = vld [vmem:[%s1524 + $0xc0] sm:$0x7f]
  %v7760 = vld [vmem:[%s1524 + $0xc8] sm:$0x7f]
  %v7761 = vld [vmem:[%s1524 + $0xd0] sm:$0x7f]
  %v7762 = vld [vmem:[%s1524 + $0xd8] sm:$0x7f]
  %v7763 = vld [vmem:[%s1524 + $0xe0] sm:$0x7f]
  %v7764 = vld [vmem:[%s1524 + $0xe8] sm:$0x7f]
  %v7765 = vld [vmem:[%s1524 + $0xf0] sm:$0x7f]
  %v7766 = vld [vmem:[%s1524 + $0xf8] sm:$0x7f]
  %v7767 = vld [vmem:[%s1524 + $0x100] sm:$0x7f]
  %v7768 = vld [vmem:[%s1524 + $0x108] sm:$0x7f]
  %v7769 = vld [vmem:[%s1524 + $0x110] sm:$0x7f]
  %v7770 = vld [vmem:[%s1524 + $0x118] sm:$0x7f]
  %v7771 = vld [vmem:[%s1524 + $0x120] sm:$0x7f]
  %v7772 = vld [vmem:[%s1524 + $0x128] sm:$0x7f]
  %v7773 = vld [vmem:[%s1524 + $0x130] sm:$0x7f]
  %v7774 = vld [vmem:[%s1524 + $0x138] sm:$0x7f]
  %v7775 = vld [vmem:[%s1524 + $0x140] sm:$0x7f]
  %v7776 = vld [vmem:[%s1524 + $0x148] sm:$0x7f]
  %v7777 = vld [vmem:[%s1524 + $0x150] sm:$0x7f]
  %v7778 = vld [vmem:[%s1524 + $0x158] sm:$0x7f]
  %v7779 = vld [vmem:[%s1524 + $0x160] sm:$0x7f]
  %v7780 = vld [vmem:[%s1524 + $0x168] sm:$0x7f]
  %v7781 = vld [vmem:[%s1524 + $0x170] sm:$0x7f]
  %v7782 = vld [vmem:[%s1524 + $0x178] sm:$0x7f]
  %v7783 = vld [vmem:[%s1524 + $0x180] sm:$0x7f]
  %v7785 = vlaneseq
  %v7786 = vshrl.u32 %v7785, 7
  %v7787 = vsub.s32 0, %v7786
  %v7788 = vrot.slane %v7734, %v7787
  %v7789 = vlaneseq
  %v7790 = vshrl.u32 %v7789, 7
  %v7791 = vsub.s32 1, %v7790
  %v7792 = vrot.slane %v7734, %v7791
  %v7793 = vlaneseq
  %v7794 = vshrl.u32 %v7793, 7
  %v7795 = vsub.s32 2, %v7794
  %v7796 = vrot.slane %v7734, %v7795
  %v7797 = vlaneseq
  %v7798 = vshrl.u32 %v7797, 7
  %v7799 = vsub.s32 3, %v7798
  %v7800 = vrot.slane %v7734, %v7799
  %v7801 = vlaneseq
  %v7802 = vshrl.u32 %v7801, 7
  %v7803 = vsub.s32 4, %v7802
  %v7804 = vrot.slane %v7734, %v7803
  %v7805 = vlaneseq
  %v7806 = vshrl.u32 %v7805, 7
  %v7807 = vsub.s32 5, %v7806
  %v7808 = vrot.slane %v7734, %v7807
  %v7809 = vlaneseq
  %v7810 = vshrl.u32 %v7809, 7
  %v7811 = vsub.s32 6, %v7810
  %v7812 = vrot.slane %v7734, %v7811
  %v7820 = vmul.f32 %v7735, %v7788
  %v7821 = vmul.f32 %v7736, %v7792
  %v7822 = vmul.f32 %v7737, %v7796
  %v7823 = vmul.f32 %v7738, %v7800
  %v7824 = vmul.f32 %v7739, %v7804
  %v7825 = vmul.f32 %v7740, %v7808
  %v7826 = vmul.f32 %v7741, %v7812
  %v7827 = vmul.f32 %v7742, %v7788
  %v7828 = vmul.f32 %v7743, %v7792
  %v7829 = vmul.f32 %v7744, %v7796
  %v7830 = vmul.f32 %v7745, %v7800
  %v7831 = vmul.f32 %v7746, %v7804
  %v7832 = vmul.f32 %v7747, %v7808
  %v7833 = vmul.f32 %v7748, %v7812
  %v7834 = vmul.f32 %v7749, %v7788
  %v7835 = vmul.f32 %v7750, %v7792
  %v7836 = vmul.f32 %v7751, %v7796
  %v7837 = vmul.f32 %v7752, %v7800
  %v7838 = vmul.f32 %v7753, %v7804
  %v7839 = vmul.f32 %v7754, %v7808
  %v7840 = vmul.f32 %v7755, %v7812
  %v7841 = vmul.f32 %v7756, %v7788
  %v7842 = vmul.f32 %v7757, %v7792
  %v7843 = vmul.f32 %v7758, %v7796
  %v7844 = vmul.f32 %v7759, %v7800
  %v7845 = vmul.f32 %v7760, %v7804
  %v7846 = vmul.f32 %v7761, %v7808
  %v7847 = vmul.f32 %v7762, %v7812
  %v7848 = vmul.f32 %v7763, %v7788
  %v7849 = vmul.f32 %v7764, %v7792
  %v7850 = vmul.f32 %v7765, %v7796
  %v7851 = vmul.f32 %v7766, %v7800
  %v7852 = vmul.f32 %v7767, %v7804
  %v7853 = vmul.f32 %v7768, %v7808
  %v7854 = vmul.f32 %v7769, %v7812
  %v7855 = vmul.f32 %v7770, %v7788
  %v7856 = vmul.f32 %v7771, %v7792
  %v7857 = vmul.f32 %v7772, %v7796
  %v7858 = vmul.f32 %v7773, %v7800
  %v7859 = vmul.f32 %v7774, %v7804
  %v7860 = vmul.f32 %v7775, %v7808
  %v7861 = vmul.f32 %v7776, %v7812
  %v7862 = vmul.f32 %v7777, %v7788
  %v7863 = vmul.f32 %v7778, %v7792
  %v7864 = vmul.f32 %v7779, %v7796
  %v7865 = vmul.f32 %v7780, %v7800
  %v7866 = vmul.f32 %v7781, %v7804
  %v7867 = vmul.f32 %v7782, %v7808
  %v7868 = vmul.f32 %v7783, %v7812
  %v7869 = vadd.f32 %v7682, %v7820
  %v7870 = vadd.f32 %v7683, %v7821
  %v7871 = vadd.f32 %v7684, %v7822
  %v7872 = vadd.f32 %v7685, %v7823
  %v7873 = vadd.f32 %v7686, %v7824
  %v7874 = vadd.f32 %v7687, %v7825
  %v7875 = vadd.f32 %v7688, %v7826
  %v7876 = vadd.f32 %v7689, %v7827
  %v7877 = vadd.f32 %v7690, %v7828
  %v7878 = vadd.f32 %v7691, %v7829
  %v7879 = vadd.f32 %v7692, %v7830
  %v7880 = vadd.f32 %v7693, %v7831
  %v7881 = vadd.f32 %v7694, %v7832
  %v7882 = vadd.f32 %v7695, %v7833
  %v7883 = vadd.f32 %v7696, %v7834
  %v7884 = vadd.f32 %v7697, %v7835
  %v7885 = vadd.f32 %v7698, %v7836
  %v7886 = vadd.f32 %v7699, %v7837
  %v7887 = vadd.f32 %v7700, %v7838
  %v7888 = vadd.f32 %v7701, %v7839
  %v7889 = vadd.f32 %v7702, %v7840
  %v7890 = vadd.f32 %v7703, %v7841
  %v7891 = vadd.f32 %v7704, %v7842
  %v7892 = vadd.f32 %v7705, %v7843
  %v7893 = vadd.f32 %v7706, %v7844
  %v7894 = vadd.f32 %v7707, %v7845
  %v7895 = vadd.f32 %v7708, %v7846
  %v7896 = vadd.f32 %v7709, %v7847
  %v7897 = vadd.f32 %v7710, %v7848
  %v7898 = vadd.f32 %v7711, %v7849
  %v7899 = vadd.f32 %v7712, %v7850
  %v7900 = vadd.f32 %v7713, %v7851
  %v7901 = vadd.f32 %v7714, %v7852
  %v7902 = vadd.f32 %v7715, %v7853
  %v7903 = vadd.f32 %v7716, %v7854
  %v7904 = vadd.f32 %v7717, %v7855
  %v7905 = vadd.f32 %v7718, %v7856
  %v7906 = vadd.f32 %v7719, %v7857
  %v7907 = vadd.f32 %v7720, %v7858
  %v7908 = vadd.f32 %v7721, %v7859
  %v7909 = vadd.f32 %v7722, %v7860
  %v7910 = vadd.f32 %v7723, %v7861
  %v7911 = vadd.f32 %v7724, %v7862
  %v7912 = vadd.f32 %v7725, %v7863
  %v7913 = vadd.f32 %v7726, %v7864
  %v7914 = vadd.f32 %v7727, %v7865
  %v7915 = vadd.f32 %v7728, %v7866
  %v7916 = vadd.f32 %v7729, %v7867
  %v7917 = vadd.f32 %v7730, %v7868
  %s7918 = scalar_lea.vmem %s3, 62
  %v7919 = vld [vmem:[%s7918] ss:$8 sm:$0xf]
  %v7920 = vld [vmem:[%s7918] ss:$8 sm:$0x70]
  %v7921 = vor.u32 %v7919, %v7920
  %v7922 = vld [vmem:[%s1712] sm:$0x7f]
  %v7923 = vld [vmem:[%s1712 + $0x8] sm:$0x7f]
  %v7924 = vld [vmem:[%s1712 + $0x10] sm:$0x7f]
  %v7925 = vld [vmem:[%s1712 + $0x18] sm:$0x7f]
  %v7926 = vld [vmem:[%s1712 + $0x20] sm:$0x7f]
  %v7927 = vld [vmem:[%s1712 + $0x28] sm:$0x7f]
  %v7928 = vld [vmem:[%s1712 + $0x30] sm:$0x7f]
  %v7929 = vld [vmem:[%s1712 + $0x38] sm:$0x7f]
  %v7930 = vld [vmem:[%s1712 + $0x40] sm:$0x7f]
  %v7931 = vld [vmem:[%s1712 + $0x48] sm:$0x7f]
  %v7932 = vld [vmem:[%s1712 + $0x50] sm:$0x7f]
  %v7933 = vld [vmem:[%s1712 + $0x58] sm:$0x7f]
  %v7934 = vld [vmem:[%s1712 + $0x60] sm:$0x7f]
  %v7935 = vld [vmem:[%s1712 + $0x68] sm:$0x7f]
  %v7936 = vld [vmem:[%s1712 + $0x70] sm:$0x7f]
  %v7937 = vld [vmem:[%s1712 + $0x78] sm:$0x7f]
  %v7938 = vld [vmem:[%s1712 + $0x80] sm:$0x7f]
  %v7939 = vld [vmem:[%s1712 + $0x88] sm:$0x7f]
  %v7940 = vld [vmem:[%s1712 + $0x90] sm:$0x7f]
  %v7941 = vld [vmem:[%s1712 + $0x98] sm:$0x7f]
  %v7942 = vld [vmem:[%s1712 + $0xa0] sm:$0x7f]
  %v7943 = vld [vmem:[%s1712 + $0xa8] sm:$0x7f]
  %v7944 = vld [vmem:[%s1712 + $0xb0] sm:$0x7f]
  %v7945 = vld [vmem:[%s1712 + $0xb8] sm:$0x7f]
  %v7946 = vld [vmem:[%s1712 + $0xc0] sm:$0x7f]
  %v7947 = vld [vmem:[%s1712 + $0xc8] sm:$0x7f]
  %v7948 = vld [vmem:[%s1712 + $0xd0] sm:$0x7f]
  %v7949 = vld [vmem:[%s1712 + $0xd8] sm:$0x7f]
  %v7950 = vld [vmem:[%s1712 + $0xe0] sm:$0x7f]
  %v7951 = vld [vmem:[%s1712 + $0xe8] sm:$0x7f]
  %v7952 = vld [vmem:[%s1712 + $0xf0] sm:$0x7f]
  %v7953 = vld [vmem:[%s1712 + $0xf8] sm:$0x7f]
  %v7954 = vld [vmem:[%s1712 + $0x100] sm:$0x7f]
  %v7955 = vld [vmem:[%s1712 + $0x108] sm:$0x7f]
  %v7956 = vld [vmem:[%s1712 + $0x110] sm:$0x7f]
  %v7957 = vld [vmem:[%s1712 + $0x118] sm:$0x7f]
  %v7958 = vld [vmem:[%s1712 + $0x120] sm:$0x7f]
  %v7959 = vld [vmem:[%s1712 + $0x128] sm:$0x7f]
  %v7960 = vld [vmem:[%s1712 + $0x130] sm:$0x7f]
  %v7961 = vld [vmem:[%s1712 + $0x138] sm:$0x7f]
  %v7962 = vld [vmem:[%s1712 + $0x140] sm:$0x7f]
  %v7963 = vld [vmem:[%s1712 + $0x148] sm:$0x7f]
  %v7964 = vld [vmem:[%s1712 + $0x150] sm:$0x7f]
  %v7965 = vld [vmem:[%s1712 + $0x158] sm:$0x7f]
  %v7966 = vld [vmem:[%s1712 + $0x160] sm:$0x7f]
  %v7967 = vld [vmem:[%s1712 + $0x168] sm:$0x7f]
  %v7968 = vld [vmem:[%s1712 + $0x170] sm:$0x7f]
  %v7969 = vld [vmem:[%s1712 + $0x178] sm:$0x7f]
  %v7970 = vld [vmem:[%s1712 + $0x180] sm:$0x7f]
  %v7972 = vlaneseq
  %v7973 = vshrl.u32 %v7972, 7
  %v7974 = vsub.s32 0, %v7973
  %v7975 = vrot.slane %v7921, %v7974
  %v7976 = vlaneseq
  %v7977 = vshrl.u32 %v7976, 7
  %v7978 = vsub.s32 1, %v7977
  %v7979 = vrot.slane %v7921, %v7978
  %v7980 = vlaneseq
  %v7981 = vshrl.u32 %v7980, 7
  %v7982 = vsub.s32 2, %v7981
  %v7983 = vrot.slane %v7921, %v7982
  %v7984 = vlaneseq
  %v7985 = vshrl.u32 %v7984, 7
  %v7986 = vsub.s32 3, %v7985
  %v7987 = vrot.slane %v7921, %v7986
  %v7988 = vlaneseq
  %v7989 = vshrl.u32 %v7988, 7
  %v7990 = vsub.s32 4, %v7989
  %v7991 = vrot.slane %v7921, %v7990
  %v7992 = vlaneseq
  %v7993 = vshrl.u32 %v7992, 7
  %v7994 = vsub.s32 5, %v7993
  %v7995 = vrot.slane %v7921, %v7994
  %v7996 = vlaneseq
  %v7997 = vshrl.u32 %v7996, 7
  %v7998 = vsub.s32 6, %v7997
  %v7999 = vrot.slane %v7921, %v7998
  %v8007 = vmul.f32 %v7922, %v7975
  %v8008 = vmul.f32 %v7923, %v7979
  %v8009 = vmul.f32 %v7924, %v7983
  %v8010 = vmul.f32 %v7925, %v7987
  %v8011 = vmul.f32 %v7926, %v7991
  %v8012 = vmul.f32 %v7927, %v7995
  %v8013 = vmul.f32 %v7928, %v7999
  %v8014 = vmul.f32 %v7929, %v7975
  %v8015 = vmul.f32 %v7930, %v7979
  %v8016 = vmul.f32 %v7931, %v7983
  %v8017 = vmul.f32 %v7932, %v7987
  %v8018 = vmul.f32 %v7933, %v7991
  %v8019 = vmul.f32 %v7934, %v7995
  %v8020 = vmul.f32 %v7935, %v7999
  %v8021 = vmul.f32 %v7936, %v7975
  %v8022 = vmul.f32 %v7937, %v7979
  %v8023 = vmul.f32 %v7938, %v7983
  %v8024 = vmul.f32 %v7939, %v7987
  %v8025 = vmul.f32 %v7940, %v7991
  %v8026 = vmul.f32 %v7941, %v7995
  %v8027 = vmul.f32 %v7942, %v7999
  %v8028 = vmul.f32 %v7943, %v7975
  %v8029 = vmul.f32 %v7944, %v7979
  %v8030 = vmul.f32 %v7945, %v7983
  %v8031 = vmul.f32 %v7946, %v7987
  %v8032 = vmul.f32 %v7947, %v7991
  %v8033 = vmul.f32 %v7948, %v7995
  %v8034 = vmul.f32 %v7949, %v7999
  %v8035 = vmul.f32 %v7950, %v7975
  %v8036 = vmul.f32 %v7951, %v7979
  %v8037 = vmul.f32 %v7952, %v7983
  %v8038 = vmul.f32 %v7953, %v7987
  %v8039 = vmul.f32 %v7954, %v7991
  %v8040 = vmul.f32 %v7955, %v7995
  %v8041 = vmul.f32 %v7956, %v7999
  %v8042 = vmul.f32 %v7957, %v7975
  %v8043 = vmul.f32 %v7958, %v7979
  %v8044 = vmul.f32 %v7959, %v7983
  %v8045 = vmul.f32 %v7960, %v7987
  %v8046 = vmul.f32 %v7961, %v7991
  %v8047 = vmul.f32 %v7962, %v7995
  %v8048 = vmul.f32 %v7963, %v7999
  %v8049 = vmul.f32 %v7964, %v7975
  %v8050 = vmul.f32 %v7965, %v7979
  %v8051 = vmul.f32 %v7966, %v7983
  %v8052 = vmul.f32 %v7967, %v7987
  %v8053 = vmul.f32 %v7968, %v7991
  %v8054 = vmul.f32 %v7969, %v7995
  %v8055 = vmul.f32 %v7970, %v7999
  %v8056 = vadd.f32 %v7869, %v8007
  %v8057 = vadd.f32 %v7870, %v8008
  %v8058 = vadd.f32 %v7871, %v8009
  %v8059 = vadd.f32 %v7872, %v8010
  %v8060 = vadd.f32 %v7873, %v8011
  %v8061 = vadd.f32 %v7874, %v8012
  %v8062 = vadd.f32 %v7875, %v8013
  %v8063 = vadd.f32 %v7876, %v8014
  %v8064 = vadd.f32 %v7877, %v8015
  %v8065 = vadd.f32 %v7878, %v8016
  %v8066 = vadd.f32 %v7879, %v8017
  %v8067 = vadd.f32 %v7880, %v8018
  %v8068 = vadd.f32 %v7881, %v8019
  %v8069 = vadd.f32 %v7882, %v8020
  %v8070 = vadd.f32 %v7883, %v8021
  %v8071 = vadd.f32 %v7884, %v8022
  %v8072 = vadd.f32 %v7885, %v8023
  %v8073 = vadd.f32 %v7886, %v8024
  %v8074 = vadd.f32 %v7887, %v8025
  %v8075 = vadd.f32 %v7888, %v8026
  %v8076 = vadd.f32 %v7889, %v8027
  %v8077 = vadd.f32 %v7890, %v8028
  %v8078 = vadd.f32 %v7891, %v8029
  %v8079 = vadd.f32 %v7892, %v8030
  %v8080 = vadd.f32 %v7893, %v8031
  %v8081 = vadd.f32 %v7894, %v8032
  %v8082 = vadd.f32 %v7895, %v8033
  %v8083 = vadd.f32 %v7896, %v8034
  %v8084 = vadd.f32 %v7897, %v8035
  %v8085 = vadd.f32 %v7898, %v8036
  %v8086 = vadd.f32 %v7899, %v8037
  %v8087 = vadd.f32 %v7900, %v8038
  %v8088 = vadd.f32 %v7901, %v8039
  %v8089 = vadd.f32 %v7902, %v8040
  %v8090 = vadd.f32 %v7903, %v8041
  %v8091 = vadd.f32 %v7904, %v8042
  %v8092 = vadd.f32 %v7905, %v8043
  %v8093 = vadd.f32 %v7906, %v8044
  %v8094 = vadd.f32 %v7907, %v8045
  %v8095 = vadd.f32 %v7908, %v8046
  %v8096 = vadd.f32 %v7909, %v8047
  %v8097 = vadd.f32 %v7910, %v8048
  %v8098 = vadd.f32 %v7911, %v8049
  %v8099 = vadd.f32 %v7912, %v8050
  %v8100 = vadd.f32 %v7913, %v8051
  %v8101 = vadd.f32 %v7914, %v8052
  %v8102 = vadd.f32 %v7915, %v8053
  %v8103 = vadd.f32 %v7916, %v8054
  %v8104 = vadd.f32 %v7917, %v8055
  %s8105 = scalar_lea.vmem %s3, 115
  %v8106 = vld [vmem:[%s8105] ss:$8 sm:$0xf]
  %v8107 = vld [vmem:[%s8105] ss:$8 sm:$0x70]
  %v8108 = vor.u32 %v8106, %v8107
  %v8109 = vld [vmem:[%s1900] sm:$0x7f]
  %v8110 = vld [vmem:[%s1900 + $0x8] sm:$0x7f]
  %v8111 = vld [vmem:[%s1900 + $0x10] sm:$0x7f]
  %v8112 = vld [vmem:[%s1900 + $0x18] sm:$0x7f]
  %v8113 = vld [vmem:[%s1900 + $0x20] sm:$0x7f]
  %v8114 = vld [vmem:[%s1900 + $0x28] sm:$0x7f]
  %v8115 = vld [vmem:[%s1900 + $0x30] sm:$0x7f]
  %v8116 = vld [vmem:[%s1900 + $0x38] sm:$0x7f]
  %v8117 = vld [vmem:[%s1900 + $0x40] sm:$0x7f]
  %v8118 = vld [vmem:[%s1900 + $0x48] sm:$0x7f]
  %v8119 = vld [vmem:[%s1900 + $0x50] sm:$0x7f]
  %v8120 = vld [vmem:[%s1900 + $0x58] sm:$0x7f]
  %v8121 = vld [vmem:[%s1900 + $0x60] sm:$0x7f]
  %v8122 = vld [vmem:[%s1900 + $0x68] sm:$0x7f]
  %v8123 = vld [vmem:[%s1900 + $0x70] sm:$0x7f]
  %v8124 = vld [vmem:[%s1900 + $0x78] sm:$0x7f]
  %v8125 = vld [vmem:[%s1900 + $0x80] sm:$0x7f]
  %v8126 = vld [vmem:[%s1900 + $0x88] sm:$0x7f]
  %v8127 = vld [vmem:[%s1900 + $0x90] sm:$0x7f]
  %v8128 = vld [vmem:[%s1900 + $0x98] sm:$0x7f]
  %v8129 = vld [vmem:[%s1900 + $0xa0] sm:$0x7f]
  %v8130 = vld [vmem:[%s1900 + $0xa8] sm:$0x7f]
  %v8131 = vld [vmem:[%s1900 + $0xb0] sm:$0x7f]
  %v8132 = vld [vmem:[%s1900 + $0xb8] sm:$0x7f]
  %v8133 = vld [vmem:[%s1900 + $0xc0] sm:$0x7f]
  %v8134 = vld [vmem:[%s1900 + $0xc8] sm:$0x7f]
  %v8135 = vld [vmem:[%s1900 + $0xd0] sm:$0x7f]
  %v8136 = vld [vmem:[%s1900 + $0xd8] sm:$0x7f]
  %v8137 = vld [vmem:[%s1900 + $0xe0] sm:$0x7f]
  %v8138 = vld [vmem:[%s1900 + $0xe8] sm:$0x7f]
  %v8139 = vld [vmem:[%s1900 + $0xf0] sm:$0x7f]
  %v8140 = vld [vmem:[%s1900 + $0xf8] sm:$0x7f]
  %v8141 = vld [vmem:[%s1900 + $0x100] sm:$0x7f]
  %v8142 = vld [vmem:[%s1900 + $0x108] sm:$0x7f]
  %v8143 = vld [vmem:[%s1900 + $0x110] sm:$0x7f]
  %v8144 = vld [vmem:[%s1900 + $0x118] sm:$0x7f]
  %v8145 = vld [vmem:[%s1900 + $0x120] sm:$0x7f]
  %v8146 = vld [vmem:[%s1900 + $0x128] sm:$0x7f]
  %v8147 = vld [vmem:[%s1900 + $0x130] sm:$0x7f]
  %v8148 = vld [vmem:[%s1900 + $0x138] sm:$0x7f]
  %v8149 = vld [vmem:[%s1900 + $0x140] sm:$0x7f]
  %v8150 = vld [vmem:[%s1900 + $0x148] sm:$0x7f]
  %v8151 = vld [vmem:[%s1900 + $0x150] sm:$0x7f]
  %v8152 = vld [vmem:[%s1900 + $0x158] sm:$0x7f]
  %v8153 = vld [vmem:[%s1900 + $0x160] sm:$0x7f]
  %v8154 = vld [vmem:[%s1900 + $0x168] sm:$0x7f]
  %v8155 = vld [vmem:[%s1900 + $0x170] sm:$0x7f]
  %v8156 = vld [vmem:[%s1900 + $0x178] sm:$0x7f]
  %v8157 = vld [vmem:[%s1900 + $0x180] sm:$0x7f]
  %v8159 = vlaneseq
  %v8160 = vshrl.u32 %v8159, 7
  %v8161 = vsub.s32 0, %v8160
  %v8162 = vrot.slane %v8108, %v8161
  %v8163 = vlaneseq
  %v8164 = vshrl.u32 %v8163, 7
  %v8165 = vsub.s32 1, %v8164
  %v8166 = vrot.slane %v8108, %v8165
  %v8167 = vlaneseq
  %v8168 = vshrl.u32 %v8167, 7
  %v8169 = vsub.s32 2, %v8168
  %v8170 = vrot.slane %v8108, %v8169
  %v8171 = vlaneseq
  %v8172 = vshrl.u32 %v8171, 7
  %v8173 = vsub.s32 3, %v8172
  %v8174 = vrot.slane %v8108, %v8173
  %v8175 = vlaneseq
  %v8176 = vshrl.u32 %v8175, 7
  %v8177 = vsub.s32 4, %v8176
  %v8178 = vrot.slane %v8108, %v8177
  %v8179 = vlaneseq
  %v8180 = vshrl.u32 %v8179, 7
  %v8181 = vsub.s32 5, %v8180
  %v8182 = vrot.slane %v8108, %v8181
  %v8183 = vlaneseq
  %v8184 = vshrl.u32 %v8183, 7
  %v8185 = vsub.s32 6, %v8184
  %v8186 = vrot.slane %v8108, %v8185
  %v8194 = vmul.f32 %v8109, %v8162
  %v8195 = vmul.f32 %v8110, %v8166
  %v8196 = vmul.f32 %v8111, %v8170
  %v8197 = vmul.f32 %v8112, %v8174
  %v8198 = vmul.f32 %v8113, %v8178
  %v8199 = vmul.f32 %v8114, %v8182
  %v8200 = vmul.f32 %v8115, %v8186
  %v8201 = vmul.f32 %v8116, %v8162
  %v8202 = vmul.f32 %v8117, %v8166
  %v8203 = vmul.f32 %v8118, %v8170
  %v8204 = vmul.f32 %v8119, %v8174
  %v8205 = vmul.f32 %v8120, %v8178
  %v8206 = vmul.f32 %v8121, %v8182
  %v8207 = vmul.f32 %v8122, %v8186
  %v8208 = vmul.f32 %v8123, %v8162
  %v8209 = vmul.f32 %v8124, %v8166
  %v8210 = vmul.f32 %v8125, %v8170
  %v8211 = vmul.f32 %v8126, %v8174
  %v8212 = vmul.f32 %v8127, %v8178
  %v8213 = vmul.f32 %v8128, %v8182
  %v8214 = vmul.f32 %v8129, %v8186
  %v8215 = vmul.f32 %v8130, %v8162
  %v8216 = vmul.f32 %v8131, %v8166
  %v8217 = vmul.f32 %v8132, %v8170
  %v8218 = vmul.f32 %v8133, %v8174
  %v8219 = vmul.f32 %v8134, %v8178
  %v8220 = vmul.f32 %v8135, %v8182
  %v8221 = vmul.f32 %v8136, %v8186
  %v8222 = vmul.f32 %v8137, %v8162
  %v8223 = vmul.f32 %v8138, %v8166
  %v8224 = vmul.f32 %v8139, %v8170
  %v8225 = vmul.f32 %v8140, %v8174
  %v8226 = vmul.f32 %v8141, %v8178
  %v8227 = vmul.f32 %v8142, %v8182
  %v8228 = vmul.f32 %v8143, %v8186
  %v8229 = vmul.f32 %v8144, %v8162
  %v8230 = vmul.f32 %v8145, %v8166
  %v8231 = vmul.f32 %v8146, %v8170
  %v8232 = vmul.f32 %v8147, %v8174
  %v8233 = vmul.f32 %v8148, %v8178
  %v8234 = vmul.f32 %v8149, %v8182
  %v8235 = vmul.f32 %v8150, %v8186
  %v8236 = vmul.f32 %v8151, %v8162
  %v8237 = vmul.f32 %v8152, %v8166
  %v8238 = vmul.f32 %v8153, %v8170
  %v8239 = vmul.f32 %v8154, %v8174
  %v8240 = vmul.f32 %v8155, %v8178
  %v8241 = vmul.f32 %v8156, %v8182
  %v8242 = vmul.f32 %v8157, %v8186
  %v8243 = vadd.f32 %v8056, %v8194
  %v8244 = vadd.f32 %v8057, %v8195
  %v8245 = vadd.f32 %v8058, %v8196
  %v8246 = vadd.f32 %v8059, %v8197
  %v8247 = vadd.f32 %v8060, %v8198
  %v8248 = vadd.f32 %v8061, %v8199
  %v8249 = vadd.f32 %v8062, %v8200
  %v8250 = vadd.f32 %v8063, %v8201
  %v8251 = vadd.f32 %v8064, %v8202
  %v8252 = vadd.f32 %v8065, %v8203
  %v8253 = vadd.f32 %v8066, %v8204
  %v8254 = vadd.f32 %v8067, %v8205
  %v8255 = vadd.f32 %v8068, %v8206
  %v8256 = vadd.f32 %v8069, %v8207
  %v8257 = vadd.f32 %v8070, %v8208
  %v8258 = vadd.f32 %v8071, %v8209
  %v8259 = vadd.f32 %v8072, %v8210
  %v8260 = vadd.f32 %v8073, %v8211
  %v8261 = vadd.f32 %v8074, %v8212
  %v8262 = vadd.f32 %v8075, %v8213
  %v8263 = vadd.f32 %v8076, %v8214
  %v8264 = vadd.f32 %v8077, %v8215
  %v8265 = vadd.f32 %v8078, %v8216
  %v8266 = vadd.f32 %v8079, %v8217
  %v8267 = vadd.f32 %v8080, %v8218
  %v8268 = vadd.f32 %v8081, %v8219
  %v8269 = vadd.f32 %v8082, %v8220
  %v8270 = vadd.f32 %v8083, %v8221
  %v8271 = vadd.f32 %v8084, %v8222
  %v8272 = vadd.f32 %v8085, %v8223
  %v8273 = vadd.f32 %v8086, %v8224
  %v8274 = vadd.f32 %v8087, %v8225
  %v8275 = vadd.f32 %v8088, %v8226
  %v8276 = vadd.f32 %v8089, %v8227
  %v8277 = vadd.f32 %v8090, %v8228
  %v8278 = vadd.f32 %v8091, %v8229
  %v8279 = vadd.f32 %v8092, %v8230
  %v8280 = vadd.f32 %v8093, %v8231
  %v8281 = vadd.f32 %v8094, %v8232
  %v8282 = vadd.f32 %v8095, %v8233
  %v8283 = vadd.f32 %v8096, %v8234
  %v8284 = vadd.f32 %v8097, %v8235
  %v8285 = vadd.f32 %v8098, %v8236
  %v8286 = vadd.f32 %v8099, %v8237
  %v8287 = vadd.f32 %v8100, %v8238
  %v8288 = vadd.f32 %v8101, %v8239
  %v8289 = vadd.f32 %v8102, %v8240
  %v8290 = vadd.f32 %v8103, %v8241
  %v8291 = vadd.f32 %v8104, %v8242
  %s8292 = scalar_lea.vmem %s3, 168
  %v8293 = vld [vmem:[%s8292] ss:$8 sm:$0xf]
  %v8294 = vld [vmem:[%s8292] ss:$8 sm:$0x70]
  %v8295 = vor.u32 %v8293, %v8294
  %v8296 = vld [vmem:[%s2088] sm:$0x7f]
  %v8297 = vld [vmem:[%s2088 + $0x8] sm:$0x7f]
  %v8298 = vld [vmem:[%s2088 + $0x10] sm:$0x7f]
  %v8299 = vld [vmem:[%s2088 + $0x18] sm:$0x7f]
  %v8300 = vld [vmem:[%s2088 + $0x20] sm:$0x7f]
  %v8301 = vld [vmem:[%s2088 + $0x28] sm:$0x7f]
  %v8302 = vld [vmem:[%s2088 + $0x30] sm:$0x7f]
  %v8303 = vld [vmem:[%s2088 + $0x38] sm:$0x7f]
  %v8304 = vld [vmem:[%s2088 + $0x40] sm:$0x7f]
  %v8305 = vld [vmem:[%s2088 + $0x48] sm:$0x7f]
  %v8306 = vld [vmem:[%s2088 + $0x50] sm:$0x7f]
  %v8307 = vld [vmem:[%s2088 + $0x58] sm:$0x7f]
  %v8308 = vld [vmem:[%s2088 + $0x60] sm:$0x7f]
  %v8309 = vld [vmem:[%s2088 + $0x68] sm:$0x7f]
  %v8310 = vld [vmem:[%s2088 + $0x70] sm:$0x7f]
  %v8311 = vld [vmem:[%s2088 + $0x78] sm:$0x7f]
  %v8312 = vld [vmem:[%s2088 + $0x80] sm:$0x7f]
  %v8313 = vld [vmem:[%s2088 + $0x88] sm:$0x7f]
  %v8314 = vld [vmem:[%s2088 + $0x90] sm:$0x7f]
  %v8315 = vld [vmem:[%s2088 + $0x98] sm:$0x7f]
  %v8316 = vld [vmem:[%s2088 + $0xa0] sm:$0x7f]
  %v8317 = vld [vmem:[%s2088 + $0xa8] sm:$0x7f]
  %v8318 = vld [vmem:[%s2088 + $0xb0] sm:$0x7f]
  %v8319 = vld [vmem:[%s2088 + $0xb8] sm:$0x7f]
  %v8320 = vld [vmem:[%s2088 + $0xc0] sm:$0x7f]
  %v8321 = vld [vmem:[%s2088 + $0xc8] sm:$0x7f]
  %v8322 = vld [vmem:[%s2088 + $0xd0] sm:$0x7f]
  %v8323 = vld [vmem:[%s2088 + $0xd8] sm:$0x7f]
  %v8324 = vld [vmem:[%s2088 + $0xe0] sm:$0x7f]
  %v8325 = vld [vmem:[%s2088 + $0xe8] sm:$0x7f]
  %v8326 = vld [vmem:[%s2088 + $0xf0] sm:$0x7f]
  %v8327 = vld [vmem:[%s2088 + $0xf8] sm:$0x7f]
  %v8328 = vld [vmem:[%s2088 + $0x100] sm:$0x7f]
  %v8329 = vld [vmem:[%s2088 + $0x108] sm:$0x7f]
  %v8330 = vld [vmem:[%s2088 + $0x110] sm:$0x7f]
  %v8331 = vld [vmem:[%s2088 + $0x118] sm:$0x7f]
  %v8332 = vld [vmem:[%s2088 + $0x120] sm:$0x7f]
  %v8333 = vld [vmem:[%s2088 + $0x128] sm:$0x7f]
  %v8334 = vld [vmem:[%s2088 + $0x130] sm:$0x7f]
  %v8335 = vld [vmem:[%s2088 + $0x138] sm:$0x7f]
  %v8336 = vld [vmem:[%s2088 + $0x140] sm:$0x7f]
  %v8337 = vld [vmem:[%s2088 + $0x148] sm:$0x7f]
  %v8338 = vld [vmem:[%s2088 + $0x150] sm:$0x7f]
  %v8339 = vld [vmem:[%s2088 + $0x158] sm:$0x7f]
  %v8340 = vld [vmem:[%s2088 + $0x160] sm:$0x7f]
  %v8341 = vld [vmem:[%s2088 + $0x168] sm:$0x7f]
  %v8342 = vld [vmem:[%s2088 + $0x170] sm:$0x7f]
  %v8343 = vld [vmem:[%s2088 + $0x178] sm:$0x7f]
  %v8344 = vld [vmem:[%s2088 + $0x180] sm:$0x7f]
  %v8346 = vlaneseq
  %v8347 = vshrl.u32 %v8346, 7
  %v8348 = vsub.s32 0, %v8347
  %v8349 = vrot.slane %v8295, %v8348
  %v8350 = vlaneseq
  %v8351 = vshrl.u32 %v8350, 7
  %v8352 = vsub.s32 1, %v8351
  %v8353 = vrot.slane %v8295, %v8352
  %v8354 = vlaneseq
  %v8355 = vshrl.u32 %v8354, 7
  %v8356 = vsub.s32 2, %v8355
  %v8357 = vrot.slane %v8295, %v8356
  %v8358 = vlaneseq
  %v8359 = vshrl.u32 %v8358, 7
  %v8360 = vsub.s32 3, %v8359
  %v8361 = vrot.slane %v8295, %v8360
  %v8362 = vlaneseq
  %v8363 = vshrl.u32 %v8362, 7
  %v8364 = vsub.s32 4, %v8363
  %v8365 = vrot.slane %v8295, %v8364
  %v8366 = vlaneseq
  %v8367 = vshrl.u32 %v8366, 7
  %v8368 = vsub.s32 5, %v8367
  %v8369 = vrot.slane %v8295, %v8368
  %v8370 = vlaneseq
  %v8371 = vshrl.u32 %v8370, 7
  %v8372 = vsub.s32 6, %v8371
  %v8373 = vrot.slane %v8295, %v8372
  %v8381 = vmul.f32 %v8296, %v8349
  %v8382 = vmul.f32 %v8297, %v8353
  %v8383 = vmul.f32 %v8298, %v8357
  %v8384 = vmul.f32 %v8299, %v8361
  %v8385 = vmul.f32 %v8300, %v8365
  %v8386 = vmul.f32 %v8301, %v8369
  %v8387 = vmul.f32 %v8302, %v8373
  %v8388 = vmul.f32 %v8303, %v8349
  %v8389 = vmul.f32 %v8304, %v8353
  %v8390 = vmul.f32 %v8305, %v8357
  %v8391 = vmul.f32 %v8306, %v8361
  %v8392 = vmul.f32 %v8307, %v8365
  %v8393 = vmul.f32 %v8308, %v8369
  %v8394 = vmul.f32 %v8309, %v8373
  %v8395 = vmul.f32 %v8310, %v8349
  %v8396 = vmul.f32 %v8311, %v8353
  %v8397 = vmul.f32 %v8312, %v8357
  %v8398 = vmul.f32 %v8313, %v8361
  %v8399 = vmul.f32 %v8314, %v8365
  %v8400 = vmul.f32 %v8315, %v8369
  %v8401 = vmul.f32 %v8316, %v8373
  %v8402 = vmul.f32 %v8317, %v8349
  %v8403 = vmul.f32 %v8318, %v8353
  %v8404 = vmul.f32 %v8319, %v8357
  %v8405 = vmul.f32 %v8320, %v8361
  %v8406 = vmul.f32 %v8321, %v8365
  %v8407 = vmul.f32 %v8322, %v8369
  %v8408 = vmul.f32 %v8323, %v8373
  %v8409 = vmul.f32 %v8324, %v8349
  %v8410 = vmul.f32 %v8325, %v8353
  %v8411 = vmul.f32 %v8326, %v8357
  %v8412 = vmul.f32 %v8327, %v8361
  %v8413 = vmul.f32 %v8328, %v8365
  %v8414 = vmul.f32 %v8329, %v8369
  %v8415 = vmul.f32 %v8330, %v8373
  %v8416 = vmul.f32 %v8331, %v8349
  %v8417 = vmul.f32 %v8332, %v8353
  %v8418 = vmul.f32 %v8333, %v8357
  %v8419 = vmul.f32 %v8334, %v8361
  %v8420 = vmul.f32 %v8335, %v8365
  %v8421 = vmul.f32 %v8336, %v8369
  %v8422 = vmul.f32 %v8337, %v8373
  %v8423 = vmul.f32 %v8338, %v8349
  %v8424 = vmul.f32 %v8339, %v8353
  %v8425 = vmul.f32 %v8340, %v8357
  %v8426 = vmul.f32 %v8341, %v8361
  %v8427 = vmul.f32 %v8342, %v8365
  %v8428 = vmul.f32 %v8343, %v8369
  %v8429 = vmul.f32 %v8344, %v8373
  %v8430 = vadd.f32 %v8243, %v8381
  %v8431 = vadd.f32 %v8244, %v8382
  %v8432 = vadd.f32 %v8245, %v8383
  %v8433 = vadd.f32 %v8246, %v8384
  %v8434 = vadd.f32 %v8247, %v8385
  %v8435 = vadd.f32 %v8248, %v8386
  %v8436 = vadd.f32 %v8249, %v8387
  %v8437 = vadd.f32 %v8250, %v8388
  %v8438 = vadd.f32 %v8251, %v8389
  %v8439 = vadd.f32 %v8252, %v8390
  %v8440 = vadd.f32 %v8253, %v8391
  %v8441 = vadd.f32 %v8254, %v8392
  %v8442 = vadd.f32 %v8255, %v8393
  %v8443 = vadd.f32 %v8256, %v8394
  %v8444 = vadd.f32 %v8257, %v8395
  %v8445 = vadd.f32 %v8258, %v8396
  %v8446 = vadd.f32 %v8259, %v8397
  %v8447 = vadd.f32 %v8260, %v8398
  %v8448 = vadd.f32 %v8261, %v8399
  %v8449 = vadd.f32 %v8262, %v8400
  %v8450 = vadd.f32 %v8263, %v8401
  %v8451 = vadd.f32 %v8264, %v8402
  %v8452 = vadd.f32 %v8265, %v8403
  %v8453 = vadd.f32 %v8266, %v8404
  %v8454 = vadd.f32 %v8267, %v8405
  %v8455 = vadd.f32 %v8268, %v8406
  %v8456 = vadd.f32 %v8269, %v8407
  %v8457 = vadd.f32 %v8270, %v8408
  %v8458 = vadd.f32 %v8271, %v8409
  %v8459 = vadd.f32 %v8272, %v8410
  %v8460 = vadd.f32 %v8273, %v8411
  %v8461 = vadd.f32 %v8274, %v8412
  %v8462 = vadd.f32 %v8275, %v8413
  %v8463 = vadd.f32 %v8276, %v8414
  %v8464 = vadd.f32 %v8277, %v8415
  %v8465 = vadd.f32 %v8278, %v8416
  %v8466 = vadd.f32 %v8279, %v8417
  %v8467 = vadd.f32 %v8280, %v8418
  %v8468 = vadd.f32 %v8281, %v8419
  %v8469 = vadd.f32 %v8282, %v8420
  %v8470 = vadd.f32 %v8283, %v8421
  %v8471 = vadd.f32 %v8284, %v8422
  %v8472 = vadd.f32 %v8285, %v8423
  %v8473 = vadd.f32 %v8286, %v8424
  %v8474 = vadd.f32 %v8287, %v8425
  %v8475 = vadd.f32 %v8288, %v8426
  %v8476 = vadd.f32 %v8289, %v8427
  %v8477 = vadd.f32 %v8290, %v8428
  %v8478 = vadd.f32 %v8291, %v8429
  %v8479 = vsel %vm72, %v8430, 0.0
  %v8480 = vsel %vm72, %v8437, 0.0
  %v8481 = vadd.f32 %v8479, %v8480
  %v8482 = vsel %vm72, %v8444, 0.0
  %v8483 = vadd.f32 %v8481, %v8482
  %v8484 = vsel %vm72, %v8451, 0.0
  %v8485 = vadd.f32 %v8483, %v8484
  %v8486 = vsel %vm72, %v8458, 0.0
  %v8487 = vadd.f32 %v8485, %v8486
  %v8488 = vsel %vm72, %v8465, 0.0
  %v8489 = vadd.f32 %v8487, %v8488
  %v8490 = vsel %vm72, %v8472, 0.0
  %v8491 = vadd.f32 %v8489, %v8490
  %v8492 = vrot.slane %v8491, 4
  %v8493 = vadd.f32 %v8491, %v8492
  %v8494 = vrot.slane %v8493, 2
  %v8495 = vadd.f32 %v8493, %v8494
  %v8496 = vrot.slane %v8495, 1
  %v8497 = vadd.f32 %v8495, %v8496
  %v8498 = vsel %vm72, %v8431, 0.0
  %v8499 = vsel %vm72, %v8438, 0.0
  %v8500 = vadd.f32 %v8498, %v8499
  %v8501 = vsel %vm72, %v8445, 0.0
  %v8502 = vadd.f32 %v8500, %v8501
  %v8503 = vsel %vm72, %v8452, 0.0
  %v8504 = vadd.f32 %v8502, %v8503
  %v8505 = vsel %vm72, %v8459, 0.0
  %v8506 = vadd.f32 %v8504, %v8505
  %v8507 = vsel %vm72, %v8466, 0.0
  %v8508 = vadd.f32 %v8506, %v8507
  %v8509 = vsel %vm72, %v8473, 0.0
  %v8510 = vadd.f32 %v8508, %v8509
  %v8511 = vrot.slane %v8510, 4
  %v8512 = vadd.f32 %v8510, %v8511
  %v8513 = vrot.slane %v8512, 2
  %v8514 = vadd.f32 %v8512, %v8513
  %v8515 = vrot.slane %v8514, 1
  %v8516 = vadd.f32 %v8514, %v8515
  %v8517 = vsel %vm72, %v8432, 0.0
  %v8518 = vsel %vm72, %v8439, 0.0
  %v8519 = vadd.f32 %v8517, %v8518
  %v8520 = vsel %vm72, %v8446, 0.0
  %v8521 = vadd.f32 %v8519, %v8520
  %v8522 = vsel %vm72, %v8453, 0.0
  %v8523 = vadd.f32 %v8521, %v8522
  %v8524 = vsel %vm72, %v8460, 0.0
  %v8525 = vadd.f32 %v8523, %v8524
  %v8526 = vsel %vm72, %v8467, 0.0
  %v8527 = vadd.f32 %v8525, %v8526
  %v8528 = vsel %vm72, %v8474, 0.0
  %v8529 = vadd.f32 %v8527, %v8528
  %v8530 = vrot.slane %v8529, 4
  %v8531 = vadd.f32 %v8529, %v8530
  %v8532 = vrot.slane %v8531, 2
  %v8533 = vadd.f32 %v8531, %v8532
  %v8534 = vrot.slane %v8533, 1
  %v8535 = vadd.f32 %v8533, %v8534
  %v8536 = vsel %vm72, %v8433, 0.0
  %v8537 = vsel %vm72, %v8440, 0.0
  %v8538 = vadd.f32 %v8536, %v8537
  %v8539 = vsel %vm72, %v8447, 0.0
  %v8540 = vadd.f32 %v8538, %v8539
  %v8541 = vsel %vm72, %v8454, 0.0
  %v8542 = vadd.f32 %v8540, %v8541
  %v8543 = vsel %vm72, %v8461, 0.0
  %v8544 = vadd.f32 %v8542, %v8543
  %v8545 = vsel %vm72, %v8468, 0.0
  %v8546 = vadd.f32 %v8544, %v8545
  %v8547 = vsel %vm72, %v8475, 0.0
  %v8548 = vadd.f32 %v8546, %v8547
  %v8549 = vrot.slane %v8548, 4
  %v8550 = vadd.f32 %v8548, %v8549
  %v8551 = vrot.slane %v8550, 2
  %v8552 = vadd.f32 %v8550, %v8551
  %v8553 = vrot.slane %v8552, 1
  %v8554 = vadd.f32 %v8552, %v8553
  %v8555 = vsel %vm72, %v8434, 0.0
  %v8556 = vsel %vm72, %v8441, 0.0
  %v8557 = vadd.f32 %v8555, %v8556
  %v8558 = vsel %vm72, %v8448, 0.0
  %v8559 = vadd.f32 %v8557, %v8558
  %v8560 = vsel %vm72, %v8455, 0.0
  %v8561 = vadd.f32 %v8559, %v8560
  %v8562 = vsel %vm72, %v8462, 0.0
  %v8563 = vadd.f32 %v8561, %v8562
  %v8564 = vsel %vm72, %v8469, 0.0
  %v8565 = vadd.f32 %v8563, %v8564
  %v8566 = vsel %vm72, %v8476, 0.0
  %v8567 = vadd.f32 %v8565, %v8566
  %v8568 = vrot.slane %v8567, 4
  %v8569 = vadd.f32 %v8567, %v8568
  %v8570 = vrot.slane %v8569, 2
  %v8571 = vadd.f32 %v8569, %v8570
  %v8572 = vrot.slane %v8571, 1
  %v8573 = vadd.f32 %v8571, %v8572
  %v8574 = vsel %vm72, %v8435, 0.0
  %v8575 = vsel %vm72, %v8442, 0.0
  %v8576 = vadd.f32 %v8574, %v8575
  %v8577 = vsel %vm72, %v8449, 0.0
  %v8578 = vadd.f32 %v8576, %v8577
  %v8579 = vsel %vm72, %v8456, 0.0
  %v8580 = vadd.f32 %v8578, %v8579
  %v8581 = vsel %vm72, %v8463, 0.0
  %v8582 = vadd.f32 %v8580, %v8581
  %v8583 = vsel %vm72, %v8470, 0.0
  %v8584 = vadd.f32 %v8582, %v8583
  %v8585 = vsel %vm72, %v8477, 0.0
  %v8586 = vadd.f32 %v8584, %v8585
  %v8587 = vrot.slane %v8586, 4
  %v8588 = vadd.f32 %v8586, %v8587
  %v8589 = vrot.slane %v8588, 2
  %v8590 = vadd.f32 %v8588, %v8589
  %v8591 = vrot.slane %v8590, 1
  %v8592 = vadd.f32 %v8590, %v8591
  %v8593 = vsel %vm187, %v8436, 0.0
  %v8594 = vsel %vm187, %v8443, 0.0
  %v8595 = vadd.f32 %v8593, %v8594
  %v8596 = vsel %vm187, %v8450, 0.0
  %v8597 = vadd.f32 %v8595, %v8596
  %v8598 = vsel %vm187, %v8457, 0.0
  %v8599 = vadd.f32 %v8597, %v8598
  %v8600 = vsel %vm187, %v8464, 0.0
  %v8601 = vadd.f32 %v8599, %v8600
  %v8602 = vsel %vm187, %v8471, 0.0
  %v8603 = vadd.f32 %v8601, %v8602
  %v8604 = vsel %vm187, %v8478, 0.0
  %v8605 = vadd.f32 %v8603, %v8604
  %v8606 = vrot.slane %v8605, 4
  %v8607 = vadd.f32 %v8605, %v8606
  %v8608 = vrot.slane %v8607, 2
  %v8609 = vadd.f32 %v8607, %v8608
  %v8610 = vrot.slane %v8609, 1
  %v8611 = vadd.f32 %v8609, %v8610
  %v8612 = vmul.f32 %v8430, %v8430
  %v8613 = vmul.f32 %v8431, %v8431
  %v8614 = vmul.f32 %v8432, %v8432
  %v8615 = vmul.f32 %v8433, %v8433
  %v8616 = vmul.f32 %v8434, %v8434
  %v8617 = vmul.f32 %v8435, %v8435
  %v8618 = vmul.f32 %v8436, %v8436
  %v8619 = vmul.f32 %v8437, %v8437
  %v8620 = vmul.f32 %v8438, %v8438
  %v8621 = vmul.f32 %v8439, %v8439
  %v8622 = vmul.f32 %v8440, %v8440
  %v8623 = vmul.f32 %v8441, %v8441
  %v8624 = vmul.f32 %v8442, %v8442
  %v8625 = vmul.f32 %v8443, %v8443
  %v8626 = vmul.f32 %v8444, %v8444
  %v8627 = vmul.f32 %v8445, %v8445
  %v8628 = vmul.f32 %v8446, %v8446
  %v8629 = vmul.f32 %v8447, %v8447
  %v8630 = vmul.f32 %v8448, %v8448
  %v8631 = vmul.f32 %v8449, %v8449
  %v8632 = vmul.f32 %v8450, %v8450
  %v8633 = vmul.f32 %v8451, %v8451
  %v8634 = vmul.f32 %v8452, %v8452
  %v8635 = vmul.f32 %v8453, %v8453
  %v8636 = vmul.f32 %v8454, %v8454
  %v8637 = vmul.f32 %v8455, %v8455
  %v8638 = vmul.f32 %v8456, %v8456
  %v8639 = vmul.f32 %v8457, %v8457
  %v8640 = vmul.f32 %v8458, %v8458
  %v8641 = vmul.f32 %v8459, %v8459
  %v8642 = vmul.f32 %v8460, %v8460
  %v8643 = vmul.f32 %v8461, %v8461
  %v8644 = vmul.f32 %v8462, %v8462
  %v8645 = vmul.f32 %v8463, %v8463
  %v8646 = vmul.f32 %v8464, %v8464
  %v8647 = vmul.f32 %v8465, %v8465
  %v8648 = vmul.f32 %v8466, %v8466
  %v8649 = vmul.f32 %v8467, %v8467
  %v8650 = vmul.f32 %v8468, %v8468
  %v8651 = vmul.f32 %v8469, %v8469
  %v8652 = vmul.f32 %v8470, %v8470
  %v8653 = vmul.f32 %v8471, %v8471
  %v8654 = vmul.f32 %v8472, %v8472
  %v8655 = vmul.f32 %v8473, %v8473
  %v8656 = vmul.f32 %v8474, %v8474
  %v8657 = vmul.f32 %v8475, %v8475
  %v8658 = vmul.f32 %v8476, %v8476
  %v8659 = vmul.f32 %v8477, %v8477
  %v8660 = vmul.f32 %v8478, %v8478
  %v8661 = vsel %vm72, %v8612, 0.0
  %v8662 = vsel %vm72, %v8619, 0.0
  %v8663 = vadd.f32 %v8661, %v8662
  %v8664 = vsel %vm72, %v8626, 0.0
  %v8665 = vadd.f32 %v8663, %v8664
  %v8666 = vsel %vm72, %v8633, 0.0
  %v8667 = vadd.f32 %v8665, %v8666
  %v8668 = vsel %vm72, %v8640, 0.0
  %v8669 = vadd.f32 %v8667, %v8668
  %v8670 = vsel %vm72, %v8647, 0.0
  %v8671 = vadd.f32 %v8669, %v8670
  %v8672 = vsel %vm72, %v8654, 0.0
  %v8673 = vadd.f32 %v8671, %v8672
  %v8674 = vrot.slane %v8673, 4
  %v8675 = vadd.f32 %v8673, %v8674
  %v8676 = vrot.slane %v8675, 2
  %v8677 = vadd.f32 %v8675, %v8676
  %v8678 = vrot.slane %v8677, 1
  %v8679 = vadd.f32 %v8677, %v8678
  %v8680 = vsel %vm72, %v8613, 0.0
  %v8681 = vsel %vm72, %v8620, 0.0
  %v8682 = vadd.f32 %v8680, %v8681
  %v8683 = vsel %vm72, %v8627, 0.0
  %v8684 = vadd.f32 %v8682, %v8683
  %v8685 = vsel %vm72, %v8634, 0.0
  %v8686 = vadd.f32 %v8684, %v8685
  %v8687 = vsel %vm72, %v8641, 0.0
  %v8688 = vadd.f32 %v8686, %v8687
  %v8689 = vsel %vm72, %v8648, 0.0
  %v8690 = vadd.f32 %v8688, %v8689
  %v8691 = vsel %vm72, %v8655, 0.0
  %v8692 = vadd.f32 %v8690, %v8691
  %v8693 = vrot.slane %v8692, 4
  %v8694 = vadd.f32 %v8692, %v8693
  %v8695 = vrot.slane %v8694, 2
  %v8696 = vadd.f32 %v8694, %v8695
  %v8697 = vrot.slane %v8696, 1
  %v8698 = vadd.f32 %v8696, %v8697
  %v8699 = vsel %vm72, %v8614, 0.0
  %v8700 = vsel %vm72, %v8621, 0.0
  %v8701 = vadd.f32 %v8699, %v8700
  %v8702 = vsel %vm72, %v8628, 0.0
  %v8703 = vadd.f32 %v8701, %v8702
  %v8704 = vsel %vm72, %v8635, 0.0
  %v8705 = vadd.f32 %v8703, %v8704
  %v8706 = vsel %vm72, %v8642, 0.0
  %v8707 = vadd.f32 %v8705, %v8706
  %v8708 = vsel %vm72, %v8649, 0.0
  %v8709 = vadd.f32 %v8707, %v8708
  %v8710 = vsel %vm72, %v8656, 0.0
  %v8711 = vadd.f32 %v8709, %v8710
  %v8712 = vrot.slane %v8711, 4
  %v8713 = vadd.f32 %v8711, %v8712
  %v8714 = vrot.slane %v8713, 2
  %v8715 = vadd.f32 %v8713, %v8714
  %v8716 = vrot.slane %v8715, 1
  %v8717 = vadd.f32 %v8715, %v8716
  %v8718 = vsel %vm72, %v8615, 0.0
  %v8719 = vsel %vm72, %v8622, 0.0
  %v8720 = vadd.f32 %v8718, %v8719
  %v8721 = vsel %vm72, %v8629, 0.0
  %v8722 = vadd.f32 %v8720, %v8721
  %v8723 = vsel %vm72, %v8636, 0.0
  %v8724 = vadd.f32 %v8722, %v8723
  %v8725 = vsel %vm72, %v8643, 0.0
  %v8726 = vadd.f32 %v8724, %v8725
  %v8727 = vsel %vm72, %v8650, 0.0
  %v8728 = vadd.f32 %v8726, %v8727
  %v8729 = vsel %vm72, %v8657, 0.0
  %v8730 = vadd.f32 %v8728, %v8729
  %v8731 = vrot.slane %v8730, 4
  %v8732 = vadd.f32 %v8730, %v8731
  %v8733 = vrot.slane %v8732, 2
  %v8734 = vadd.f32 %v8732, %v8733
  %v8735 = vrot.slane %v8734, 1
  %v8736 = vadd.f32 %v8734, %v8735
  %v8737 = vsel %vm72, %v8616, 0.0
  %v8738 = vsel %vm72, %v8623, 0.0
  %v8739 = vadd.f32 %v8737, %v8738
  %v8740 = vsel %vm72, %v8630, 0.0
  %v8741 = vadd.f32 %v8739, %v8740
  %v8742 = vsel %vm72, %v8637, 0.0
  %v8743 = vadd.f32 %v8741, %v8742
  %v8744 = vsel %vm72, %v8644, 0.0
  %v8745 = vadd.f32 %v8743, %v8744
  %v8746 = vsel %vm72, %v8651, 0.0
  %v8747 = vadd.f32 %v8745, %v8746
  %v8748 = vsel %vm72, %v8658, 0.0
  %v8749 = vadd.f32 %v8747, %v8748
  %v8750 = vrot.slane %v8749, 4
  %v8751 = vadd.f32 %v8749, %v8750
  %v8752 = vrot.slane %v8751, 2
  %v8753 = vadd.f32 %v8751, %v8752
  %v8754 = vrot.slane %v8753, 1
  %v8755 = vadd.f32 %v8753, %v8754
  %v8756 = vsel %vm72, %v8617, 0.0
  %v8757 = vsel %vm72, %v8624, 0.0
  %v8758 = vadd.f32 %v8756, %v8757
  %v8759 = vsel %vm72, %v8631, 0.0
  %v8760 = vadd.f32 %v8758, %v8759
  %v8761 = vsel %vm72, %v8638, 0.0
  %v8762 = vadd.f32 %v8760, %v8761
  %v8763 = vsel %vm72, %v8645, 0.0
  %v8764 = vadd.f32 %v8762, %v8763
  %v8765 = vsel %vm72, %v8652, 0.0
  %v8766 = vadd.f32 %v8764, %v8765
  %v8767 = vsel %vm72, %v8659, 0.0
  %v8768 = vadd.f32 %v8766, %v8767
  %v8769 = vrot.slane %v8768, 4
  %v8770 = vadd.f32 %v8768, %v8769
  %v8771 = vrot.slane %v8770, 2
  %v8772 = vadd.f32 %v8770, %v8771
  %v8773 = vrot.slane %v8772, 1
  %v8774 = vadd.f32 %v8772, %v8773
  %v8775 = vsel %vm187, %v8618, 0.0
  %v8776 = vsel %vm187, %v8625, 0.0
  %v8777 = vadd.f32 %v8775, %v8776
  %v8778 = vsel %vm187, %v8632, 0.0
  %v8779 = vadd.f32 %v8777, %v8778
  %v8780 = vsel %vm187, %v8639, 0.0
  %v8781 = vadd.f32 %v8779, %v8780
  %v8782 = vsel %vm187, %v8646, 0.0
  %v8783 = vadd.f32 %v8781, %v8782
  %v8784 = vsel %vm187, %v8653, 0.0
  %v8785 = vadd.f32 %v8783, %v8784
  %v8786 = vsel %vm187, %v8660, 0.0
  %v8787 = vadd.f32 %v8785, %v8786
  %v8788 = vrot.slane %v8787, 4
  %v8789 = vadd.f32 %v8787, %v8788
  %v8790 = vrot.slane %v8789, 2
  %v8791 = vadd.f32 %v8789, %v8790
  %v8792 = vrot.slane %v8791, 1
  %v8793 = vadd.f32 %v8791, %v8792
  %v8794 = vmul.f32 %v8497, 0.020408163
  %v8795 = vmul.f32 %v8516, 0.020408163
  %v8796 = vmul.f32 %v8535, 0.020408163
  %v8797 = vmul.f32 %v8554, 0.020408163
  %v8798 = vmul.f32 %v8573, 0.020408163
  %v8799 = vmul.f32 %v8592, 0.020408163
  %v8800 = vmul.f32 %v8611, 0.020408163
  %v8801 = vmul.f32 %v8679, 0.020408163
  %v8802 = vmul.f32 %v8698, 0.020408163
  %v8803 = vmul.f32 %v8717, 0.020408163
  %v8804 = vmul.f32 %v8736, 0.020408163
  %v8805 = vmul.f32 %v8755, 0.020408163
  %v8806 = vmul.f32 %v8774, 0.020408163
  %v8807 = vmul.f32 %v8793, 0.020408163
  %v8808 = vmul.f32 %v8794, %v8794
  %v8809 = vmul.f32 %v8795, %v8795
  %v8810 = vmul.f32 %v8796, %v8796
  %v8811 = vmul.f32 %v8797, %v8797
  %v8812 = vmul.f32 %v8798, %v8798
  %v8813 = vmul.f32 %v8799, %v8799
  %v8814 = vmul.f32 %v8800, %v8800
  %v8815 = vsub.f32 %v8801, %v8808
  %v8816 = vsub.f32 %v8802, %v8809
  %v8817 = vsub.f32 %v8803, %v8810
  %v8818 = vsub.f32 %v8804, %v8811
  %v8819 = vsub.f32 %v8805, %v8812
  %v8820 = vsub.f32 %v8806, %v8813
  %v8821 = vsub.f32 %v8807, %v8814
  %v8822 = vld [vmem:[%s4] sm:$0x7f]
  %v8823 = vadd.f32 %v8815, 1e-05
  %v8824 = vadd.f32 %v8816, 1e-05
  %v8825 = vadd.f32 %v8817, 1e-05
  %v8826 = vadd.f32 %v8818, 1e-05
  %v8827 = vadd.f32 %v8819, 1e-05
  %v8828 = vadd.f32 %v8820, 1e-05
  %v8829 = vadd.f32 %v8821, 1e-05
  %v8830 = vrsqrt.pop %v8823
  %v8831 = vrsqrt.pop %v8824
  %v8832 = vrsqrt.pop %v8825
  %v8833 = vrsqrt.pop %v8826
  %v8834 = vrsqrt.pop %v8827
  %v8835 = vrsqrt.pop %v8828
  %v8836 = vrsqrt.pop %v8829
  %v8844 = vcombine.low %v8830, %v8831
  %v8845 = vcombine.low %v8832, %v8833
  %v8846 = vcombine.low %v8834, %v8835
  %v8848 = vunpack.c.l.s4 1966171168
  %v8849 = vunpack.c.0.s8 %v8848
  %v8850 = vlaneseq
  %v8851 = vshrl.u32 %v8850, 7
  %v8852 = vsub.s32 %v8849, %v8851
  %v8853 = vrot.slane %v8844, %v8852
  %v8855 = vunpack.c.l.s4 1966171168
  %v8856 = vunpack.c.0.s8 %v8855
  %v8857 = vlaneseq
  %v8858 = vshrl.u32 %v8857, 7
  %v8859 = vsub.s32 %v8856, %v8858
  %v8860 = vrot.slane %v8845, %v8859
  %v8862 = vunpack.c.l.s4 1966171168
  %v8863 = vunpack.c.0.s8 %v8862
  %v8864 = vlaneseq
  %v8865 = vshrl.u32 %v8864, 7
  %v8866 = vsub.s32 %v8863, %v8865
  %v8867 = vrot.slane %v8846, %v8866
  %v8869 = vunpack.c.l.s4 1966171168
  %v8870 = vunpack.c.0.s8 %v8869
  %v8871 = vlaneseq
  %v8872 = vshrl.u32 %v8871, 7
  %v8873 = vsub.s32 %v8870, %v8872
  %v8874 = vrot.slane %v8836, %v8873
  %v8875 = vcombine.low %v8853, %v8860
  %v8876 = vcombine.low %v8867, %v8874
  %v8878 = vunpack.c.l.s4 1966171168
  %v8879 = vunpack.c.0.s8 %v8878
  %v8880 = vlaneseq
  %v8881 = vshrl.u32 %v8880, 7
  %v8882 = vsub.s32 %v8879, %v8881
  %v8883 = vrot.slane %v8875, %v8882
  %v8885 = vunpack.c.l.s4 1966171168
  %v8886 = vunpack.c.0.s8 %v8885
  %v8887 = vlaneseq
  %v8888 = vshrl.u32 %v8887, 7
  %v8889 = vsub.s32 %v8886, %v8888
  %v8890 = vrot.slane %v8876, %v8889
  %v8891 = vcombine.low %v8883, %v8890
  %v8893 = vmul.f32 %v8822, %v8891
  %v8894 = vld [vmem:[%s5] sm:$0x7f]
  %v8896 = vlaneseq
  %v8897 = vshrl.u32 %v8896, 7
  %v8898 = vsub.s32 0, %v8897
  %v8899 = vrot.slane %v8893, %v8898
  %v8900 = vlaneseq
  %v8901 = vshrl.u32 %v8900, 7
  %v8902 = vsub.s32 1, %v8901
  %v8903 = vrot.slane %v8893, %v8902
  %v8904 = vlaneseq
  %v8905 = vshrl.u32 %v8904, 7
  %v8906 = vsub.s32 2, %v8905
  %v8907 = vrot.slane %v8893, %v8906
  %v8908 = vlaneseq
  %v8909 = vshrl.u32 %v8908, 7
  %v8910 = vsub.s32 3, %v8909
  %v8911 = vrot.slane %v8893, %v8910
  %v8912 = vlaneseq
  %v8913 = vshrl.u32 %v8912, 7
  %v8914 = vsub.s32 4, %v8913
  %v8915 = vrot.slane %v8893, %v8914
  %v8916 = vlaneseq
  %v8917 = vshrl.u32 %v8916, 7
  %v8918 = vsub.s32 5, %v8917
  %v8919 = vrot.slane %v8893, %v8918
  %v8920 = vlaneseq
  %v8921 = vshrl.u32 %v8920, 7
  %v8922 = vsub.s32 6, %v8921
  %v8923 = vrot.slane %v8893, %v8922
  %v8931 = vmul.f32 %v8794, %v8899
  %v8932 = vmul.f32 %v8795, %v8903
  %v8933 = vmul.f32 %v8796, %v8907
  %v8934 = vmul.f32 %v8797, %v8911
  %v8935 = vmul.f32 %v8798, %v8915
  %v8936 = vmul.f32 %v8799, %v8919
  %v8937 = vmul.f32 %v8800, %v8923
  %v8945 = vcombine.low %v8931, %v8932
  %v8946 = vcombine.low %v8933, %v8934
  %v8947 = vcombine.low %v8935, %v8936
  %v8949 = vunpack.c.l.s4 1966171168
  %v8950 = vunpack.c.0.s8 %v8949
  %v8951 = vlaneseq
  %v8952 = vshrl.u32 %v8951, 7
  %v8953 = vsub.s32 %v8950, %v8952
  %v8954 = vrot.slane %v8945, %v8953
  %v8956 = vunpack.c.l.s4 1966171168
  %v8957 = vunpack.c.0.s8 %v8956
  %v8958 = vlaneseq
  %v8959 = vshrl.u32 %v8958, 7
  %v8960 = vsub.s32 %v8957, %v8959
  %v8961 = vrot.slane %v8946, %v8960
  %v8963 = vunpack.c.l.s4 1966171168
  %v8964 = vunpack.c.0.s8 %v8963
  %v8965 = vlaneseq
  %v8966 = vshrl.u32 %v8965, 7
  %v8967 = vsub.s32 %v8964, %v8966
  %v8968 = vrot.slane %v8947, %v8967
  %v8970 = vunpack.c.l.s4 1966171168
  %v8971 = vunpack.c.0.s8 %v8970
  %v8972 = vlaneseq
  %v8973 = vshrl.u32 %v8972, 7
  %v8974 = vsub.s32 %v8971, %v8973
  %v8975 = vrot.slane %v8937, %v8974
  %v8976 = vcombine.low %v8954, %v8961
  %v8977 = vcombine.low %v8968, %v8975
  %v8979 = vunpack.c.l.s4 1966171168
  %v8980 = vunpack.c.0.s8 %v8979
  %v8981 = vlaneseq
  %v8982 = vshrl.u32 %v8981, 7
  %v8983 = vsub.s32 %v8980, %v8982
  %v8984 = vrot.slane %v8976, %v8983
  %v8986 = vunpack.c.l.s4 1966171168
  %v8987 = vunpack.c.0.s8 %v8986
  %v8988 = vlaneseq
  %v8989 = vshrl.u32 %v8988, 7
  %v8990 = vsub.s32 %v8987, %v8989
  %v8991 = vrot.slane %v8977, %v8990
  %v8992 = vcombine.low %v8984, %v8991
  %v8994 = vsub.f32 %v8894, %v8992
  %v8995 = vmul.f32 %v8430, %v8899
  %v8996 = vmul.f32 %v8431, %v8903
  %v8997 = vmul.f32 %v8432, %v8907
  %v8998 = vmul.f32 %v8433, %v8911
  %v8999 = vmul.f32 %v8434, %v8915
  %v9000 = vmul.f32 %v8435, %v8919
  %v9001 = vmul.f32 %v8436, %v8923
  %v9002 = vmul.f32 %v8437, %v8899
  %v9003 = vmul.f32 %v8438, %v8903
  %v9004 = vmul.f32 %v8439, %v8907
  %v9005 = vmul.f32 %v8440, %v8911
  %v9006 = vmul.f32 %v8441, %v8915
  %v9007 = vmul.f32 %v8442, %v8919
  %v9008 = vmul.f32 %v8443, %v8923
  %v9009 = vmul.f32 %v8444, %v8899
  %v9010 = vmul.f32 %v8445, %v8903
  %v9011 = vmul.f32 %v8446, %v8907
  %v9012 = vmul.f32 %v8447, %v8911
  %v9013 = vmul.f32 %v8448, %v8915
  %v9014 = vmul.f32 %v8449, %v8919
  %v9015 = vmul.f32 %v8450, %v8923
  %v9016 = vmul.f32 %v8451, %v8899
  %v9017 = vmul.f32 %v8452, %v8903
  %v9018 = vmul.f32 %v8453, %v8907
  %v9019 = vmul.f32 %v8454, %v8911
  %v9020 = vmul.f32 %v8455, %v8915
  %v9021 = vmul.f32 %v8456, %v8919
  %v9022 = vmul.f32 %v8457, %v8923
  %v9023 = vmul.f32 %v8458, %v8899
  %v9024 = vmul.f32 %v8459, %v8903
  %v9025 = vmul.f32 %v8460, %v8907
  %v9026 = vmul.f32 %v8461, %v8911
  %v9027 = vmul.f32 %v8462, %v8915
  %v9028 = vmul.f32 %v8463, %v8919
  %v9029 = vmul.f32 %v8464, %v8923
  %v9030 = vmul.f32 %v8465, %v8899
  %v9031 = vmul.f32 %v8466, %v8903
  %v9032 = vmul.f32 %v8467, %v8907
  %v9033 = vmul.f32 %v8468, %v8911
  %v9034 = vmul.f32 %v8469, %v8915
  %v9035 = vmul.f32 %v8470, %v8919
  %v9036 = vmul.f32 %v8471, %v8923
  %v9037 = vmul.f32 %v8472, %v8899
  %v9038 = vmul.f32 %v8473, %v8903
  %v9039 = vmul.f32 %v8474, %v8907
  %v9040 = vmul.f32 %v8475, %v8911
  %v9041 = vmul.f32 %v8476, %v8915
  %v9042 = vmul.f32 %v8477, %v8919
  %v9043 = vmul.f32 %v8478, %v8923
  %v9045 = vlaneseq
  %v9046 = vshrl.u32 %v9045, 7
  %v9047 = vsub.s32 0, %v9046
  %v9048 = vrot.slane %v8994, %v9047
  %v9049 = vlaneseq
  %v9050 = vshrl.u32 %v9049, 7
  %v9051 = vsub.s32 1, %v9050
  %v9052 = vrot.slane %v8994, %v9051
  %v9053 = vlaneseq
  %v9054 = vshrl.u32 %v9053, 7
  %v9055 = vsub.s32 2, %v9054
  %v9056 = vrot.slane %v8994, %v9055
  %v9057 = vlaneseq
  %v9058 = vshrl.u32 %v9057, 7
  %v9059 = vsub.s32 3, %v9058
  %v9060 = vrot.slane %v8994, %v9059
  %v9061 = vlaneseq
  %v9062 = vshrl.u32 %v9061, 7
  %v9063 = vsub.s32 4, %v9062
  %v9064 = vrot.slane %v8994, %v9063
  %v9065 = vlaneseq
  %v9066 = vshrl.u32 %v9065, 7
  %v9067 = vsub.s32 5, %v9066
  %v9068 = vrot.slane %v8994, %v9067
  %v9069 = vlaneseq
  %v9070 = vshrl.u32 %v9069, 7
  %v9071 = vsub.s32 6, %v9070
  %v9072 = vrot.slane %v8994, %v9071
  %v9080 = vadd.f32 %v8995, %v9048
  %v9081 = vadd.f32 %v8996, %v9052
  %v9082 = vadd.f32 %v8997, %v9056
  %v9083 = vadd.f32 %v8998, %v9060
  %v9084 = vadd.f32 %v8999, %v9064
  %v9085 = vadd.f32 %v9000, %v9068
  %v9086 = vadd.f32 %v9001, %v9072
  %v9087 = vadd.f32 %v9002, %v9048
  %v9088 = vadd.f32 %v9003, %v9052
  %v9089 = vadd.f32 %v9004, %v9056
  %v9090 = vadd.f32 %v9005, %v9060
  %v9091 = vadd.f32 %v9006, %v9064
  %v9092 = vadd.f32 %v9007, %v9068
  %v9093 = vadd.f32 %v9008, %v9072
  %v9094 = vadd.f32 %v9009, %v9048
  %v9095 = vadd.f32 %v9010, %v9052
  %v9096 = vadd.f32 %v9011, %v9056
  %v9097 = vadd.f32 %v9012, %v9060
  %v9098 = vadd.f32 %v9013, %v9064
  %v9099 = vadd.f32 %v9014, %v9068
  %v9100 = vadd.f32 %v9015, %v9072
  %v9101 = vadd.f32 %v9016, %v9048
  %v9102 = vadd.f32 %v9017, %v9052
  %v9103 = vadd.f32 %v9018, %v9056
  %v9104 = vadd.f32 %v9019, %v9060
  %v9105 = vadd.f32 %v9020, %v9064
  %v9106 = vadd.f32 %v9021, %v9068
  %v9107 = vadd.f32 %v9022, %v9072
  %v9108 = vadd.f32 %v9023, %v9048
  %v9109 = vadd.f32 %v9024, %v9052
  %v9110 = vadd.f32 %v9025, %v9056
  %v9111 = vadd.f32 %v9026, %v9060
  %v9112 = vadd.f32 %v9027, %v9064
  %v9113 = vadd.f32 %v9028, %v9068
  %v9114 = vadd.f32 %v9029, %v9072
  %v9115 = vadd.f32 %v9030, %v9048
  %v9116 = vadd.f32 %v9031, %v9052
  %v9117 = vadd.f32 %v9032, %v9056
  %v9118 = vadd.f32 %v9033, %v9060
  %v9119 = vadd.f32 %v9034, %v9064
  %v9120 = vadd.f32 %v9035, %v9068
  %v9121 = vadd.f32 %v9036, %v9072
  %v9122 = vadd.f32 %v9037, %v9048
  %v9123 = vadd.f32 %v9038, %v9052
  %v9124 = vadd.f32 %v9039, %v9056
  %v9125 = vadd.f32 %v9040, %v9060
  %v9126 = vadd.f32 %v9041, %v9064
  %v9127 = vadd.f32 %v9042, %v9068
  %v9128 = vadd.f32 %v9043, %v9072
  %9129 = vst [vmem:[%s6] sm:$0x7f] %v9080
  %9130 = vst [vmem:[%s6 + $0x8] sm:$0x7f] %v9081
  %9131 = vst [vmem:[%s6 + $0x10] sm:$0x7f] %v9082
  %9132 = vst [vmem:[%s6 + $0x18] sm:$0x7f] %v9083
  %9133 = vst [vmem:[%s6 + $0x20] sm:$0x7f] %v9084
  %9134 = vst [vmem:[%s6 + $0x28] sm:$0x7f] %v9085
  %9135 = vst.msk [vmem:[%s6 + $0x30] sm:$0x7f] %vm187, %v9086
  %9136 = vst [vmem:[%s6 + $0x38] sm:$0x7f] %v9087
  %9137 = vst [vmem:[%s6 + $0x40] sm:$0x7f] %v9088
  %9138 = vst [vmem:[%s6 + $0x48] sm:$0x7f] %v9089
  %9139 = vst [vmem:[%s6 + $0x50] sm:$0x7f] %v9090
  %9140 = vst [vmem:[%s6 + $0x58] sm:$0x7f] %v9091
  %9141 = vst [vmem:[%s6 + $0x60] sm:$0x7f] %v9092
  %9142 = vst.msk [vmem:[%s6 + $0x68] sm:$0x7f] %vm187, %v9093
  %9143 = vst [vmem:[%s6 + $0x70] sm:$0x7f] %v9094
  %9144 = vst [vmem:[%s6 + $0x78] sm:$0x7f] %v9095
  %9145 = vst [vmem:[%s6 + $0x80] sm:$0x7f] %v9096
  %9146 = vst [vmem:[%s6 + $0x88] sm:$0x7f] %v9097
  %9147 = vst [vmem:[%s6 + $0x90] sm:$0x7f] %v9098
  %9148 = vst [vmem:[%s6 + $0x98] sm:$0x7f] %v9099
  %9149 = vst.msk [vmem:[%s6 + $0xa0] sm:$0x7f] %vm187, %v9100
  %9150 = vst [vmem:[%s6 + $0xa8] sm:$0x7f] %v9101
  %9151 = vst [vmem:[%s6 + $0xb0] sm:$0x7f] %v9102
  %9152 = vst [vmem:[%s6 + $0xb8] sm:$0x7f] %v9103
  %9153 = vst [vmem:[%s6 + $0xc0] sm:$0x7f] %v9104
  %9154 = vst [vmem:[%s6 + $0xc8] sm:$0x7f] %v9105
  %9155 = vst [vmem:[%s6 + $0xd0] sm:$0x7f] %v9106
  %9156 = vst.msk [vmem:[%s6 + $0xd8] sm:$0x7f] %vm187, %v9107
  %9157 = vst [vmem:[%s6 + $0xe0] sm:$0x7f] %v9108
  %9158 = vst [vmem:[%s6 + $0xe8] sm:$0x7f] %v9109
  %9159 = vst [vmem:[%s6 + $0xf0] sm:$0x7f] %v9110
  %9160 = vst [vmem:[%s6 + $0xf8] sm:$0x7f] %v9111
  %9161 = vst [vmem:[%s6 + $0x100] sm:$0x7f] %v9112
  %9162 = vst [vmem:[%s6 + $0x108] sm:$0x7f] %v9113
  %9163 = vst.msk [vmem:[%s6 + $0x110] sm:$0x7f] %vm187, %v9114
  %9164 = vst [vmem:[%s6 + $0x118] sm:$0x7f] %v9115
  %9165 = vst [vmem:[%s6 + $0x120] sm:$0x7f] %v9116
  %9166 = vst [vmem:[%s6 + $0x128] sm:$0x7f] %v9117
  %9167 = vst [vmem:[%s6 + $0x130] sm:$0x7f] %v9118
  %9168 = vst [vmem:[%s6 + $0x138] sm:$0x7f] %v9119
  %9169 = vst [vmem:[%s6 + $0x140] sm:$0x7f] %v9120
  %9170 = vst.msk [vmem:[%s6 + $0x148] sm:$0x7f] %vm187, %v9121
  %9171 = vst [vmem:[%s6 + $0x150] sm:$0x7f] %v9122
  %9172 = vst [vmem:[%s6 + $0x158] sm:$0x7f] %v9123
  %9173 = vst [vmem:[%s6 + $0x160] sm:$0x7f] %v9124
  %9174 = vst [vmem:[%s6 + $0x168] sm:$0x7f] %v9125
  %9175 = vst [vmem:[%s6 + $0x170] sm:$0x7f] %v9126
  %9176 = vst [vmem:[%s6 + $0x178] sm:$0x7f] %v9127
  %9177 = vst.msk [vmem:[%s6 + $0x180] sm:$0x7f] %vm187, %v9128
  // Predicated region
  $region26: #{_forward_impl.1} parent=0 // pred_check
    _
  $region27: #{_forward_impl.1} parent=0 // pred_check_branch
    %9179 = sbr.rel (0) target = $region29
  $region28: #{_forward_impl.1} parent=0 // pred_region
    _
  $region29: #{_forward_impl.1} parent=0 // pred_fallthru
    _
  // Predicated region
  $region30: #{_forward_impl.1} parent=0 // pred_check
    _
  $region31: #{_forward_impl.1} parent=0 // pred_check_branch
    %9181 = sbr.rel (0) target = $region33
  $region32: #{_forward_impl.1} parent=0 // pred_region
    _
  $region33: #{_forward_impl.1} parent=0 // pred_fallthru
    _

</llo_original>
